<compile_context>
chip_gen: v7x
topology: tpu7x:2x2x1
jax: 0.10.0
libtpu: 0.0.40
codegen_flags: <defaults>
</compile_context>

<pallas_src>
import functools

import jax
import jax.numpy as jnp
import numpy as np
from jax import lax
from jax.experimental import pallas as pl
from jax.experimental.pallas import tpu as pltpu

_COL0 = 8  # sublane-aligned start column of the interior inside the padded buffers


def _fused_head_kernel(x_ref, *refs, H, W, C, cin_pad, row_tile, n_layers):
    # refs = (w1, b1, ..., wn, bn, o_ref, bufA, bufB)
    w_refs = [refs[2 * i] for i in range(n_layers)]
    b_refs = [refs[2 * i + 1] for i in range(n_layers)]
    o_ref = refs[2 * n_layers]
    bufs = [refs[2 * n_layers + 1], refs[2 * n_layers + 2]]
    Wp = bufs[0].shape[1]

    # ---- Halo-only zeroing (per image: cheap, and correct under megacore
    # batch sharding). Interiors are fully overwritten every layer; only the
    # 1-pixel halo is ever read without being written.
    for buf in bufs:
        buf[0:1, :, :] = jnp.zeros((1, Wp, C), buf.dtype)              # top halo row
        buf[H + 1:H + 2, :, :] = jnp.zeros((1, Wp, C), buf.dtype)      # bottom halo row
        buf[:, 0:_COL0, :] = jnp.zeros((H + 2, _COL0, C), buf.dtype)   # left cols (halo col 7)
        buf[:, _COL0 + W:Wp, :] = jnp.zeros((H + 2, Wp - _COL0 - W, C),
                                            buf.dtype)                 # right halo cols

    # Input (channel-padded to cin_pad, bf16) -> interior of buffer 0.
    bufs[0][1:H + 1, _COL0:_COL0 + W, 0:cin_pad] = x_ref[0]

    for li in range(n_layers):
        last = li == n_layers - 1
        src = bufs[li % 2]
        dst = None if last else bufs[(li + 1) % 2]
        w_ref, b_ref = w_refs[li], b_refs[li]
        cout = w_ref.shape[-1]
        cin_l = cin_pad if li == 0 else C      # layer-0 K may be narrower than C

        def do_chunk(r0, rt):
            # Rows r0 .. r0+rt+1 of the padded buffer cover all three dy taps.
            rows = src[pl.ds(r0, rt + 2), :, 0:cin_l]            # (rt+2, Wp, cin_l) bf16
            # im2col along dx: lane-concat of the three dx shifts -> K = 3*cin_l.
            slab = jnp.concatenate(
                [rows[:, _COL0 - 1:_COL0 - 1 + W, :],
                 rows[:, _COL0:_COL0 + W, :],
                 rows[:, _COL0 + 1:_COL0 + 1 + W, :]], axis=-1)  # (rt+2, W, 3*cin_l)

            # f32 accumulator initialised from the broadcast bias (saves a
            # separate bias-add VALU pass).
            acc = jnp.broadcast_to(b_ref[...], (rt * W, cout)).astype(jnp.float32)
            for dy in range(3):
                lhs = slab[dy:dy + rt].reshape(rt * W, 3 * cin_l)  # bf16
                acc = acc + jnp.dot(lhs, w_ref[dy],
                                    preferred_element_type=jnp.float32)

            if last:
                o_ref[0, pl.ds(r0, rt), :, :] = (
                    acc.reshape(rt, W, cout).astype(o_ref.dtype))
            else:
                acc = jnp.maximum(acc, 0.0)                       # f32 ReLU
                # Sublane-aligned interior store (interior starts at col 8).
                # TODO(synk): for W % 8 != 0 (RetinaNet 100/50/25/13/7), compute
                # round_up(W, 8) columns so reshape/store stay tile-aligned.
                dst[pl.ds(r0 + 1, rt), _COL0:_COL0 + W, :] = (
                    acc.reshape(rt, W, cout).astype(dst.dtype))

        n_full, rem = divmod(H, row_tile)
        if n_full > 0:
            def body(c, carry):
                do_chunk(pl.multiple_of(c * row_tile, row_tile), row_tile)
                return carry
            lax.fori_loop(0, n_full, body, 0)
        if rem > 0:
            do_chunk(n_full * row_tile, rem)


def _round_up(x, m):
    return (x + m - 1) // m * m


def _pack_conv(w_hwio, bias, c_in_pad, c_out_pad):
    """(3,3,cin,cout) HWIO f32 -> ((3, 3*c_in_pad, c_out_pad) bf16, (1, c_out_pad) f32)."""
    kh, kw, cin, cout = w_hwio.shape
    wp = jnp.zeros((kh, kw, c_in_pad, c_out_pad), jnp.float32)
    wp = wp.at[:, :, :cin, :cout].set(w_hwio.astype(jnp.float32))
    wp = wp.reshape(kh, kw * c_in_pad, c_out_pad).astype(jnp.bfloat16)
    bp = jnp.zeros((1, c_out_pad), jnp.float32).at[0, :cout].set(
        bias.astype(jnp.float32))
    return wp, bp


def regression_model(x_nchw, params, *, out_dtype=jnp.float32, target_m=512):
    """Forward pass matching RegressionModel.forward. Input is NCHW like PyTorch.

    params: list of (w_hwio (3,3,cin,cout) f32, bias (cout,) f32) per layer.
    target_m: matmul rows per chunk (row_tile*W). ~512 suits v6e/v7x 256x256
      MXUs; use ~128-256 on v5e.
    out_dtype: final store dtype; jnp.bfloat16 halves output HBM/VMEM cost if
      downstream tolerates it (default f32 matches the PyTorch module).
    """
    B, cin0, H, W = x_nchw.shape
    n_layers = len(params)
    feat = params[0][0].shape[-1]
    C = max(cin0, feat)                        # channel width of activation buffers
    cin_pad = min(C, _round_up(cin0, 128))     # layer-0 input width (narrow-input case)
    a4 = params[-1][0].shape[-1]               # num_anchors * 4
    cout_last = _round_up(a4, 128)             # lane-dense final HBM store
    Wp = _round_up(_COL0 + W + 1, 8)           # padded buffer width, interior at col 8

    # Pack weights: layer-0 K = 3*cin_pad, others K = 3*C; intermediate Cout
    # padded to C, final padded to cout_last.
    packed = []
    for i, (w, b) in enumerate(params):
        ci = cin_pad if i == 0 else C
        co = cout_last if i == n_layers - 1 else C
        packed.append(_pack_conv(w, b, ci, co))

    # NCHW -> NHWC, bf16, channel-pad only to cin_pad. Spatial halo is in-kernel.
    x = jnp.transpose(x_nchw, (0, 2, 3, 1)).astype(jnp.bfloat16)
    if cin0 < cin_pad:
        x = jnp.pad(x, ((0, 0), (0, 0), (0, 0), (0, cin_pad - cin0)))

    row_tile = max(1, min(H, target_m // max(W, 1)))

    in_specs = [pl.BlockSpec((1, H, W, cin_pad), lambda b: (b, 0, 0, 0))]
    args = [x]
    for wp, bp in packed:
        # Constant index_map + single buffer: weights/biases are DMA'd once and
        # reused by every grid step (reclaims ~half their VMEM footprint).
        in_specs.append(pl.BlockSpec(wp.shape, lambda b: (0, 0, 0),
                                     pipeline_mode=pl.Buffered(1)))
        in_specs.append(pl.BlockSpec(bp.shape, lambda b: (0, 0),
                                     pipeline_mode=pl.Buffered(1)))
        args.extend([wp, bp])

    kernel = functools.partial(_fused_head_kernel, H=H, W=W, C=C,
                               cin_pad=cin_pad, row_tile=row_tile,
                               n_layers=n_layers)

    out_bytes = jnp.dtype(out_dtype).itemsize
    vmem_est = (2 * (H + 2) * Wp * C * 2                 # two padded activation buffers
                + 2 * H * W * cin_pad * 2                # double-buffered input block
                + 2 * H * W * cout_last * out_bytes      # double-buffered output block
                + sum(int(wp.size) * 2 + int(bp.size) * 4 for wp, bp in packed)
                + (row_tile + 2) * W * 3 * C * 2         # im2col slab working set
                + row_tile * W * max(C, cout_last) * 4   # f32 accumulator
                + (4 << 20))
    compiler_kwargs = {"dimension_semantics": ("parallel",)}
    if vmem_est > (30 << 20):
        try:
            phys = int(pltpu.get_tpu_info().vmem_capacity_bytes)
        except Exception:                    # conservative fallback = v7x physical VMEM
            phys = 64 << 20
        # TODO(synk): when vmem_est approaches phys (large maps on v7x, 64 MiB),
        # add a row-stripe grid axis with 1-row halo re-fetch per layer instead
        # of whole-image blocks, rather than only raising the limit.
        compiler_kwargs["vmem_limit_bytes"] = int(min(vmem_est, (phys * 7) // 8))

    # TODO(synk): on v7x with per-core batch < 2, split H across the two
    # TensorCores (leading core axis + ~5-row halo recompute) instead of
    # relying on batch parallelism alone.
    out = pl.pallas_call(
        kernel,
        out_shape=jax.ShapeDtypeStruct((B, H, W, cout_last), out_dtype),
        grid_spec=pltpu.PrefetchScalarGridSpec(
            num_scalar_prefetch=0,
            grid=(B,),
            in_specs=in_specs,
            out_specs=pl.BlockSpec((1, H, W, cout_last), lambda b: (b, 0, 0, 0)),
            scratch_shapes=[pltpu.VMEM((H + 2, Wp, C), jnp.bfloat16),
                            pltpu.VMEM((H + 2, Wp, C), jnp.bfloat16)]),
        compiler_params=pltpu.CompilerParams(**compiler_kwargs),
    )(*args)

    # Drop the lane padding; same element order as PyTorch permute+view.
    return out[..., :a4].reshape(B, H * W * (a4 // 4), 4)


def init_params(key, num_features_in, num_anchors=9, feature_size=256):
    """Deterministic synthetic weights in HWIO layout (3, 3, cin, cout)."""
    dims = [
        (num_features_in, feature_size),   # conv1
        (feature_size, feature_size),      # conv2
        (feature_size, feature_size),      # conv3
        (feature_size, feature_size),      # conv4
        (feature_size, num_anchors * 4),   # output
    ]
    params = []
    for cin, cout in dims:
        key, kw, kb = jax.random.split(key, 3)
        w = 0.05 * jax.random.normal(kw, (3, 3, cin, cout), jnp.float32)
        b = 0.05 * jax.random.normal(kb, (cout,), jnp.float32)
        params.append((w, b))
    return params


def _reference(x_nchw, params):
    """Pure-JAX reference with the same bf16-matmul / f32-epilogue precision."""
    x = jnp.transpose(x_nchw, (0, 2, 3, 1)).astype(jnp.float32)
    n = len(params)
    for i, (w, b) in enumerate(params):
        y = jax.lax.conv_general_dilated(
            x.astype(jnp.bfloat16), w.astype(jnp.bfloat16),
            window_strides=(1, 1), padding="SAME",
            dimension_numbers=("NHWC", "HWIO", "NHWC"),
            preferred_element_type=jnp.float32)
        y = y + b[None, None, None, :]
        if i < n - 1:
            y = jnp.maximum(y, 0.0)
        x = y
    return x.reshape(x.shape[0], -1, 4)


if __name__ == "__main__":
    B, Cin, H, W = 2, 4, 16, 16
    num_anchors, feature_size = 9, 32  # small feature_size for a quick run

    key = jax.random.PRNGKey(0)
    key, kx = jax.random.split(key)
    x = jax.random.normal(kx, (B, Cin, H, W), jnp.float32)  # NCHW like PyTorch
    params = init_params(key, Cin, num_anchors=num_anchors,
                         feature_size=feature_size)

    out = regression_model(x, params)
    out = jax.block_until_ready(out)
    assert out.shape == (B, H * W * num_anchors, 4), out.shape

    ref = jax.block_until_ready(_reference(x, params))
    np.testing.assert_allclose(np.asarray(out, np.float32),
                               np.asarray(ref, np.float32),
                               atol=2e-2, rtol=2e-2)
    print("KERNEL_OK")
</pallas_src>

<mosaic_0001>
module attributes {stable_mosaic.version = 11 : i64} {
  func.func @_fused_head_kernel(%arg0: i32, %arg1: memref<1x16x16x32xbf16, #tpu.memory_space<vmem>>, %arg2: memref<3x96x32xbf16, #tpu.memory_space<vmem>>, %arg3: memref<1x32xf32, #tpu.memory_space<vmem>>, %arg4: memref<3x96x32xbf16, #tpu.memory_space<vmem>>, %arg5: memref<1x32xf32, #tpu.memory_space<vmem>>, %arg6: memref<3x96x32xbf16, #tpu.memory_space<vmem>>, %arg7: memref<1x32xf32, #tpu.memory_space<vmem>>, %arg8: memref<3x96x32xbf16, #tpu.memory_space<vmem>>, %arg9: memref<1x32xf32, #tpu.memory_space<vmem>>, %arg10: memref<3x96x128xbf16, #tpu.memory_space<vmem>>, %arg11: memref<1x128xf32, #tpu.memory_space<vmem>>, %arg12: memref<1x16x16x128xf32, #tpu.memory_space<vmem>>, %arg13: memref<18x32x32xbf16, #tpu.memory_space<vmem>>, %arg14: memref<18x32x32xbf16, #tpu.memory_space<vmem>>) attributes {dimension_semantics = [#tpu.dimension_semantics<parallel>], iteration_bounds = array<i64: 2>, scalar_prefetch = 0 : i64, scratch_operands = 2 : i64, tpu.core_type = #tpu.core_type<tc>, window_params = [{transform_indices = @transform_0, window_bounds = array<i64: 1, 16, 16, 32>}, {pipeline_mode = #tpu.pipeline_mode<synchronous>, transform_indices = @transform_1, window_bounds = array<i64: 3, 96, 32>}, {pipeline_mode = #tpu.pipeline_mode<synchronous>, transform_indices = @transform_2, window_bounds = array<i64: 1, 32>}, {pipeline_mode = #tpu.pipeline_mode<synchronous>, transform_indices = @transform_3, window_bounds = array<i64: 3, 96, 32>}, {pipeline_mode = #tpu.pipeline_mode<synchronous>, transform_indices = @transform_4, window_bounds = array<i64: 1, 32>}, {pipeline_mode = #tpu.pipeline_mode<synchronous>, transform_indices = @transform_5, window_bounds = array<i64: 3, 96, 32>}, {pipeline_mode = #tpu.pipeline_mode<synchronous>, transform_indices = @transform_6, window_bounds = array<i64: 1, 32>}, {pipeline_mode = #tpu.pipeline_mode<synchronous>, transform_indices = @transform_7, window_bounds = array<i64: 3, 96, 32>}, {pipeline_mode = #tpu.pipeline_mode<synchronous>, transform_indices = @transform_8, window_bounds = array<i64: 1, 32>}, {pipeline_mode = #tpu.pipeline_mode<synchronous>, transform_indices = @transform_9, window_bounds = array<i64: 3, 96, 128>}, {pipeline_mode = #tpu.pipeline_mode<synchronous>, transform_indices = @transform_10, window_bounds = array<i64: 1, 128>}, {transform_indices = @transform_11, window_bounds = array<i64: 1, 16, 16, 128>}]} {
    %cst = arith.constant 0.000000e+00 : bf16
    %0 = vector.broadcast %cst : bf16 to vector<1x32x32xbf16>
    %c0 = arith.constant 0 : index
    %c0_0 = arith.constant 0 : index
    %c0_1 = arith.constant 0 : index
    %1 = vector.load %arg13[%c0, %c0_0, %c0_1] : memref<18x32x32xbf16, #tpu.memory_space<vmem>>, vector<1x32x32xbf16>
    tpu.vector_store %arg13[%c0, %c0_0, %c0_1], %0 {strides = array<i32>} : memref<18x32x32xbf16, #tpu.memory_space<vmem>>, vector<1x32x32xbf16>,
    %cst_2 = arith.constant 0.000000e+00 : bf16
    %2 = vector.broadcast %cst_2 : bf16 to vector<1x32x32xbf16>
    %c17 = arith.constant 17 : index
    %c0_3 = arith.constant 0 : index
    %c0_4 = arith.constant 0 : index
    %3 = vector.load %arg13[%c17, %c0_3, %c0_4] : memref<18x32x32xbf16, #tpu.memory_space<vmem>>, vector<1x32x32xbf16>
    tpu.vector_store %arg13[%c17, %c0_3, %c0_4], %2 {strides = array<i32>} : memref<18x32x32xbf16, #tpu.memory_space<vmem>>, vector<1x32x32xbf16>,
    %cst_5 = arith.constant 0.000000e+00 : bf16
    %4 = vector.broadcast %cst_5 : bf16 to vector<18x8x32xbf16>
    %c0_6 = arith.constant 0 : index
    %c0_7 = arith.constant 0 : index
    %c0_8 = arith.constant 0 : index
    %5 = vector.load %arg13[%c0_6, %c0_7, %c0_8] : memref<18x32x32xbf16, #tpu.memory_space<vmem>>, vector<18x8x32xbf16>
    tpu.vector_store %arg13[%c0_6, %c0_7, %c0_8], %4 {strides = array<i32>} : memref<18x32x32xbf16, #tpu.memory_space<vmem>>, vector<18x8x32xbf16>,
    %cst_9 = arith.constant 0.000000e+00 : bf16
    %6 = vector.broadcast %cst_9 : bf16 to vector<18x8x32xbf16>
    %c0_10 = arith.constant 0 : index
    %c24 = arith.constant 24 : index
    %c0_11 = arith.constant 0 : index
    %7 = vector.load %arg13[%c0_10, %c24, %c0_11] : memref<18x32x32xbf16, #tpu.memory_space<vmem>>, vector<18x8x32xbf16>
    tpu.vector_store %arg13[%c0_10, %c24, %c0_11], %6 {strides = array<i32>} : memref<18x32x32xbf16, #tpu.memory_space<vmem>>, vector<18x8x32xbf16>,
    %cst_12 = arith.constant 0.000000e+00 : bf16
    %8 = vector.broadcast %cst_12 : bf16 to vector<1x32x32xbf16>
    %c0_13 = arith.constant 0 : index
    %c0_14 = arith.constant 0 : index
    %c0_15 = arith.constant 0 : index
    %9 = vector.load %arg14[%c0_13, %c0_14, %c0_15] : memref<18x32x32xbf16, #tpu.memory_space<vmem>>, vector<1x32x32xbf16>
    tpu.vector_store %arg14[%c0_13, %c0_14, %c0_15], %8 {strides = array<i32>} : memref<18x32x32xbf16, #tpu.memory_space<vmem>>, vector<1x32x32xbf16>,
    %cst_16 = arith.constant 0.000000e+00 : bf16
    %10 = vector.broadcast %cst_16 : bf16 to vector<1x32x32xbf16>
    %c17_17 = arith.constant 17 : index
    %c0_18 = arith.constant 0 : index
    %c0_19 = arith.constant 0 : index
    %11 = vector.load %arg14[%c17_17, %c0_18, %c0_19] : memref<18x32x32xbf16, #tpu.memory_space<vmem>>, vector<1x32x32xbf16>
    tpu.vector_store %arg14[%c17_17, %c0_18, %c0_19], %10 {strides = array<i32>} : memref<18x32x32xbf16, #tpu.memory_space<vmem>>, vector<1x32x32xbf16>,
    %cst_20 = arith.constant 0.000000e+00 : bf16
    %12 = vector.broadcast %cst_20 : bf16 to vector<18x8x32xbf16>
    %c0_21 = arith.constant 0 : index
    %c0_22 = arith.constant 0 : index
    %c0_23 = arith.constant 0 : index
    %13 = vector.load %arg14[%c0_21, %c0_22, %c0_23] : memref<18x32x32xbf16, #tpu.memory_space<vmem>>, vector<18x8x32xbf16>
    tpu.vector_store %arg14[%c0_21, %c0_22, %c0_23], %12 {strides = array<i32>} : memref<18x32x32xbf16, #tpu.memory_space<vmem>>, vector<18x8x32xbf16>,
    %cst_24 = arith.constant 0.000000e+00 : bf16
    %14 = vector.broadcast %cst_24 : bf16 to vector<18x8x32xbf16>
    %c0_25 = arith.constant 0 : index
    %c24_26 = arith.constant 24 : index
    %c0_27 = arith.constant 0 : index
    %15 = vector.load %arg14[%c0_25, %c24_26, %c0_27] : memref<18x32x32xbf16, #tpu.memory_space<vmem>>, vector<18x8x32xbf16>
    tpu.vector_store %arg14[%c0_25, %c24_26, %c0_27], %14 {strides = array<i32>} : memref<18x32x32xbf16, #tpu.memory_space<vmem>>, vector<18x8x32xbf16>,
    %c0_28 = arith.constant 0 : index
    %c0_29 = arith.constant 0 : index
    %c0_30 = arith.constant 0 : index
    %c0_31 = arith.constant 0 : index
    %16 = vector.load %arg1[%c0_28, %c0_29, %c0_30, %c0_31] : memref<1x16x16x32xbf16, #tpu.memory_space<vmem>>, vector<1x16x16x32xbf16>
    %17 = vector.shape_cast %16 : vector<1x16x16x32xbf16> to vector<16x16x32xbf16>
    %c1 = arith.constant 1 : index
    %c8 = arith.constant 8 : index
    %c0_32 = arith.constant 0 : index
    %18 = vector.load %arg13[%c1, %c8, %c0_32] : memref<18x32x32xbf16, #tpu.memory_space<vmem>>, vector<16x16x32xbf16>
    tpu.vector_store %arg13[%c1, %c8, %c0_32], %17 {strides = array<i32>} : memref<18x32x32xbf16, #tpu.memory_space<vmem>>, vector<16x16x32xbf16>,
    %c0_i32 = arith.constant 0 : i32
    %c16_i32 = arith.constant 16 : i32
    %19 = arith.muli %c0_i32, %c16_i32 : i32
    %20 = tpu.assume_multiple %19, 16 : i32
    %21 = arith.index_cast %20 : i32 to index
    %c0_33 = arith.constant 0 : index
    %c0_34 = arith.constant 0 : index
    %22 = vector.load %arg13[%21, %c0_33, %c0_34] : memref<18x32x32xbf16, #tpu.memory_space<vmem>>, vector<18x32x32xbf16>
    %23 = vector.extract_strided_slice %22 {offsets = [0, 7, 0], sizes = [18, 16, 32], strides = [1, 1, 1]} : vector<18x32x32xbf16> to vector<18x16x32xbf16>
    %24 = vector.extract_strided_slice %22 {offsets = [0, 8, 0], sizes = [18, 16, 32], strides = [1, 1, 1]} : vector<18x32x32xbf16> to vector<18x16x32xbf16>
    %25 = vector.extract_strided_slice %22 {offsets = [0, 9, 0], sizes = [18, 16, 32], strides = [1, 1, 1]} : vector<18x32x32xbf16> to vector<18x16x32xbf16>
    %26 = tpu.concatenate %23, %24, %25 in 2 : vector<18x16x32xbf16>, vector<18x16x32xbf16>, vector<18x16x32xbf16> -> vector<18x16x96xbf16>
    %c0_35 = arith.constant 0 : index
    %c0_36 = arith.constant 0 : index
    %27 = vector.load %arg3[%c0_35, %c0_36] : memref<1x32xf32, #tpu.memory_space<vmem>>, vector<1x32xf32>
    %28 = vector.shape_cast %27 : vector<1x32xf32> to vector<1x32xf32>
    %29 = vector.broadcast %28 : vector<1x32xf32> to vector<256x32xf32>
    %30 = vector.extract_strided_slice %26 {offsets = [0, 0, 0], sizes = [16, 16, 96], strides = [1, 1, 1]} : vector<18x16x96xbf16> to vector<16x16x96xbf16>
    %31 = vector.shape_cast %30 : vector<16x16x96xbf16> to vector<256x96xbf16>
    %c0_37 = arith.constant 0 : index
    %c0_38 = arith.constant 0 : index
    %c0_39 = arith.constant 0 : index
    %32 = vector.load %arg2[%c0_37, %c0_38, %c0_39] : memref<3x96x32xbf16, #tpu.memory_space<vmem>>, vector<1x96x32xbf16>
    %33 = vector.shape_cast %32 : vector<1x96x32xbf16> to vector<96x32xbf16>
    %cst_40 = arith.constant dense<0.000000e+00> : vector<256x32xf32>
    %34 = tpu.matmul %31, %33, %cst_40 {dimension_numbers = #tpu.dot_dimension_numbers<[1], [0], [0], [1], [0, 0, 1, 1], [], []>} : vector<256x96xbf16>, vector<96x32xbf16>, vector<256x32xf32> -> vector<256x32xf32>
    %35 = arith.addf %29, %34 : vector<256x32xf32>
    %36 = vector.extract_strided_slice %26 {offsets = [1, 0, 0], sizes = [16, 16, 96], strides = [1, 1, 1]} : vector<18x16x96xbf16> to vector<16x16x96xbf16>
    %37 = vector.shape_cast %36 : vector<16x16x96xbf16> to vector<256x96xbf16>
    %c1_41 = arith.constant 1 : index
    %c0_42 = arith.constant 0 : index
    %c0_43 = arith.constant 0 : index
    %38 = vector.load %arg2[%c1_41, %c0_42, %c0_43] : memref<3x96x32xbf16, #tpu.memory_space<vmem>>, vector<1x96x32xbf16>
    %39 = vector.shape_cast %38 : vector<1x96x32xbf16> to vector<96x32xbf16>
    %cst_44 = arith.constant dense<0.000000e+00> : vector<256x32xf32>
    %40 = tpu.matmul %37, %39, %cst_44 {dimension_numbers = #tpu.dot_dimension_numbers<[1], [0], [0], [1], [0, 0, 1, 1], [], []>} : vector<256x96xbf16>, vector<96x32xbf16>, vector<256x32xf32> -> vector<256x32xf32>
    %41 = arith.addf %35, %40 : vector<256x32xf32>
    %42 = vector.extract_strided_slice %26 {offsets = [2, 0, 0], sizes = [16, 16, 96], strides = [1, 1, 1]} : vector<18x16x96xbf16> to vector<16x16x96xbf16>
    %43 = vector.shape_cast %42 : vector<16x16x96xbf16> to vector<256x96xbf16>
    %c2 = arith.constant 2 : index
    %c0_45 = arith.constant 0 : index
    %c0_46 = arith.constant 0 : index
    %44 = vector.load %arg2[%c2, %c0_45, %c0_46] : memref<3x96x32xbf16, #tpu.memory_space<vmem>>, vector<1x96x32xbf16>
    %45 = vector.shape_cast %44 : vector<1x96x32xbf16> to vector<96x32xbf16>
    %cst_47 = arith.constant dense<0.000000e+00> : vector<256x32xf32>
    %46 = tpu.matmul %43, %45, %cst_47 {dimension_numbers = #tpu.dot_dimension_numbers<[1], [0], [0], [1], [0, 0, 1, 1], [], []>} : vector<256x96xbf16>, vector<96x32xbf16>, vector<256x32xf32> -> vector<256x32xf32>
    %47 = arith.addf %41, %46 : vector<256x32xf32>
    %cst_48 = arith.constant 0.000000e+00 : f32
    %48 = vector.broadcast %cst_48 : f32 to vector<256x32xf32>
    %49 = arith.maximumf %47, %48 : vector<256x32xf32>
    %50 = vector.shape_cast %49 : vector<256x32xf32> to vector<16x16x32xf32>
    %51 = arith.truncf %50 : vector<16x16x32xf32> to vector<16x16x32xbf16>
    %c1_i32 = arith.constant 1 : i32
    %52 = arith.addi %20, %c1_i32 : i32
    %53 = arith.index_cast %52 : i32 to index
    %c8_49 = arith.constant 8 : index
    %c0_50 = arith.constant 0 : index
    %54 = vector.load %arg14[%53, %c8_49, %c0_50] : memref<18x32x32xbf16, #tpu.memory_space<vmem>>, vector<16x16x32xbf16>
    tpu.vector_store %arg14[%53, %c8_49, %c0_50], %51 {strides = array<i32>} : memref<18x32x32xbf16, #tpu.memory_space<vmem>>, vector<16x16x32xbf16>,
    %c1_i32_51 = arith.constant 1 : i32
    %c0_i32_52 = arith.constant 0 : i32
    %c16_i32_53 = arith.constant 16 : i32
    %55 = arith.muli %c0_i32_52, %c16_i32_53 : i32
    %56 = tpu.assume_multiple %55, 16 : i32
    %57 = arith.index_cast %56 : i32 to index
    %c0_54 = arith.constant 0 : index
    %c0_55 = arith.constant 0 : index
    %58 = vector.load %arg14[%57, %c0_54, %c0_55] : memref<18x32x32xbf16, #tpu.memory_space<vmem>>, vector<18x32x32xbf16>
    %59 = vector.extract_strided_slice %58 {offsets = [0, 7, 0], sizes = [18, 16, 32], strides = [1, 1, 1]} : vector<18x32x32xbf16> to vector<18x16x32xbf16>
    %60 = vector.extract_strided_slice %58 {offsets = [0, 8, 0], sizes = [18, 16, 32], strides = [1, 1, 1]} : vector<18x32x32xbf16> to vector<18x16x32xbf16>
    %61 = vector.extract_strided_slice %58 {offsets = [0, 9, 0], sizes = [18, 16, 32], strides = [1, 1, 1]} : vector<18x32x32xbf16> to vector<18x16x32xbf16>
    %62 = tpu.concatenate %59, %60, %61 in 2 : vector<18x16x32xbf16>, vector<18x16x32xbf16>, vector<18x16x32xbf16> -> vector<18x16x96xbf16>
    %c0_56 = arith.constant 0 : index
    %c0_57 = arith.constant 0 : index
    %63 = vector.load %arg5[%c0_56, %c0_57] : memref<1x32xf32, #tpu.memory_space<vmem>>, vector<1x32xf32>
    %64 = vector.shape_cast %63 : vector<1x32xf32> to vector<1x32xf32>
    %65 = vector.broadcast %64 : vector<1x32xf32> to vector<256x32xf32>
    %66 = vector.extract_strided_slice %62 {offsets = [0, 0, 0], sizes = [16, 16, 96], strides = [1, 1, 1]} : vector<18x16x96xbf16> to vector<16x16x96xbf16>
    %67 = vector.shape_cast %66 : vector<16x16x96xbf16> to vector<256x96xbf16>
    %c0_58 = arith.constant 0 : index
    %c0_59 = arith.constant 0 : index
    %c0_60 = arith.constant 0 : index
    %68 = vector.load %arg4[%c0_58, %c0_59, %c0_60] : memref<3x96x32xbf16, #tpu.memory_space<vmem>>, vector<1x96x32xbf16>
    %69 = vector.shape_cast %68 : vector<1x96x32xbf16> to vector<96x32xbf16>
    %cst_61 = arith.constant dense<0.000000e+00> : vector<256x32xf32>
    %70 = tpu.matmul %67, %69, %cst_61 {dimension_numbers = #tpu.dot_dimension_numbers<[1], [0], [0], [1], [0, 0, 1, 1], [], []>} : vector<256x96xbf16>, vector<96x32xbf16>, vector<256x32xf32> -> vector<256x32xf32>
    %71 = arith.addf %65, %70 : vector<256x32xf32>
    %72 = vector.extract_strided_slice %62 {offsets = [1, 0, 0], sizes = [16, 16, 96], strides = [1, 1, 1]} : vector<18x16x96xbf16> to vector<16x16x96xbf16>
    %73 = vector.shape_cast %72 : vector<16x16x96xbf16> to vector<256x96xbf16>
    %c1_62 = arith.constant 1 : index
    %c0_63 = arith.constant 0 : index
    %c0_64 = arith.constant 0 : index
    %74 = vector.load %arg4[%c1_62, %c0_63, %c0_64] : memref<3x96x32xbf16, #tpu.memory_space<vmem>>, vector<1x96x32xbf16>
    %75 = vector.shape_cast %74 : vector<1x96x32xbf16> to vector<96x32xbf16>
    %cst_65 = arith.constant dense<0.000000e+00> : vector<256x32xf32>
    %76 = tpu.matmul %73, %75, %cst_65 {dimension_numbers = #tpu.dot_dimension_numbers<[1], [0], [0], [1], [0, 0, 1, 1], [], []>} : vector<256x96xbf16>, vector<96x32xbf16>, vector<256x32xf32> -> vector<256x32xf32>
    %77 = arith.addf %71, %76 : vector<256x32xf32>
    %78 = vector.extract_strided_slice %62 {offsets = [2, 0, 0], sizes = [16, 16, 96], strides = [1, 1, 1]} : vector<18x16x96xbf16> to vector<16x16x96xbf16>
    %79 = vector.shape_cast %78 : vector<16x16x96xbf16> to vector<256x96xbf16>
    %c2_66 = arith.constant 2 : index
    %c0_67 = arith.constant 0 : index
    %c0_68 = arith.constant 0 : index
    %80 = vector.load %arg4[%c2_66, %c0_67, %c0_68] : memref<3x96x32xbf16, #tpu.memory_space<vmem>>, vector<1x96x32xbf16>
    %81 = vector.shape_cast %80 : vector<1x96x32xbf16> to vector<96x32xbf16>
    %cst_69 = arith.constant dense<0.000000e+00> : vector<256x32xf32>
    %82 = tpu.matmul %79, %81, %cst_69 {dimension_numbers = #tpu.dot_dimension_numbers<[1], [0], [0], [1], [0, 0, 1, 1], [], []>} : vector<256x96xbf16>, vector<96x32xbf16>, vector<256x32xf32> -> vector<256x32xf32>
    %83 = arith.addf %77, %82 : vector<256x32xf32>
    %cst_70 = arith.constant 0.000000e+00 : f32
    %84 = vector.broadcast %cst_70 : f32 to vector<256x32xf32>
    %85 = arith.maximumf %83, %84 : vector<256x32xf32>
    %86 = vector.shape_cast %85 : vector<256x32xf32> to vector<16x16x32xf32>
    %87 = arith.truncf %86 : vector<16x16x32xf32> to vector<16x16x32xbf16>
    %c1_i32_71 = arith.constant 1 : i32
    %88 = arith.addi %56, %c1_i32_71 : i32
    %89 = arith.index_cast %88 : i32 to index
    %c8_72 = arith.constant 8 : index
    %c0_73 = arith.constant 0 : index
    %90 = vector.load %arg13[%89, %c8_72, %c0_73] : memref<18x32x32xbf16, #tpu.memory_space<vmem>>, vector<16x16x32xbf16>
    tpu.vector_store %arg13[%89, %c8_72, %c0_73], %87 {strides = array<i32>} : memref<18x32x32xbf16, #tpu.memory_space<vmem>>, vector<16x16x32xbf16>,
    %c1_i32_74 = arith.constant 1 : i32
    %c0_i32_75 = arith.constant 0 : i32
    %c16_i32_76 = arith.constant 16 : i32
    %91 = arith.muli %c0_i32_75, %c16_i32_76 : i32
    %92 = tpu.assume_multiple %91, 16 : i32
    %93 = arith.index_cast %92 : i32 to index
    %c0_77 = arith.constant 0 : index
    %c0_78 = arith.constant 0 : index
    %94 = vector.load %arg13[%93, %c0_77, %c0_78] : memref<18x32x32xbf16, #tpu.memory_space<vmem>>, vector<18x32x32xbf16>
    %95 = vector.extract_strided_slice %94 {offsets = [0, 7, 0], sizes = [18, 16, 32], strides = [1, 1, 1]} : vector<18x32x32xbf16> to vector<18x16x32xbf16>
    %96 = vector.extract_strided_slice %94 {offsets = [0, 8, 0], sizes = [18, 16, 32], strides = [1, 1, 1]} : vector<18x32x32xbf16> to vector<18x16x32xbf16>
    %97 = vector.extract_strided_slice %94 {offsets = [0, 9, 0], sizes = [18, 16, 32], strides = [1, 1, 1]} : vector<18x32x32xbf16> to vector<18x16x32xbf16>
    %98 = tpu.concatenate %95, %96, %97 in 2 : vector<18x16x32xbf16>, vector<18x16x32xbf16>, vector<18x16x32xbf16> -> vector<18x16x96xbf16>
    %c0_79 = arith.constant 0 : index
    %c0_80 = arith.constant 0 : index
    %99 = vector.load %arg7[%c0_79, %c0_80] : memref<1x32xf32, #tpu.memory_space<vmem>>, vector<1x32xf32>
    %100 = vector.shape_cast %99 : vector<1x32xf32> to vector<1x32xf32>
    %101 = vector.broadcast %100 : vector<1x32xf32> to vector<256x32xf32>
    %102 = vector.extract_strided_slice %98 {offsets = [0, 0, 0], sizes = [16, 16, 96], strides = [1, 1, 1]} : vector<18x16x96xbf16> to vector<16x16x96xbf16>
    %103 = vector.shape_cast %102 : vector<16x16x96xbf16> to vector<256x96xbf16>
    %c0_81 = arith.constant 0 : index
    %c0_82 = arith.constant 0 : index
    %c0_83 = arith.constant 0 : index
    %104 = vector.load %arg6[%c0_81, %c0_82, %c0_83] : memref<3x96x32xbf16, #tpu.memory_space<vmem>>, vector<1x96x32xbf16>
    %105 = vector.shape_cast %104 : vector<1x96x32xbf16> to vector<96x32xbf16>
    %cst_84 = arith.constant dense<0.000000e+00> : vector<256x32xf32>
    %106 = tpu.matmul %103, %105, %cst_84 {dimension_numbers = #tpu.dot_dimension_numbers<[1], [0], [0], [1], [0, 0, 1, 1], [], []>} : vector<256x96xbf16>, vector<96x32xbf16>, vector<256x32xf32> -> vector<256x32xf32>
    %107 = arith.addf %101, %106 : vector<256x32xf32>
    %108 = vector.extract_strided_slice %98 {offsets = [1, 0, 0], sizes = [16, 16, 96], strides = [1, 1, 1]} : vector<18x16x96xbf16> to vector<16x16x96xbf16>
    %109 = vector.shape_cast %108 : vector<16x16x96xbf16> to vector<256x96xbf16>
    %c1_85 = arith.constant 1 : index
    %c0_86 = arith.constant 0 : index
    %c0_87 = arith.constant 0 : index
    %110 = vector.load %arg6[%c1_85, %c0_86, %c0_87] : memref<3x96x32xbf16, #tpu.memory_space<vmem>>, vector<1x96x32xbf16>
    %111 = vector.shape_cast %110 : vector<1x96x32xbf16> to vector<96x32xbf16>
    %cst_88 = arith.constant dense<0.000000e+00> : vector<256x32xf32>
    %112 = tpu.matmul %109, %111, %cst_88 {dimension_numbers = #tpu.dot_dimension_numbers<[1], [0], [0], [1], [0, 0, 1, 1], [], []>} : vector<256x96xbf16>, vector<96x32xbf16>, vector<256x32xf32> -> vector<256x32xf32>
    %113 = arith.addf %107, %112 : vector<256x32xf32>
    %114 = vector.extract_strided_slice %98 {offsets = [2, 0, 0], sizes = [16, 16, 96], strides = [1, 1, 1]} : vector<18x16x96xbf16> to vector<16x16x96xbf16>
    %115 = vector.shape_cast %114 : vector<16x16x96xbf16> to vector<256x96xbf16>
    %c2_89 = arith.constant 2 : index
    %c0_90 = arith.constant 0 : index
    %c0_91 = arith.constant 0 : index
    %116 = vector.load %arg6[%c2_89, %c0_90, %c0_91] : memref<3x96x32xbf16, #tpu.memory_space<vmem>>, vector<1x96x32xbf16>
    %117 = vector.shape_cast %116 : vector<1x96x32xbf16> to vector<96x32xbf16>
    %cst_92 = arith.constant dense<0.000000e+00> : vector<256x32xf32>
    %118 = tpu.matmul %115, %117, %cst_92 {dimension_numbers = #tpu.dot_dimension_numbers<[1], [0], [0], [1], [0, 0, 1, 1], [], []>} : vector<256x96xbf16>, vector<96x32xbf16>, vector<256x32xf32> -> vector<256x32xf32>
    %119 = arith.addf %113, %118 : vector<256x32xf32>
    %cst_93 = arith.constant 0.000000e+00 : f32
    %120 = vector.broadcast %cst_93 : f32 to vector<256x32xf32>
    %121 = arith.maximumf %119, %120 : vector<256x32xf32>
    %122 = vector.shape_cast %121 : vector<256x32xf32> to vector<16x16x32xf32>
    %123 = arith.truncf %122 : vector<16x16x32xf32> to vector<16x16x32xbf16>
    %c1_i32_94 = arith.constant 1 : i32
    %124 = arith.addi %92, %c1_i32_94 : i32
    %125 = arith.index_cast %124 : i32 to index
    %c8_95 = arith.constant 8 : index
    %c0_96 = arith.constant 0 : index
    %126 = vector.load %arg14[%125, %c8_95, %c0_96] : memref<18x32x32xbf16, #tpu.memory_space<vmem>>, vector<16x16x32xbf16>
    tpu.vector_store %arg14[%125, %c8_95, %c0_96], %123 {strides = array<i32>} : memref<18x32x32xbf16, #tpu.memory_space<vmem>>, vector<16x16x32xbf16>,
    %c1_i32_97 = arith.constant 1 : i32
    %c0_i32_98 = arith.constant 0 : i32
    %c16_i32_99 = arith.constant 16 : i32
    %127 = arith.muli %c0_i32_98, %c16_i32_99 : i32
    %128 = tpu.assume_multiple %127, 16 : i32
    %129 = arith.index_cast %128 : i32 to index
    %c0_100 = arith.constant 0 : index
    %c0_101 = arith.constant 0 : index
    %130 = vector.load %arg14[%129, %c0_100, %c0_101] : memref<18x32x32xbf16, #tpu.memory_space<vmem>>, vector<18x32x32xbf16>
    %131 = vector.extract_strided_slice %130 {offsets = [0, 7, 0], sizes = [18, 16, 32], strides = [1, 1, 1]} : vector<18x32x32xbf16> to vector<18x16x32xbf16>
    %132 = vector.extract_strided_slice %130 {offsets = [0, 8, 0], sizes = [18, 16, 32], strides = [1, 1, 1]} : vector<18x32x32xbf16> to vector<18x16x32xbf16>
    %133 = vector.extract_strided_slice %130 {offsets = [0, 9, 0], sizes = [18, 16, 32], strides = [1, 1, 1]} : vector<18x32x32xbf16> to vector<18x16x32xbf16>
    %134 = tpu.concatenate %131, %132, %133 in 2 : vector<18x16x32xbf16>, vector<18x16x32xbf16>, vector<18x16x32xbf16> -> vector<18x16x96xbf16>
    %c0_102 = arith.constant 0 : index
    %c0_103 = arith.constant 0 : index
    %135 = vector.load %arg9[%c0_102, %c0_103] : memref<1x32xf32, #tpu.memory_space<vmem>>, vector<1x32xf32>
    %136 = vector.shape_cast %135 : vector<1x32xf32> to vector<1x32xf32>
    %137 = vector.broadcast %136 : vector<1x32xf32> to vector<256x32xf32>
    %138 = vector.extract_strided_slice %134 {offsets = [0, 0, 0], sizes = [16, 16, 96], strides = [1, 1, 1]} : vector<18x16x96xbf16> to vector<16x16x96xbf16>
    %139 = vector.shape_cast %138 : vector<16x16x96xbf16> to vector<256x96xbf16>
    %c0_104 = arith.constant 0 : index
    %c0_105 = arith.constant 0 : index
    %c0_106 = arith.constant 0 : index
    %140 = vector.load %arg8[%c0_104, %c0_105, %c0_106] : memref<3x96x32xbf16, #tpu.memory_space<vmem>>, vector<1x96x32xbf16>
    %141 = vector.shape_cast %140 : vector<1x96x32xbf16> to vector<96x32xbf16>
    %cst_107 = arith.constant dense<0.000000e+00> : vector<256x32xf32>
    %142 = tpu.matmul %139, %141, %cst_107 {dimension_numbers = #tpu.dot_dimension_numbers<[1], [0], [0], [1], [0, 0, 1, 1], [], []>} : vector<256x96xbf16>, vector<96x32xbf16>, vector<256x32xf32> -> vector<256x32xf32>
    %143 = arith.addf %137, %142 : vector<256x32xf32>
    %144 = vector.extract_strided_slice %134 {offsets = [1, 0, 0], sizes = [16, 16, 96], strides = [1, 1, 1]} : vector<18x16x96xbf16> to vector<16x16x96xbf16>
    %145 = vector.shape_cast %144 : vector<16x16x96xbf16> to vector<256x96xbf16>
    %c1_108 = arith.constant 1 : index
    %c0_109 = arith.constant 0 : index
    %c0_110 = arith.constant 0 : index
    %146 = vector.load %arg8[%c1_108, %c0_109, %c0_110] : memref<3x96x32xbf16, #tpu.memory_space<vmem>>, vector<1x96x32xbf16>
    %147 = vector.shape_cast %146 : vector<1x96x32xbf16> to vector<96x32xbf16>
    %cst_111 = arith.constant dense<0.000000e+00> : vector<256x32xf32>
    %148 = tpu.matmul %145, %147, %cst_111 {dimension_numbers = #tpu.dot_dimension_numbers<[1], [0], [0], [1], [0, 0, 1, 1], [], []>} : vector<256x96xbf16>, vector<96x32xbf16>, vector<256x32xf32> -> vector<256x32xf32>
    %149 = arith.addf %143, %148 : vector<256x32xf32>
    %150 = vector.extract_strided_slice %134 {offsets = [2, 0, 0], sizes = [16, 16, 96], strides = [1, 1, 1]} : vector<18x16x96xbf16> to vector<16x16x96xbf16>
    %151 = vector.shape_cast %150 : vector<16x16x96xbf16> to vector<256x96xbf16>
    %c2_112 = arith.constant 2 : index
    %c0_113 = arith.constant 0 : index
    %c0_114 = arith.constant 0 : index
    %152 = vector.load %arg8[%c2_112, %c0_113, %c0_114] : memref<3x96x32xbf16, #tpu.memory_space<vmem>>, vector<1x96x32xbf16>
    %153 = vector.shape_cast %152 : vector<1x96x32xbf16> to vector<96x32xbf16>
    %cst_115 = arith.constant dense<0.000000e+00> : vector<256x32xf32>
    %154 = tpu.matmul %151, %153, %cst_115 {dimension_numbers = #tpu.dot_dimension_numbers<[1], [0], [0], [1], [0, 0, 1, 1], [], []>} : vector<256x96xbf16>, vector<96x32xbf16>, vector<256x32xf32> -> vector<256x32xf32>
    %155 = arith.addf %149, %154 : vector<256x32xf32>
    %cst_116 = arith.constant 0.000000e+00 : f32
    %156 = vector.broadcast %cst_116 : f32 to vector<256x32xf32>
    %157 = arith.maximumf %155, %156 : vector<256x32xf32>
    %158 = vector.shape_cast %157 : vector<256x32xf32> to vector<16x16x32xf32>
    %159 = arith.truncf %158 : vector<16x16x32xf32> to vector<16x16x32xbf16>
    %c1_i32_117 = arith.constant 1 : i32
    %160 = arith.addi %128, %c1_i32_117 : i32
    %161 = arith.index_cast %160 : i32 to index
    %c8_118 = arith.constant 8 : index
    %c0_119 = arith.constant 0 : index
    %162 = vector.load %arg13[%161, %c8_118, %c0_119] : memref<18x32x32xbf16, #tpu.memory_space<vmem>>, vector<16x16x32xbf16>
    tpu.vector_store %arg13[%161, %c8_118, %c0_119], %159 {strides = array<i32>} : memref<18x32x32xbf16, #tpu.memory_space<vmem>>, vector<16x16x32xbf16>,
    %c1_i32_120 = arith.constant 1 : i32
    %c0_i32_121 = arith.constant 0 : i32
    %c16_i32_122 = arith.constant 16 : i32
    %163 = arith.muli %c0_i32_121, %c16_i32_122 : i32
    %164 = tpu.assume_multiple %163, 16 : i32
    %165 = arith.index_cast %164 : i32 to index
    %c0_123 = arith.constant 0 : index
    %c0_124 = arith.constant 0 : index
    %166 = vector.load %arg13[%165, %c0_123, %c0_124] : memref<18x32x32xbf16, #tpu.memory_space<vmem>>, vector<18x32x32xbf16>
    %167 = vector.extract_strided_slice %166 {offsets = [0, 7, 0], sizes = [18, 16, 32], strides = [1, 1, 1]} : vector<18x32x32xbf16> to vector<18x16x32xbf16>
    %168 = vector.extract_strided_slice %166 {offsets = [0, 8, 0], sizes = [18, 16, 32], strides = [1, 1, 1]} : vector<18x32x32xbf16> to vector<18x16x32xbf16>
    %169 = vector.extract_strided_slice %166 {offsets = [0, 9, 0], sizes = [18, 16, 32], strides = [1, 1, 1]} : vector<18x32x32xbf16> to vector<18x16x32xbf16>
    %170 = tpu.concatenate %167, %168, %169 in 2 : vector<18x16x32xbf16>, vector<18x16x32xbf16>, vector<18x16x32xbf16> -> vector<18x16x96xbf16>
    %c0_125 = arith.constant 0 : index
    %c0_126 = arith.constant 0 : index
    %171 = vector.load %arg11[%c0_125, %c0_126] : memref<1x128xf32, #tpu.memory_space<vmem>>, vector<1x128xf32>
    %172 = vector.shape_cast %171 : vector<1x128xf32> to vector<1x128xf32>
    %173 = vector.broadcast %172 : vector<1x128xf32> to vector<256x128xf32>
    %174 = vector.extract_strided_slice %170 {offsets = [0, 0, 0], sizes = [16, 16, 96], strides = [1, 1, 1]} : vector<18x16x96xbf16> to vector<16x16x96xbf16>
    %175 = vector.shape_cast %174 : vector<16x16x96xbf16> to vector<256x96xbf16>
    %c0_127 = arith.constant 0 : index
    %c0_128 = arith.constant 0 : index
    %c0_129 = arith.constant 0 : index
    %176 = vector.load %arg10[%c0_127, %c0_128, %c0_129] : memref<3x96x128xbf16, #tpu.memory_space<vmem>>, vector<1x96x128xbf16>
    %177 = vector.shape_cast %176 : vector<1x96x128xbf16> to vector<96x128xbf16>
    %cst_130 = arith.constant dense<0.000000e+00> : vector<256x128xf32>
    %178 = tpu.matmul %175, %177, %cst_130 {dimension_numbers = #tpu.dot_dimension_numbers<[1], [0], [0], [1], [0, 0, 1, 1], [], []>} : vector<256x96xbf16>, vector<96x128xbf16>, vector<256x128xf32> -> vector<256x128xf32>
    %179 = arith.addf %173, %178 : vector<256x128xf32>
    %180 = vector.extract_strided_slice %170 {offsets = [1, 0, 0], sizes = [16, 16, 96], strides = [1, 1, 1]} : vector<18x16x96xbf16> to vector<16x16x96xbf16>
    %181 = vector.shape_cast %180 : vector<16x16x96xbf16> to vector<256x96xbf16>
    %c1_131 = arith.constant 1 : index
    %c0_132 = arith.constant 0 : index
    %c0_133 = arith.constant 0 : index
    %182 = vector.load %arg10[%c1_131, %c0_132, %c0_133] : memref<3x96x128xbf16, #tpu.memory_space<vmem>>, vector<1x96x128xbf16>
    %183 = vector.shape_cast %182 : vector<1x96x128xbf16> to vector<96x128xbf16>
    %cst_134 = arith.constant dense<0.000000e+00> : vector<256x128xf32>
    %184 = tpu.matmul %181, %183, %cst_134 {dimension_numbers = #tpu.dot_dimension_numbers<[1], [0], [0], [1], [0, 0, 1, 1], [], []>} : vector<256x96xbf16>, vector<96x128xbf16>, vector<256x128xf32> -> vector<256x128xf32>
    %185 = arith.addf %179, %184 : vector<256x128xf32>
    %186 = vector.extract_strided_slice %170 {offsets = [2, 0, 0], sizes = [16, 16, 96], strides = [1, 1, 1]} : vector<18x16x96xbf16> to vector<16x16x96xbf16>
    %187 = vector.shape_cast %186 : vector<16x16x96xbf16> to vector<256x96xbf16>
    %c2_135 = arith.constant 2 : index
    %c0_136 = arith.constant 0 : index
    %c0_137 = arith.constant 0 : index
    %188 = vector.load %arg10[%c2_135, %c0_136, %c0_137] : memref<3x96x128xbf16, #tpu.memory_space<vmem>>, vector<1x96x128xbf16>
    %189 = vector.shape_cast %188 : vector<1x96x128xbf16> to vector<96x128xbf16>
    %cst_138 = arith.constant dense<0.000000e+00> : vector<256x128xf32>
    %190 = tpu.matmul %187, %189, %cst_138 {dimension_numbers = #tpu.dot_dimension_numbers<[1], [0], [0], [1], [0, 0, 1, 1], [], []>} : vector<256x96xbf16>, vector<96x128xbf16>, vector<256x128xf32> -> vector<256x128xf32>
    %191 = arith.addf %185, %190 : vector<256x128xf32>
    %192 = vector.shape_cast %191 : vector<256x128xf32> to vector<16x16x128xf32>
    %c0_139 = arith.constant 0 : index
    %193 = arith.index_cast %164 : i32 to index
    %c0_140 = arith.constant 0 : index
    %c0_141 = arith.constant 0 : index
    %194 = vector.load %arg12[%c0_139, %193, %c0_140, %c0_141] : memref<1x16x16x128xf32, #tpu.memory_space<vmem>>, vector<1x16x16x128xf32>
    %195 = vector.shape_cast %194 : vector<1x16x16x128xf32> to vector<16x16x128xf32>
    %196 = vector.shape_cast %192 : vector<16x16x128xf32> to vector<1x16x16x128xf32>
    tpu.vector_store %arg12[%c0_139, %193, %c0_140, %c0_141], %196 {strides = array<i32>} : memref<1x16x16x128xf32, #tpu.memory_space<vmem>>, vector<1x16x16x128xf32>,
    %c1_i32_142 = arith.constant 1 : i32
    return
  }
  func.func @transform_0(%arg0: i32) -> (i32, i32, i32, i32) {
    %c0_i32 = arith.constant 0 : i32
    %c0_i32_0 = arith.constant 0 : i32
    %c0_i32_1 = arith.constant 0 : i32
    %c0_i32_2 = arith.constant 0 : i32
    return %arg0, %c0_i32, %c0_i32_0, %c0_i32_1 : i32, i32, i32, i32
  }
  func.func @transform_1(%arg0: i32) -> (i32, i32, i32) {
    %c0_i32 = arith.constant 0 : i32
    %c0_i32_0 = arith.constant 0 : i32
    %c0_i32_1 = arith.constant 0 : i32
    %c0_i32_2 = arith.constant 0 : i32
    return %c0_i32, %c0_i32_0, %c0_i32_1 : i32, i32, i32
  }
  func.func @transform_2(%arg0: i32) -> (i32, i32) {
    %c0_i32 = arith.constant 0 : i32
    %c0_i32_0 = arith.constant 0 : i32
    %c0_i32_1 = arith.constant 0 : i32
    return %c0_i32, %c0_i32_0 : i32, i32
  }
  func.func @transform_3(%arg0: i32) -> (i32, i32, i32) {
    %c0_i32 = arith.constant 0 : i32
    %c0_i32_0 = arith.constant 0 : i32
    %c0_i32_1 = arith.constant 0 : i32
    %c0_i32_2 = arith.constant 0 : i32
    return %c0_i32, %c0_i32_0, %c0_i32_1 : i32, i32, i32
  }
  func.func @transform_4(%arg0: i32) -> (i32, i32) {
    %c0_i32 = arith.constant 0 : i32
    %c0_i32_0 = arith.constant 0 : i32
    %c0_i32_1 = arith.constant 0 : i32
    return %c0_i32, %c0_i32_0 : i32, i32
  }
  func.func @transform_5(%arg0: i32) -> (i32, i32, i32) {
    %c0_i32 = arith.constant 0 : i32
    %c0_i32_0 = arith.constant 0 : i32
    %c0_i32_1 = arith.constant 0 : i32
    %c0_i32_2 = arith.constant 0 : i32
    return %c0_i32, %c0_i32_0, %c0_i32_1 : i32, i32, i32
  }
  func.func @transform_6(%arg0: i32) -> (i32, i32) {
    %c0_i32 = arith.constant 0 : i32
    %c0_i32_0 = arith.constant 0 : i32
    %c0_i32_1 = arith.constant 0 : i32
    return %c0_i32, %c0_i32_0 : i32, i32
  }
  func.func @transform_7(%arg0: i32) -> (i32, i32, i32) {
    %c0_i32 = arith.constant 0 : i32
    %c0_i32_0 = arith.constant 0 : i32
    %c0_i32_1 = arith.constant 0 : i32
    %c0_i32_2 = arith.constant 0 : i32
    return %c0_i32, %c0_i32_0, %c0_i32_1 : i32, i32, i32
  }
  func.func @transform_8(%arg0: i32) -> (i32, i32) {
    %c0_i32 = arith.constant 0 : i32
    %c0_i32_0 = arith.constant 0 : i32
    %c0_i32_1 = arith.constant 0 : i32
    return %c0_i32, %c0_i32_0 : i32, i32
  }
  func.func @transform_9(%arg0: i32) -> (i32, i32, i32) {
    %c0_i32 = arith.constant 0 : i32
    %c0_i32_0 = arith.constant 0 : i32
    %c0_i32_1 = arith.constant 0 : i32
    %c0_i32_2 = arith.constant 0 : i32
    return %c0_i32, %c0_i32_0, %c0_i32_1 : i32, i32, i32
  }
  func.func @transform_10(%arg0: i32) -> (i32, i32) {
    %c0_i32 = arith.constant 0 : i32
    %c0_i32_0 = arith.constant 0 : i32
    %c0_i32_1 = arith.constant 0 : i32
    return %c0_i32, %c0_i32_0 : i32, i32
  }
  func.func @transform_11(%arg0: i32) -> (i32, i32, i32, i32) {
    %c0_i32 = arith.constant 0 : i32
    %c0_i32_0 = arith.constant 0 : i32
    %c0_i32_1 = arith.constant 0 : i32
    %c0_i32_2 = arith.constant 0 : i32
    return %arg0, %c0_i32, %c0_i32_0, %c0_i32_1 : i32, i32, i32, i32
  }
}

</mosaic_0001>

<llo_original>
// kernel: tpu_custom_call.1
$region0: #{tpu_custom_call.1}
  #allocation0 [shape = 'u32[]', space=smem, size = 0x4, offset = 0x4, fixed_abs, tag = 'smem constant byte address 0x4 - core index']
  #allocation1 [shape = 'u32[144,128]{1,0:T(1,128)}', space=vmem, size = 0x12000, scoped, tag = 'internal scratch']
  #allocation2 [shape = 'bf16[18,32,32]{2,1,0:T(16,128)(2,1)}', space=vmem, size = 0x24000, scoped, tag = 'scratch operand']
  #allocation3 [shape = 'bf16[18,32,32]{2,1,0:T(16,128)(2,1)}', space=vmem, size = 0x24000, scoped, tag = 'scratch operand']
  %s0 = inlined_call_operand.vmem [shape: bf16[2,16,16,32], index: 0, kind: input, shape index: {}]
  %s1 = inlined_call_operand.vmem [shape: bf16[3,96,32], index: 1, kind: input, shape index: {}]
  %s2 = inlined_call_operand.vmem [shape: f32[1,32], index: 2, kind: input, shape index: {}]
  %s3 = inlined_call_operand.vmem [shape: bf16[3,96,32], index: 3, kind: input, shape index: {}]
  %s4 = inlined_call_operand.vmem [shape: f32[1,32], index: 4, kind: input, shape index: {}]
  %s5 = inlined_call_operand.vmem [shape: bf16[3,96,32], index: 5, kind: input, shape index: {}]
  %s6 = inlined_call_operand.vmem [shape: f32[1,32], index: 6, kind: input, shape index: {}]
  %s7 = inlined_call_operand.vmem [shape: bf16[3,96,32], index: 7, kind: input, shape index: {}]
  %s8 = inlined_call_operand.vmem [shape: f32[1,32], index: 8, kind: input, shape index: {}]
  %s9 = inlined_call_operand.vmem [shape: bf16[3,96,128], index: 9, kind: input, shape index: {}]
  %s10 = inlined_call_operand.vmem [shape: f32[1,128], index: 10, kind: input, shape index: {}]
  %s11 = inlined_call_operand.hbm [shape: f32[2,16,16,128], index: 11, kind: output, shape index: {}]
  %s12 = sld [smem:[#allocation0]]
  $region77: #{tpu_custom_call.1} parent=0
    _
  %s14 = ssub.s32 1, %s12
  %s15 = scalar_select 0, %s14, %s12
  $region1: #{tpu_custom_call.1} parent=0
    #allocation4 [shape = 'u8[262144]{0}', space=vmem, size = 0x40000, scoped, tag = 'output window, operand 0']
    #allocation5 [shape = 's32[2]{0}', space=sflag, size = 0x8, scoped, tag = 'scoped memory for tpu_custom_call.1']
    %16 = vsyncpa [#allocation5], 0
    %s17 = scalar_lea.sflag [#allocation5], 1
    %18 = vsyncpa %s17, 0
    loop: start=0, step=1, limit=4
    $region2: #{tpu_custom_call.1} parent=1 // loop_pre_header
      _
    $region3: #{tpu_custom_call.1} parent=1 // loop_header
      %s20 = sphi 0, %s24
      %p21 = scmp.ge.s32.totalorder %s20, 4
      %s30 = sphi 0, %s32
      %s33 = sphi 0, %s30
      %s34 = sphi 0, %s33
      %s50 = sphi 0, %s34
      %s54 = sphi 0, %s54
      %s56 = sphi 0, %s54
      %s57 = sphi 0, %s56
      %s71 = sphi 0, %s57
      %s75 = sphi 0, %s75
      %s77 = sphi 0, %s75
      %s78 = sphi 0, %s77
      %s92 = sphi 0, %s78
      %s96 = sphi 0, %s96
      %s98 = sphi 0, %s96
      %s99 = sphi 0, %s98
      %s113 = sphi 0, %s99
      %s117 = sphi 0, %s117
      %s119 = sphi 0, %s117
      %s120 = sphi 0, %s119
      %s134 = sphi 0, %s120
      %s138 = sphi 0, %s138
      %s140 = sphi 0, %s138
      %s141 = sphi 0, %s140
      %s155 = sphi 0, %s141
      %s159 = sphi 0, %s159
      %s161 = sphi 0, %s159
      %s162 = sphi 0, %s161
      %s176 = sphi 0, %s162
      %s180 = sphi 0, %s180
      %s182 = sphi 0, %s180
      %s183 = sphi 0, %s182
      %s197 = sphi 0, %s183
      %s201 = sphi 0, %s201
      %s203 = sphi 0, %s201
      %s204 = sphi 0, %s203
      %s218 = sphi 0, %s204
      %s222 = sphi 0, %s222
      %s224 = sphi 0, %s222
      %s225 = sphi 0, %s224
      %s239 = sphi 0, %s225
      %s243 = sphi 0, %s243
      %s245 = sphi 0, %s243
      %s246 = sphi 0, %s245
      %s260 = sphi 0, %s246
      %s266 = sphi 0, %s268
      %s269 = sphi 0, %s266
      %s270 = sphi 0, %s269
      %s286 = sphi 0, %s270
    $region4: #{tpu_custom_call.1} parent=1 // loop_header_branch
      %23 = sbr.rel (%p21) target = $region8
    $region5: #{tpu_custom_call.1} parent=1 // loop_body
      %s25 = ssub.s32 %s20, 1
      %s26 = ssub.s32 %s20, 2
      %s27 = sadd.s32 %s20, 1
      %s28 = ssub.s32 %s20, %s27
      %p29 = scmp.eq.s32.totalorder %s28, 0
      %s31 = sadd.s32 %s30, 1
      %s32 = scalar_select %p29, %s30, %s31
      %p35 = pneg %p29
      %p36 = scmp.eq.s32.totalorder %s20, 1
      %p37 = por %p35, %p36
      %p38 = scmp.ne.s32.totalorder %s30, %s33
      %p39 = scmp.eq.s32.totalorder %s20, 0
      %p40 = por %p38, %p39
      %p41 = scmp.ne.s32.totalorder %s30, %s33
      %p42 = scmp.eq.s32.totalorder %s25, 1
      %p43 = por %p41, %p42
      %p44 = scmp.ne.s32.totalorder %s33, %s34
      %p45 = scmp.eq.s32.totalorder %s25, 0
      %p46 = por %p44, %p45
      %p47 = scmp.ne.s32.totalorder %s33, %s34
      %p48 = scmp.eq.s32.totalorder %s26, 1
      %p49 = por %p47, %p48
      %p51 = scmp.ne.s32.totalorder %s34, %s50
      %p52 = scmp.eq.s32.totalorder %s26, 0
      %p53 = por %p51, %p52
      %s55 = sadd.s32 %s54, 1
      %p58 = scmp.eq.s32.totalorder %s20, 1
      %p59 = scmp.ne.s32.totalorder %s54, %s56
      %p60 = scmp.eq.s32.totalorder %s20, 0
      %p61 = por %p59, %p60
      %p62 = scmp.ne.s32.totalorder %s54, %s56
      %p63 = scmp.eq.s32.totalorder %s25, 1
      %p64 = por %p62, %p63
      %p65 = scmp.ne.s32.totalorder %s56, %s57
      %p66 = scmp.eq.s32.totalorder %s25, 0
      %p67 = por %p65, %p66
      %p68 = scmp.ne.s32.totalorder %s56, %s57
      %p69 = scmp.eq.s32.totalorder %s26, 1
      %p70 = por %p68, %p69
      %p72 = scmp.ne.s32.totalorder %s57, %s71
      %p73 = scmp.eq.s32.totalorder %s26, 0
      %p74 = por %p72, %p73
      %s76 = sadd.s32 %s75, 1
      %p79 = scmp.eq.s32.totalorder %s20, 1
      %p80 = scmp.ne.s32.totalorder %s75, %s77
      %p81 = scmp.eq.s32.totalorder %s20, 0
      %p82 = por %p80, %p81
      %p83 = scmp.ne.s32.totalorder %s75, %s77
      %p84 = scmp.eq.s32.totalorder %s25, 1
      %p85 = por %p83, %p84
      %p86 = scmp.ne.s32.totalorder %s77, %s78
      %p87 = scmp.eq.s32.totalorder %s25, 0
      %p88 = por %p86, %p87
      %p89 = scmp.ne.s32.totalorder %s77, %s78
      %p90 = scmp.eq.s32.totalorder %s26, 1
      %p91 = por %p89, %p90
      %p93 = scmp.ne.s32.totalorder %s78, %s92
      %p94 = scmp.eq.s32.totalorder %s26, 0
      %p95 = por %p93, %p94
      %s97 = sadd.s32 %s96, 1
      %p100 = scmp.eq.s32.totalorder %s20, 1
      %p101 = scmp.ne.s32.totalorder %s96, %s98
      %p102 = scmp.eq.s32.totalorder %s20, 0
      %p103 = por %p101, %p102
      %p104 = scmp.ne.s32.totalorder %s96, %s98
      %p105 = scmp.eq.s32.totalorder %s25, 1
      %p106 = por %p104, %p105
      %p107 = scmp.ne.s32.totalorder %s98, %s99
      %p108 = scmp.eq.s32.totalorder %s25, 0
      %p109 = por %p107, %p108
      %p110 = scmp.ne.s32.totalorder %s98, %s99
      %p111 = scmp.eq.s32.totalorder %s26, 1
      %p112 = por %p110, %p111
      %p114 = scmp.ne.s32.totalorder %s99, %s113
      %p115 = scmp.eq.s32.totalorder %s26, 0
      %p116 = por %p114, %p115
      %s118 = sadd.s32 %s117, 1
      %p121 = scmp.eq.s32.totalorder %s20, 1
      %p122 = scmp.ne.s32.totalorder %s117, %s119
      %p123 = scmp.eq.s32.totalorder %s20, 0
      %p124 = por %p122, %p123
      %p125 = scmp.ne.s32.totalorder %s117, %s119
      %p126 = scmp.eq.s32.totalorder %s25, 1
      %p127 = por %p125, %p126
      %p128 = scmp.ne.s32.totalorder %s119, %s120
      %p129 = scmp.eq.s32.totalorder %s25, 0
      %p130 = por %p128, %p129
      %p131 = scmp.ne.s32.totalorder %s119, %s120
      %p132 = scmp.eq.s32.totalorder %s26, 1
      %p133 = por %p131, %p132
      %p135 = scmp.ne.s32.totalorder %s120, %s134
      %p136 = scmp.eq.s32.totalorder %s26, 0
      %p137 = por %p135, %p136
      %s139 = sadd.s32 %s138, 1
      %p142 = scmp.eq.s32.totalorder %s20, 1
      %p143 = scmp.ne.s32.totalorder %s138, %s140
      %p144 = scmp.eq.s32.totalorder %s20, 0
      %p145 = por %p143, %p144
      %p146 = scmp.ne.s32.totalorder %s138, %s140
      %p147 = scmp.eq.s32.totalorder %s25, 1
      %p148 = por %p146, %p147
      %p149 = scmp.ne.s32.totalorder %s140, %s141
      %p150 = scmp.eq.s32.totalorder %s25, 0
      %p151 = por %p149, %p150
      %p152 = scmp.ne.s32.totalorder %s140, %s141
      %p153 = scmp.eq.s32.totalorder %s26, 1
      %p154 = por %p152, %p153
      %p156 = scmp.ne.s32.totalorder %s141, %s155
      %p157 = scmp.eq.s32.totalorder %s26, 0
      %p158 = por %p156, %p157
      %s160 = sadd.s32 %s159, 1
      %p163 = scmp.eq.s32.totalorder %s20, 1
      %p164 = scmp.ne.s32.totalorder %s159, %s161
      %p165 = scmp.eq.s32.totalorder %s20, 0
      %p166 = por %p164, %p165
      %p167 = scmp.ne.s32.totalorder %s159, %s161
      %p168 = scmp.eq.s32.totalorder %s25, 1
      %p169 = por %p167, %p168
      %p170 = scmp.ne.s32.totalorder %s161, %s162
      %p171 = scmp.eq.s32.totalorder %s25, 0
      %p172 = por %p170, %p171
      %p173 = scmp.ne.s32.totalorder %s161, %s162
      %p174 = scmp.eq.s32.totalorder %s26, 1
      %p175 = por %p173, %p174
      %p177 = scmp.ne.s32.totalorder %s162, %s176
      %p178 = scmp.eq.s32.totalorder %s26, 0
      %p179 = por %p177, %p178
      %s181 = sadd.s32 %s180, 1
      %p184 = scmp.eq.s32.totalorder %s20, 1
      %p185 = scmp.ne.s32.totalorder %s180, %s182
      %p186 = scmp.eq.s32.totalorder %s20, 0
      %p187 = por %p185, %p186
      %p188 = scmp.ne.s32.totalorder %s180, %s182
      %p189 = scmp.eq.s32.totalorder %s25, 1
      %p190 = por %p188, %p189
      %p191 = scmp.ne.s32.totalorder %s182, %s183
      %p192 = scmp.eq.s32.totalorder %s25, 0
      %p193 = por %p191, %p192
      %p194 = scmp.ne.s32.totalorder %s182, %s183
      %p195 = scmp.eq.s32.totalorder %s26, 1
      %p196 = por %p194, %p195
      %p198 = scmp.ne.s32.totalorder %s183, %s197
      %p199 = scmp.eq.s32.totalorder %s26, 0
      %p200 = por %p198, %p199
      %s202 = sadd.s32 %s201, 1
      %p205 = scmp.eq.s32.totalorder %s20, 1
      %p206 = scmp.ne.s32.totalorder %s201, %s203
      %p207 = scmp.eq.s32.totalorder %s20, 0
      %p208 = por %p206, %p207
      %p209 = scmp.ne.s32.totalorder %s201, %s203
      %p210 = scmp.eq.s32.totalorder %s25, 1
      %p211 = por %p209, %p210
      %p212 = scmp.ne.s32.totalorder %s203, %s204
      %p213 = scmp.eq.s32.totalorder %s25, 0
      %p214 = por %p212, %p213
      %p215 = scmp.ne.s32.totalorder %s203, %s204
      %p216 = scmp.eq.s32.totalorder %s26, 1
      %p217 = por %p215, %p216
      %p219 = scmp.ne.s32.totalorder %s204, %s218
      %p220 = scmp.eq.s32.totalorder %s26, 0
      %p221 = por %p219, %p220
      %s223 = sadd.s32 %s222, 1
      %p226 = scmp.eq.s32.totalorder %s20, 1
      %p227 = scmp.ne.s32.totalorder %s222, %s224
      %p228 = scmp.eq.s32.totalorder %s20, 0
      %p229 = por %p227, %p228
      %p230 = scmp.ne.s32.totalorder %s222, %s224
      %p231 = scmp.eq.s32.totalorder %s25, 1
      %p232 = por %p230, %p231
      %p233 = scmp.ne.s32.totalorder %s224, %s225
      %p234 = scmp.eq.s32.totalorder %s25, 0
      %p235 = por %p233, %p234
      %p236 = scmp.ne.s32.totalorder %s224, %s225
      %p237 = scmp.eq.s32.totalorder %s26, 1
      %p238 = por %p236, %p237
      %p240 = scmp.ne.s32.totalorder %s225, %s239
      %p241 = scmp.eq.s32.totalorder %s26, 0
      %p242 = por %p240, %p241
      %s244 = sadd.s32 %s243, 1
      %p247 = scmp.eq.s32.totalorder %s20, 1
      %p248 = scmp.ne.s32.totalorder %s243, %s245
      %p249 = scmp.eq.s32.totalorder %s20, 0
      %p250 = por %p248, %p249
      %p251 = scmp.ne.s32.totalorder %s243, %s245
      %p252 = scmp.eq.s32.totalorder %s25, 1
      %p253 = por %p251, %p252
      %p254 = scmp.ne.s32.totalorder %s245, %s246
      %p255 = scmp.eq.s32.totalorder %s25, 0
      %p256 = por %p254, %p255
      %p257 = scmp.ne.s32.totalorder %s245, %s246
      %p258 = scmp.eq.s32.totalorder %s26, 1
      %p259 = por %p257, %p258
      %p261 = scmp.ne.s32.totalorder %s246, %s260
      %p262 = scmp.eq.s32.totalorder %s26, 0
      %p263 = por %p261, %p262
      %s264 = ssub.s32 %s20, %s27
      %p265 = scmp.eq.s32.totalorder %s264, 0
      %s267 = sadd.s32 %s266, 1
      %s268 = scalar_select %p265, %s266, %s267
      %p271 = pneg %p265
      %p272 = scmp.eq.s32.totalorder %s20, 1
      %p273 = por %p271, %p272
      %p274 = scmp.ne.s32.totalorder %s266, %s269
      %p275 = scmp.eq.s32.totalorder %s20, 0
      %p276 = por %p274, %p275
      %p277 = scmp.ne.s32.totalorder %s266, %s269
      %p278 = scmp.eq.s32.totalorder %s25, 1
      %p279 = por %p277, %p278
      %p280 = scmp.ne.s32.totalorder %s269, %s270
      %p281 = scmp.eq.s32.totalorder %s25, 0
      %p282 = por %p280, %p281
      %p283 = scmp.ne.s32.totalorder %s269, %s270
      %p284 = scmp.eq.s32.totalorder %s26, 1
      %p285 = por %p283, %p284
      %p287 = scmp.ne.s32.totalorder %s270, %s286
      %p288 = scmp.eq.s32.totalorder %s26, 0
      %p289 = por %p287, %p288
      %p290 = scmp.le.s32.totalorder 1, %s20
      %p291 = scmp.lt.s32.totalorder %s20, 3
      %p292 = pnand %p290, %p291
      %p293 = pneg %p292
      // Predicated region
      $region9: #{tpu_custom_call.1} parent=5 // pred_check
        _
      $region10: #{tpu_custom_call.1} parent=5 // pred_check_branch
        %295 = sbr.rel (%p292) target = $region12
      $region11: #{tpu_custom_call.1} parent=5 // pred_region
        %s296 = ssub.s32 %s20, 1
        // Predicated region
        $region13: #{tpu_custom_call.1} parent=11 // pred_check
          %p297 = pneg %p67
        $region14: #{tpu_custom_call.1} parent=11 // pred_check_branch
          %299 = sbr.rel (%p297) target = $region16
        $region15: #{tpu_custom_call.1} parent=11 // pred_region
          _
        $region16: #{tpu_custom_call.1} parent=11 // pred_fallthru
          _
        // Predicated region
        $region17: #{tpu_custom_call.1} parent=11 // pred_check
          %p300 = pneg %p88
        $region18: #{tpu_custom_call.1} parent=11 // pred_check_branch
          %302 = sbr.rel (%p300) target = $region20
        $region19: #{tpu_custom_call.1} parent=11 // pred_region
          _
        $region20: #{tpu_custom_call.1} parent=11 // pred_fallthru
          _
        // Predicated region
        $region21: #{tpu_custom_call.1} parent=11 // pred_check
          %p303 = pneg %p109
        $region22: #{tpu_custom_call.1} parent=11 // pred_check_branch
          %305 = sbr.rel (%p303) target = $region24
        $region23: #{tpu_custom_call.1} parent=11 // pred_region
          _
        $region24: #{tpu_custom_call.1} parent=11 // pred_fallthru
          _
        // Predicated region
        $region25: #{tpu_custom_call.1} parent=11 // pred_check
          %p306 = pneg %p130
        $region26: #{tpu_custom_call.1} parent=11 // pred_check_branch
          %308 = sbr.rel (%p306) target = $region28
        $region27: #{tpu_custom_call.1} parent=11 // pred_region
          _
        $region28: #{tpu_custom_call.1} parent=11 // pred_fallthru
          _
        // Predicated region
        $region29: #{tpu_custom_call.1} parent=11 // pred_check
          %p309 = pneg %p151
        $region30: #{tpu_custom_call.1} parent=11 // pred_check_branch
          %311 = sbr.rel (%p309) target = $region32
        $region31: #{tpu_custom_call.1} parent=11 // pred_region
          _
        $region32: #{tpu_custom_call.1} parent=11 // pred_fallthru
          _
        // Predicated region
        $region33: #{tpu_custom_call.1} parent=11 // pred_check
          %p312 = pneg %p172
        $region34: #{tpu_custom_call.1} parent=11 // pred_check_branch
          %314 = sbr.rel (%p312) target = $region36
        $region35: #{tpu_custom_call.1} parent=11 // pred_region
          _
        $region36: #{tpu_custom_call.1} parent=11 // pred_fallthru
          _
        // Predicated region
        $region37: #{tpu_custom_call.1} parent=11 // pred_check
          %p315 = pneg %p193
        $region38: #{tpu_custom_call.1} parent=11 // pred_check_branch
          %317 = sbr.rel (%p315) target = $region40
        $region39: #{tpu_custom_call.1} parent=11 // pred_region
          _
        $region40: #{tpu_custom_call.1} parent=11 // pred_fallthru
          _
        // Predicated region
        $region41: #{tpu_custom_call.1} parent=11 // pred_check
          %p318 = pneg %p214
        $region42: #{tpu_custom_call.1} parent=11 // pred_check_branch
          %320 = sbr.rel (%p318) target = $region44
        $region43: #{tpu_custom_call.1} parent=11 // pred_region
          _
        $region44: #{tpu_custom_call.1} parent=11 // pred_fallthru
          _
        // Predicated region
        $region45: #{tpu_custom_call.1} parent=11 // pred_check
          %p321 = pneg %p235
        $region46: #{tpu_custom_call.1} parent=11 // pred_check_branch
          %323 = sbr.rel (%p321) target = $region48
        $region47: #{tpu_custom_call.1} parent=11 // pred_region
          _
        $region48: #{tpu_custom_call.1} parent=11 // pred_fallthru
          _
        // Predicated region
        $region49: #{tpu_custom_call.1} parent=11 // pred_check
          %p324 = pneg %p256
        $region50: #{tpu_custom_call.1} parent=11 // pred_check_branch
          %326 = sbr.rel (%p324) target = $region52
        $region51: #{tpu_custom_call.1} parent=11 // pred_region
          _
        $region52: #{tpu_custom_call.1} parent=11 // pred_fallthru
          _
      $region12: #{tpu_custom_call.1} parent=5 // pred_fallthru
        _
      %p327 = scmp.lt.s32.totalorder %s20, 2
      // Predicated region
      $region53: #{tpu_custom_call.1} parent=5 // pred_check
        %p328 = pneg %p327
      $region54: #{tpu_custom_call.1} parent=5 // pred_check_branch
        %330 = sbr.rel (%p328) target = $region56
      $region55: #{tpu_custom_call.1} parent=5 // pred_region
        // Predicated region
        $region57: #{tpu_custom_call.1} parent=55 // pred_check
          %p331 = pneg %p40
        $region58: #{tpu_custom_call.1} parent=55 // pred_check_branch
          %333 = sbr.rel (%p331) target = $region60
        $region59: #{tpu_custom_call.1} parent=55 // pred_region
          %p334 = scmp.lt.s32.totalorder %s20, 1
          %s335 = scalar_select %p334, %s20, 1
          %s336 = smul.addr %s335, 32
          %s337 = smul.addr %s336, 4
          %s338 = scalar_lea.vmem %s0, %s337
        $region60: #{tpu_custom_call.1} parent=55 // pred_fallthru
          _
      $region56: #{tpu_custom_call.1} parent=5 // pred_fallthru
        _
      %p339 = scmp.le.s32.totalorder 1, %s20
      %p340 = scmp.lt.s32.totalorder %s20, 3
      %p341 = pnand %p339, %p340
      %p342 = pneg %p341
      // Predicated region
      $region61: #{tpu_custom_call.1} parent=5 // pred_check
        _
      $region62: #{tpu_custom_call.1} parent=5 // pred_check_branch
        %344 = sbr.rel (%p341) target = $region64
      $region63: #{tpu_custom_call.1} parent=5 // pred_region
        %s345 = ssub.s32 %s20, 1
        %p346 = scmp.lt.s32.totalorder %s25, 1
        %s347 = scalar_select %p346, %s25, 1
        %s348 = smul.addr %s347, 32
        %s349 = smul.addr %s348, 4
        %s350 = scalar_lea.vmem %s0, %s349
        %p351 = pneg %p46
        %p352 = pneg %p43
        %p353 = pneg %p67
        %p354 = pneg %p64
        %p355 = pneg %p88
        %p356 = pneg %p85
        %p357 = pneg %p109
        %p358 = pneg %p106
        %p359 = pneg %p130
        %p360 = pneg %p127
        %p361 = pneg %p151
        %p362 = pneg %p148
        %p363 = pneg %p172
        %p364 = pneg %p169
        %p365 = pneg %p193
        %p366 = pneg %p190
        %p367 = pneg %p214
        %p368 = pneg %p211
        %p369 = pneg %p235
        %p370 = pneg %p232
        %p371 = pneg %p256
        %p372 = pneg %p253
        %p373 = pneg %p282
        %p374 = pneg %p279
        %s375 = sand.u32 %s269, 1
        %s376 = scalar_lea.sflag [#allocation5], %s375
        %s377 = sand.u32 %s269, 1
        %s378 = smul.addr %s377, 256
        %s379 = scalar_lea.vmem [#allocation4], %s378
        %p380 = scmp.lt.s32.totalorder %s25, 1
        %s381 = scalar_select %p380, %s25, 1
        %s382 = smul.addr %s381, 32
        %s383 = smul.addr %s382, 4
        %s384 = scalar_lea.vmem %s0, %s383
        %vm386 = vcmask 261120
        %387 = vst.msk [vmem:[#allocation2] sm:$0xff] %vm386, 0
        %388 = vst.msk [vmem:[#allocation2 + $0x8] sm:$0xff] %vm386, 0
        %s389 = scalar_lea.vmem [#allocation2], 272
        %390 = vst.msk [vmem:[%s389] sm:$0xff] %vm386, 0
        %391 = vst.msk [vmem:[%s389 + $0x8] sm:$0xff] %vm386, 0
        %vm392 = vcmask 257024
        %393 = vst.msk [vmem:[#allocation2] sm:$0xf] %vm392, 0
        %394 = vst.msk [vmem:[#allocation2 + $0x10] sm:$0xf] %vm392, 0
        %395 = vst.msk [vmem:[#allocation2 + $0x20] sm:$0xf] %vm392, 0
        %396 = vst.msk [vmem:[#allocation2 + $0x30] sm:$0xf] %vm392, 0
        %397 = vst.msk [vmem:[#allocation2 + $0x40] sm:$0xf] %vm392, 0
        %398 = vst.msk [vmem:[#allocation2 + $0x50] sm:$0xf] %vm392, 0
        %399 = vst.msk [vmem:[#allocation2 + $0x60] sm:$0xf] %vm392, 0
        %400 = vst.msk [vmem:[#allocation2 + $0x70] sm:$0xf] %vm392, 0
        %401 = vst.msk [vmem:[#allocation2 + $0x80] sm:$0xf] %vm392, 0
        %402 = vst.msk [vmem:[#allocation2 + $0x90] sm:$0xf] %vm392, 0
        %403 = vst.msk [vmem:[#allocation2 + $0xa0] sm:$0xf] %vm392, 0
        %404 = vst.msk [vmem:[#allocation2 + $0xb0] sm:$0xf] %vm392, 0
        %405 = vst.msk [vmem:[#allocation2 + $0xc0] sm:$0xf] %vm392, 0
        %406 = vst.msk [vmem:[#allocation2 + $0xd0] sm:$0xf] %vm392, 0
        %407 = vst.msk [vmem:[#allocation2 + $0xe0] sm:$0xf] %vm392, 0
        %408 = vst.msk [vmem:[#allocation2 + $0xf0] sm:$0xf] %vm392, 0
        %409 = vst.msk [vmem:[#allocation2 + $0x100] sm:$0xf] %vm392, 0
        %410 = vst.msk [vmem:[#allocation2 + $0x110] sm:$0xf] %vm392, 0
        %vm411 = vcmask 261124
        %412 = vst.msk [vmem:[#allocation2 + $0x8] sm:$0xf0] %vm411, 0
        %413 = vst.msk [vmem:[#allocation2 + $0x18] sm:$0xf0] %vm411, 0
        %414 = vst.msk [vmem:[#allocation2 + $0x28] sm:$0xf0] %vm411, 0
        %415 = vst.msk [vmem:[#allocation2 + $0x38] sm:$0xf0] %vm411, 0
        %416 = vst.msk [vmem:[#allocation2 + $0x48] sm:$0xf0] %vm411, 0
        %417 = vst.msk [vmem:[#allocation2 + $0x58] sm:$0xf0] %vm411, 0
        %418 = vst.msk [vmem:[#allocation2 + $0x68] sm:$0xf0] %vm411, 0
        %419 = vst.msk [vmem:[#allocation2 + $0x78] sm:$0xf0] %vm411, 0
        %420 = vst.msk [vmem:[#allocation2 + $0x88] sm:$0xf0] %vm411, 0
        %421 = vst.msk [vmem:[#allocation2 + $0x98] sm:$0xf0] %vm411, 0
        %422 = vst.msk [vmem:[#allocation2 + $0xa8] sm:$0xf0] %vm411, 0
        %423 = vst.msk [vmem:[#allocation2 + $0xb8] sm:$0xf0] %vm411, 0
        %424 = vst.msk [vmem:[#allocation2 + $0xc8] sm:$0xf0] %vm411, 0
        %425 = vst.msk [vmem:[#allocation2 + $0xd8] sm:$0xf0] %vm411, 0
        %426 = vst.msk [vmem:[#allocation2 + $0xe8] sm:$0xf0] %vm411, 0
        %427 = vst.msk [vmem:[#allocation2 + $0xf8] sm:$0xf0] %vm411, 0
        %428 = vst.msk [vmem:[#allocation2 + $0x108] sm:$0xf0] %vm411, 0
        %429 = vst.msk [vmem:[#allocation2 + $0x118] sm:$0xf0] %vm411, 0
        %430 = vst.msk [vmem:[#allocation3] sm:$0xff] %vm386, 0
        %431 = vst.msk [vmem:[#allocation3 + $0x8] sm:$0xff] %vm386, 0
        %s432 = scalar_lea.vmem [#allocation3], 272
        %433 = vst.msk [vmem:[%s432] sm:$0xff] %vm386, 0
        %434 = vst.msk [vmem:[%s432 + $0x8] sm:$0xff] %vm386, 0
        %435 = vst.msk [vmem:[#allocation3] sm:$0xf] %vm392, 0
        %436 = vst.msk [vmem:[#allocation3 + $0x10] sm:$0xf] %vm392, 0
        %437 = vst.msk [vmem:[#allocation3 + $0x20] sm:$0xf] %vm392, 0
        %438 = vst.msk [vmem:[#allocation3 + $0x30] sm:$0xf] %vm392, 0
        %439 = vst.msk [vmem:[#allocation3 + $0x40] sm:$0xf] %vm392, 0
        %440 = vst.msk [vmem:[#allocation3 + $0x50] sm:$0xf] %vm392, 0
        %441 = vst.msk [vmem:[#allocation3 + $0x60] sm:$0xf] %vm392, 0
        %442 = vst.msk [vmem:[#allocation3 + $0x70] sm:$0xf] %vm392, 0
        %443 = vst.msk [vmem:[#allocation3 + $0x80] sm:$0xf] %vm392, 0
        %444 = vst.msk [vmem:[#allocation3 + $0x90] sm:$0xf] %vm392, 0
        %445 = vst.msk [vmem:[#allocation3 + $0xa0] sm:$0xf] %vm392, 0
        %446 = vst.msk [vmem:[#allocation3 + $0xb0] sm:$0xf] %vm392, 0
        %447 = vst.msk [vmem:[#allocation3 + $0xc0] sm:$0xf] %vm392, 0
        %448 = vst.msk [vmem:[#allocation3 + $0xd0] sm:$0xf] %vm392, 0
        %449 = vst.msk [vmem:[#allocation3 + $0xe0] sm:$0xf] %vm392, 0
        %450 = vst.msk [vmem:[#allocation3 + $0xf0] sm:$0xf] %vm392, 0
        %451 = vst.msk [vmem:[#allocation3 + $0x100] sm:$0xf] %vm392, 0
        %452 = vst.msk [vmem:[#allocation3 + $0x110] sm:$0xf] %vm392, 0
        %453 = vst.msk [vmem:[#allocation3 + $0x8] sm:$0xf0] %vm411, 0
        %454 = vst.msk [vmem:[#allocation3 + $0x18] sm:$0xf0] %vm411, 0
        %455 = vst.msk [vmem:[#allocation3 + $0x28] sm:$0xf0] %vm411, 0
        %456 = vst.msk [vmem:[#allocation3 + $0x38] sm:$0xf0] %vm411, 0
        %457 = vst.msk [vmem:[#allocation3 + $0x48] sm:$0xf0] %vm411, 0
        %458 = vst.msk [vmem:[#allocation3 + $0x58] sm:$0xf0] %vm411, 0
        %459 = vst.msk [vmem:[#allocation3 + $0x68] sm:$0xf0] %vm411, 0
        %460 = vst.msk [vmem:[#allocation3 + $0x78] sm:$0xf0] %vm411, 0
        %461 = vst.msk [vmem:[#allocation3 + $0x88] sm:$0xf0] %vm411, 0
        %462 = vst.msk [vmem:[#allocation3 + $0x98] sm:$0xf0] %vm411, 0
        %463 = vst.msk [vmem:[#allocation3 + $0xa8] sm:$0xf0] %vm411, 0
        %464 = vst.msk [vmem:[#allocation3 + $0xb8] sm:$0xf0] %vm411, 0
        %465 = vst.msk [vmem:[#allocation3 + $0xc8] sm:$0xf0] %vm411, 0
        %466 = vst.msk [vmem:[#allocation3 + $0xd8] sm:$0xf0] %vm411, 0
        %467 = vst.msk [vmem:[#allocation3 + $0xe8] sm:$0xf0] %vm411, 0
        %468 = vst.msk [vmem:[#allocation3 + $0xf8] sm:$0xf0] %vm411, 0
        %469 = vst.msk [vmem:[#allocation3 + $0x108] sm:$0xf0] %vm411, 0
        %470 = vst.msk [vmem:[#allocation3 + $0x118] sm:$0xf0] %vm411, 0
        %v471 = vld [vmem:[%s384] sm:$0xf]
        %v472 = vld [vmem:[%s384 + $0x4] sm:$0xf]
        %v473 = vld [vmem:[%s384 + $0x8] sm:$0xf]
        %v474 = vld [vmem:[%s384 + $0xc] sm:$0xf]
        %v475 = vld [vmem:[%s384 + $0x10] sm:$0xf]
        %v476 = vld [vmem:[%s384 + $0x14] sm:$0xf]
        %v477 = vld [vmem:[%s384 + $0x18] sm:$0xf]
        %v478 = vld [vmem:[%s384 + $0x1c] sm:$0xf]
        %v479 = vld [vmem:[%s384 + $0x20] sm:$0xf]
        %v480 = vld [vmem:[%s384 + $0x24] sm:$0xf]
        %v481 = vld [vmem:[%s384 + $0x28] sm:$0xf]
        %v482 = vld [vmem:[%s384 + $0x2c] sm:$0xf]
        %v483 = vld [vmem:[%s384 + $0x30] sm:$0xf]
        %v484 = vld [vmem:[%s384 + $0x34] sm:$0xf]
        %v485 = vld [vmem:[%s384 + $0x38] sm:$0xf]
        %v486 = vld [vmem:[%s384 + $0x3c] sm:$0xf]
        %v487 = vld [vmem:[%s384 + $0x40] sm:$0xf]
        %v488 = vld [vmem:[%s384 + $0x44] sm:$0xf]
        %v489 = vld [vmem:[%s384 + $0x48] sm:$0xf]
        %v490 = vld [vmem:[%s384 + $0x4c] sm:$0xf]
        %v491 = vld [vmem:[%s384 + $0x50] sm:$0xf]
        %v492 = vld [vmem:[%s384 + $0x54] sm:$0xf]
        %v493 = vld [vmem:[%s384 + $0x58] sm:$0xf]
        %v494 = vld [vmem:[%s384 + $0x5c] sm:$0xf]
        %v495 = vld [vmem:[%s384 + $0x60] sm:$0xf]
        %v496 = vld [vmem:[%s384 + $0x64] sm:$0xf]
        %v497 = vld [vmem:[%s384 + $0x68] sm:$0xf]
        %v498 = vld [vmem:[%s384 + $0x6c] sm:$0xf]
        %v499 = vld [vmem:[%s384 + $0x70] sm:$0xf]
        %v500 = vld [vmem:[%s384 + $0x74] sm:$0xf]
        %v501 = vld [vmem:[%s384 + $0x78] sm:$0xf]
        %v502 = vld [vmem:[%s384 + $0x7c] sm:$0xf]
        %v535 = vunpack.c.l.b16 %v471
        %v536 = vunpack.c.l.b16 %v472
        %v537 = vunpack.c.l.b16 %v473
        %v538 = vunpack.c.l.b16 %v474
        %v539 = vunpack.c.l.b16 %v475
        %v540 = vunpack.c.l.b16 %v476
        %v541 = vunpack.c.l.b16 %v477
        %v542 = vunpack.c.l.b16 %v478
        %v543 = vunpack.c.l.b16 %v479
        %v544 = vunpack.c.l.b16 %v480
        %v545 = vunpack.c.l.b16 %v481
        %v546 = vunpack.c.l.b16 %v482
        %v547 = vunpack.c.l.b16 %v483
        %v548 = vunpack.c.l.b16 %v484
        %v549 = vunpack.c.l.b16 %v485
        %v550 = vunpack.c.l.b16 %v486
        %v551 = vunpack.c.l.b16 %v487
        %v552 = vunpack.c.l.b16 %v488
        %v553 = vunpack.c.l.b16 %v489
        %v554 = vunpack.c.l.b16 %v490
        %v555 = vunpack.c.l.b16 %v491
        %v556 = vunpack.c.l.b16 %v492
        %v557 = vunpack.c.l.b16 %v493
        %v558 = vunpack.c.l.b16 %v494
        %v559 = vunpack.c.l.b16 %v495
        %v560 = vunpack.c.l.b16 %v496
        %v561 = vunpack.c.l.b16 %v497
        %v562 = vunpack.c.l.b16 %v498
        %v563 = vunpack.c.l.b16 %v499
        %v564 = vunpack.c.l.b16 %v500
        %v565 = vunpack.c.l.b16 %v501
        %v566 = vunpack.c.l.b16 %v502
        %v567 = vpack.c.b16 %v535, %v535
        %v568 = vpack.c.b16 %v536, %v536
        %v569 = vpack.c.b16 %v537, %v537
        %v570 = vpack.c.b16 %v538, %v538
        %v571 = vpack.c.b16 %v539, %v539
        %v572 = vpack.c.b16 %v540, %v540
        %v573 = vpack.c.b16 %v541, %v541
        %v574 = vpack.c.b16 %v542, %v542
        %v575 = vpack.c.b16 %v543, %v543
        %v576 = vpack.c.b16 %v544, %v544
        %v577 = vpack.c.b16 %v545, %v545
        %v578 = vpack.c.b16 %v546, %v546
        %v579 = vpack.c.b16 %v547, %v547
        %v580 = vpack.c.b16 %v548, %v548
        %v581 = vpack.c.b16 %v549, %v549
        %v582 = vpack.c.b16 %v550, %v550
        %v583 = vpack.c.b16 %v551, %v551
        %v584 = vpack.c.b16 %v552, %v552
        %v585 = vpack.c.b16 %v553, %v553
        %v586 = vpack.c.b16 %v554, %v554
        %v587 = vpack.c.b16 %v555, %v555
        %v588 = vpack.c.b16 %v556, %v556
        %v589 = vpack.c.b16 %v557, %v557
        %v590 = vpack.c.b16 %v558, %v558
        %v591 = vpack.c.b16 %v559, %v559
        %v592 = vpack.c.b16 %v560, %v560
        %v593 = vpack.c.b16 %v561, %v561
        %v594 = vpack.c.b16 %v562, %v562
        %v595 = vpack.c.b16 %v563, %v563
        %v596 = vpack.c.b16 %v564, %v564
        %v597 = vpack.c.b16 %v565, %v565
        %v598 = vpack.c.b16 %v566, %v566
        %s631 = scalar_lea.vmem [#allocation2], 16
        %632 = vst.msk [vmem:[%s631] sm:$0xf0] %vm411, %v567
        %633 = vst.msk [vmem:[%s631 + $0x8] sm:$0xf] %vm392, %v568
        %634 = vst.msk [vmem:[%s631 + $0x10] sm:$0xf0] %vm411, %v569
        %635 = vst.msk [vmem:[%s631 + $0x18] sm:$0xf] %vm392, %v570
        %636 = vst.msk [vmem:[%s631 + $0x20] sm:$0xf0] %vm411, %v571
        %637 = vst.msk [vmem:[%s631 + $0x28] sm:$0xf] %vm392, %v572
        %638 = vst.msk [vmem:[%s631 + $0x30] sm:$0xf0] %vm411, %v573
        %639 = vst.msk [vmem:[%s631 + $0x38] sm:$0xf] %vm392, %v574
        %640 = vst.msk [vmem:[%s631 + $0x40] sm:$0xf0] %vm411, %v575
        %641 = vst.msk [vmem:[%s631 + $0x48] sm:$0xf] %vm392, %v576
        %642 = vst.msk [vmem:[%s631 + $0x50] sm:$0xf0] %vm411, %v577
        %643 = vst.msk [vmem:[%s631 + $0x58] sm:$0xf] %vm392, %v578
        %644 = vst.msk [vmem:[%s631 + $0x60] sm:$0xf0] %vm411, %v579
        %645 = vst.msk [vmem:[%s631 + $0x68] sm:$0xf] %vm392, %v580
        %646 = vst.msk [vmem:[%s631 + $0x70] sm:$0xf0] %vm411, %v581
        %647 = vst.msk [vmem:[%s631 + $0x78] sm:$0xf] %vm392, %v582
        %648 = vst.msk [vmem:[%s631 + $0x80] sm:$0xf0] %vm411, %v583
        %649 = vst.msk [vmem:[%s631 + $0x88] sm:$0xf] %vm392, %v584
        %650 = vst.msk [vmem:[%s631 + $0x90] sm:$0xf0] %vm411, %v585
        %651 = vst.msk [vmem:[%s631 + $0x98] sm:$0xf] %vm392, %v586
        %652 = vst.msk [vmem:[%s631 + $0xa0] sm:$0xf0] %vm411, %v587
        %653 = vst.msk [vmem:[%s631 + $0xa8] sm:$0xf] %vm392, %v588
        %654 = vst.msk [vmem:[%s631 + $0xb0] sm:$0xf0] %vm411, %v589
        %655 = vst.msk [vmem:[%s631 + $0xb8] sm:$0xf] %vm392, %v590
        %656 = vst.msk [vmem:[%s631 + $0xc0] sm:$0xf0] %vm411, %v591
        %657 = vst.msk [vmem:[%s631 + $0xc8] sm:$0xf] %vm392, %v592
        %658 = vst.msk [vmem:[%s631 + $0xd0] sm:$0xf0] %vm411, %v593
        %659 = vst.msk [vmem:[%s631 + $0xd8] sm:$0xf] %vm392, %v594
        %660 = vst.msk [vmem:[%s631 + $0xe0] sm:$0xf0] %vm411, %v595
        %661 = vst.msk [vmem:[%s631 + $0xe8] sm:$0xf] %vm392, %v596
        %662 = vst.msk [vmem:[%s631 + $0xf0] sm:$0xf0] %vm411, %v597
        %663 = vst.msk [vmem:[%s631 + $0xf8] sm:$0xf] %vm392, %v598
        %s664 = smul.u32 0, 2
        %s665 = smul.addr %s664, 8
        %s666 = scalar_lea.vmem [#allocation2], %s665
        %v667 = vld [vmem:[%s666] sm:$0xff]
        %v668 = vld [vmem:[%s666 + $0x8] sm:$0xff]
        %v669 = vld [vmem:[%s666 + $0x10] sm:$0xff]
        %v670 = vld [vmem:[%s666 + $0x18] sm:$0xff]
        %v671 = vld [vmem:[%s666 + $0x20] sm:$0xff]
        %v672 = vld [vmem:[%s666 + $0x28] sm:$0xff]
        %v673 = vld [vmem:[%s666 + $0x30] sm:$0xff]
        %v674 = vld [vmem:[%s666 + $0x38] sm:$0xff]
        %v675 = vld [vmem:[%s666 + $0x40] sm:$0xff]
        %v676 = vld [vmem:[%s666 + $0x48] sm:$0xff]
        %v677 = vld [vmem:[%s666 + $0x50] sm:$0xff]
        %v678 = vld [vmem:[%s666 + $0x58] sm:$0xff]
        %v679 = vld [vmem:[%s666 + $0x60] sm:$0xff]
        %v680 = vld [vmem:[%s666 + $0x68] sm:$0xff]
        %v681 = vld [vmem:[%s666 + $0x70] sm:$0xff]
        %v682 = vld [vmem:[%s666 + $0x78] sm:$0xff]
        %v683 = vld [vmem:[%s666 + $0x80] sm:$0xff]
        %v684 = vld [vmem:[%s666 + $0x88] sm:$0xff]
        %v685 = vld [vmem:[%s666 + $0x90] sm:$0xff]
        %v686 = vld [vmem:[%s666 + $0x98] sm:$0xff]
        %v687 = vld [vmem:[%s666 + $0xa0] sm:$0xff]
        %v688 = vld [vmem:[%s666 + $0xa8] sm:$0xff]
        %v689 = vld [vmem:[%s666 + $0xb0] sm:$0xff]
        %v690 = vld [vmem:[%s666 + $0xb8] sm:$0xff]
        %v691 = vld [vmem:[%s666 + $0xc0] sm:$0xff]
        %v692 = vld [vmem:[%s666 + $0xc8] sm:$0xff]
        %v693 = vld [vmem:[%s666 + $0xd0] sm:$0xff]
        %v694 = vld [vmem:[%s666 + $0xd8] sm:$0xff]
        %v695 = vld [vmem:[%s666 + $0xe0] sm:$0xff]
        %v696 = vld [vmem:[%s666 + $0xe8] sm:$0xff]
        %v697 = vld [vmem:[%s666 + $0xf0] sm:$0xff]
        %v698 = vld [vmem:[%s666 + $0xf8] sm:$0xff]
        %v699 = vld [vmem:[%s666 + $0x100] sm:$0xff]
        %v700 = vld [vmem:[%s666 + $0x108] sm:$0xff]
        %v701 = vld [vmem:[%s666 + $0x110] sm:$0xff]
        %v702 = vld [vmem:[%s666 + $0x118] sm:$0xff]
        %vm703 = vsmask.f32 7424
        %v705 = vshrl.u32 %v667, 16
        %v707 = vshll.u32 %v667, 16
        %v709 = vrot.slane %v707, 1
        %v710 = vor.u32 %v705, %v709
        %v712 = vshll.u32 %v668, 16
        %v714 = vrot.slane %v712, 1
        %v715 = vsel %vm703, %v710, %v714
        %v716 = vshrl.u32 %v668, 16
        %v718 = vor.u32 %v716, %v714
        %v720 = vshrl.u32 %v669, 16
        %v722 = vshll.u32 %v669, 16
        %v724 = vrot.slane %v722, 1
        %v725 = vor.u32 %v720, %v724
        %v727 = vshll.u32 %v670, 16
        %v729 = vrot.slane %v727, 1
        %v730 = vsel %vm703, %v725, %v729
        %v731 = vshrl.u32 %v670, 16
        %v733 = vor.u32 %v731, %v729
        %v735 = vshrl.u32 %v671, 16
        %v737 = vshll.u32 %v671, 16
        %v739 = vrot.slane %v737, 1
        %v740 = vor.u32 %v735, %v739
        %v742 = vshll.u32 %v672, 16
        %v744 = vrot.slane %v742, 1
        %v745 = vsel %vm703, %v740, %v744
        %v746 = vshrl.u32 %v672, 16
        %v748 = vor.u32 %v746, %v744
        %v750 = vshrl.u32 %v673, 16
        %v752 = vshll.u32 %v673, 16
        %v754 = vrot.slane %v752, 1
        %v755 = vor.u32 %v750, %v754
        %v757 = vshll.u32 %v674, 16
        %v759 = vrot.slane %v757, 1
        %v760 = vsel %vm703, %v755, %v759
        %v761 = vshrl.u32 %v674, 16
        %v763 = vor.u32 %v761, %v759
        %v765 = vshrl.u32 %v675, 16
        %v767 = vshll.u32 %v675, 16
        %v769 = vrot.slane %v767, 1
        %v770 = vor.u32 %v765, %v769
        %v772 = vshll.u32 %v676, 16
        %v774 = vrot.slane %v772, 1
        %v775 = vsel %vm703, %v770, %v774
        %v776 = vshrl.u32 %v676, 16
        %v778 = vor.u32 %v776, %v774
        %v780 = vshrl.u32 %v677, 16
        %v782 = vshll.u32 %v677, 16
        %v784 = vrot.slane %v782, 1
        %v785 = vor.u32 %v780, %v784
        %v787 = vshll.u32 %v678, 16
        %v789 = vrot.slane %v787, 1
        %v790 = vsel %vm703, %v785, %v789
        %v791 = vshrl.u32 %v678, 16
        %v793 = vor.u32 %v791, %v789
        %v795 = vshrl.u32 %v679, 16
        %v797 = vshll.u32 %v679, 16
        %v799 = vrot.slane %v797, 1
        %v800 = vor.u32 %v795, %v799
        %v802 = vshll.u32 %v680, 16
        %v804 = vrot.slane %v802, 1
        %v805 = vsel %vm703, %v800, %v804
        %v806 = vshrl.u32 %v680, 16
        %v808 = vor.u32 %v806, %v804
        %v810 = vshrl.u32 %v681, 16
        %v812 = vshll.u32 %v681, 16
        %v814 = vrot.slane %v812, 1
        %v815 = vor.u32 %v810, %v814
        %v817 = vshll.u32 %v682, 16
        %v819 = vrot.slane %v817, 1
        %v820 = vsel %vm703, %v815, %v819
        %v821 = vshrl.u32 %v682, 16
        %v823 = vor.u32 %v821, %v819
        %v825 = vshrl.u32 %v683, 16
        %v827 = vshll.u32 %v683, 16
        %v829 = vrot.slane %v827, 1
        %v830 = vor.u32 %v825, %v829
        %v832 = vshll.u32 %v684, 16
        %v834 = vrot.slane %v832, 1
        %v835 = vsel %vm703, %v830, %v834
        %v836 = vshrl.u32 %v684, 16
        %v838 = vor.u32 %v836, %v834
        %v840 = vshrl.u32 %v685, 16
        %v842 = vshll.u32 %v685, 16
        %v844 = vrot.slane %v842, 1
        %v845 = vor.u32 %v840, %v844
        %v847 = vshll.u32 %v686, 16
        %v849 = vrot.slane %v847, 1
        %v850 = vsel %vm703, %v845, %v849
        %v851 = vshrl.u32 %v686, 16
        %v853 = vor.u32 %v851, %v849
        %v855 = vshrl.u32 %v687, 16
        %v857 = vshll.u32 %v687, 16
        %v859 = vrot.slane %v857, 1
        %v860 = vor.u32 %v855, %v859
        %v862 = vshll.u32 %v688, 16
        %v864 = vrot.slane %v862, 1
        %v865 = vsel %vm703, %v860, %v864
        %v866 = vshrl.u32 %v688, 16
        %v868 = vor.u32 %v866, %v864
        %v870 = vshrl.u32 %v689, 16
        %v872 = vshll.u32 %v689, 16
        %v874 = vrot.slane %v872, 1
        %v875 = vor.u32 %v870, %v874
        %v877 = vshll.u32 %v690, 16
        %v879 = vrot.slane %v877, 1
        %v880 = vsel %vm703, %v875, %v879
        %v881 = vshrl.u32 %v690, 16
        %v883 = vor.u32 %v881, %v879
        %v885 = vshrl.u32 %v691, 16
        %v887 = vshll.u32 %v691, 16
        %v889 = vrot.slane %v887, 1
        %v890 = vor.u32 %v885, %v889
        %v892 = vshll.u32 %v692, 16
        %v894 = vrot.slane %v892, 1
        %v895 = vsel %vm703, %v890, %v894
        %v896 = vshrl.u32 %v692, 16
        %v898 = vor.u32 %v896, %v894
        %v900 = vshrl.u32 %v693, 16
        %v902 = vshll.u32 %v693, 16
        %v904 = vrot.slane %v902, 1
        %v905 = vor.u32 %v900, %v904
        %v907 = vshll.u32 %v694, 16
        %v909 = vrot.slane %v907, 1
        %v910 = vsel %vm703, %v905, %v909
        %v911 = vshrl.u32 %v694, 16
        %v913 = vor.u32 %v911, %v909
        %v915 = vshrl.u32 %v695, 16
        %v917 = vshll.u32 %v695, 16
        %v919 = vrot.slane %v917, 1
        %v920 = vor.u32 %v915, %v919
        %v922 = vshll.u32 %v696, 16
        %v924 = vrot.slane %v922, 1
        %v925 = vsel %vm703, %v920, %v924
        %v926 = vshrl.u32 %v696, 16
        %v928 = vor.u32 %v926, %v924
        %v930 = vshrl.u32 %v697, 16
        %v932 = vshll.u32 %v697, 16
        %v934 = vrot.slane %v932, 1
        %v935 = vor.u32 %v930, %v934
        %v937 = vshll.u32 %v698, 16
        %v939 = vrot.slane %v937, 1
        %v940 = vsel %vm703, %v935, %v939
        %v941 = vshrl.u32 %v698, 16
        %v943 = vor.u32 %v941, %v939
        %v945 = vshrl.u32 %v699, 16
        %v947 = vshll.u32 %v699, 16
        %v949 = vrot.slane %v947, 1
        %v950 = vor.u32 %v945, %v949
        %v952 = vshll.u32 %v700, 16
        %v954 = vrot.slane %v952, 1
        %v955 = vsel %vm703, %v950, %v954
        %v956 = vshrl.u32 %v700, 16
        %v958 = vor.u32 %v956, %v954
        %v960 = vshrl.u32 %v701, 16
        %v962 = vshll.u32 %v701, 16
        %v964 = vrot.slane %v962, 1
        %v965 = vor.u32 %v960, %v964
        %v967 = vshll.u32 %v702, 16
        %v969 = vrot.slane %v967, 1
        %v970 = vsel %vm703, %v965, %v969
        %v971 = vshrl.u32 %v702, 16
        %v973 = vor.u32 %v971, %v969
        %974 = vrot.lane.b32.xlu0 %v715, 32
        %v975 = vpop.permute.xlu0 %974
        %976 = vrot.lane.b32.xlu0 %v718, 32
        %v977 = vpop.permute.xlu0 %976
        %978 = vrot.lane.b32.xlu0 %v730, 32
        %v979 = vpop.permute.xlu0 %978
        %980 = vrot.lane.b32.xlu0 %v733, 32
        %v981 = vpop.permute.xlu0 %980
        %982 = vrot.lane.b32.xlu0 %v745, 32
        %v983 = vpop.permute.xlu0 %982
        %984 = vrot.lane.b32.xlu0 %v748, 32
        %v985 = vpop.permute.xlu0 %984
        %986 = vrot.lane.b32.xlu0 %v760, 32
        %v987 = vpop.permute.xlu0 %986
        %988 = vrot.lane.b32.xlu0 %v763, 32
        %v989 = vpop.permute.xlu0 %988
        %990 = vrot.lane.b32.xlu0 %v775, 32
        %v991 = vpop.permute.xlu0 %990
        %992 = vrot.lane.b32.xlu0 %v778, 32
        %v993 = vpop.permute.xlu0 %992
        %994 = vrot.lane.b32.xlu0 %v790, 32
        %v995 = vpop.permute.xlu0 %994
        %996 = vrot.lane.b32.xlu0 %v793, 32
        %v997 = vpop.permute.xlu0 %996
        %998 = vrot.lane.b32.xlu0 %v805, 32
        %v999 = vpop.permute.xlu0 %998
        %1000 = vrot.lane.b32.xlu0 %v808, 32
        %v1001 = vpop.permute.xlu0 %1000
        %1002 = vrot.lane.b32.xlu0 %v820, 32
        %v1003 = vpop.permute.xlu0 %1002
        %1004 = vrot.lane.b32.xlu0 %v823, 32
        %v1005 = vpop.permute.xlu0 %1004
        %1006 = vrot.lane.b32.xlu0 %v835, 32
        %v1007 = vpop.permute.xlu0 %1006
        %1008 = vrot.lane.b32.xlu0 %v838, 32
        %v1009 = vpop.permute.xlu0 %1008
        %1010 = vrot.lane.b32.xlu0 %v850, 32
        %v1011 = vpop.permute.xlu0 %1010
        %1012 = vrot.lane.b32.xlu0 %v853, 32
        %v1013 = vpop.permute.xlu0 %1012
        %1014 = vrot.lane.b32.xlu0 %v865, 32
        %v1015 = vpop.permute.xlu0 %1014
        %1016 = vrot.lane.b32.xlu0 %v868, 32
        %v1017 = vpop.permute.xlu0 %1016
        %1018 = vrot.lane.b32.xlu0 %v880, 32
        %v1019 = vpop.permute.xlu0 %1018
        %1020 = vrot.lane.b32.xlu0 %v883, 32
        %v1021 = vpop.permute.xlu0 %1020
        %1022 = vrot.lane.b32.xlu0 %v895, 32
        %v1023 = vpop.permute.xlu0 %1022
        %1024 = vrot.lane.b32.xlu0 %v898, 32
        %v1025 = vpop.permute.xlu0 %1024
        %1026 = vrot.lane.b32.xlu0 %v910, 32
        %v1027 = vpop.permute.xlu0 %1026
        %1028 = vrot.lane.b32.xlu0 %v913, 32
        %v1029 = vpop.permute.xlu0 %1028
        %1030 = vrot.lane.b32.xlu0 %v925, 32
        %v1031 = vpop.permute.xlu0 %1030
        %1032 = vrot.lane.b32.xlu0 %v928, 32
        %v1033 = vpop.permute.xlu0 %1032
        %1034 = vrot.lane.b32.xlu0 %v940, 32
        %v1035 = vpop.permute.xlu0 %1034
        %1036 = vrot.lane.b32.xlu0 %v943, 32
        %v1037 = vpop.permute.xlu0 %1036
        %1038 = vrot.lane.b32.xlu0 %v955, 32
        %v1039 = vpop.permute.xlu0 %1038
        %1040 = vrot.lane.b32.xlu0 %v958, 32
        %v1041 = vpop.permute.xlu0 %1040
        %1042 = vrot.lane.b32.xlu0 %v970, 32
        %v1043 = vpop.permute.xlu0 %1042
        %1044 = vrot.lane.b32.xlu0 %v973, 32
        %v1045 = vpop.permute.xlu0 %1044
        %vm1082 = vcmask 1046528
        %v1083 = vrot.slane %v667, 1
        %v1084 = vrot.slane %v668, 1
        %v1085 = vsel %vm1082, %v1083, %v1084
        %v1086 = vrot.slane %v669, 1
        %v1087 = vrot.slane %v670, 1
        %v1088 = vsel %vm1082, %v1086, %v1087
        %v1089 = vrot.slane %v671, 1
        %v1090 = vrot.slane %v672, 1
        %v1091 = vsel %vm1082, %v1089, %v1090
        %v1092 = vrot.slane %v673, 1
        %v1093 = vrot.slane %v674, 1
        %v1094 = vsel %vm1082, %v1092, %v1093
        %v1095 = vrot.slane %v675, 1
        %v1096 = vrot.slane %v676, 1
        %v1097 = vsel %vm1082, %v1095, %v1096
        %v1098 = vrot.slane %v677, 1
        %v1099 = vrot.slane %v678, 1
        %v1100 = vsel %vm1082, %v1098, %v1099
        %v1101 = vrot.slane %v679, 1
        %v1102 = vrot.slane %v680, 1
        %v1103 = vsel %vm1082, %v1101, %v1102
        %v1104 = vrot.slane %v681, 1
        %v1105 = vrot.slane %v682, 1
        %v1106 = vsel %vm1082, %v1104, %v1105
        %v1107 = vrot.slane %v683, 1
        %v1108 = vrot.slane %v684, 1
        %v1109 = vsel %vm1082, %v1107, %v1108
        %v1110 = vrot.slane %v685, 1
        %v1111 = vrot.slane %v686, 1
        %v1112 = vsel %vm1082, %v1110, %v1111
        %v1113 = vrot.slane %v687, 1
        %v1114 = vrot.slane %v688, 1
        %v1115 = vsel %vm1082, %v1113, %v1114
        %v1116 = vrot.slane %v689, 1
        %v1117 = vrot.slane %v690, 1
        %v1118 = vsel %vm1082, %v1116, %v1117
        %v1119 = vrot.slane %v691, 1
        %v1120 = vrot.slane %v692, 1
        %v1121 = vsel %vm1082, %v1119, %v1120
        %v1122 = vrot.slane %v693, 1
        %v1123 = vrot.slane %v694, 1
        %v1124 = vsel %vm1082, %v1122, %v1123
        %v1125 = vrot.slane %v695, 1
        %v1126 = vrot.slane %v696, 1
        %v1127 = vsel %vm1082, %v1125, %v1126
        %v1128 = vrot.slane %v697, 1
        %v1129 = vrot.slane %v698, 1
        %v1130 = vsel %vm1082, %v1128, %v1129
        %v1131 = vrot.slane %v699, 1
        %v1132 = vrot.slane %v700, 1
        %v1133 = vsel %vm1082, %v1131, %v1132
        %v1134 = vrot.slane %v701, 1
        %v1135 = vrot.slane %v702, 1
        %v1136 = vsel %vm1082, %v1134, %v1135
        %1137 = vrot.lane.b32.xlu0 %v1085, 64
        %v1138 = vpop.permute.xlu0 %1137
        %1139 = vrot.lane.b32.xlu0 %v1084, 64
        %v1140 = vpop.permute.xlu0 %1139
        %1141 = vrot.lane.b32.xlu0 %v1088, 64
        %v1142 = vpop.permute.xlu0 %1141
        %1143 = vrot.lane.b32.xlu0 %v1087, 64
        %v1144 = vpop.permute.xlu0 %1143
        %1145 = vrot.lane.b32.xlu0 %v1091, 64
        %v1146 = vpop.permute.xlu0 %1145
        %1147 = vrot.lane.b32.xlu0 %v1090, 64
        %v1148 = vpop.permute.xlu0 %1147
        %1149 = vrot.lane.b32.xlu0 %v1094, 64
        %v1150 = vpop.permute.xlu0 %1149
        %1151 = vrot.lane.b32.xlu0 %v1093, 64
        %v1152 = vpop.permute.xlu0 %1151
        %1153 = vrot.lane.b32.xlu0 %v1097, 64
        %v1154 = vpop.permute.xlu0 %1153
        %1155 = vrot.lane.b32.xlu0 %v1096, 64
        %v1156 = vpop.permute.xlu0 %1155
        %1157 = vrot.lane.b32.xlu0 %v1100, 64
        %v1158 = vpop.permute.xlu0 %1157
        %1159 = vrot.lane.b32.xlu0 %v1099, 64
        %v1160 = vpop.permute.xlu0 %1159
        %1161 = vrot.lane.b32.xlu0 %v1103, 64
        %v1162 = vpop.permute.xlu0 %1161
        %1163 = vrot.lane.b32.xlu0 %v1102, 64
        %v1164 = vpop.permute.xlu0 %1163
        %1165 = vrot.lane.b32.xlu0 %v1106, 64
        %v1166 = vpop.permute.xlu0 %1165
        %1167 = vrot.lane.b32.xlu0 %v1105, 64
        %v1168 = vpop.permute.xlu0 %1167
        %1169 = vrot.lane.b32.xlu0 %v1109, 64
        %v1170 = vpop.permute.xlu0 %1169
        %1171 = vrot.lane.b32.xlu0 %v1108, 64
        %v1172 = vpop.permute.xlu0 %1171
        %1173 = vrot.lane.b32.xlu0 %v1112, 64
        %v1174 = vpop.permute.xlu0 %1173
        %1175 = vrot.lane.b32.xlu0 %v1111, 64
        %v1176 = vpop.permute.xlu0 %1175
        %1177 = vrot.lane.b32.xlu0 %v1115, 64
        %v1178 = vpop.permute.xlu0 %1177
        %1179 = vrot.lane.b32.xlu0 %v1114, 64
        %v1180 = vpop.permute.xlu0 %1179
        %1181 = vrot.lane.b32.xlu0 %v1118, 64
        %v1182 = vpop.permute.xlu0 %1181
        %1183 = vrot.lane.b32.xlu0 %v1117, 64
        %v1184 = vpop.permute.xlu0 %1183
        %1185 = vrot.lane.b32.xlu0 %v1121, 64
        %v1186 = vpop.permute.xlu0 %1185
        %1187 = vrot.lane.b32.xlu0 %v1120, 64
        %v1188 = vpop.permute.xlu0 %1187
        %1189 = vrot.lane.b32.xlu0 %v1124, 64
        %v1190 = vpop.permute.xlu0 %1189
        %1191 = vrot.lane.b32.xlu0 %v1123, 64
        %v1192 = vpop.permute.xlu0 %1191
        %1193 = vrot.lane.b32.xlu0 %v1127, 64
        %v1194 = vpop.permute.xlu0 %1193
        %1195 = vrot.lane.b32.xlu0 %v1126, 64
        %v1196 = vpop.permute.xlu0 %1195
        %1197 = vrot.lane.b32.xlu0 %v1130, 64
        %v1198 = vpop.permute.xlu0 %1197
        %1199 = vrot.lane.b32.xlu0 %v1129, 64
        %v1200 = vpop.permute.xlu0 %1199
        %1201 = vrot.lane.b32.xlu0 %v1133, 64
        %v1202 = vpop.permute.xlu0 %1201
        %1203 = vrot.lane.b32.xlu0 %v1132, 64
        %v1204 = vpop.permute.xlu0 %1203
        %1205 = vrot.lane.b32.xlu0 %v1136, 64
        %v1206 = vpop.permute.xlu0 %1205
        %1207 = vrot.lane.b32.xlu0 %v1135, 64
        %v1208 = vpop.permute.xlu0 %1207
        %v1210 = vsel %vm386, %v667, %v975
        %v1212 = vsel %vm386, %v668, %v977
        %v1214 = vsel %vm386, %v669, %v979
        %v1216 = vsel %vm386, %v670, %v981
        %v1218 = vsel %vm386, %v671, %v983
        %v1220 = vsel %vm386, %v672, %v985
        %v1222 = vsel %vm386, %v673, %v987
        %v1224 = vsel %vm386, %v674, %v989
        %v1226 = vsel %vm386, %v675, %v991
        %v1228 = vsel %vm386, %v676, %v993
        %v1230 = vsel %vm386, %v677, %v995
        %v1232 = vsel %vm386, %v678, %v997
        %v1234 = vsel %vm386, %v679, %v999
        %v1236 = vsel %vm386, %v680, %v1001
        %v1238 = vsel %vm386, %v681, %v1003
        %v1240 = vsel %vm386, %v682, %v1005
        %v1242 = vsel %vm386, %v683, %v1007
        %v1244 = vsel %vm386, %v684, %v1009
        %v1246 = vsel %vm386, %v685, %v1011
        %v1248 = vsel %vm386, %v686, %v1013
        %v1250 = vsel %vm386, %v687, %v1015
        %v1252 = vsel %vm386, %v688, %v1017
        %v1254 = vsel %vm386, %v689, %v1019
        %v1256 = vsel %vm386, %v690, %v1021
        %v1258 = vsel %vm386, %v691, %v1023
        %v1260 = vsel %vm386, %v692, %v1025
        %v1262 = vsel %vm386, %v693, %v1027
        %v1264 = vsel %vm386, %v694, %v1029
        %v1266 = vsel %vm386, %v695, %v1031
        %v1268 = vsel %vm386, %v696, %v1033
        %v1270 = vsel %vm386, %v697, %v1035
        %v1272 = vsel %vm386, %v698, %v1037
        %v1274 = vsel %vm386, %v699, %v1039
        %v1276 = vsel %vm386, %v700, %v1041
        %v1278 = vsel %vm386, %v701, %v1043
        %v1280 = vsel %vm386, %v702, %v1045
        %vm1281 = vcmask 523264
        %v1283 = vsel %vm1281, %v1210, %v1138
        %v1285 = vsel %vm1281, %v1212, %v1140
        %v1287 = vsel %vm1281, %v1214, %v1142
        %v1289 = vsel %vm1281, %v1216, %v1144
        %v1291 = vsel %vm1281, %v1218, %v1146
        %v1293 = vsel %vm1281, %v1220, %v1148
        %v1295 = vsel %vm1281, %v1222, %v1150
        %v1297 = vsel %vm1281, %v1224, %v1152
        %v1299 = vsel %vm1281, %v1226, %v1154
        %v1301 = vsel %vm1281, %v1228, %v1156
        %v1303 = vsel %vm1281, %v1230, %v1158
        %v1305 = vsel %vm1281, %v1232, %v1160
        %v1307 = vsel %vm1281, %v1234, %v1162
        %v1309 = vsel %vm1281, %v1236, %v1164
        %v1311 = vsel %vm1281, %v1238, %v1166
        %v1313 = vsel %vm1281, %v1240, %v1168
        %v1315 = vsel %vm1281, %v1242, %v1170
        %v1317 = vsel %vm1281, %v1244, %v1172
        %v1319 = vsel %vm1281, %v1246, %v1174
        %v1321 = vsel %vm1281, %v1248, %v1176
        %v1323 = vsel %vm1281, %v1250, %v1178
        %v1325 = vsel %vm1281, %v1252, %v1180
        %v1327 = vsel %vm1281, %v1254, %v1182
        %v1329 = vsel %vm1281, %v1256, %v1184
        %v1331 = vsel %vm1281, %v1258, %v1186
        %v1333 = vsel %vm1281, %v1260, %v1188
        %v1335 = vsel %vm1281, %v1262, %v1190
        %v1337 = vsel %vm1281, %v1264, %v1192
        %v1339 = vsel %vm1281, %v1266, %v1194
        %v1341 = vsel %vm1281, %v1268, %v1196
        %v1343 = vsel %vm1281, %v1270, %v1198
        %v1345 = vsel %vm1281, %v1272, %v1200
        %v1347 = vsel %vm1281, %v1274, %v1202
        %v1349 = vsel %vm1281, %v1276, %v1204
        %v1351 = vsel %vm1281, %v1278, %v1206
        %v1353 = vsel %vm1281, %v1280, %v1208
        %v1354 = vld [vmem:[%s2] sm:$0x1]
        %v1356 = vlaneseq
        %v1357 = vshrl.u32 %v1356, 7
        %v1358 = vsub.s32 0, %v1357
        %v1359 = vrot.slane %v1354, %v1358
        %vm1361 = vsmask.f32 4352
        %v1362 = vshrl.u32 %v1283, 16
        %v1364 = vrot.slane %v1362, 3
        %v1365 = vshll.u32 %v1283, 16
        %v1367 = vrot.slane %v1365, 4
        %v1368 = vor.u32 %v1364, %v1367
        %v1369 = vshrl.u32 %v1285, 16
        %v1371 = vrot.slane %v1369, 3
        %v1372 = vshll.u32 %v1285, 16
        %v1374 = vrot.slane %v1372, 4
        %v1375 = vor.u32 %v1371, %v1374
        %v1376 = vsel %vm1361, %v1368, %v1375
        %v1377 = vshrl.u32 %v1287, 16
        %v1379 = vrot.slane %v1377, 3
        %v1380 = vshll.u32 %v1287, 16
        %v1382 = vrot.slane %v1380, 4
        %v1383 = vor.u32 %v1379, %v1382
        %v1384 = vshrl.u32 %v1289, 16
        %v1386 = vrot.slane %v1384, 3
        %v1387 = vshll.u32 %v1289, 16
        %v1389 = vrot.slane %v1387, 4
        %v1390 = vor.u32 %v1386, %v1389
        %v1391 = vsel %vm1361, %v1383, %v1390
        %v1392 = vshrl.u32 %v1291, 16
        %v1394 = vrot.slane %v1392, 3
        %v1395 = vshll.u32 %v1291, 16
        %v1397 = vrot.slane %v1395, 4
        %v1398 = vor.u32 %v1394, %v1397
        %v1399 = vshrl.u32 %v1293, 16
        %v1401 = vrot.slane %v1399, 3
        %v1402 = vshll.u32 %v1293, 16
        %v1404 = vrot.slane %v1402, 4
        %v1405 = vor.u32 %v1401, %v1404
        %v1406 = vsel %vm1361, %v1398, %v1405
        %v1407 = vshrl.u32 %v1295, 16
        %v1409 = vrot.slane %v1407, 3
        %v1410 = vshll.u32 %v1295, 16
        %v1412 = vrot.slane %v1410, 4
        %v1413 = vor.u32 %v1409, %v1412
        %v1414 = vshrl.u32 %v1297, 16
        %v1416 = vrot.slane %v1414, 3
        %v1417 = vshll.u32 %v1297, 16
        %v1419 = vrot.slane %v1417, 4
        %v1420 = vor.u32 %v1416, %v1419
        %v1421 = vsel %vm1361, %v1413, %v1420
        %v1422 = vshrl.u32 %v1299, 16
        %v1424 = vrot.slane %v1422, 3
        %v1425 = vshll.u32 %v1299, 16
        %v1427 = vrot.slane %v1425, 4
        %v1428 = vor.u32 %v1424, %v1427
        %v1429 = vshrl.u32 %v1301, 16
        %v1431 = vrot.slane %v1429, 3
        %v1432 = vshll.u32 %v1301, 16
        %v1434 = vrot.slane %v1432, 4
        %v1435 = vor.u32 %v1431, %v1434
        %v1436 = vsel %vm1361, %v1428, %v1435
        %v1437 = vshrl.u32 %v1303, 16
        %v1439 = vrot.slane %v1437, 3
        %v1440 = vshll.u32 %v1303, 16
        %v1442 = vrot.slane %v1440, 4
        %v1443 = vor.u32 %v1439, %v1442
        %v1444 = vshrl.u32 %v1305, 16
        %v1446 = vrot.slane %v1444, 3
        %v1447 = vshll.u32 %v1305, 16
        %v1449 = vrot.slane %v1447, 4
        %v1450 = vor.u32 %v1446, %v1449
        %v1451 = vsel %vm1361, %v1443, %v1450
        %v1452 = vshrl.u32 %v1307, 16
        %v1454 = vrot.slane %v1452, 3
        %v1455 = vshll.u32 %v1307, 16
        %v1457 = vrot.slane %v1455, 4
        %v1458 = vor.u32 %v1454, %v1457
        %v1459 = vshrl.u32 %v1309, 16
        %v1461 = vrot.slane %v1459, 3
        %v1462 = vshll.u32 %v1309, 16
        %v1464 = vrot.slane %v1462, 4
        %v1465 = vor.u32 %v1461, %v1464
        %v1466 = vsel %vm1361, %v1458, %v1465
        %v1467 = vshrl.u32 %v1311, 16
        %v1469 = vrot.slane %v1467, 3
        %v1470 = vshll.u32 %v1311, 16
        %v1472 = vrot.slane %v1470, 4
        %v1473 = vor.u32 %v1469, %v1472
        %v1474 = vshrl.u32 %v1313, 16
        %v1476 = vrot.slane %v1474, 3
        %v1477 = vshll.u32 %v1313, 16
        %v1479 = vrot.slane %v1477, 4
        %v1480 = vor.u32 %v1476, %v1479
        %v1481 = vsel %vm1361, %v1473, %v1480
        %v1482 = vshrl.u32 %v1315, 16
        %v1484 = vrot.slane %v1482, 3
        %v1485 = vshll.u32 %v1315, 16
        %v1487 = vrot.slane %v1485, 4
        %v1488 = vor.u32 %v1484, %v1487
        %v1489 = vshrl.u32 %v1317, 16
        %v1491 = vrot.slane %v1489, 3
        %v1492 = vshll.u32 %v1317, 16
        %v1494 = vrot.slane %v1492, 4
        %v1495 = vor.u32 %v1491, %v1494
        %v1496 = vsel %vm1361, %v1488, %v1495
        %v1497 = vshrl.u32 %v1319, 16
        %v1499 = vrot.slane %v1497, 3
        %v1500 = vshll.u32 %v1319, 16
        %v1502 = vrot.slane %v1500, 4
        %v1503 = vor.u32 %v1499, %v1502
        %v1504 = vshrl.u32 %v1321, 16
        %v1506 = vrot.slane %v1504, 3
        %v1507 = vshll.u32 %v1321, 16
        %v1509 = vrot.slane %v1507, 4
        %v1510 = vor.u32 %v1506, %v1509
        %v1511 = vsel %vm1361, %v1503, %v1510
        %v1512 = vshrl.u32 %v1323, 16
        %v1514 = vrot.slane %v1512, 3
        %v1515 = vshll.u32 %v1323, 16
        %v1517 = vrot.slane %v1515, 4
        %v1518 = vor.u32 %v1514, %v1517
        %v1519 = vshrl.u32 %v1325, 16
        %v1521 = vrot.slane %v1519, 3
        %v1522 = vshll.u32 %v1325, 16
        %v1524 = vrot.slane %v1522, 4
        %v1525 = vor.u32 %v1521, %v1524
        %v1526 = vsel %vm1361, %v1518, %v1525
        %v1527 = vshrl.u32 %v1327, 16
        %v1529 = vrot.slane %v1527, 3
        %v1530 = vshll.u32 %v1327, 16
        %v1532 = vrot.slane %v1530, 4
        %v1533 = vor.u32 %v1529, %v1532
        %v1534 = vshrl.u32 %v1329, 16
        %v1536 = vrot.slane %v1534, 3
        %v1537 = vshll.u32 %v1329, 16
        %v1539 = vrot.slane %v1537, 4
        %v1540 = vor.u32 %v1536, %v1539
        %v1541 = vsel %vm1361, %v1533, %v1540
        %v1542 = vshrl.u32 %v1331, 16
        %v1544 = vrot.slane %v1542, 3
        %v1545 = vshll.u32 %v1331, 16
        %v1547 = vrot.slane %v1545, 4
        %v1548 = vor.u32 %v1544, %v1547
        %v1549 = vshrl.u32 %v1333, 16
        %v1551 = vrot.slane %v1549, 3
        %v1552 = vshll.u32 %v1333, 16
        %v1554 = vrot.slane %v1552, 4
        %v1555 = vor.u32 %v1551, %v1554
        %v1556 = vsel %vm1361, %v1548, %v1555
        %v1557 = vshrl.u32 %v1335, 16
        %v1559 = vrot.slane %v1557, 3
        %v1560 = vshll.u32 %v1335, 16
        %v1562 = vrot.slane %v1560, 4
        %v1563 = vor.u32 %v1559, %v1562
        %v1564 = vshrl.u32 %v1337, 16
        %v1566 = vrot.slane %v1564, 3
        %v1567 = vshll.u32 %v1337, 16
        %v1569 = vrot.slane %v1567, 4
        %v1570 = vor.u32 %v1566, %v1569
        %v1571 = vsel %vm1361, %v1563, %v1570
        %v1572 = vshrl.u32 %v1339, 16
        %v1574 = vrot.slane %v1572, 3
        %v1575 = vshll.u32 %v1339, 16
        %v1577 = vrot.slane %v1575, 4
        %v1578 = vor.u32 %v1574, %v1577
        %v1579 = vshrl.u32 %v1341, 16
        %v1581 = vrot.slane %v1579, 3
        %v1582 = vshll.u32 %v1341, 16
        %v1584 = vrot.slane %v1582, 4
        %v1585 = vor.u32 %v1581, %v1584
        %v1586 = vsel %vm1361, %v1578, %v1585
        %v1587 = vshrl.u32 %v1343, 16
        %v1589 = vrot.slane %v1587, 3
        %v1590 = vshll.u32 %v1343, 16
        %v1592 = vrot.slane %v1590, 4
        %v1593 = vor.u32 %v1589, %v1592
        %v1594 = vshrl.u32 %v1345, 16
        %v1596 = vrot.slane %v1594, 3
        %v1597 = vshll.u32 %v1345, 16
        %v1599 = vrot.slane %v1597, 4
        %v1600 = vor.u32 %v1596, %v1599
        %v1601 = vsel %vm1361, %v1593, %v1600
        %v1602 = vld [vmem:[%s1] sm:$0xf]
        %v1603 = vld [vmem:[%s1 + $0x4] sm:$0xf]
        %v1604 = vld [vmem:[%s1 + $0x8] sm:$0xf]
        %v1605 = vld [vmem:[%s1 + $0xc] sm:$0xf]
        %v1606 = vld [vmem:[%s1 + $0x10] sm:$0xf]
        %v1607 = vld [vmem:[%s1 + $0x14] sm:$0xf]
        %v1608 = vld [vmem:[%s1 + $0x18] sm:$0xf]
        %v1609 = vld [vmem:[%s1 + $0x1c] sm:$0xf]
        %v1610 = vld [vmem:[%s1 + $0x20] sm:$0xf]
        %v1611 = vld [vmem:[%s1 + $0x24] sm:$0xf]
        %v1612 = vld [vmem:[%s1 + $0x28] sm:$0xf]
        %v1613 = vld [vmem:[%s1 + $0x2c] sm:$0xf]
        %v1626 = vunpack.c.l.b16 %v1602
        %v1627 = vunpack.c.l.b16 %v1603
        %v1628 = vunpack.c.l.b16 %v1604
        %v1629 = vunpack.c.l.b16 %v1605
        %v1630 = vunpack.c.l.b16 %v1606
        %v1631 = vunpack.c.l.b16 %v1607
        %v1632 = vunpack.c.l.b16 %v1608
        %v1633 = vunpack.c.l.b16 %v1609
        %v1634 = vunpack.c.l.b16 %v1610
        %v1635 = vunpack.c.l.b16 %v1611
        %v1636 = vunpack.c.l.b16 %v1612
        %v1637 = vunpack.c.l.b16 %v1613
        %v1638 = vpack.c.b16 %v1627, %v1626
        %v1639 = vpack.c.b16 %v1629, %v1628
        %v1640 = vpack.c.b16 %v1631, %v1630
        %v1641 = vpack.c.b16 %v1633, %v1632
        %v1642 = vpack.c.b16 %v1635, %v1634
        %v1643 = vpack.c.b16 %v1637, %v1636
        %vm1650 = vcmask 785408
        %v1652 = vsel %vm1650, %v1376, 0
        %v1655 = vsel %vm1650, %v1391, 0
        %v1658 = vsel %vm1650, %v1406, 0
        %v1661 = vsel %vm1650, %v1421, 0
        %v1664 = vsel %vm1650, %v1436, 0
        %v1667 = vsel %vm1650, %v1451, 0
        %v1670 = vsel %vm1650, %v1466, 0
        %v1673 = vsel %vm1650, %v1481, 0
        %v1676 = vsel %vm1650, %v1496, 0
        %v1679 = vsel %vm1650, %v1511, 0
        %v1682 = vsel %vm1650, %v1526, 0
        %v1685 = vsel %vm1650, %v1541, 0
        %v1688 = vsel %vm1650, %v1556, 0
        %v1691 = vsel %vm1650, %v1571, 0
        %v1694 = vsel %vm1650, %v1586, 0
        %v1697 = vsel %vm1650, %v1601, 0
        %1699 = vmatprep.subr.bf16.mxu0 0
        %1700 = vmatpush1.bf16.msra.mxu0 %v1638
        %1701 = vmatprep.subr.bf16.mxu0 0
        %1702 = vmatpush1.bf16.msra.mxu0 %v1639
        %1703 = vmatprep.subr.bf16.mxu0 0
        %1704 = vmatpush1.bf16.msra.mxu0 %v1640
        %1705 = vmatprep.subr.bf16.mxu0 0
        %1706 = vmatpush1.bf16.msra.mxu0 %v1641
        %1707 = vmatprep.subr.bf16.mxu0 0
        %1708 = vmatpush1.bf16.msra.mxu0 %v1642
        %1709 = vmatprep.subr.bf16.mxu0 0
        %1710 = vmatpush1.bf16.msra.mxu0 %v1643
        %1711 = vmatprep.subr.bf16.mxu0 0
        %1712 = vmatpush1.bf16.msra.mxu0 0
        %1713 = vmatprep.subr.bf16.mxu0 0
        %1714 = vmatpush1.bf16.msra.mxu0 0
        %1715 = vmatprep.subr.bf16.mxu0 0
        %1716 = vmatpush1.bf16.msra.mxu0 0
        %1717 = vmatprep.subr.bf16.mxu0 0
        %1718 = vmatpush1.bf16.msra.mxu0 0
        %1719 = vmatprep.subr.bf16.mxu0 0
        %1720 = vmatpush1.bf16.msra.mxu0 0
        %1721 = vmatprep.subr.bf16.mxu0 0
        %1722 = vmatpush1.bf16.msra.mxu0 0
        %1723 = vmatprep.subr.bf16.mxu0 0
        %1724 = vmatpush1.bf16.msra.mxu0 0
        %1725 = vmatprep.subr.bf16.mxu0 0
        %1726 = vmatpush1.bf16.msra.mxu0 0
        %1727 = vmatprep.subr.bf16.mxu0 0
        %1728 = vmatpush1.bf16.msra.mxu0 0
        %1729 = vmatprep.subr.bf16.mxu0 0
        %1730 = vmatpush1.bf16.msra.mxu0 0
        %1731 = vmatprep.mubr.bf16.mxu0 0
        %1732 = vmatmul.mubr.bf16.gmra.mrb[0].mxu0 %v1652
        %v1733 = vpop.f32.mrb[0].mxu0
        %v1734 = vadd.f32 0.0, %v1733
        %v1735 = vpop.f32.mrb[0].mxu0
        %v1736 = vpop.f32.mrb[0].mxu0
        %v1737 = vadd.f32 0.0, %v1736
        %v1738 = vpop.f32.mrb[0].mxu0
        %1739 = vmatprep.mubr.bf16.mxu0 0
        %1740 = vmatmul.mubr.bf16.gmra.mrb[0].mxu0 %v1655
        %v1741 = vpop.f32.mrb[0].mxu0
        %v1742 = vadd.f32 0.0, %v1741
        %v1743 = vpop.f32.mrb[0].mxu0
        %v1744 = vpop.f32.mrb[0].mxu0
        %v1745 = vadd.f32 0.0, %v1744
        %v1746 = vpop.f32.mrb[0].mxu0
        %1747 = vmatprep.mubr.bf16.mxu0 0
        %1748 = vmatmul.mubr.bf16.gmra.mrb[0].mxu0 %v1658
        %v1749 = vpop.f32.mrb[0].mxu0
        %v1750 = vadd.f32 0.0, %v1749
        %v1751 = vpop.f32.mrb[0].mxu0
        %v1752 = vpop.f32.mrb[0].mxu0
        %v1753 = vadd.f32 0.0, %v1752
        %v1754 = vpop.f32.mrb[0].mxu0
        %1755 = vmatprep.mubr.bf16.mxu0 0
        %1756 = vmatmul.mubr.bf16.gmra.mrb[0].mxu0 %v1661
        %v1757 = vpop.f32.mrb[0].mxu0
        %v1758 = vadd.f32 0.0, %v1757
        %v1759 = vpop.f32.mrb[0].mxu0
        %v1760 = vpop.f32.mrb[0].mxu0
        %v1761 = vadd.f32 0.0, %v1760
        %v1762 = vpop.f32.mrb[0].mxu0
        %1763 = vmatprep.mubr.bf16.mxu0 0
        %1764 = vmatmul.mubr.bf16.gmra.mrb[0].mxu0 %v1664
        %v1765 = vpop.f32.mrb[0].mxu0
        %v1766 = vadd.f32 0.0, %v1765
        %v1767 = vpop.f32.mrb[0].mxu0
        %v1768 = vpop.f32.mrb[0].mxu0
        %v1769 = vadd.f32 0.0, %v1768
        %v1770 = vpop.f32.mrb[0].mxu0
        %1771 = vmatprep.mubr.bf16.mxu0 0
        %1772 = vmatmul.mubr.bf16.gmra.mrb[0].mxu0 %v1667
        %v1773 = vpop.f32.mrb[0].mxu0
        %v1774 = vadd.f32 0.0, %v1773
        %v1775 = vpop.f32.mrb[0].mxu0
        %v1776 = vpop.f32.mrb[0].mxu0
        %v1777 = vadd.f32 0.0, %v1776
        %v1778 = vpop.f32.mrb[0].mxu0
        %1779 = vmatprep.mubr.bf16.mxu0 0
        %1780 = vmatmul.mubr.bf16.gmra.mrb[0].mxu0 %v1670
        %v1781 = vpop.f32.mrb[0].mxu0
        %v1782 = vadd.f32 0.0, %v1781
        %v1783 = vpop.f32.mrb[0].mxu0
        %v1784 = vpop.f32.mrb[0].mxu0
        %v1785 = vadd.f32 0.0, %v1784
        %v1786 = vpop.f32.mrb[0].mxu0
        %1787 = vmatprep.mubr.bf16.mxu0 0
        %1788 = vmatmul.mubr.bf16.gmra.mrb[0].mxu0 %v1673
        %v1789 = vpop.f32.mrb[0].mxu0
        %v1790 = vadd.f32 0.0, %v1789
        %v1791 = vpop.f32.mrb[0].mxu0
        %v1792 = vpop.f32.mrb[0].mxu0
        %v1793 = vadd.f32 0.0, %v1792
        %v1794 = vpop.f32.mrb[0].mxu0
        %1795 = vmatprep.mubr.bf16.mxu0 0
        %1796 = vmatmul.mubr.bf16.gmra.mrb[0].mxu0 %v1676
        %v1797 = vpop.f32.mrb[0].mxu0
        %v1798 = vadd.f32 0.0, %v1797
        %v1799 = vpop.f32.mrb[0].mxu0
        %v1800 = vpop.f32.mrb[0].mxu0
        %v1801 = vadd.f32 0.0, %v1800
        %v1802 = vpop.f32.mrb[0].mxu0
        %1803 = vmatprep.mubr.bf16.mxu0 0
        %1804 = vmatmul.mubr.bf16.gmra.mrb[0].mxu0 %v1679
        %v1805 = vpop.f32.mrb[0].mxu0
        %v1806 = vadd.f32 0.0, %v1805
        %v1807 = vpop.f32.mrb[0].mxu0
        %v1808 = vpop.f32.mrb[0].mxu0
        %v1809 = vadd.f32 0.0, %v1808
        %v1810 = vpop.f32.mrb[0].mxu0
        %1811 = vmatprep.mubr.bf16.mxu0 0
        %1812 = vmatmul.mubr.bf16.gmra.mrb[0].mxu0 %v1682
        %v1813 = vpop.f32.mrb[0].mxu0
        %v1814 = vadd.f32 0.0, %v1813
        %v1815 = vpop.f32.mrb[0].mxu0
        %v1816 = vpop.f32.mrb[0].mxu0
        %v1817 = vadd.f32 0.0, %v1816
        %v1818 = vpop.f32.mrb[0].mxu0
        %1819 = vmatprep.mubr.bf16.mxu0 0
        %1820 = vmatmul.mubr.bf16.gmra.mrb[0].mxu0 %v1685
        %v1821 = vpop.f32.mrb[0].mxu0
        %v1822 = vadd.f32 0.0, %v1821
        %v1823 = vpop.f32.mrb[0].mxu0
        %v1824 = vpop.f32.mrb[0].mxu0
        %v1825 = vadd.f32 0.0, %v1824
        %v1826 = vpop.f32.mrb[0].mxu0
        %1827 = vmatprep.mubr.bf16.mxu0 0
        %1828 = vmatmul.mubr.bf16.gmra.mrb[0].mxu0 %v1688
        %v1829 = vpop.f32.mrb[0].mxu0
        %v1830 = vadd.f32 0.0, %v1829
        %v1831 = vpop.f32.mrb[0].mxu0
        %v1832 = vpop.f32.mrb[0].mxu0
        %v1833 = vadd.f32 0.0, %v1832
        %v1834 = vpop.f32.mrb[0].mxu0
        %1835 = vmatprep.mubr.bf16.mxu0 0
        %1836 = vmatmul.mubr.bf16.gmra.mrb[0].mxu0 %v1691
        %v1837 = vpop.f32.mrb[0].mxu0
        %v1838 = vadd.f32 0.0, %v1837
        %v1839 = vpop.f32.mrb[0].mxu0
        %v1840 = vpop.f32.mrb[0].mxu0
        %v1841 = vadd.f32 0.0, %v1840
        %v1842 = vpop.f32.mrb[0].mxu0
        %1843 = vmatprep.mubr.bf16.mxu0 0
        %1844 = vmatmul.mubr.bf16.gmra.mrb[0].mxu0 %v1694
        %v1845 = vpop.f32.mrb[0].mxu0
        %v1846 = vadd.f32 0.0, %v1845
        %v1847 = vpop.f32.mrb[0].mxu0
        %v1848 = vpop.f32.mrb[0].mxu0
        %v1849 = vadd.f32 0.0, %v1848
        %v1850 = vpop.f32.mrb[0].mxu0
        %1851 = vmatprep.mubr.bf16.mxu0 0
        %1852 = vmatmul.mubr.bf16.gmra.mrb[0].mxu0 %v1697
        %v1853 = vpop.f32.mrb[0].mxu0
        %v1854 = vadd.f32 0.0, %v1853
        %v1855 = vpop.f32.mrb[0].mxu0
        %v1856 = vpop.f32.mrb[0].mxu0
        %v1857 = vadd.f32 0.0, %v1856
        %v1858 = vpop.f32.mrb[0].mxu0
        %1859 = vdwg.mxu0
        %v1860 = vadd.f32 %v1359, %v1734
        %v1861 = vadd.f32 %v1359, %v1737
        %v1862 = vadd.f32 %v1359, %v1742
        %v1863 = vadd.f32 %v1359, %v1745
        %v1864 = vadd.f32 %v1359, %v1750
        %v1865 = vadd.f32 %v1359, %v1753
        %v1866 = vadd.f32 %v1359, %v1758
        %v1867 = vadd.f32 %v1359, %v1761
        %v1868 = vadd.f32 %v1359, %v1766
        %v1869 = vadd.f32 %v1359, %v1769
        %v1870 = vadd.f32 %v1359, %v1774
        %v1871 = vadd.f32 %v1359, %v1777
        %v1872 = vadd.f32 %v1359, %v1782
        %v1873 = vadd.f32 %v1359, %v1785
        %v1874 = vadd.f32 %v1359, %v1790
        %v1875 = vadd.f32 %v1359, %v1793
        %v1876 = vadd.f32 %v1359, %v1798
        %v1877 = vadd.f32 %v1359, %v1801
        %v1878 = vadd.f32 %v1359, %v1806
        %v1879 = vadd.f32 %v1359, %v1809
        %v1880 = vadd.f32 %v1359, %v1814
        %v1881 = vadd.f32 %v1359, %v1817
        %v1882 = vadd.f32 %v1359, %v1822
        %v1883 = vadd.f32 %v1359, %v1825
        %v1884 = vadd.f32 %v1359, %v1830
        %v1885 = vadd.f32 %v1359, %v1833
        %v1886 = vadd.f32 %v1359, %v1838
        %v1887 = vadd.f32 %v1359, %v1841
        %v1888 = vadd.f32 %v1359, %v1846
        %v1889 = vadd.f32 %v1359, %v1849
        %v1890 = vadd.f32 %v1359, %v1854
        %v1891 = vadd.f32 %v1359, %v1857
        %v1892 = vshrl.u32 %v1347, 16
        %v1894 = vrot.slane %v1892, 3
        %v1895 = vshll.u32 %v1347, 16
        %v1897 = vrot.slane %v1895, 4
        %v1898 = vor.u32 %v1894, %v1897
        %v1899 = vshrl.u32 %v1349, 16
        %v1901 = vrot.slane %v1899, 3
        %v1902 = vshll.u32 %v1349, 16
        %v1904 = vrot.slane %v1902, 4
        %v1905 = vor.u32 %v1901, %v1904
        %v1906 = vsel %vm1361, %v1898, %v1905
        %s1907 = scalar_lea.vmem %s1, 48
        %v1908 = vld [vmem:[%s1907] sm:$0xf]
        %v1909 = vld [vmem:[%s1907 + $0x4] sm:$0xf]
        %v1910 = vld [vmem:[%s1907 + $0x8] sm:$0xf]
        %v1911 = vld [vmem:[%s1907 + $0xc] sm:$0xf]
        %v1912 = vld [vmem:[%s1907 + $0x10] sm:$0xf]
        %v1913 = vld [vmem:[%s1907 + $0x14] sm:$0xf]
        %v1914 = vld [vmem:[%s1907 + $0x18] sm:$0xf]
        %v1915 = vld [vmem:[%s1907 + $0x1c] sm:$0xf]
        %v1916 = vld [vmem:[%s1907 + $0x20] sm:$0xf]
        %v1917 = vld [vmem:[%s1907 + $0x24] sm:$0xf]
        %v1918 = vld [vmem:[%s1907 + $0x28] sm:$0xf]
        %v1919 = vld [vmem:[%s1907 + $0x2c] sm:$0xf]
        %v1932 = vunpack.c.l.b16 %v1908
        %v1933 = vunpack.c.l.b16 %v1909
        %v1934 = vunpack.c.l.b16 %v1910
        %v1935 = vunpack.c.l.b16 %v1911
        %v1936 = vunpack.c.l.b16 %v1912
        %v1937 = vunpack.c.l.b16 %v1913
        %v1938 = vunpack.c.l.b16 %v1914
        %v1939 = vunpack.c.l.b16 %v1915
        %v1940 = vunpack.c.l.b16 %v1916
        %v1941 = vunpack.c.l.b16 %v1917
        %v1942 = vunpack.c.l.b16 %v1918
        %v1943 = vunpack.c.l.b16 %v1919
        %v1944 = vpack.c.b16 %v1933, %v1932
        %v1945 = vpack.c.b16 %v1935, %v1934
        %v1946 = vpack.c.b16 %v1937, %v1936
        %v1947 = vpack.c.b16 %v1939, %v1938
        %v1948 = vpack.c.b16 %v1941, %v1940
        %v1949 = vpack.c.b16 %v1943, %v1942
        %v1957 = vsel %vm1650, %v1906, 0
        %1959 = vmatprep.subr.bf16.mxu0 0
        %1960 = vmatpush1.bf16.msra.mxu0 %v1944
        %1961 = vmatprep.subr.bf16.mxu0 0
        %1962 = vmatpush1.bf16.msra.mxu0 %v1945
        %1963 = vmatprep.subr.bf16.mxu0 0
        %1964 = vmatpush1.bf16.msra.mxu0 %v1946
        %1965 = vmatprep.subr.bf16.mxu0 0
        %1966 = vmatpush1.bf16.msra.mxu0 %v1947
        %1967 = vmatprep.subr.bf16.mxu0 0
        %1968 = vmatpush1.bf16.msra.mxu0 %v1948
        %1969 = vmatprep.subr.bf16.mxu0 0
        %1970 = vmatpush1.bf16.msra.mxu0 %v1949
        %1971 = vmatprep.subr.bf16.mxu0 0
        %1972 = vmatpush1.bf16.msra.mxu0 0
        %1973 = vmatprep.subr.bf16.mxu0 0
        %1974 = vmatpush1.bf16.msra.mxu0 0
        %1975 = vmatprep.subr.bf16.mxu0 0
        %1976 = vmatpush1.bf16.msra.mxu0 0
        %1977 = vmatprep.subr.bf16.mxu0 0
        %1978 = vmatpush1.bf16.msra.mxu0 0
        %1979 = vmatprep.subr.bf16.mxu0 0
        %1980 = vmatpush1.bf16.msra.mxu0 0
        %1981 = vmatprep.subr.bf16.mxu0 0
        %1982 = vmatpush1.bf16.msra.mxu0 0
        %1983 = vmatprep.subr.bf16.mxu0 0
        %1984 = vmatpush1.bf16.msra.mxu0 0
        %1985 = vmatprep.subr.bf16.mxu0 0
        %1986 = vmatpush1.bf16.msra.mxu0 0
        %1987 = vmatprep.subr.bf16.mxu0 0
        %1988 = vmatpush1.bf16.msra.mxu0 0
        %1989 = vmatprep.subr.bf16.mxu0 0
        %1990 = vmatpush1.bf16.msra.mxu0 0
        %1991 = vmatprep.mubr.bf16.mxu0 0
        %1992 = vmatmul.mubr.bf16.gmra.mrb[0].mxu0 %v1655
        %v1993 = vpop.f32.mrb[0].mxu0
        %v1994 = vadd.f32 0.0, %v1993
        %v1995 = vpop.f32.mrb[0].mxu0
        %v1996 = vpop.f32.mrb[0].mxu0
        %v1997 = vadd.f32 0.0, %v1996
        %v1998 = vpop.f32.mrb[0].mxu0
        %1999 = vmatprep.mubr.bf16.mxu0 0
        %2000 = vmatmul.mubr.bf16.gmra.mrb[0].mxu0 %v1658
        %v2001 = vpop.f32.mrb[0].mxu0
        %v2002 = vadd.f32 0.0, %v2001
        %v2003 = vpop.f32.mrb[0].mxu0
        %v2004 = vpop.f32.mrb[0].mxu0
        %v2005 = vadd.f32 0.0, %v2004
        %v2006 = vpop.f32.mrb[0].mxu0
        %2007 = vmatprep.mubr.bf16.mxu0 0
        %2008 = vmatmul.mubr.bf16.gmra.mrb[0].mxu0 %v1661
        %v2009 = vpop.f32.mrb[0].mxu0
        %v2010 = vadd.f32 0.0, %v2009
        %v2011 = vpop.f32.mrb[0].mxu0
        %v2012 = vpop.f32.mrb[0].mxu0
        %v2013 = vadd.f32 0.0, %v2012
        %v2014 = vpop.f32.mrb[0].mxu0
        %2015 = vmatprep.mubr.bf16.mxu0 0
        %2016 = vmatmul.mubr.bf16.gmra.mrb[0].mxu0 %v1664
        %v2017 = vpop.f32.mrb[0].mxu0
        %v2018 = vadd.f32 0.0, %v2017
        %v2019 = vpop.f32.mrb[0].mxu0
        %v2020 = vpop.f32.mrb[0].mxu0
        %v2021 = vadd.f32 0.0, %v2020
        %v2022 = vpop.f32.mrb[0].mxu0
        %2023 = vmatprep.mubr.bf16.mxu0 0
        %2024 = vmatmul.mubr.bf16.gmra.mrb[0].mxu0 %v1667
        %v2025 = vpop.f32.mrb[0].mxu0
        %v2026 = vadd.f32 0.0, %v2025
        %v2027 = vpop.f32.mrb[0].mxu0
        %v2028 = vpop.f32.mrb[0].mxu0
        %v2029 = vadd.f32 0.0, %v2028
        %v2030 = vpop.f32.mrb[0].mxu0
        %2031 = vmatprep.mubr.bf16.mxu0 0
        %2032 = vmatmul.mubr.bf16.gmra.mrb[0].mxu0 %v1670
        %v2033 = vpop.f32.mrb[0].mxu0
        %v2034 = vadd.f32 0.0, %v2033
        %v2035 = vpop.f32.mrb[0].mxu0
        %v2036 = vpop.f32.mrb[0].mxu0
        %v2037 = vadd.f32 0.0, %v2036
        %v2038 = vpop.f32.mrb[0].mxu0
        %2039 = vmatprep.mubr.bf16.mxu0 0
        %2040 = vmatmul.mubr.bf16.gmra.mrb[0].mxu0 %v1673
        %v2041 = vpop.f32.mrb[0].mxu0
        %v2042 = vadd.f32 0.0, %v2041
        %v2043 = vpop.f32.mrb[0].mxu0
        %v2044 = vpop.f32.mrb[0].mxu0
        %v2045 = vadd.f32 0.0, %v2044
        %v2046 = vpop.f32.mrb[0].mxu0
        %2047 = vmatprep.mubr.bf16.mxu0 0
        %2048 = vmatmul.mubr.bf16.gmra.mrb[0].mxu0 %v1676
        %v2049 = vpop.f32.mrb[0].mxu0
        %v2050 = vadd.f32 0.0, %v2049
        %v2051 = vpop.f32.mrb[0].mxu0
        %v2052 = vpop.f32.mrb[0].mxu0
        %v2053 = vadd.f32 0.0, %v2052
        %v2054 = vpop.f32.mrb[0].mxu0
        %2055 = vmatprep.mubr.bf16.mxu0 0
        %2056 = vmatmul.mubr.bf16.gmra.mrb[0].mxu0 %v1679
        %v2057 = vpop.f32.mrb[0].mxu0
        %v2058 = vadd.f32 0.0, %v2057
        %v2059 = vpop.f32.mrb[0].mxu0
        %v2060 = vpop.f32.mrb[0].mxu0
        %v2061 = vadd.f32 0.0, %v2060
        %v2062 = vpop.f32.mrb[0].mxu0
        %2063 = vmatprep.mubr.bf16.mxu0 0
        %2064 = vmatmul.mubr.bf16.gmra.mrb[0].mxu0 %v1682
        %v2065 = vpop.f32.mrb[0].mxu0
        %v2066 = vadd.f32 0.0, %v2065
        %v2067 = vpop.f32.mrb[0].mxu0
        %v2068 = vpop.f32.mrb[0].mxu0
        %v2069 = vadd.f32 0.0, %v2068
        %v2070 = vpop.f32.mrb[0].mxu0
        %2071 = vmatprep.mubr.bf16.mxu0 0
        %2072 = vmatmul.mubr.bf16.gmra.mrb[0].mxu0 %v1685
        %v2073 = vpop.f32.mrb[0].mxu0
        %v2074 = vadd.f32 0.0, %v2073
        %v2075 = vpop.f32.mrb[0].mxu0
        %v2076 = vpop.f32.mrb[0].mxu0
        %v2077 = vadd.f32 0.0, %v2076
        %v2078 = vpop.f32.mrb[0].mxu0
        %2079 = vmatprep.mubr.bf16.mxu0 0
        %2080 = vmatmul.mubr.bf16.gmra.mrb[0].mxu0 %v1688
        %v2081 = vpop.f32.mrb[0].mxu0
        %v2082 = vadd.f32 0.0, %v2081
        %v2083 = vpop.f32.mrb[0].mxu0
        %v2084 = vpop.f32.mrb[0].mxu0
        %v2085 = vadd.f32 0.0, %v2084
        %v2086 = vpop.f32.mrb[0].mxu0
        %2087 = vmatprep.mubr.bf16.mxu0 0
        %2088 = vmatmul.mubr.bf16.gmra.mrb[0].mxu0 %v1691
        %v2089 = vpop.f32.mrb[0].mxu0
        %v2090 = vadd.f32 0.0, %v2089
        %v2091 = vpop.f32.mrb[0].mxu0
        %v2092 = vpop.f32.mrb[0].mxu0
        %v2093 = vadd.f32 0.0, %v2092
        %v2094 = vpop.f32.mrb[0].mxu0
        %2095 = vmatprep.mubr.bf16.mxu0 0
        %2096 = vmatmul.mubr.bf16.gmra.mrb[0].mxu0 %v1694
        %v2097 = vpop.f32.mrb[0].mxu0
        %v2098 = vadd.f32 0.0, %v2097
        %v2099 = vpop.f32.mrb[0].mxu0
        %v2100 = vpop.f32.mrb[0].mxu0
        %v2101 = vadd.f32 0.0, %v2100
        %v2102 = vpop.f32.mrb[0].mxu0
        %2103 = vmatprep.mubr.bf16.mxu0 0
        %2104 = vmatmul.mubr.bf16.gmra.mrb[0].mxu0 %v1697
        %v2105 = vpop.f32.mrb[0].mxu0
        %v2106 = vadd.f32 0.0, %v2105
        %v2107 = vpop.f32.mrb[0].mxu0
        %v2108 = vpop.f32.mrb[0].mxu0
        %v2109 = vadd.f32 0.0, %v2108
        %v2110 = vpop.f32.mrb[0].mxu0
        %2111 = vmatprep.mubr.bf16.mxu0 0
        %2112 = vmatmul.mubr.bf16.gmra.mrb[0].mxu0 %v1957
        %v2113 = vpop.f32.mrb[0].mxu0
        %v2114 = vadd.f32 0.0, %v2113
        %v2115 = vpop.f32.mrb[0].mxu0
        %v2116 = vpop.f32.mrb[0].mxu0
        %v2117 = vadd.f32 0.0, %v2116
        %v2118 = vpop.f32.mrb[0].mxu0
        %2119 = vdwg.mxu0
        %v2120 = vadd.f32 %v1860, %v1994
        %v2121 = vadd.f32 %v1861, %v1997
        %v2122 = vadd.f32 %v1862, %v2002
        %v2123 = vadd.f32 %v1863, %v2005
        %v2124 = vadd.f32 %v1864, %v2010
        %v2125 = vadd.f32 %v1865, %v2013
        %v2126 = vadd.f32 %v1866, %v2018
        %v2127 = vadd.f32 %v1867, %v2021
        %v2128 = vadd.f32 %v1868, %v2026
        %v2129 = vadd.f32 %v1869, %v2029
        %v2130 = vadd.f32 %v1870, %v2034
        %v2131 = vadd.f32 %v1871, %v2037
        %v2132 = vadd.f32 %v1872, %v2042
        %v2133 = vadd.f32 %v1873, %v2045
        %v2134 = vadd.f32 %v1874, %v2050
        %v2135 = vadd.f32 %v1875, %v2053
        %v2136 = vadd.f32 %v1876, %v2058
        %v2137 = vadd.f32 %v1877, %v2061
        %v2138 = vadd.f32 %v1878, %v2066
        %v2139 = vadd.f32 %v1879, %v2069
        %v2140 = vadd.f32 %v1880, %v2074
        %v2141 = vadd.f32 %v1881, %v2077
        %v2142 = vadd.f32 %v1882, %v2082
        %v2143 = vadd.f32 %v1883, %v2085
        %v2144 = vadd.f32 %v1884, %v2090
        %v2145 = vadd.f32 %v1885, %v2093
        %v2146 = vadd.f32 %v1886, %v2098
        %v2147 = vadd.f32 %v1887, %v2101
        %v2148 = vadd.f32 %v1888, %v2106
        %v2149 = vadd.f32 %v1889, %v2109
        %v2150 = vadd.f32 %v1890, %v2114
        %v2151 = vadd.f32 %v1891, %v2117
        %v2152 = vshrl.u32 %v1351, 16
        %v2154 = vrot.slane %v2152, 3
        %v2155 = vshll.u32 %v1351, 16
        %v2157 = vrot.slane %v2155, 4
        %v2158 = vor.u32 %v2154, %v2157
        %v2159 = vshrl.u32 %v1353, 16
        %v2161 = vrot.slane %v2159, 3
        %v2162 = vshll.u32 %v1353, 16
        %v2164 = vrot.slane %v2162, 4
        %v2165 = vor.u32 %v2161, %v2164
        %v2166 = vsel %vm1361, %v2158, %v2165
        %s2167 = scalar_lea.vmem %s1, 96
        %v2168 = vld [vmem:[%s2167] sm:$0xf]
        %v2169 = vld [vmem:[%s2167 + $0x4] sm:$0xf]
        %v2170 = vld [vmem:[%s2167 + $0x8] sm:$0xf]
        %v2171 = vld [vmem:[%s2167 + $0xc] sm:$0xf]
        %v2172 = vld [vmem:[%s2167 + $0x10] sm:$0xf]
        %v2173 = vld [vmem:[%s2167 + $0x14] sm:$0xf]
        %v2174 = vld [vmem:[%s2167 + $0x18] sm:$0xf]
        %v2175 = vld [vmem:[%s2167 + $0x1c] sm:$0xf]
        %v2176 = vld [vmem:[%s2167 + $0x20] sm:$0xf]
        %v2177 = vld [vmem:[%s2167 + $0x24] sm:$0xf]
        %v2178 = vld [vmem:[%s2167 + $0x28] sm:$0xf]
        %v2179 = vld [vmem:[%s2167 + $0x2c] sm:$0xf]
        %v2192 = vunpack.c.l.b16 %v2168
        %v2193 = vunpack.c.l.b16 %v2169
        %v2194 = vunpack.c.l.b16 %v2170
        %v2195 = vunpack.c.l.b16 %v2171
        %v2196 = vunpack.c.l.b16 %v2172
        %v2197 = vunpack.c.l.b16 %v2173
        %v2198 = vunpack.c.l.b16 %v2174
        %v2199 = vunpack.c.l.b16 %v2175
        %v2200 = vunpack.c.l.b16 %v2176
        %v2201 = vunpack.c.l.b16 %v2177
        %v2202 = vunpack.c.l.b16 %v2178
        %v2203 = vunpack.c.l.b16 %v2179
        %v2204 = vpack.c.b16 %v2193, %v2192
        %v2205 = vpack.c.b16 %v2195, %v2194
        %v2206 = vpack.c.b16 %v2197, %v2196
        %v2207 = vpack.c.b16 %v2199, %v2198
        %v2208 = vpack.c.b16 %v2201, %v2200
        %v2209 = vpack.c.b16 %v2203, %v2202
        %v2217 = vsel %vm1650, %v2166, 0
        %2219 = vmatprep.subr.bf16.mxu0 0
        %2220 = vmatpush1.bf16.msra.mxu0 %v2204
        %2221 = vmatprep.subr.bf16.mxu0 0
        %2222 = vmatpush1.bf16.msra.mxu0 %v2205
        %2223 = vmatprep.subr.bf16.mxu0 0
        %2224 = vmatpush1.bf16.msra.mxu0 %v2206
        %2225 = vmatprep.subr.bf16.mxu0 0
        %2226 = vmatpush1.bf16.msra.mxu0 %v2207
        %2227 = vmatprep.subr.bf16.mxu0 0
        %2228 = vmatpush1.bf16.msra.mxu0 %v2208
        %2229 = vmatprep.subr.bf16.mxu0 0
        %2230 = vmatpush1.bf16.msra.mxu0 %v2209
        %2231 = vmatprep.subr.bf16.mxu0 0
        %2232 = vmatpush1.bf16.msra.mxu0 0
        %2233 = vmatprep.subr.bf16.mxu0 0
        %2234 = vmatpush1.bf16.msra.mxu0 0
        %2235 = vmatprep.subr.bf16.mxu0 0
        %2236 = vmatpush1.bf16.msra.mxu0 0
        %2237 = vmatprep.subr.bf16.mxu0 0
        %2238 = vmatpush1.bf16.msra.mxu0 0
        %2239 = vmatprep.subr.bf16.mxu0 0
        %2240 = vmatpush1.bf16.msra.mxu0 0
        %2241 = vmatprep.subr.bf16.mxu0 0
        %2242 = vmatpush1.bf16.msra.mxu0 0
        %2243 = vmatprep.subr.bf16.mxu0 0
        %2244 = vmatpush1.bf16.msra.mxu0 0
        %2245 = vmatprep.subr.bf16.mxu0 0
        %2246 = vmatpush1.bf16.msra.mxu0 0
        %2247 = vmatprep.subr.bf16.mxu0 0
        %2248 = vmatpush1.bf16.msra.mxu0 0
        %2249 = vmatprep.subr.bf16.mxu0 0
        %2250 = vmatpush1.bf16.msra.mxu0 0
        %2251 = vmatprep.mubr.bf16.mxu0 0
        %2252 = vmatmul.mubr.bf16.gmra.mrb[0].mxu0 %v1658
        %v2253 = vpop.f32.mrb[0].mxu0
        %v2254 = vadd.f32 0.0, %v2253
        %v2255 = vpop.f32.mrb[0].mxu0
        %v2256 = vpop.f32.mrb[0].mxu0
        %v2257 = vadd.f32 0.0, %v2256
        %v2258 = vpop.f32.mrb[0].mxu0
        %2259 = vmatprep.mubr.bf16.mxu0 0
        %2260 = vmatmul.mubr.bf16.gmra.mrb[0].mxu0 %v1661
        %v2261 = vpop.f32.mrb[0].mxu0
        %v2262 = vadd.f32 0.0, %v2261
        %v2263 = vpop.f32.mrb[0].mxu0
        %v2264 = vpop.f32.mrb[0].mxu0
        %v2265 = vadd.f32 0.0, %v2264
        %v2266 = vpop.f32.mrb[0].mxu0
        %2267 = vmatprep.mubr.bf16.mxu0 0
        %2268 = vmatmul.mubr.bf16.gmra.mrb[0].mxu0 %v1664
        %v2269 = vpop.f32.mrb[0].mxu0
        %v2270 = vadd.f32 0.0, %v2269
        %v2271 = vpop.f32.mrb[0].mxu0
        %v2272 = vpop.f32.mrb[0].mxu0
        %v2273 = vadd.f32 0.0, %v2272
        %v2274 = vpop.f32.mrb[0].mxu0
        %2275 = vmatprep.mubr.bf16.mxu0 0
        %2276 = vmatmul.mubr.bf16.gmra.mrb[0].mxu0 %v1667
        %v2277 = vpop.f32.mrb[0].mxu0
        %v2278 = vadd.f32 0.0, %v2277
        %v2279 = vpop.f32.mrb[0].mxu0
        %v2280 = vpop.f32.mrb[0].mxu0
        %v2281 = vadd.f32 0.0, %v2280
        %v2282 = vpop.f32.mrb[0].mxu0
        %2283 = vmatprep.mubr.bf16.mxu0 0
        %2284 = vmatmul.mubr.bf16.gmra.mrb[0].mxu0 %v1670
        %v2285 = vpop.f32.mrb[0].mxu0
        %v2286 = vadd.f32 0.0, %v2285
        %v2287 = vpop.f32.mrb[0].mxu0
        %v2288 = vpop.f32.mrb[0].mxu0
        %v2289 = vadd.f32 0.0, %v2288
        %v2290 = vpop.f32.mrb[0].mxu0
        %2291 = vmatprep.mubr.bf16.mxu0 0
        %2292 = vmatmul.mubr.bf16.gmra.mrb[0].mxu0 %v1673
        %v2293 = vpop.f32.mrb[0].mxu0
        %v2294 = vadd.f32 0.0, %v2293
        %v2295 = vpop.f32.mrb[0].mxu0
        %v2296 = vpop.f32.mrb[0].mxu0
        %v2297 = vadd.f32 0.0, %v2296
        %v2298 = vpop.f32.mrb[0].mxu0
        %2299 = vmatprep.mubr.bf16.mxu0 0
        %2300 = vmatmul.mubr.bf16.gmra.mrb[0].mxu0 %v1676
        %v2301 = vpop.f32.mrb[0].mxu0
        %v2302 = vadd.f32 0.0, %v2301
        %v2303 = vpop.f32.mrb[0].mxu0
        %v2304 = vpop.f32.mrb[0].mxu0
        %v2305 = vadd.f32 0.0, %v2304
        %v2306 = vpop.f32.mrb[0].mxu0
        %2307 = vmatprep.mubr.bf16.mxu0 0
        %2308 = vmatmul.mubr.bf16.gmra.mrb[0].mxu0 %v1679
        %v2309 = vpop.f32.mrb[0].mxu0
        %v2310 = vadd.f32 0.0, %v2309
        %v2311 = vpop.f32.mrb[0].mxu0
        %v2312 = vpop.f32.mrb[0].mxu0
        %v2313 = vadd.f32 0.0, %v2312
        %v2314 = vpop.f32.mrb[0].mxu0
        %2315 = vmatprep.mubr.bf16.mxu0 0
        %2316 = vmatmul.mubr.bf16.gmra.mrb[0].mxu0 %v1682
        %v2317 = vpop.f32.mrb[0].mxu0
        %v2318 = vadd.f32 0.0, %v2317
        %v2319 = vpop.f32.mrb[0].mxu0
        %v2320 = vpop.f32.mrb[0].mxu0
        %v2321 = vadd.f32 0.0, %v2320
        %v2322 = vpop.f32.mrb[0].mxu0
        %2323 = vmatprep.mubr.bf16.mxu0 0
        %2324 = vmatmul.mubr.bf16.gmra.mrb[0].mxu0 %v1685
        %v2325 = vpop.f32.mrb[0].mxu0
        %v2326 = vadd.f32 0.0, %v2325
        %v2327 = vpop.f32.mrb[0].mxu0
        %v2328 = vpop.f32.mrb[0].mxu0
        %v2329 = vadd.f32 0.0, %v2328
        %v2330 = vpop.f32.mrb[0].mxu0
        %2331 = vmatprep.mubr.bf16.mxu0 0
        %2332 = vmatmul.mubr.bf16.gmra.mrb[0].mxu0 %v1688
        %v2333 = vpop.f32.mrb[0].mxu0
        %v2334 = vadd.f32 0.0, %v2333
        %v2335 = vpop.f32.mrb[0].mxu0
        %v2336 = vpop.f32.mrb[0].mxu0
        %v2337 = vadd.f32 0.0, %v2336
        %v2338 = vpop.f32.mrb[0].mxu0
        %2339 = vmatprep.mubr.bf16.mxu0 0
        %2340 = vmatmul.mubr.bf16.gmra.mrb[0].mxu0 %v1691
        %v2341 = vpop.f32.mrb[0].mxu0
        %v2342 = vadd.f32 0.0, %v2341
        %v2343 = vpop.f32.mrb[0].mxu0
        %v2344 = vpop.f32.mrb[0].mxu0
        %v2345 = vadd.f32 0.0, %v2344
        %v2346 = vpop.f32.mrb[0].mxu0
        %2347 = vmatprep.mubr.bf16.mxu0 0
        %2348 = vmatmul.mubr.bf16.gmra.mrb[0].mxu0 %v1694
        %v2349 = vpop.f32.mrb[0].mxu0
        %v2350 = vadd.f32 0.0, %v2349
        %v2351 = vpop.f32.mrb[0].mxu0
        %v2352 = vpop.f32.mrb[0].mxu0
        %v2353 = vadd.f32 0.0, %v2352
        %v2354 = vpop.f32.mrb[0].mxu0
        %2355 = vmatprep.mubr.bf16.mxu0 0
        %2356 = vmatmul.mubr.bf16.gmra.mrb[0].mxu0 %v1697
        %v2357 = vpop.f32.mrb[0].mxu0
        %v2358 = vadd.f32 0.0, %v2357
        %v2359 = vpop.f32.mrb[0].mxu0
        %v2360 = vpop.f32.mrb[0].mxu0
        %v2361 = vadd.f32 0.0, %v2360
        %v2362 = vpop.f32.mrb[0].mxu0
        %2363 = vmatprep.mubr.bf16.mxu0 0
        %2364 = vmatmul.mubr.bf16.gmra.mrb[0].mxu0 %v1957
        %v2365 = vpop.f32.mrb[0].mxu0
        %v2366 = vadd.f32 0.0, %v2365
        %v2367 = vpop.f32.mrb[0].mxu0
        %v2368 = vpop.f32.mrb[0].mxu0
        %v2369 = vadd.f32 0.0, %v2368
        %v2370 = vpop.f32.mrb[0].mxu0
        %2371 = vmatprep.mubr.bf16.mxu0 0
        %2372 = vmatmul.mubr.bf16.gmra.mrb[0].mxu0 %v2217
        %v2373 = vpop.f32.mrb[0].mxu0
        %v2374 = vadd.f32 0.0, %v2373
        %v2375 = vpop.f32.mrb[0].mxu0
        %v2376 = vpop.f32.mrb[0].mxu0
        %v2377 = vadd.f32 0.0, %v2376
        %v2378 = vpop.f32.mrb[0].mxu0
        %2379 = vdwg.mxu0
        %v2380 = vadd.f32 %v2120, %v2254
        %v2381 = vadd.f32 %v2121, %v2257
        %v2382 = vadd.f32 %v2122, %v2262
        %v2383 = vadd.f32 %v2123, %v2265
        %v2384 = vadd.f32 %v2124, %v2270
        %v2385 = vadd.f32 %v2125, %v2273
        %v2386 = vadd.f32 %v2126, %v2278
        %v2387 = vadd.f32 %v2127, %v2281
        %v2388 = vadd.f32 %v2128, %v2286
        %v2389 = vadd.f32 %v2129, %v2289
        %v2390 = vadd.f32 %v2130, %v2294
        %v2391 = vadd.f32 %v2131, %v2297
        %v2392 = vadd.f32 %v2132, %v2302
        %v2393 = vadd.f32 %v2133, %v2305
        %v2394 = vadd.f32 %v2134, %v2310
        %v2395 = vadd.f32 %v2135, %v2313
        %v2396 = vadd.f32 %v2136, %v2318
        %v2397 = vadd.f32 %v2137, %v2321
        %v2398 = vadd.f32 %v2138, %v2326
        %v2399 = vadd.f32 %v2139, %v2329
        %v2400 = vadd.f32 %v2140, %v2334
        %v2401 = vadd.f32 %v2141, %v2337
        %v2402 = vadd.f32 %v2142, %v2342
        %v2403 = vadd.f32 %v2143, %v2345
        %v2404 = vadd.f32 %v2144, %v2350
        %v2405 = vadd.f32 %v2145, %v2353
        %v2406 = vadd.f32 %v2146, %v2358
        %v2407 = vadd.f32 %v2147, %v2361
        %v2408 = vadd.f32 %v2148, %v2366
        %v2409 = vadd.f32 %v2149, %v2369
        %v2410 = vadd.f32 %v2150, %v2374
        %v2411 = vadd.f32 %v2151, %v2377
        %v2412 = vmax.f32 %v2380, 0.0
        %v2413 = vmax.f32 %v2381, 0.0
        %v2414 = vmax.f32 %v2382, 0.0
        %v2415 = vmax.f32 %v2383, 0.0
        %v2416 = vmax.f32 %v2384, 0.0
        %v2417 = vmax.f32 %v2385, 0.0
        %v2418 = vmax.f32 %v2386, 0.0
        %v2419 = vmax.f32 %v2387, 0.0
        %v2420 = vmax.f32 %v2388, 0.0
        %v2421 = vmax.f32 %v2389, 0.0
        %v2422 = vmax.f32 %v2390, 0.0
        %v2423 = vmax.f32 %v2391, 0.0
        %v2424 = vmax.f32 %v2392, 0.0
        %v2425 = vmax.f32 %v2393, 0.0
        %v2426 = vmax.f32 %v2394, 0.0
        %v2427 = vmax.f32 %v2395, 0.0
        %v2428 = vmax.f32 %v2396, 0.0
        %v2429 = vmax.f32 %v2397, 0.0
        %v2430 = vmax.f32 %v2398, 0.0
        %v2431 = vmax.f32 %v2399, 0.0
        %v2432 = vmax.f32 %v2400, 0.0
        %v2433 = vmax.f32 %v2401, 0.0
        %v2434 = vmax.f32 %v2402, 0.0
        %v2435 = vmax.f32 %v2403, 0.0
        %v2436 = vmax.f32 %v2404, 0.0
        %v2437 = vmax.f32 %v2405, 0.0
        %v2438 = vmax.f32 %v2406, 0.0
        %v2439 = vmax.f32 %v2407, 0.0
        %v2440 = vmax.f32 %v2408, 0.0
        %v2441 = vmax.f32 %v2409, 0.0
        %v2442 = vmax.f32 %v2410, 0.0
        %v2443 = vmax.f32 %v2411, 0.0
        %v2444 = vpack.c.bf16 %v2413, %v2412
        %v2445 = vpack.c.bf16 %v2415, %v2414
        %v2446 = vpack.c.bf16 %v2417, %v2416
        %v2447 = vpack.c.bf16 %v2419, %v2418
        %v2448 = vpack.c.bf16 %v2421, %v2420
        %v2449 = vpack.c.bf16 %v2423, %v2422
        %v2450 = vpack.c.bf16 %v2425, %v2424
        %v2451 = vpack.c.bf16 %v2427, %v2426
        %v2452 = vpack.c.bf16 %v2429, %v2428
        %v2453 = vpack.c.bf16 %v2431, %v2430
        %v2454 = vpack.c.bf16 %v2433, %v2432
        %v2455 = vpack.c.bf16 %v2435, %v2434
        %v2456 = vpack.c.bf16 %v2437, %v2436
        %v2457 = vpack.c.bf16 %v2439, %v2438
        %v2458 = vpack.c.bf16 %v2441, %v2440
        %v2459 = vpack.c.bf16 %v2443, %v2442
        %s2460 = sadd.s32 0, 1
        %v2477 = vrot.slane %v2444, 4
        %v2478 = vrot.slane %v2445, 4
        %v2479 = vrot.slane %v2446, 4
        %v2480 = vrot.slane %v2447, 4
        %v2481 = vrot.slane %v2448, 4
        %v2482 = vrot.slane %v2449, 4
        %v2483 = vrot.slane %v2450, 4
        %v2484 = vrot.slane %v2451, 4
        %v2485 = vrot.slane %v2452, 4
        %v2486 = vrot.slane %v2453, 4
        %v2487 = vrot.slane %v2454, 4
        %v2488 = vrot.slane %v2455, 4
        %v2489 = vrot.slane %v2456, 4
        %v2490 = vrot.slane %v2457, 4
        %v2491 = vrot.slane %v2458, 4
        %v2492 = vrot.slane %v2459, 4
        %s2509 = smul.u32 %s2460, 2
        %s2510 = smul.addr %s2509, 8
        %s2511 = scalar_lea.vmem [#allocation3], %s2510
        %2512 = vst.msk [vmem:[%s2511] sm:$0xf0] %vm411, %v2477
        %2513 = vst.msk [vmem:[%s2511 + $0x8] sm:$0xf] %vm392, %v2477
        %2514 = vst.msk [vmem:[%s2511 + $0x10] sm:$0xf0] %vm411, %v2478
        %2515 = vst.msk [vmem:[%s2511 + $0x18] sm:$0xf] %vm392, %v2478
        %2516 = vst.msk [vmem:[%s2511 + $0x20] sm:$0xf0] %vm411, %v2479
        %2517 = vst.msk [vmem:[%s2511 + $0x28] sm:$0xf] %vm392, %v2479
        %2518 = vst.msk [vmem:[%s2511 + $0x30] sm:$0xf0] %vm411, %v2480
        %2519 = vst.msk [vmem:[%s2511 + $0x38] sm:$0xf] %vm392, %v2480
        %2520 = vst.msk [vmem:[%s2511 + $0x40] sm:$0xf0] %vm411, %v2481
        %2521 = vst.msk [vmem:[%s2511 + $0x48] sm:$0xf] %vm392, %v2481
        %2522 = vst.msk [vmem:[%s2511 + $0x50] sm:$0xf0] %vm411, %v2482
        %2523 = vst.msk [vmem:[%s2511 + $0x58] sm:$0xf] %vm392, %v2482
        %2524 = vst.msk [vmem:[%s2511 + $0x60] sm:$0xf0] %vm411, %v2483
        %2525 = vst.msk [vmem:[%s2511 + $0x68] sm:$0xf] %vm392, %v2483
        %2526 = vst.msk [vmem:[%s2511 + $0x70] sm:$0xf0] %vm411, %v2484
        %2527 = vst.msk [vmem:[%s2511 + $0x78] sm:$0xf] %vm392, %v2484
        %2528 = vst.msk [vmem:[%s2511 + $0x80] sm:$0xf0] %vm411, %v2485
        %2529 = vst.msk [vmem:[%s2511 + $0x88] sm:$0xf] %vm392, %v2485
        %2530 = vst.msk [vmem:[%s2511 + $0x90] sm:$0xf0] %vm411, %v2486
        %2531 = vst.msk [vmem:[%s2511 + $0x98] sm:$0xf] %vm392, %v2486
        %2532 = vst.msk [vmem:[%s2511 + $0xa0] sm:$0xf0] %vm411, %v2487
        %2533 = vst.msk [vmem:[%s2511 + $0xa8] sm:$0xf] %vm392, %v2487
        %2534 = vst.msk [vmem:[%s2511 + $0xb0] sm:$0xf0] %vm411, %v2488
        %2535 = vst.msk [vmem:[%s2511 + $0xb8] sm:$0xf] %vm392, %v2488
        %2536 = vst.msk [vmem:[%s2511 + $0xc0] sm:$0xf0] %vm411, %v2489
        %2537 = vst.msk [vmem:[%s2511 + $0xc8] sm:$0xf] %vm392, %v2489
        %2538 = vst.msk [vmem:[%s2511 + $0xd0] sm:$0xf0] %vm411, %v2490
        %2539 = vst.msk [vmem:[%s2511 + $0xd8] sm:$0xf] %vm392, %v2490
        %2540 = vst.msk [vmem:[%s2511 + $0xe0] sm:$0xf0] %vm411, %v2491
        %2541 = vst.msk [vmem:[%s2511 + $0xe8] sm:$0xf] %vm392, %v2491
        %2542 = vst.msk [vmem:[%s2511 + $0xf0] sm:$0xf0] %vm411, %v2492
        %2543 = vst.msk [vmem:[%s2511 + $0xf8] sm:$0xf] %vm392, %v2492
        %s2544 = smul.addr %s664, 8
        %s2545 = scalar_lea.vmem [#allocation3], %s2544
        %v2546 = vld [vmem:[%s2545] sm:$0xff]
        %v2547 = vld [vmem:[%s2545 + $0x8] sm:$0xff]
        %v2548 = vld [vmem:[%s2545 + $0x10] sm:$0xff]
        %v2549 = vld [vmem:[%s2545 + $0x18] sm:$0xff]
        %v2550 = vld [vmem:[%s2545 + $0x20] sm:$0xff]
        %v2551 = vld [vmem:[%s2545 + $0x28] sm:$0xff]
        %v2552 = vld [vmem:[%s2545 + $0x30] sm:$0xff]
        %v2553 = vld [vmem:[%s2545 + $0x38] sm:$0xff]
        %v2554 = vld [vmem:[%s2545 + $0x40] sm:$0xff]
        %v2555 = vld [vmem:[%s2545 + $0x48] sm:$0xff]
        %v2556 = vld [vmem:[%s2545 + $0x50] sm:$0xff]
        %v2557 = vld [vmem:[%s2545 + $0x58] sm:$0xff]
        %v2558 = vld [vmem:[%s2545 + $0x60] sm:$0xff]
        %v2559 = vld [vmem:[%s2545 + $0x68] sm:$0xff]
        %v2560 = vld [vmem:[%s2545 + $0x70] sm:$0xff]
        %v2561 = vld [vmem:[%s2545 + $0x78] sm:$0xff]
        %v2562 = vld [vmem:[%s2545 + $0x80] sm:$0xff]
        %v2563 = vld [vmem:[%s2545 + $0x88] sm:$0xff]
        %v2564 = vld [vmem:[%s2545 + $0x90] sm:$0xff]
        %v2565 = vld [vmem:[%s2545 + $0x98] sm:$0xff]
        %v2566 = vld [vmem:[%s2545 + $0xa0] sm:$0xff]
        %v2567 = vld [vmem:[%s2545 + $0xa8] sm:$0xff]
        %v2568 = vld [vmem:[%s2545 + $0xb0] sm:$0xff]
        %v2569 = vld [vmem:[%s2545 + $0xb8] sm:$0xff]
        %v2570 = vld [vmem:[%s2545 + $0xc0] sm:$0xff]
        %v2571 = vld [vmem:[%s2545 + $0xc8] sm:$0xff]
        %v2572 = vld [vmem:[%s2545 + $0xd0] sm:$0xff]
        %v2573 = vld [vmem:[%s2545 + $0xd8] sm:$0xff]
        %v2574 = vld [vmem:[%s2545 + $0xe0] sm:$0xff]
        %v2575 = vld [vmem:[%s2545 + $0xe8] sm:$0xff]
        %v2576 = vld [vmem:[%s2545 + $0xf0] sm:$0xff]
        %v2577 = vld [vmem:[%s2545 + $0xf8] sm:$0xff]
        %v2578 = vld [vmem:[%s2545 + $0x100] sm:$0xff]
        %v2579 = vld [vmem:[%s2545 + $0x108] sm:$0xff]
        %v2580 = vld [vmem:[%s2545 + $0x110] sm:$0xff]
        %v2581 = vld [vmem:[%s2545 + $0x118] sm:$0xff]
        %v2583 = vshrl.u32 %v2546, 16
        %v2585 = vshll.u32 %v2546, 16
        %v2587 = vrot.slane %v2585, 1
        %v2588 = vor.u32 %v2583, %v2587
        %v2590 = vshll.u32 %v2547, 16
        %v2592 = vrot.slane %v2590, 1
        %v2593 = vsel %vm703, %v2588, %v2592
        %v2594 = vshrl.u32 %v2547, 16
        %v2596 = vor.u32 %v2594, %v2592
        %v2598 = vshrl.u32 %v2548, 16
        %v2600 = vshll.u32 %v2548, 16
        %v2602 = vrot.slane %v2600, 1
        %v2603 = vor.u32 %v2598, %v2602
        %v2605 = vshll.u32 %v2549, 16
        %v2607 = vrot.slane %v2605, 1
        %v2608 = vsel %vm703, %v2603, %v2607
        %v2609 = vshrl.u32 %v2549, 16
        %v2611 = vor.u32 %v2609, %v2607
        %v2613 = vshrl.u32 %v2550, 16
        %v2615 = vshll.u32 %v2550, 16
        %v2617 = vrot.slane %v2615, 1
        %v2618 = vor.u32 %v2613, %v2617
        %v2620 = vshll.u32 %v2551, 16
        %v2622 = vrot.slane %v2620, 1
        %v2623 = vsel %vm703, %v2618, %v2622
        %v2624 = vshrl.u32 %v2551, 16
        %v2626 = vor.u32 %v2624, %v2622
        %v2628 = vshrl.u32 %v2552, 16
        %v2630 = vshll.u32 %v2552, 16
        %v2632 = vrot.slane %v2630, 1
        %v2633 = vor.u32 %v2628, %v2632
        %v2635 = vshll.u32 %v2553, 16
        %v2637 = vrot.slane %v2635, 1
        %v2638 = vsel %vm703, %v2633, %v2637
        %v2639 = vshrl.u32 %v2553, 16
        %v2641 = vor.u32 %v2639, %v2637
        %v2643 = vshrl.u32 %v2554, 16
        %v2645 = vshll.u32 %v2554, 16
        %v2647 = vrot.slane %v2645, 1
        %v2648 = vor.u32 %v2643, %v2647
        %v2650 = vshll.u32 %v2555, 16
        %v2652 = vrot.slane %v2650, 1
        %v2653 = vsel %vm703, %v2648, %v2652
        %v2654 = vshrl.u32 %v2555, 16
        %v2656 = vor.u32 %v2654, %v2652
        %v2658 = vshrl.u32 %v2556, 16
        %v2660 = vshll.u32 %v2556, 16
        %v2662 = vrot.slane %v2660, 1
        %v2663 = vor.u32 %v2658, %v2662
        %v2665 = vshll.u32 %v2557, 16
        %v2667 = vrot.slane %v2665, 1
        %v2668 = vsel %vm703, %v2663, %v2667
        %v2669 = vshrl.u32 %v2557, 16
        %v2671 = vor.u32 %v2669, %v2667
        %v2673 = vshrl.u32 %v2558, 16
        %v2675 = vshll.u32 %v2558, 16
        %v2677 = vrot.slane %v2675, 1
        %v2678 = vor.u32 %v2673, %v2677
        %v2680 = vshll.u32 %v2559, 16
        %v2682 = vrot.slane %v2680, 1
        %v2683 = vsel %vm703, %v2678, %v2682
        %v2684 = vshrl.u32 %v2559, 16
        %v2686 = vor.u32 %v2684, %v2682
        %v2688 = vshrl.u32 %v2560, 16
        %v2690 = vshll.u32 %v2560, 16
        %v2692 = vrot.slane %v2690, 1
        %v2693 = vor.u32 %v2688, %v2692
        %v2695 = vshll.u32 %v2561, 16
        %v2697 = vrot.slane %v2695, 1
        %v2698 = vsel %vm703, %v2693, %v2697
        %v2699 = vshrl.u32 %v2561, 16
        %v2701 = vor.u32 %v2699, %v2697
        %v2703 = vshrl.u32 %v2562, 16
        %v2705 = vshll.u32 %v2562, 16
        %v2707 = vrot.slane %v2705, 1
        %v2708 = vor.u32 %v2703, %v2707
        %v2710 = vshll.u32 %v2563, 16
        %v2712 = vrot.slane %v2710, 1
        %v2713 = vsel %vm703, %v2708, %v2712
        %v2714 = vshrl.u32 %v2563, 16
        %v2716 = vor.u32 %v2714, %v2712
        %v2718 = vshrl.u32 %v2564, 16
        %v2720 = vshll.u32 %v2564, 16
        %v2722 = vrot.slane %v2720, 1
        %v2723 = vor.u32 %v2718, %v2722
        %v2725 = vshll.u32 %v2565, 16
        %v2727 = vrot.slane %v2725, 1
        %v2728 = vsel %vm703, %v2723, %v2727
        %v2729 = vshrl.u32 %v2565, 16
        %v2731 = vor.u32 %v2729, %v2727
        %v2733 = vshrl.u32 %v2566, 16
        %v2735 = vshll.u32 %v2566, 16
        %v2737 = vrot.slane %v2735, 1
        %v2738 = vor.u32 %v2733, %v2737
        %v2740 = vshll.u32 %v2567, 16
        %v2742 = vrot.slane %v2740, 1
        %v2743 = vsel %vm703, %v2738, %v2742
        %v2744 = vshrl.u32 %v2567, 16
        %v2746 = vor.u32 %v2744, %v2742
        %v2748 = vshrl.u32 %v2568, 16
        %v2750 = vshll.u32 %v2568, 16
        %v2752 = vrot.slane %v2750, 1
        %v2753 = vor.u32 %v2748, %v2752
        %v2755 = vshll.u32 %v2569, 16
        %v2757 = vrot.slane %v2755, 1
        %v2758 = vsel %vm703, %v2753, %v2757
        %v2759 = vshrl.u32 %v2569, 16
        %v2761 = vor.u32 %v2759, %v2757
        %v2763 = vshrl.u32 %v2570, 16
        %v2765 = vshll.u32 %v2570, 16
        %v2767 = vrot.slane %v2765, 1
        %v2768 = vor.u32 %v2763, %v2767
        %v2770 = vshll.u32 %v2571, 16
        %v2772 = vrot.slane %v2770, 1
        %v2773 = vsel %vm703, %v2768, %v2772
        %v2774 = vshrl.u32 %v2571, 16
        %v2776 = vor.u32 %v2774, %v2772
        %v2778 = vshrl.u32 %v2572, 16
        %v2780 = vshll.u32 %v2572, 16
        %v2782 = vrot.slane %v2780, 1
        %v2783 = vor.u32 %v2778, %v2782
        %v2785 = vshll.u32 %v2573, 16
        %v2787 = vrot.slane %v2785, 1
        %v2788 = vsel %vm703, %v2783, %v2787
        %v2789 = vshrl.u32 %v2573, 16
        %v2791 = vor.u32 %v2789, %v2787
        %v2793 = vshrl.u32 %v2574, 16
        %v2795 = vshll.u32 %v2574, 16
        %v2797 = vrot.slane %v2795, 1
        %v2798 = vor.u32 %v2793, %v2797
        %v2800 = vshll.u32 %v2575, 16
        %v2802 = vrot.slane %v2800, 1
        %v2803 = vsel %vm703, %v2798, %v2802
        %v2804 = vshrl.u32 %v2575, 16
        %v2806 = vor.u32 %v2804, %v2802
        %v2808 = vshrl.u32 %v2576, 16
        %v2810 = vshll.u32 %v2576, 16
        %v2812 = vrot.slane %v2810, 1
        %v2813 = vor.u32 %v2808, %v2812
        %v2815 = vshll.u32 %v2577, 16
        %v2817 = vrot.slane %v2815, 1
        %v2818 = vsel %vm703, %v2813, %v2817
        %v2819 = vshrl.u32 %v2577, 16
        %v2821 = vor.u32 %v2819, %v2817
        %v2823 = vshrl.u32 %v2578, 16
        %v2825 = vshll.u32 %v2578, 16
        %v2827 = vrot.slane %v2825, 1
        %v2828 = vor.u32 %v2823, %v2827
        %v2830 = vshll.u32 %v2579, 16
        %v2832 = vrot.slane %v2830, 1
        %v2833 = vsel %vm703, %v2828, %v2832
        %v2834 = vshrl.u32 %v2579, 16
        %v2836 = vor.u32 %v2834, %v2832
        %v2838 = vshrl.u32 %v2580, 16
        %v2840 = vshll.u32 %v2580, 16
        %v2842 = vrot.slane %v2840, 1
        %v2843 = vor.u32 %v2838, %v2842
        %v2845 = vshll.u32 %v2581, 16
        %v2847 = vrot.slane %v2845, 1
        %v2848 = vsel %vm703, %v2843, %v2847
        %v2849 = vshrl.u32 %v2581, 16
        %v2851 = vor.u32 %v2849, %v2847
        %2852 = vrot.lane.b32.xlu0 %v2593, 32
        %v2853 = vpop.permute.xlu0 %2852
        %2854 = vrot.lane.b32.xlu0 %v2596, 32
        %v2855 = vpop.permute.xlu0 %2854
        %2856 = vrot.lane.b32.xlu0 %v2608, 32
        %v2857 = vpop.permute.xlu0 %2856
        %2858 = vrot.lane.b32.xlu0 %v2611, 32
        %v2859 = vpop.permute.xlu0 %2858
        %2860 = vrot.lane.b32.xlu0 %v2623, 32
        %v2861 = vpop.permute.xlu0 %2860
        %2862 = vrot.lane.b32.xlu0 %v2626, 32
        %v2863 = vpop.permute.xlu0 %2862
        %2864 = vrot.lane.b32.xlu0 %v2638, 32
        %v2865 = vpop.permute.xlu0 %2864
        %2866 = vrot.lane.b32.xlu0 %v2641, 32
        %v2867 = vpop.permute.xlu0 %2866
        %2868 = vrot.lane.b32.xlu0 %v2653, 32
        %v2869 = vpop.permute.xlu0 %2868
        %2870 = vrot.lane.b32.xlu0 %v2656, 32
        %v2871 = vpop.permute.xlu0 %2870
        %2872 = vrot.lane.b32.xlu0 %v2668, 32
        %v2873 = vpop.permute.xlu0 %2872
        %2874 = vrot.lane.b32.xlu0 %v2671, 32
        %v2875 = vpop.permute.xlu0 %2874
        %2876 = vrot.lane.b32.xlu0 %v2683, 32
        %v2877 = vpop.permute.xlu0 %2876
        %2878 = vrot.lane.b32.xlu0 %v2686, 32
        %v2879 = vpop.permute.xlu0 %2878
        %2880 = vrot.lane.b32.xlu0 %v2698, 32
        %v2881 = vpop.permute.xlu0 %2880
        %2882 = vrot.lane.b32.xlu0 %v2701, 32
        %v2883 = vpop.permute.xlu0 %2882
        %2884 = vrot.lane.b32.xlu0 %v2713, 32
        %v2885 = vpop.permute.xlu0 %2884
        %2886 = vrot.lane.b32.xlu0 %v2716, 32
        %v2887 = vpop.permute.xlu0 %2886
        %2888 = vrot.lane.b32.xlu0 %v2728, 32
        %v2889 = vpop.permute.xlu0 %2888
        %2890 = vrot.lane.b32.xlu0 %v2731, 32
        %v2891 = vpop.permute.xlu0 %2890
        %2892 = vrot.lane.b32.xlu0 %v2743, 32
        %v2893 = vpop.permute.xlu0 %2892
        %2894 = vrot.lane.b32.xlu0 %v2746, 32
        %v2895 = vpop.permute.xlu0 %2894
        %2896 = vrot.lane.b32.xlu0 %v2758, 32
        %v2897 = vpop.permute.xlu0 %2896
        %2898 = vrot.lane.b32.xlu0 %v2761, 32
        %v2899 = vpop.permute.xlu0 %2898
        %2900 = vrot.lane.b32.xlu0 %v2773, 32
        %v2901 = vpop.permute.xlu0 %2900
        %2902 = vrot.lane.b32.xlu0 %v2776, 32
        %v2903 = vpop.permute.xlu0 %2902
        %2904 = vrot.lane.b32.xlu0 %v2788, 32
        %v2905 = vpop.permute.xlu0 %2904
        %2906 = vrot.lane.b32.xlu0 %v2791, 32
        %v2907 = vpop.permute.xlu0 %2906
        %2908 = vrot.lane.b32.xlu0 %v2803, 32
        %v2909 = vpop.permute.xlu0 %2908
        %2910 = vrot.lane.b32.xlu0 %v2806, 32
        %v2911 = vpop.permute.xlu0 %2910
        %2912 = vrot.lane.b32.xlu0 %v2818, 32
        %v2913 = vpop.permute.xlu0 %2912
        %2914 = vrot.lane.b32.xlu0 %v2821, 32
        %v2915 = vpop.permute.xlu0 %2914
        %2916 = vrot.lane.b32.xlu0 %v2833, 32
        %v2917 = vpop.permute.xlu0 %2916
        %2918 = vrot.lane.b32.xlu0 %v2836, 32
        %v2919 = vpop.permute.xlu0 %2918
        %2920 = vrot.lane.b32.xlu0 %v2848, 32
        %v2921 = vpop.permute.xlu0 %2920
        %2922 = vrot.lane.b32.xlu0 %v2851, 32
        %v2923 = vpop.permute.xlu0 %2922
        %v2960 = vrot.slane %v2546, 1
        %v2961 = vrot.slane %v2547, 1
        %v2962 = vsel %vm1082, %v2960, %v2961
        %v2963 = vrot.slane %v2548, 1
        %v2964 = vrot.slane %v2549, 1
        %v2965 = vsel %vm1082, %v2963, %v2964
        %v2966 = vrot.slane %v2550, 1
        %v2967 = vrot.slane %v2551, 1
        %v2968 = vsel %vm1082, %v2966, %v2967
        %v2969 = vrot.slane %v2552, 1
        %v2970 = vrot.slane %v2553, 1
        %v2971 = vsel %vm1082, %v2969, %v2970
        %v2972 = vrot.slane %v2554, 1
        %v2973 = vrot.slane %v2555, 1
        %v2974 = vsel %vm1082, %v2972, %v2973
        %v2975 = vrot.slane %v2556, 1
        %v2976 = vrot.slane %v2557, 1
        %v2977 = vsel %vm1082, %v2975, %v2976
        %v2978 = vrot.slane %v2558, 1
        %v2979 = vrot.slane %v2559, 1
        %v2980 = vsel %vm1082, %v2978, %v2979
        %v2981 = vrot.slane %v2560, 1
        %v2982 = vrot.slane %v2561, 1
        %v2983 = vsel %vm1082, %v2981, %v2982
        %v2984 = vrot.slane %v2562, 1
        %v2985 = vrot.slane %v2563, 1
        %v2986 = vsel %vm1082, %v2984, %v2985
        %v2987 = vrot.slane %v2564, 1
        %v2988 = vrot.slane %v2565, 1
        %v2989 = vsel %vm1082, %v2987, %v2988
        %v2990 = vrot.slane %v2566, 1
        %v2991 = vrot.slane %v2567, 1
        %v2992 = vsel %vm1082, %v2990, %v2991
        %v2993 = vrot.slane %v2568, 1
        %v2994 = vrot.slane %v2569, 1
        %v2995 = vsel %vm1082, %v2993, %v2994
        %v2996 = vrot.slane %v2570, 1
        %v2997 = vrot.slane %v2571, 1
        %v2998 = vsel %vm1082, %v2996, %v2997
        %v2999 = vrot.slane %v2572, 1
        %v3000 = vrot.slane %v2573, 1
        %v3001 = vsel %vm1082, %v2999, %v3000
        %v3002 = vrot.slane %v2574, 1
        %v3003 = vrot.slane %v2575, 1
        %v3004 = vsel %vm1082, %v3002, %v3003
        %v3005 = vrot.slane %v2576, 1
        %v3006 = vrot.slane %v2577, 1
        %v3007 = vsel %vm1082, %v3005, %v3006
        %v3008 = vrot.slane %v2578, 1
        %v3009 = vrot.slane %v2579, 1
        %v3010 = vsel %vm1082, %v3008, %v3009
        %v3011 = vrot.slane %v2580, 1
        %v3012 = vrot.slane %v2581, 1
        %v3013 = vsel %vm1082, %v3011, %v3012
        %3014 = vrot.lane.b32.xlu0 %v2962, 64
        %v3015 = vpop.permute.xlu0 %3014
        %3016 = vrot.lane.b32.xlu0 %v2961, 64
        %v3017 = vpop.permute.xlu0 %3016
        %3018 = vrot.lane.b32.xlu0 %v2965, 64
        %v3019 = vpop.permute.xlu0 %3018
        %3020 = vrot.lane.b32.xlu0 %v2964, 64
        %v3021 = vpop.permute.xlu0 %3020
        %3022 = vrot.lane.b32.xlu0 %v2968, 64
        %v3023 = vpop.permute.xlu0 %3022
        %3024 = vrot.lane.b32.xlu0 %v2967, 64
        %v3025 = vpop.permute.xlu0 %3024
        %3026 = vrot.lane.b32.xlu0 %v2971, 64
        %v3027 = vpop.permute.xlu0 %3026
        %3028 = vrot.lane.b32.xlu0 %v2970, 64
        %v3029 = vpop.permute.xlu0 %3028
        %3030 = vrot.lane.b32.xlu0 %v2974, 64
        %v3031 = vpop.permute.xlu0 %3030
        %3032 = vrot.lane.b32.xlu0 %v2973, 64
        %v3033 = vpop.permute.xlu0 %3032
        %3034 = vrot.lane.b32.xlu0 %v2977, 64
        %v3035 = vpop.permute.xlu0 %3034
        %3036 = vrot.lane.b32.xlu0 %v2976, 64
        %v3037 = vpop.permute.xlu0 %3036
        %3038 = vrot.lane.b32.xlu0 %v2980, 64
        %v3039 = vpop.permute.xlu0 %3038
        %3040 = vrot.lane.b32.xlu0 %v2979, 64
        %v3041 = vpop.permute.xlu0 %3040
        %3042 = vrot.lane.b32.xlu0 %v2983, 64
        %v3043 = vpop.permute.xlu0 %3042
        %3044 = vrot.lane.b32.xlu0 %v2982, 64
        %v3045 = vpop.permute.xlu0 %3044
        %3046 = vrot.lane.b32.xlu0 %v2986, 64
        %v3047 = vpop.permute.xlu0 %3046
        %3048 = vrot.lane.b32.xlu0 %v2985, 64
        %v3049 = vpop.permute.xlu0 %3048
        %3050 = vrot.lane.b32.xlu0 %v2989, 64
        %v3051 = vpop.permute.xlu0 %3050
        %3052 = vrot.lane.b32.xlu0 %v2988, 64
        %v3053 = vpop.permute.xlu0 %3052
        %3054 = vrot.lane.b32.xlu0 %v2992, 64
        %v3055 = vpop.permute.xlu0 %3054
        %3056 = vrot.lane.b32.xlu0 %v2991, 64
        %v3057 = vpop.permute.xlu0 %3056
        %3058 = vrot.lane.b32.xlu0 %v2995, 64
        %v3059 = vpop.permute.xlu0 %3058
        %3060 = vrot.lane.b32.xlu0 %v2994, 64
        %v3061 = vpop.permute.xlu0 %3060
        %3062 = vrot.lane.b32.xlu0 %v2998, 64
        %v3063 = vpop.permute.xlu0 %3062
        %3064 = vrot.lane.b32.xlu0 %v2997, 64
        %v3065 = vpop.permute.xlu0 %3064
        %3066 = vrot.lane.b32.xlu0 %v3001, 64
        %v3067 = vpop.permute.xlu0 %3066
        %3068 = vrot.lane.b32.xlu0 %v3000, 64
        %v3069 = vpop.permute.xlu0 %3068
        %3070 = vrot.lane.b32.xlu0 %v3004, 64
        %v3071 = vpop.permute.xlu0 %3070
        %3072 = vrot.lane.b32.xlu0 %v3003, 64
        %v3073 = vpop.permute.xlu0 %3072
        %3074 = vrot.lane.b32.xlu0 %v3007, 64
        %v3075 = vpop.permute.xlu0 %3074
        %3076 = vrot.lane.b32.xlu0 %v3006, 64
        %v3077 = vpop.permute.xlu0 %3076
        %3078 = vrot.lane.b32.xlu0 %v3010, 64
        %v3079 = vpop.permute.xlu0 %3078
        %3080 = vrot.lane.b32.xlu0 %v3009, 64
        %v3081 = vpop.permute.xlu0 %3080
        %3082 = vrot.lane.b32.xlu0 %v3013, 64
        %v3083 = vpop.permute.xlu0 %3082
        %3084 = vrot.lane.b32.xlu0 %v3012, 64
        %v3085 = vpop.permute.xlu0 %3084
        %v3087 = vsel %vm386, %v2546, %v2853
        %v3089 = vsel %vm386, %v2547, %v2855
        %v3091 = vsel %vm386, %v2548, %v2857
        %v3093 = vsel %vm386, %v2549, %v2859
        %v3095 = vsel %vm386, %v2550, %v2861
        %v3097 = vsel %vm386, %v2551, %v2863
        %v3099 = vsel %vm386, %v2552, %v2865
        %v3101 = vsel %vm386, %v2553, %v2867
        %v3103 = vsel %vm386, %v2554, %v2869
        %v3105 = vsel %vm386, %v2555, %v2871
        %v3107 = vsel %vm386, %v2556, %v2873
        %v3109 = vsel %vm386, %v2557, %v2875
        %v3111 = vsel %vm386, %v2558, %v2877
        %v3113 = vsel %vm386, %v2559, %v2879
        %v3115 = vsel %vm386, %v2560, %v2881
        %v3117 = vsel %vm386, %v2561, %v2883
        %v3119 = vsel %vm386, %v2562, %v2885
        %v3121 = vsel %vm386, %v2563, %v2887
        %v3123 = vsel %vm386, %v2564, %v2889
        %v3125 = vsel %vm386, %v2565, %v2891
        %v3127 = vsel %vm386, %v2566, %v2893
        %v3129 = vsel %vm386, %v2567, %v2895
        %v3131 = vsel %vm386, %v2568, %v2897
        %v3133 = vsel %vm386, %v2569, %v2899
        %v3135 = vsel %vm386, %v2570, %v2901
        %v3137 = vsel %vm386, %v2571, %v2903
        %v3139 = vsel %vm386, %v2572, %v2905
        %v3141 = vsel %vm386, %v2573, %v2907
        %v3143 = vsel %vm386, %v2574, %v2909
        %v3145 = vsel %vm386, %v2575, %v2911
        %v3147 = vsel %vm386, %v2576, %v2913
        %v3149 = vsel %vm386, %v2577, %v2915
        %v3151 = vsel %vm386, %v2578, %v2917
        %v3153 = vsel %vm386, %v2579, %v2919
        %v3155 = vsel %vm386, %v2580, %v2921
        %v3157 = vsel %vm386, %v2581, %v2923
        %v3159 = vsel %vm1281, %v3087, %v3015
        %v3161 = vsel %vm1281, %v3089, %v3017
        %v3163 = vsel %vm1281, %v3091, %v3019
        %v3165 = vsel %vm1281, %v3093, %v3021
        %v3167 = vsel %vm1281, %v3095, %v3023
        %v3169 = vsel %vm1281, %v3097, %v3025
        %v3171 = vsel %vm1281, %v3099, %v3027
        %v3173 = vsel %vm1281, %v3101, %v3029
        %v3175 = vsel %vm1281, %v3103, %v3031
        %v3177 = vsel %vm1281, %v3105, %v3033
        %v3179 = vsel %vm1281, %v3107, %v3035
        %v3181 = vsel %vm1281, %v3109, %v3037
        %v3183 = vsel %vm1281, %v3111, %v3039
        %v3185 = vsel %vm1281, %v3113, %v3041
        %v3187 = vsel %vm1281, %v3115, %v3043
        %v3189 = vsel %vm1281, %v3117, %v3045
        %v3191 = vsel %vm1281, %v3119, %v3047
        %v3193 = vsel %vm1281, %v3121, %v3049
        %v3195 = vsel %vm1281, %v3123, %v3051
        %v3197 = vsel %vm1281, %v3125, %v3053
        %v3199 = vsel %vm1281, %v3127, %v3055
        %v3201 = vsel %vm1281, %v3129, %v3057
        %v3203 = vsel %vm1281, %v3131, %v3059
        %v3205 = vsel %vm1281, %v3133, %v3061
        %v3207 = vsel %vm1281, %v3135, %v3063
        %v3209 = vsel %vm1281, %v3137, %v3065
        %v3211 = vsel %vm1281, %v3139, %v3067
        %v3213 = vsel %vm1281, %v3141, %v3069
        %v3215 = vsel %vm1281, %v3143, %v3071
        %v3217 = vsel %vm1281, %v3145, %v3073
        %v3219 = vsel %vm1281, %v3147, %v3075
        %v3221 = vsel %vm1281, %v3149, %v3077
        %v3223 = vsel %vm1281, %v3151, %v3079
        %v3225 = vsel %vm1281, %v3153, %v3081
        %v3227 = vsel %vm1281, %v3155, %v3083
        %v3229 = vsel %vm1281, %v3157, %v3085
        %v3230 = vld [vmem:[%s4] sm:$0x1]
        %v3232 = vlaneseq
        %v3233 = vshrl.u32 %v3232, 7
        %v3234 = vsub.s32 0, %v3233
        %v3235 = vrot.slane %v3230, %v3234
        %v3237 = vshrl.u32 %v3159, 16
        %v3239 = vrot.slane %v3237, 3
        %v3240 = vshll.u32 %v3159, 16
        %v3242 = vrot.slane %v3240, 4
        %v3243 = vor.u32 %v3239, %v3242
        %v3244 = vshrl.u32 %v3161, 16
        %v3246 = vrot.slane %v3244, 3
        %v3247 = vshll.u32 %v3161, 16
        %v3249 = vrot.slane %v3247, 4
        %v3250 = vor.u32 %v3246, %v3249
        %v3251 = vsel %vm1361, %v3243, %v3250
        %v3252 = vshrl.u32 %v3163, 16
        %v3254 = vrot.slane %v3252, 3
        %v3255 = vshll.u32 %v3163, 16
        %v3257 = vrot.slane %v3255, 4
        %v3258 = vor.u32 %v3254, %v3257
        %v3259 = vshrl.u32 %v3165, 16
        %v3261 = vrot.slane %v3259, 3
        %v3262 = vshll.u32 %v3165, 16
        %v3264 = vrot.slane %v3262, 4
        %v3265 = vor.u32 %v3261, %v3264
        %v3266 = vsel %vm1361, %v3258, %v3265
        %v3267 = vshrl.u32 %v3167, 16
        %v3269 = vrot.slane %v3267, 3
        %v3270 = vshll.u32 %v3167, 16
        %v3272 = vrot.slane %v3270, 4
        %v3273 = vor.u32 %v3269, %v3272
        %v3274 = vshrl.u32 %v3169, 16
        %v3276 = vrot.slane %v3274, 3
        %v3277 = vshll.u32 %v3169, 16
        %v3279 = vrot.slane %v3277, 4
        %v3280 = vor.u32 %v3276, %v3279
        %v3281 = vsel %vm1361, %v3273, %v3280
        %v3282 = vshrl.u32 %v3171, 16
        %v3284 = vrot.slane %v3282, 3
        %v3285 = vshll.u32 %v3171, 16
        %v3287 = vrot.slane %v3285, 4
        %v3288 = vor.u32 %v3284, %v3287
        %v3289 = vshrl.u32 %v3173, 16
        %v3291 = vrot.slane %v3289, 3
        %v3292 = vshll.u32 %v3173, 16
        %v3294 = vrot.slane %v3292, 4
        %v3295 = vor.u32 %v3291, %v3294
        %v3296 = vsel %vm1361, %v3288, %v3295
        %v3297 = vshrl.u32 %v3175, 16
        %v3299 = vrot.slane %v3297, 3
        %v3300 = vshll.u32 %v3175, 16
        %v3302 = vrot.slane %v3300, 4
        %v3303 = vor.u32 %v3299, %v3302
        %v3304 = vshrl.u32 %v3177, 16
        %v3306 = vrot.slane %v3304, 3
        %v3307 = vshll.u32 %v3177, 16
        %v3309 = vrot.slane %v3307, 4
        %v3310 = vor.u32 %v3306, %v3309
        %v3311 = vsel %vm1361, %v3303, %v3310
        %v3312 = vshrl.u32 %v3179, 16
        %v3314 = vrot.slane %v3312, 3
        %v3315 = vshll.u32 %v3179, 16
        %v3317 = vrot.slane %v3315, 4
        %v3318 = vor.u32 %v3314, %v3317
        %v3319 = vshrl.u32 %v3181, 16
        %v3321 = vrot.slane %v3319, 3
        %v3322 = vshll.u32 %v3181, 16
        %v3324 = vrot.slane %v3322, 4
        %v3325 = vor.u32 %v3321, %v3324
        %v3326 = vsel %vm1361, %v3318, %v3325
        %v3327 = vshrl.u32 %v3183, 16
        %v3329 = vrot.slane %v3327, 3
        %v3330 = vshll.u32 %v3183, 16
        %v3332 = vrot.slane %v3330, 4
        %v3333 = vor.u32 %v3329, %v3332
        %v3334 = vshrl.u32 %v3185, 16
        %v3336 = vrot.slane %v3334, 3
        %v3337 = vshll.u32 %v3185, 16
        %v3339 = vrot.slane %v3337, 4
        %v3340 = vor.u32 %v3336, %v3339
        %v3341 = vsel %vm1361, %v3333, %v3340
        %v3342 = vshrl.u32 %v3187, 16
        %v3344 = vrot.slane %v3342, 3
        %v3345 = vshll.u32 %v3187, 16
        %v3347 = vrot.slane %v3345, 4
        %v3348 = vor.u32 %v3344, %v3347
        %v3349 = vshrl.u32 %v3189, 16
        %v3351 = vrot.slane %v3349, 3
        %v3352 = vshll.u32 %v3189, 16
        %v3354 = vrot.slane %v3352, 4
        %v3355 = vor.u32 %v3351, %v3354
        %v3356 = vsel %vm1361, %v3348, %v3355
        %v3357 = vshrl.u32 %v3191, 16
        %v3359 = vrot.slane %v3357, 3
        %v3360 = vshll.u32 %v3191, 16
        %v3362 = vrot.slane %v3360, 4
        %v3363 = vor.u32 %v3359, %v3362
        %v3364 = vshrl.u32 %v3193, 16
        %v3366 = vrot.slane %v3364, 3
        %v3367 = vshll.u32 %v3193, 16
        %v3369 = vrot.slane %v3367, 4
        %v3370 = vor.u32 %v3366, %v3369
        %v3371 = vsel %vm1361, %v3363, %v3370
        %v3372 = vshrl.u32 %v3195, 16
        %v3374 = vrot.slane %v3372, 3
        %v3375 = vshll.u32 %v3195, 16
        %v3377 = vrot.slane %v3375, 4
        %v3378 = vor.u32 %v3374, %v3377
        %v3379 = vshrl.u32 %v3197, 16
        %v3381 = vrot.slane %v3379, 3
        %v3382 = vshll.u32 %v3197, 16
        %v3384 = vrot.slane %v3382, 4
        %v3385 = vor.u32 %v3381, %v3384
        %v3386 = vsel %vm1361, %v3378, %v3385
        %v3387 = vshrl.u32 %v3199, 16
        %v3389 = vrot.slane %v3387, 3
        %v3390 = vshll.u32 %v3199, 16
        %v3392 = vrot.slane %v3390, 4
        %v3393 = vor.u32 %v3389, %v3392
        %v3394 = vshrl.u32 %v3201, 16
        %v3396 = vrot.slane %v3394, 3
        %v3397 = vshll.u32 %v3201, 16
        %v3399 = vrot.slane %v3397, 4
        %v3400 = vor.u32 %v3396, %v3399
        %v3401 = vsel %vm1361, %v3393, %v3400
        %v3402 = vshrl.u32 %v3203, 16
        %v3404 = vrot.slane %v3402, 3
        %v3405 = vshll.u32 %v3203, 16
        %v3407 = vrot.slane %v3405, 4
        %v3408 = vor.u32 %v3404, %v3407
        %v3409 = vshrl.u32 %v3205, 16
        %v3411 = vrot.slane %v3409, 3
        %v3412 = vshll.u32 %v3205, 16
        %v3414 = vrot.slane %v3412, 4
        %v3415 = vor.u32 %v3411, %v3414
        %v3416 = vsel %vm1361, %v3408, %v3415
        %v3417 = vshrl.u32 %v3207, 16
        %v3419 = vrot.slane %v3417, 3
        %v3420 = vshll.u32 %v3207, 16
        %v3422 = vrot.slane %v3420, 4
        %v3423 = vor.u32 %v3419, %v3422
        %v3424 = vshrl.u32 %v3209, 16
        %v3426 = vrot.slane %v3424, 3
        %v3427 = vshll.u32 %v3209, 16
        %v3429 = vrot.slane %v3427, 4
        %v3430 = vor.u32 %v3426, %v3429
        %v3431 = vsel %vm1361, %v3423, %v3430
        %v3432 = vshrl.u32 %v3211, 16
        %v3434 = vrot.slane %v3432, 3
        %v3435 = vshll.u32 %v3211, 16
        %v3437 = vrot.slane %v3435, 4
        %v3438 = vor.u32 %v3434, %v3437
        %v3439 = vshrl.u32 %v3213, 16
        %v3441 = vrot.slane %v3439, 3
        %v3442 = vshll.u32 %v3213, 16
        %v3444 = vrot.slane %v3442, 4
        %v3445 = vor.u32 %v3441, %v3444
        %v3446 = vsel %vm1361, %v3438, %v3445
        %v3447 = vshrl.u32 %v3215, 16
        %v3449 = vrot.slane %v3447, 3
        %v3450 = vshll.u32 %v3215, 16
        %v3452 = vrot.slane %v3450, 4
        %v3453 = vor.u32 %v3449, %v3452
        %v3454 = vshrl.u32 %v3217, 16
        %v3456 = vrot.slane %v3454, 3
        %v3457 = vshll.u32 %v3217, 16
        %v3459 = vrot.slane %v3457, 4
        %v3460 = vor.u32 %v3456, %v3459
        %v3461 = vsel %vm1361, %v3453, %v3460
        %v3462 = vshrl.u32 %v3219, 16
        %v3464 = vrot.slane %v3462, 3
        %v3465 = vshll.u32 %v3219, 16
        %v3467 = vrot.slane %v3465, 4
        %v3468 = vor.u32 %v3464, %v3467
        %v3469 = vshrl.u32 %v3221, 16
        %v3471 = vrot.slane %v3469, 3
        %v3472 = vshll.u32 %v3221, 16
        %v3474 = vrot.slane %v3472, 4
        %v3475 = vor.u32 %v3471, %v3474
        %v3476 = vsel %vm1361, %v3468, %v3475
        %v3477 = vld [vmem:[%s3] sm:$0xf]
        %v3478 = vld [vmem:[%s3 + $0x4] sm:$0xf]
        %v3479 = vld [vmem:[%s3 + $0x8] sm:$0xf]
        %v3480 = vld [vmem:[%s3 + $0xc] sm:$0xf]
        %v3481 = vld [vmem:[%s3 + $0x10] sm:$0xf]
        %v3482 = vld [vmem:[%s3 + $0x14] sm:$0xf]
        %v3483 = vld [vmem:[%s3 + $0x18] sm:$0xf]
        %v3484 = vld [vmem:[%s3 + $0x1c] sm:$0xf]
        %v3485 = vld [vmem:[%s3 + $0x20] sm:$0xf]
        %v3486 = vld [vmem:[%s3 + $0x24] sm:$0xf]
        %v3487 = vld [vmem:[%s3 + $0x28] sm:$0xf]
        %v3488 = vld [vmem:[%s3 + $0x2c] sm:$0xf]
        %v3501 = vunpack.c.l.b16 %v3477
        %v3502 = vunpack.c.l.b16 %v3478
        %v3503 = vunpack.c.l.b16 %v3479
        %v3504 = vunpack.c.l.b16 %v3480
        %v3505 = vunpack.c.l.b16 %v3481
        %v3506 = vunpack.c.l.b16 %v3482
        %v3507 = vunpack.c.l.b16 %v3483
        %v3508 = vunpack.c.l.b16 %v3484
        %v3509 = vunpack.c.l.b16 %v3485
        %v3510 = vunpack.c.l.b16 %v3486
        %v3511 = vunpack.c.l.b16 %v3487
        %v3512 = vunpack.c.l.b16 %v3488
        %v3513 = vpack.c.b16 %v3502, %v3501
        %v3514 = vpack.c.b16 %v3504, %v3503
        %v3515 = vpack.c.b16 %v3506, %v3505
        %v3516 = vpack.c.b16 %v3508, %v3507
        %v3517 = vpack.c.b16 %v3510, %v3509
        %v3518 = vpack.c.b16 %v3512, %v3511
        %v3526 = vsel %vm1650, %v3251, 0
        %v3529 = vsel %vm1650, %v3266, 0
        %v3532 = vsel %vm1650, %v3281, 0
        %v3535 = vsel %vm1650, %v3296, 0
        %v3538 = vsel %vm1650, %v3311, 0
        %v3541 = vsel %vm1650, %v3326, 0
        %v3544 = vsel %vm1650, %v3341, 0
        %v3547 = vsel %vm1650, %v3356, 0
        %v3550 = vsel %vm1650, %v3371, 0
        %v3553 = vsel %vm1650, %v3386, 0
        %v3556 = vsel %vm1650, %v3401, 0
        %v3559 = vsel %vm1650, %v3416, 0
        %v3562 = vsel %vm1650, %v3431, 0
        %v3565 = vsel %vm1650, %v3446, 0
        %v3568 = vsel %vm1650, %v3461, 0
        %v3571 = vsel %vm1650, %v3476, 0
        %3573 = vmatprep.subr.bf16.mxu0 0
        %3574 = vmatpush1.bf16.msra.mxu0 %v3513
        %3575 = vmatprep.subr.bf16.mxu0 0
        %3576 = vmatpush1.bf16.msra.mxu0 %v3514
        %3577 = vmatprep.subr.bf16.mxu0 0
        %3578 = vmatpush1.bf16.msra.mxu0 %v3515
        %3579 = vmatprep.subr.bf16.mxu0 0
        %3580 = vmatpush1.bf16.msra.mxu0 %v3516
        %3581 = vmatprep.subr.bf16.mxu0 0
        %3582 = vmatpush1.bf16.msra.mxu0 %v3517
        %3583 = vmatprep.subr.bf16.mxu0 0
        %3584 = vmatpush1.bf16.msra.mxu0 %v3518
        %3585 = vmatprep.subr.bf16.mxu0 0
        %3586 = vmatpush1.bf16.msra.mxu0 0
        %3587 = vmatprep.subr.bf16.mxu0 0
        %3588 = vmatpush1.bf16.msra.mxu0 0
        %3589 = vmatprep.subr.bf16.mxu0 0
        %3590 = vmatpush1.bf16.msra.mxu0 0
        %3591 = vmatprep.subr.bf16.mxu0 0
        %3592 = vmatpush1.bf16.msra.mxu0 0
        %3593 = vmatprep.subr.bf16.mxu0 0
        %3594 = vmatpush1.bf16.msra.mxu0 0
        %3595 = vmatprep.subr.bf16.mxu0 0
        %3596 = vmatpush1.bf16.msra.mxu0 0
        %3597 = vmatprep.subr.bf16.mxu0 0
        %3598 = vmatpush1.bf16.msra.mxu0 0
        %3599 = vmatprep.subr.bf16.mxu0 0
        %3600 = vmatpush1.bf16.msra.mxu0 0
        %3601 = vmatprep.subr.bf16.mxu0 0
        %3602 = vmatpush1.bf16.msra.mxu0 0
        %3603 = vmatprep.subr.bf16.mxu0 0
        %3604 = vmatpush1.bf16.msra.mxu0 0
        %3605 = vmatprep.mubr.bf16.mxu0 0
        %3606 = vmatmul.mubr.bf16.gmra.mrb[0].mxu0 %v3526
        %v3607 = vpop.f32.mrb[0].mxu0
        %v3608 = vadd.f32 0.0, %v3607
        %v3609 = vpop.f32.mrb[0].mxu0
        %v3610 = vpop.f32.mrb[0].mxu0
        %v3611 = vadd.f32 0.0, %v3610
        %v3612 = vpop.f32.mrb[0].mxu0
        %3613 = vmatprep.mubr.bf16.mxu0 0
        %3614 = vmatmul.mubr.bf16.gmra.mrb[0].mxu0 %v3529
        %v3615 = vpop.f32.mrb[0].mxu0
        %v3616 = vadd.f32 0.0, %v3615
        %v3617 = vpop.f32.mrb[0].mxu0
        %v3618 = vpop.f32.mrb[0].mxu0
        %v3619 = vadd.f32 0.0, %v3618
        %v3620 = vpop.f32.mrb[0].mxu0
        %3621 = vmatprep.mubr.bf16.mxu0 0
        %3622 = vmatmul.mubr.bf16.gmra.mrb[0].mxu0 %v3532
        %v3623 = vpop.f32.mrb[0].mxu0
        %v3624 = vadd.f32 0.0, %v3623
        %v3625 = vpop.f32.mrb[0].mxu0
        %v3626 = vpop.f32.mrb[0].mxu0
        %v3627 = vadd.f32 0.0, %v3626
        %v3628 = vpop.f32.mrb[0].mxu0
        %3629 = vmatprep.mubr.bf16.mxu0 0
        %3630 = vmatmul.mubr.bf16.gmra.mrb[0].mxu0 %v3535
        %v3631 = vpop.f32.mrb[0].mxu0
        %v3632 = vadd.f32 0.0, %v3631
        %v3633 = vpop.f32.mrb[0].mxu0
        %v3634 = vpop.f32.mrb[0].mxu0
        %v3635 = vadd.f32 0.0, %v3634
        %v3636 = vpop.f32.mrb[0].mxu0
        %3637 = vmatprep.mubr.bf16.mxu0 0
        %3638 = vmatmul.mubr.bf16.gmra.mrb[0].mxu0 %v3538
        %v3639 = vpop.f32.mrb[0].mxu0
        %v3640 = vadd.f32 0.0, %v3639
        %v3641 = vpop.f32.mrb[0].mxu0
        %v3642 = vpop.f32.mrb[0].mxu0
        %v3643 = vadd.f32 0.0, %v3642
        %v3644 = vpop.f32.mrb[0].mxu0
        %3645 = vmatprep.mubr.bf16.mxu0 0
        %3646 = vmatmul.mubr.bf16.gmra.mrb[0].mxu0 %v3541
        %v3647 = vpop.f32.mrb[0].mxu0
        %v3648 = vadd.f32 0.0, %v3647
        %v3649 = vpop.f32.mrb[0].mxu0
        %v3650 = vpop.f32.mrb[0].mxu0
        %v3651 = vadd.f32 0.0, %v3650
        %v3652 = vpop.f32.mrb[0].mxu0
        %3653 = vmatprep.mubr.bf16.mxu0 0
        %3654 = vmatmul.mubr.bf16.gmra.mrb[0].mxu0 %v3544
        %v3655 = vpop.f32.mrb[0].mxu0
        %v3656 = vadd.f32 0.0, %v3655
        %v3657 = vpop.f32.mrb[0].mxu0
        %v3658 = vpop.f32.mrb[0].mxu0
        %v3659 = vadd.f32 0.0, %v3658
        %v3660 = vpop.f32.mrb[0].mxu0
        %3661 = vmatprep.mubr.bf16.mxu0 0
        %3662 = vmatmul.mubr.bf16.gmra.mrb[0].mxu0 %v3547
        %v3663 = vpop.f32.mrb[0].mxu0
        %v3664 = vadd.f32 0.0, %v3663
        %v3665 = vpop.f32.mrb[0].mxu0
        %v3666 = vpop.f32.mrb[0].mxu0
        %v3667 = vadd.f32 0.0, %v3666
        %v3668 = vpop.f32.mrb[0].mxu0
        %3669 = vmatprep.mubr.bf16.mxu0 0
        %3670 = vmatmul.mubr.bf16.gmra.mrb[0].mxu0 %v3550
        %v3671 = vpop.f32.mrb[0].mxu0
        %v3672 = vadd.f32 0.0, %v3671
        %v3673 = vpop.f32.mrb[0].mxu0
        %v3674 = vpop.f32.mrb[0].mxu0
        %v3675 = vadd.f32 0.0, %v3674
        %v3676 = vpop.f32.mrb[0].mxu0
        %3677 = vmatprep.mubr.bf16.mxu0 0
        %3678 = vmatmul.mubr.bf16.gmra.mrb[0].mxu0 %v3553
        %v3679 = vpop.f32.mrb[0].mxu0
        %v3680 = vadd.f32 0.0, %v3679
        %v3681 = vpop.f32.mrb[0].mxu0
        %v3682 = vpop.f32.mrb[0].mxu0
        %v3683 = vadd.f32 0.0, %v3682
        %v3684 = vpop.f32.mrb[0].mxu0
        %3685 = vmatprep.mubr.bf16.mxu0 0
        %3686 = vmatmul.mubr.bf16.gmra.mrb[0].mxu0 %v3556
        %v3687 = vpop.f32.mrb[0].mxu0
        %v3688 = vadd.f32 0.0, %v3687
        %v3689 = vpop.f32.mrb[0].mxu0
        %v3690 = vpop.f32.mrb[0].mxu0
        %v3691 = vadd.f32 0.0, %v3690
        %v3692 = vpop.f32.mrb[0].mxu0
        %3693 = vmatprep.mubr.bf16.mxu0 0
        %3694 = vmatmul.mubr.bf16.gmra.mrb[0].mxu0 %v3559
        %v3695 = vpop.f32.mrb[0].mxu0
        %v3696 = vadd.f32 0.0, %v3695
        %v3697 = vpop.f32.mrb[0].mxu0
        %v3698 = vpop.f32.mrb[0].mxu0
        %v3699 = vadd.f32 0.0, %v3698
        %v3700 = vpop.f32.mrb[0].mxu0
        %3701 = vmatprep.mubr.bf16.mxu0 0
        %3702 = vmatmul.mubr.bf16.gmra.mrb[0].mxu0 %v3562
        %v3703 = vpop.f32.mrb[0].mxu0
        %v3704 = vadd.f32 0.0, %v3703
        %v3705 = vpop.f32.mrb[0].mxu0
        %v3706 = vpop.f32.mrb[0].mxu0
        %v3707 = vadd.f32 0.0, %v3706
        %v3708 = vpop.f32.mrb[0].mxu0
        %3709 = vmatprep.mubr.bf16.mxu0 0
        %3710 = vmatmul.mubr.bf16.gmra.mrb[0].mxu0 %v3565
        %v3711 = vpop.f32.mrb[0].mxu0
        %v3712 = vadd.f32 0.0, %v3711
        %v3713 = vpop.f32.mrb[0].mxu0
        %v3714 = vpop.f32.mrb[0].mxu0
        %v3715 = vadd.f32 0.0, %v3714
        %v3716 = vpop.f32.mrb[0].mxu0
        %3717 = vmatprep.mubr.bf16.mxu0 0
        %3718 = vmatmul.mubr.bf16.gmra.mrb[0].mxu0 %v3568
        %v3719 = vpop.f32.mrb[0].mxu0
        %v3720 = vadd.f32 0.0, %v3719
        %v3721 = vpop.f32.mrb[0].mxu0
        %v3722 = vpop.f32.mrb[0].mxu0
        %v3723 = vadd.f32 0.0, %v3722
        %v3724 = vpop.f32.mrb[0].mxu0
        %3725 = vmatprep.mubr.bf16.mxu0 0
        %3726 = vmatmul.mubr.bf16.gmra.mrb[0].mxu0 %v3571
        %v3727 = vpop.f32.mrb[0].mxu0
        %v3728 = vadd.f32 0.0, %v3727
        %v3729 = vpop.f32.mrb[0].mxu0
        %v3730 = vpop.f32.mrb[0].mxu0
        %v3731 = vadd.f32 0.0, %v3730
        %v3732 = vpop.f32.mrb[0].mxu0
        %3733 = vdwg.mxu0
        %v3734 = vadd.f32 %v3235, %v3608
        %v3735 = vadd.f32 %v3235, %v3611
        %v3736 = vadd.f32 %v3235, %v3616
        %v3737 = vadd.f32 %v3235, %v3619
        %v3738 = vadd.f32 %v3235, %v3624
        %v3739 = vadd.f32 %v3235, %v3627
        %v3740 = vadd.f32 %v3235, %v3632
        %v3741 = vadd.f32 %v3235, %v3635
        %v3742 = vadd.f32 %v3235, %v3640
        %v3743 = vadd.f32 %v3235, %v3643
        %v3744 = vadd.f32 %v3235, %v3648
        %v3745 = vadd.f32 %v3235, %v3651
        %v3746 = vadd.f32 %v3235, %v3656
        %v3747 = vadd.f32 %v3235, %v3659
        %v3748 = vadd.f32 %v3235, %v3664
        %v3749 = vadd.f32 %v3235, %v3667
        %v3750 = vadd.f32 %v3235, %v3672
        %v3751 = vadd.f32 %v3235, %v3675
        %v3752 = vadd.f32 %v3235, %v3680
        %v3753 = vadd.f32 %v3235, %v3683
        %v3754 = vadd.f32 %v3235, %v3688
        %v3755 = vadd.f32 %v3235, %v3691
        %v3756 = vadd.f32 %v3235, %v3696
        %v3757 = vadd.f32 %v3235, %v3699
        %v3758 = vadd.f32 %v3235, %v3704
        %v3759 = vadd.f32 %v3235, %v3707
        %v3760 = vadd.f32 %v3235, %v3712
        %v3761 = vadd.f32 %v3235, %v3715
        %v3762 = vadd.f32 %v3235, %v3720
        %v3763 = vadd.f32 %v3235, %v3723
        %v3764 = vadd.f32 %v3235, %v3728
        %v3765 = vadd.f32 %v3235, %v3731
        %v3766 = vshrl.u32 %v3223, 16
        %v3768 = vrot.slane %v3766, 3
        %v3769 = vshll.u32 %v3223, 16
        %v3771 = vrot.slane %v3769, 4
        %v3772 = vor.u32 %v3768, %v3771
        %v3773 = vshrl.u32 %v3225, 16
        %v3775 = vrot.slane %v3773, 3
        %v3776 = vshll.u32 %v3225, 16
        %v3778 = vrot.slane %v3776, 4
        %v3779 = vor.u32 %v3775, %v3778
        %v3780 = vsel %vm1361, %v3772, %v3779
        %s3781 = scalar_lea.vmem %s3, 48
        %v3782 = vld [vmem:[%s3781] sm:$0xf]
        %v3783 = vld [vmem:[%s3781 + $0x4] sm:$0xf]
        %v3784 = vld [vmem:[%s3781 + $0x8] sm:$0xf]
        %v3785 = vld [vmem:[%s3781 + $0xc] sm:$0xf]
        %v3786 = vld [vmem:[%s3781 + $0x10] sm:$0xf]
        %v3787 = vld [vmem:[%s3781 + $0x14] sm:$0xf]
        %v3788 = vld [vmem:[%s3781 + $0x18] sm:$0xf]
        %v3789 = vld [vmem:[%s3781 + $0x1c] sm:$0xf]
        %v3790 = vld [vmem:[%s3781 + $0x20] sm:$0xf]
        %v3791 = vld [vmem:[%s3781 + $0x24] sm:$0xf]
        %v3792 = vld [vmem:[%s3781 + $0x28] sm:$0xf]
        %v3793 = vld [vmem:[%s3781 + $0x2c] sm:$0xf]
        %v3806 = vunpack.c.l.b16 %v3782
        %v3807 = vunpack.c.l.b16 %v3783
        %v3808 = vunpack.c.l.b16 %v3784
        %v3809 = vunpack.c.l.b16 %v3785
        %v3810 = vunpack.c.l.b16 %v3786
        %v3811 = vunpack.c.l.b16 %v3787
        %v3812 = vunpack.c.l.b16 %v3788
        %v3813 = vunpack.c.l.b16 %v3789
        %v3814 = vunpack.c.l.b16 %v3790
        %v3815 = vunpack.c.l.b16 %v3791
        %v3816 = vunpack.c.l.b16 %v3792
        %v3817 = vunpack.c.l.b16 %v3793
        %v3818 = vpack.c.b16 %v3807, %v3806
        %v3819 = vpack.c.b16 %v3809, %v3808
        %v3820 = vpack.c.b16 %v3811, %v3810
        %v3821 = vpack.c.b16 %v3813, %v3812
        %v3822 = vpack.c.b16 %v3815, %v3814
        %v3823 = vpack.c.b16 %v3817, %v3816
        %v3831 = vsel %vm1650, %v3780, 0
        %3833 = vmatprep.subr.bf16.mxu0 0
        %3834 = vmatpush1.bf16.msra.mxu0 %v3818
        %3835 = vmatprep.subr.bf16.mxu0 0
        %3836 = vmatpush1.bf16.msra.mxu0 %v3819
        %3837 = vmatprep.subr.bf16.mxu0 0
        %3838 = vmatpush1.bf16.msra.mxu0 %v3820
        %3839 = vmatprep.subr.bf16.mxu0 0
        %3840 = vmatpush1.bf16.msra.mxu0 %v3821
        %3841 = vmatprep.subr.bf16.mxu0 0
        %3842 = vmatpush1.bf16.msra.mxu0 %v3822
        %3843 = vmatprep.subr.bf16.mxu0 0
        %3844 = vmatpush1.bf16.msra.mxu0 %v3823
        %3845 = vmatprep.subr.bf16.mxu0 0
        %3846 = vmatpush1.bf16.msra.mxu0 0
        %3847 = vmatprep.subr.bf16.mxu0 0
        %3848 = vmatpush1.bf16.msra.mxu0 0
        %3849 = vmatprep.subr.bf16.mxu0 0
        %3850 = vmatpush1.bf16.msra.mxu0 0
        %3851 = vmatprep.subr.bf16.mxu0 0
        %3852 = vmatpush1.bf16.msra.mxu0 0
        %3853 = vmatprep.subr.bf16.mxu0 0
        %3854 = vmatpush1.bf16.msra.mxu0 0
        %3855 = vmatprep.subr.bf16.mxu0 0
        %3856 = vmatpush1.bf16.msra.mxu0 0
        %3857 = vmatprep.subr.bf16.mxu0 0
        %3858 = vmatpush1.bf16.msra.mxu0 0
        %3859 = vmatprep.subr.bf16.mxu0 0
        %3860 = vmatpush1.bf16.msra.mxu0 0
        %3861 = vmatprep.subr.bf16.mxu0 0
        %3862 = vmatpush1.bf16.msra.mxu0 0
        %3863 = vmatprep.subr.bf16.mxu0 0
        %3864 = vmatpush1.bf16.msra.mxu0 0
        %3865 = vmatprep.mubr.bf16.mxu0 0
        %3866 = vmatmul.mubr.bf16.gmra.mrb[0].mxu0 %v3529
        %v3867 = vpop.f32.mrb[0].mxu0
        %v3868 = vadd.f32 0.0, %v3867
        %v3869 = vpop.f32.mrb[0].mxu0
        %v3870 = vpop.f32.mrb[0].mxu0
        %v3871 = vadd.f32 0.0, %v3870
        %v3872 = vpop.f32.mrb[0].mxu0
        %3873 = vmatprep.mubr.bf16.mxu0 0
        %3874 = vmatmul.mubr.bf16.gmra.mrb[0].mxu0 %v3532
        %v3875 = vpop.f32.mrb[0].mxu0
        %v3876 = vadd.f32 0.0, %v3875
        %v3877 = vpop.f32.mrb[0].mxu0
        %v3878 = vpop.f32.mrb[0].mxu0
        %v3879 = vadd.f32 0.0, %v3878
        %v3880 = vpop.f32.mrb[0].mxu0
        %3881 = vmatprep.mubr.bf16.mxu0 0
        %3882 = vmatmul.mubr.bf16.gmra.mrb[0].mxu0 %v3535
        %v3883 = vpop.f32.mrb[0].mxu0
        %v3884 = vadd.f32 0.0, %v3883
        %v3885 = vpop.f32.mrb[0].mxu0
        %v3886 = vpop.f32.mrb[0].mxu0
        %v3887 = vadd.f32 0.0, %v3886
        %v3888 = vpop.f32.mrb[0].mxu0
        %3889 = vmatprep.mubr.bf16.mxu0 0
        %3890 = vmatmul.mubr.bf16.gmra.mrb[0].mxu0 %v3538
        %v3891 = vpop.f32.mrb[0].mxu0
        %v3892 = vadd.f32 0.0, %v3891
        %v3893 = vpop.f32.mrb[0].mxu0
        %v3894 = vpop.f32.mrb[0].mxu0
        %v3895 = vadd.f32 0.0, %v3894
        %v3896 = vpop.f32.mrb[0].mxu0
        %3897 = vmatprep.mubr.bf16.mxu0 0
        %3898 = vmatmul.mubr.bf16.gmra.mrb[0].mxu0 %v3541
        %v3899 = vpop.f32.mrb[0].mxu0
        %v3900 = vadd.f32 0.0, %v3899
        %v3901 = vpop.f32.mrb[0].mxu0
        %v3902 = vpop.f32.mrb[0].mxu0
        %v3903 = vadd.f32 0.0, %v3902
        %v3904 = vpop.f32.mrb[0].mxu0
        %3905 = vmatprep.mubr.bf16.mxu0 0
        %3906 = vmatmul.mubr.bf16.gmra.mrb[0].mxu0 %v3544
        %v3907 = vpop.f32.mrb[0].mxu0
        %v3908 = vadd.f32 0.0, %v3907
        %v3909 = vpop.f32.mrb[0].mxu0
        %v3910 = vpop.f32.mrb[0].mxu0
        %v3911 = vadd.f32 0.0, %v3910
        %v3912 = vpop.f32.mrb[0].mxu0
        %3913 = vmatprep.mubr.bf16.mxu0 0
        %3914 = vmatmul.mubr.bf16.gmra.mrb[0].mxu0 %v3547
        %v3915 = vpop.f32.mrb[0].mxu0
        %v3916 = vadd.f32 0.0, %v3915
        %v3917 = vpop.f32.mrb[0].mxu0
        %v3918 = vpop.f32.mrb[0].mxu0
        %v3919 = vadd.f32 0.0, %v3918
        %v3920 = vpop.f32.mrb[0].mxu0
        %3921 = vmatprep.mubr.bf16.mxu0 0
        %3922 = vmatmul.mubr.bf16.gmra.mrb[0].mxu0 %v3550
        %v3923 = vpop.f32.mrb[0].mxu0
        %v3924 = vadd.f32 0.0, %v3923
        %v3925 = vpop.f32.mrb[0].mxu0
        %v3926 = vpop.f32.mrb[0].mxu0
        %v3927 = vadd.f32 0.0, %v3926
        %v3928 = vpop.f32.mrb[0].mxu0
        %3929 = vmatprep.mubr.bf16.mxu0 0
        %3930 = vmatmul.mubr.bf16.gmra.mrb[0].mxu0 %v3553
        %v3931 = vpop.f32.mrb[0].mxu0
        %v3932 = vadd.f32 0.0, %v3931
        %v3933 = vpop.f32.mrb[0].mxu0
        %v3934 = vpop.f32.mrb[0].mxu0
        %v3935 = vadd.f32 0.0, %v3934
        %v3936 = vpop.f32.mrb[0].mxu0
        %3937 = vmatprep.mubr.bf16.mxu0 0
        %3938 = vmatmul.mubr.bf16.gmra.mrb[0].mxu0 %v3556
        %v3939 = vpop.f32.mrb[0].mxu0
        %v3940 = vadd.f32 0.0, %v3939
        %v3941 = vpop.f32.mrb[0].mxu0
        %v3942 = vpop.f32.mrb[0].mxu0
        %v3943 = vadd.f32 0.0, %v3942
        %v3944 = vpop.f32.mrb[0].mxu0
        %3945 = vmatprep.mubr.bf16.mxu0 0
        %3946 = vmatmul.mubr.bf16.gmra.mrb[0].mxu0 %v3559
        %v3947 = vpop.f32.mrb[0].mxu0
        %v3948 = vadd.f32 0.0, %v3947
        %v3949 = vpop.f32.mrb[0].mxu0
        %v3950 = vpop.f32.mrb[0].mxu0
        %v3951 = vadd.f32 0.0, %v3950
        %v3952 = vpop.f32.mrb[0].mxu0
        %3953 = vmatprep.mubr.bf16.mxu0 0
        %3954 = vmatmul.mubr.bf16.gmra.mrb[0].mxu0 %v3562
        %v3955 = vpop.f32.mrb[0].mxu0
        %v3956 = vadd.f32 0.0, %v3955
        %v3957 = vpop.f32.mrb[0].mxu0
        %v3958 = vpop.f32.mrb[0].mxu0
        %v3959 = vadd.f32 0.0, %v3958
        %v3960 = vpop.f32.mrb[0].mxu0
        %3961 = vmatprep.mubr.bf16.mxu0 0
        %3962 = vmatmul.mubr.bf16.gmra.mrb[0].mxu0 %v3565
        %v3963 = vpop.f32.mrb[0].mxu0
        %v3964 = vadd.f32 0.0, %v3963
        %v3965 = vpop.f32.mrb[0].mxu0
        %v3966 = vpop.f32.mrb[0].mxu0
        %v3967 = vadd.f32 0.0, %v3966
        %v3968 = vpop.f32.mrb[0].mxu0
        %3969 = vmatprep.mubr.bf16.mxu0 0
        %3970 = vmatmul.mubr.bf16.gmra.mrb[0].mxu0 %v3568
        %v3971 = vpop.f32.mrb[0].mxu0
        %v3972 = vadd.f32 0.0, %v3971
        %v3973 = vpop.f32.mrb[0].mxu0
        %v3974 = vpop.f32.mrb[0].mxu0
        %v3975 = vadd.f32 0.0, %v3974
        %v3976 = vpop.f32.mrb[0].mxu0
        %3977 = vmatprep.mubr.bf16.mxu0 0
        %3978 = vmatmul.mubr.bf16.gmra.mrb[0].mxu0 %v3571
        %v3979 = vpop.f32.mrb[0].mxu0
        %v3980 = vadd.f32 0.0, %v3979
        %v3981 = vpop.f32.mrb[0].mxu0
        %v3982 = vpop.f32.mrb[0].mxu0
        %v3983 = vadd.f32 0.0, %v3982
        %v3984 = vpop.f32.mrb[0].mxu0
        %3985 = vmatprep.mubr.bf16.mxu0 0
        %3986 = vmatmul.mubr.bf16.gmra.mrb[0].mxu0 %v3831
        %v3987 = vpop.f32.mrb[0].mxu0
        %v3988 = vadd.f32 0.0, %v3987
        %v3989 = vpop.f32.mrb[0].mxu0
        %v3990 = vpop.f32.mrb[0].mxu0
        %v3991 = vadd.f32 0.0, %v3990
        %v3992 = vpop.f32.mrb[0].mxu0
        %3993 = vdwg.mxu0
        %v3994 = vadd.f32 %v3734, %v3868
        %v3995 = vadd.f32 %v3735, %v3871
        %v3996 = vadd.f32 %v3736, %v3876
        %v3997 = vadd.f32 %v3737, %v3879
        %v3998 = vadd.f32 %v3738, %v3884
        %v3999 = vadd.f32 %v3739, %v3887
        %v4000 = vadd.f32 %v3740, %v3892
        %v4001 = vadd.f32 %v3741, %v3895
        %v4002 = vadd.f32 %v3742, %v3900
        %v4003 = vadd.f32 %v3743, %v3903
        %v4004 = vadd.f32 %v3744, %v3908
        %v4005 = vadd.f32 %v3745, %v3911
        %v4006 = vadd.f32 %v3746, %v3916
        %v4007 = vadd.f32 %v3747, %v3919
        %v4008 = vadd.f32 %v3748, %v3924
        %v4009 = vadd.f32 %v3749, %v3927
        %v4010 = vadd.f32 %v3750, %v3932
        %v4011 = vadd.f32 %v3751, %v3935
        %v4012 = vadd.f32 %v3752, %v3940
        %v4013 = vadd.f32 %v3753, %v3943
        %v4014 = vadd.f32 %v3754, %v3948
        %v4015 = vadd.f32 %v3755, %v3951
        %v4016 = vadd.f32 %v3756, %v3956
        %v4017 = vadd.f32 %v3757, %v3959
        %v4018 = vadd.f32 %v3758, %v3964
        %v4019 = vadd.f32 %v3759, %v3967
        %v4020 = vadd.f32 %v3760, %v3972
        %v4021 = vadd.f32 %v3761, %v3975
        %v4022 = vadd.f32 %v3762, %v3980
        %v4023 = vadd.f32 %v3763, %v3983
        %v4024 = vadd.f32 %v3764, %v3988
        %v4025 = vadd.f32 %v3765, %v3991
        %v4026 = vshrl.u32 %v3227, 16
        %v4028 = vrot.slane %v4026, 3
        %v4029 = vshll.u32 %v3227, 16
        %v4031 = vrot.slane %v4029, 4
        %v4032 = vor.u32 %v4028, %v4031
        %v4033 = vshrl.u32 %v3229, 16
        %v4035 = vrot.slane %v4033, 3
        %v4036 = vshll.u32 %v3229, 16
        %v4038 = vrot.slane %v4036, 4
        %v4039 = vor.u32 %v4035, %v4038
        %v4040 = vsel %vm1361, %v4032, %v4039
        %s4041 = scalar_lea.vmem %s3, 96
        %v4042 = vld [vmem:[%s4041] sm:$0xf]
        %v4043 = vld [vmem:[%s4041 + $0x4] sm:$0xf]
        %v4044 = vld [vmem:[%s4041 + $0x8] sm:$0xf]
        %v4045 = vld [vmem:[%s4041 + $0xc] sm:$0xf]
        %v4046 = vld [vmem:[%s4041 + $0x10] sm:$0xf]
        %v4047 = vld [vmem:[%s4041 + $0x14] sm:$0xf]
        %v4048 = vld [vmem:[%s4041 + $0x18] sm:$0xf]
        %v4049 = vld [vmem:[%s4041 + $0x1c] sm:$0xf]
        %v4050 = vld [vmem:[%s4041 + $0x20] sm:$0xf]
        %v4051 = vld [vmem:[%s4041 + $0x24] sm:$0xf]
        %v4052 = vld [vmem:[%s4041 + $0x28] sm:$0xf]
        %v4053 = vld [vmem:[%s4041 + $0x2c] sm:$0xf]
        %v4066 = vunpack.c.l.b16 %v4042
        %v4067 = vunpack.c.l.b16 %v4043
        %v4068 = vunpack.c.l.b16 %v4044
        %v4069 = vunpack.c.l.b16 %v4045
        %v4070 = vunpack.c.l.b16 %v4046
        %v4071 = vunpack.c.l.b16 %v4047
        %v4072 = vunpack.c.l.b16 %v4048
        %v4073 = vunpack.c.l.b16 %v4049
        %v4074 = vunpack.c.l.b16 %v4050
        %v4075 = vunpack.c.l.b16 %v4051
        %v4076 = vunpack.c.l.b16 %v4052
        %v4077 = vunpack.c.l.b16 %v4053
        %v4078 = vpack.c.b16 %v4067, %v4066
        %v4079 = vpack.c.b16 %v4069, %v4068
        %v4080 = vpack.c.b16 %v4071, %v4070
        %v4081 = vpack.c.b16 %v4073, %v4072
        %v4082 = vpack.c.b16 %v4075, %v4074
        %v4083 = vpack.c.b16 %v4077, %v4076
        %v4091 = vsel %vm1650, %v4040, 0
        %4093 = vmatprep.subr.bf16.mxu0 0
        %4094 = vmatpush1.bf16.msra.mxu0 %v4078
        %4095 = vmatprep.subr.bf16.mxu0 0
        %4096 = vmatpush1.bf16.msra.mxu0 %v4079
        %4097 = vmatprep.subr.bf16.mxu0 0
        %4098 = vmatpush1.bf16.msra.mxu0 %v4080
        %4099 = vmatprep.subr.bf16.mxu0 0
        %4100 = vmatpush1.bf16.msra.mxu0 %v4081
        %4101 = vmatprep.subr.bf16.mxu0 0
        %4102 = vmatpush1.bf16.msra.mxu0 %v4082
        %4103 = vmatprep.subr.bf16.mxu0 0
        %4104 = vmatpush1.bf16.msra.mxu0 %v4083
        %4105 = vmatprep.subr.bf16.mxu0 0
        %4106 = vmatpush1.bf16.msra.mxu0 0
        %4107 = vmatprep.subr.bf16.mxu0 0
        %4108 = vmatpush1.bf16.msra.mxu0 0
        %4109 = vmatprep.subr.bf16.mxu0 0
        %4110 = vmatpush1.bf16.msra.mxu0 0
        %4111 = vmatprep.subr.bf16.mxu0 0
        %4112 = vmatpush1.bf16.msra.mxu0 0
        %4113 = vmatprep.subr.bf16.mxu0 0
        %4114 = vmatpush1.bf16.msra.mxu0 0
        %4115 = vmatprep.subr.bf16.mxu0 0
        %4116 = vmatpush1.bf16.msra.mxu0 0
        %4117 = vmatprep.subr.bf16.mxu0 0
        %4118 = vmatpush1.bf16.msra.mxu0 0
        %4119 = vmatprep.subr.bf16.mxu0 0
        %4120 = vmatpush1.bf16.msra.mxu0 0
        %4121 = vmatprep.subr.bf16.mxu0 0
        %4122 = vmatpush1.bf16.msra.mxu0 0
        %4123 = vmatprep.subr.bf16.mxu0 0
        %4124 = vmatpush1.bf16.msra.mxu0 0
        %4125 = vmatprep.mubr.bf16.mxu0 0
        %4126 = vmatmul.mubr.bf16.gmra.mrb[0].mxu0 %v3532
        %v4127 = vpop.f32.mrb[0].mxu0
        %v4128 = vadd.f32 0.0, %v4127
        %v4129 = vpop.f32.mrb[0].mxu0
        %v4130 = vpop.f32.mrb[0].mxu0
        %v4131 = vadd.f32 0.0, %v4130
        %v4132 = vpop.f32.mrb[0].mxu0
        %4133 = vmatprep.mubr.bf16.mxu0 0
        %4134 = vmatmul.mubr.bf16.gmra.mrb[0].mxu0 %v3535
        %v4135 = vpop.f32.mrb[0].mxu0
        %v4136 = vadd.f32 0.0, %v4135
        %v4137 = vpop.f32.mrb[0].mxu0
        %v4138 = vpop.f32.mrb[0].mxu0
        %v4139 = vadd.f32 0.0, %v4138
        %v4140 = vpop.f32.mrb[0].mxu0
        %4141 = vmatprep.mubr.bf16.mxu0 0
        %4142 = vmatmul.mubr.bf16.gmra.mrb[0].mxu0 %v3538
        %v4143 = vpop.f32.mrb[0].mxu0
        %v4144 = vadd.f32 0.0, %v4143
        %v4145 = vpop.f32.mrb[0].mxu0
        %v4146 = vpop.f32.mrb[0].mxu0
        %v4147 = vadd.f32 0.0, %v4146
        %v4148 = vpop.f32.mrb[0].mxu0
        %4149 = vmatprep.mubr.bf16.mxu0 0
        %4150 = vmatmul.mubr.bf16.gmra.mrb[0].mxu0 %v3541
        %v4151 = vpop.f32.mrb[0].mxu0
        %v4152 = vadd.f32 0.0, %v4151
        %v4153 = vpop.f32.mrb[0].mxu0
        %v4154 = vpop.f32.mrb[0].mxu0
        %v4155 = vadd.f32 0.0, %v4154
        %v4156 = vpop.f32.mrb[0].mxu0
        %4157 = vmatprep.mubr.bf16.mxu0 0
        %4158 = vmatmul.mubr.bf16.gmra.mrb[0].mxu0 %v3544
        %v4159 = vpop.f32.mrb[0].mxu0
        %v4160 = vadd.f32 0.0, %v4159
        %v4161 = vpop.f32.mrb[0].mxu0
        %v4162 = vpop.f32.mrb[0].mxu0
        %v4163 = vadd.f32 0.0, %v4162
        %v4164 = vpop.f32.mrb[0].mxu0
        %4165 = vmatprep.mubr.bf16.mxu0 0
        %4166 = vmatmul.mubr.bf16.gmra.mrb[0].mxu0 %v3547
        %v4167 = vpop.f32.mrb[0].mxu0
        %v4168 = vadd.f32 0.0, %v4167
        %v4169 = vpop.f32.mrb[0].mxu0
        %v4170 = vpop.f32.mrb[0].mxu0
        %v4171 = vadd.f32 0.0, %v4170
        %v4172 = vpop.f32.mrb[0].mxu0
        %4173 = vmatprep.mubr.bf16.mxu0 0
        %4174 = vmatmul.mubr.bf16.gmra.mrb[0].mxu0 %v3550
        %v4175 = vpop.f32.mrb[0].mxu0
        %v4176 = vadd.f32 0.0, %v4175
        %v4177 = vpop.f32.mrb[0].mxu0
        %v4178 = vpop.f32.mrb[0].mxu0
        %v4179 = vadd.f32 0.0, %v4178
        %v4180 = vpop.f32.mrb[0].mxu0
        %4181 = vmatprep.mubr.bf16.mxu0 0
        %4182 = vmatmul.mubr.bf16.gmra.mrb[0].mxu0 %v3553
        %v4183 = vpop.f32.mrb[0].mxu0
        %v4184 = vadd.f32 0.0, %v4183
        %v4185 = vpop.f32.mrb[0].mxu0
        %v4186 = vpop.f32.mrb[0].mxu0
        %v4187 = vadd.f32 0.0, %v4186
        %v4188 = vpop.f32.mrb[0].mxu0
        %4189 = vmatprep.mubr.bf16.mxu0 0
        %4190 = vmatmul.mubr.bf16.gmra.mrb[0].mxu0 %v3556
        %v4191 = vpop.f32.mrb[0].mxu0
        %v4192 = vadd.f32 0.0, %v4191
        %v4193 = vpop.f32.mrb[0].mxu0
        %v4194 = vpop.f32.mrb[0].mxu0
        %v4195 = vadd.f32 0.0, %v4194
        %v4196 = vpop.f32.mrb[0].mxu0
        %4197 = vmatprep.mubr.bf16.mxu0 0
        %4198 = vmatmul.mubr.bf16.gmra.mrb[0].mxu0 %v3559
        %v4199 = vpop.f32.mrb[0].mxu0
        %v4200 = vadd.f32 0.0, %v4199
        %v4201 = vpop.f32.mrb[0].mxu0
        %v4202 = vpop.f32.mrb[0].mxu0
        %v4203 = vadd.f32 0.0, %v4202
        %v4204 = vpop.f32.mrb[0].mxu0
        %4205 = vmatprep.mubr.bf16.mxu0 0
        %4206 = vmatmul.mubr.bf16.gmra.mrb[0].mxu0 %v3562
        %v4207 = vpop.f32.mrb[0].mxu0
        %v4208 = vadd.f32 0.0, %v4207
        %v4209 = vpop.f32.mrb[0].mxu0
        %v4210 = vpop.f32.mrb[0].mxu0
        %v4211 = vadd.f32 0.0, %v4210
        %v4212 = vpop.f32.mrb[0].mxu0
        %4213 = vmatprep.mubr.bf16.mxu0 0
        %4214 = vmatmul.mubr.bf16.gmra.mrb[0].mxu0 %v3565
        %v4215 = vpop.f32.mrb[0].mxu0
        %v4216 = vadd.f32 0.0, %v4215
        %v4217 = vpop.f32.mrb[0].mxu0
        %v4218 = vpop.f32.mrb[0].mxu0
        %v4219 = vadd.f32 0.0, %v4218
        %v4220 = vpop.f32.mrb[0].mxu0
        %4221 = vmatprep.mubr.bf16.mxu0 0
        %4222 = vmatmul.mubr.bf16.gmra.mrb[0].mxu0 %v3568
        %v4223 = vpop.f32.mrb[0].mxu0
        %v4224 = vadd.f32 0.0, %v4223
        %v4225 = vpop.f32.mrb[0].mxu0
        %v4226 = vpop.f32.mrb[0].mxu0
        %v4227 = vadd.f32 0.0, %v4226
        %v4228 = vpop.f32.mrb[0].mxu0
        %4229 = vmatprep.mubr.bf16.mxu0 0
        %4230 = vmatmul.mubr.bf16.gmra.mrb[0].mxu0 %v3571
        %v4231 = vpop.f32.mrb[0].mxu0
        %v4232 = vadd.f32 0.0, %v4231
        %v4233 = vpop.f32.mrb[0].mxu0
        %v4234 = vpop.f32.mrb[0].mxu0
        %v4235 = vadd.f32 0.0, %v4234
        %v4236 = vpop.f32.mrb[0].mxu0
        %4237 = vmatprep.mubr.bf16.mxu0 0
        %4238 = vmatmul.mubr.bf16.gmra.mrb[0].mxu0 %v3831
        %v4239 = vpop.f32.mrb[0].mxu0
        %v4240 = vadd.f32 0.0, %v4239
        %v4241 = vpop.f32.mrb[0].mxu0
        %v4242 = vpop.f32.mrb[0].mxu0
        %v4243 = vadd.f32 0.0, %v4242
        %v4244 = vpop.f32.mrb[0].mxu0
        %4245 = vmatprep.mubr.bf16.mxu0 0
        %4246 = vmatmul.mubr.bf16.gmra.mrb[0].mxu0 %v4091
        %v4247 = vpop.f32.mrb[0].mxu0
        %v4248 = vadd.f32 0.0, %v4247
        %v4249 = vpop.f32.mrb[0].mxu0
        %v4250 = vpop.f32.mrb[0].mxu0
        %v4251 = vadd.f32 0.0, %v4250
        %v4252 = vpop.f32.mrb[0].mxu0
        %4253 = vdwg.mxu0
        %v4254 = vadd.f32 %v3994, %v4128
        %v4255 = vadd.f32 %v3995, %v4131
        %v4256 = vadd.f32 %v3996, %v4136
        %v4257 = vadd.f32 %v3997, %v4139
        %v4258 = vadd.f32 %v3998, %v4144
        %v4259 = vadd.f32 %v3999, %v4147
        %v4260 = vadd.f32 %v4000, %v4152
        %v4261 = vadd.f32 %v4001, %v4155
        %v4262 = vadd.f32 %v4002, %v4160
        %v4263 = vadd.f32 %v4003, %v4163
        %v4264 = vadd.f32 %v4004, %v4168
        %v4265 = vadd.f32 %v4005, %v4171
        %v4266 = vadd.f32 %v4006, %v4176
        %v4267 = vadd.f32 %v4007, %v4179
        %v4268 = vadd.f32 %v4008, %v4184
        %v4269 = vadd.f32 %v4009, %v4187
        %v4270 = vadd.f32 %v4010, %v4192
        %v4271 = vadd.f32 %v4011, %v4195
        %v4272 = vadd.f32 %v4012, %v4200
        %v4273 = vadd.f32 %v4013, %v4203
        %v4274 = vadd.f32 %v4014, %v4208
        %v4275 = vadd.f32 %v4015, %v4211
        %v4276 = vadd.f32 %v4016, %v4216
        %v4277 = vadd.f32 %v4017, %v4219
        %v4278 = vadd.f32 %v4018, %v4224
        %v4279 = vadd.f32 %v4019, %v4227
        %v4280 = vadd.f32 %v4020, %v4232
        %v4281 = vadd.f32 %v4021, %v4235
        %v4282 = vadd.f32 %v4022, %v4240
        %v4283 = vadd.f32 %v4023, %v4243
        %v4284 = vadd.f32 %v4024, %v4248
        %v4285 = vadd.f32 %v4025, %v4251
        %v4286 = vmax.f32 %v4254, 0.0
        %v4287 = vmax.f32 %v4255, 0.0
        %v4288 = vmax.f32 %v4256, 0.0
        %v4289 = vmax.f32 %v4257, 0.0
        %v4290 = vmax.f32 %v4258, 0.0
        %v4291 = vmax.f32 %v4259, 0.0
        %v4292 = vmax.f32 %v4260, 0.0
        %v4293 = vmax.f32 %v4261, 0.0
        %v4294 = vmax.f32 %v4262, 0.0
        %v4295 = vmax.f32 %v4263, 0.0
        %v4296 = vmax.f32 %v4264, 0.0
        %v4297 = vmax.f32 %v4265, 0.0
        %v4298 = vmax.f32 %v4266, 0.0
        %v4299 = vmax.f32 %v4267, 0.0
        %v4300 = vmax.f32 %v4268, 0.0
        %v4301 = vmax.f32 %v4269, 0.0
        %v4302 = vmax.f32 %v4270, 0.0
        %v4303 = vmax.f32 %v4271, 0.0
        %v4304 = vmax.f32 %v4272, 0.0
        %v4305 = vmax.f32 %v4273, 0.0
        %v4306 = vmax.f32 %v4274, 0.0
        %v4307 = vmax.f32 %v4275, 0.0
        %v4308 = vmax.f32 %v4276, 0.0
        %v4309 = vmax.f32 %v4277, 0.0
        %v4310 = vmax.f32 %v4278, 0.0
        %v4311 = vmax.f32 %v4279, 0.0
        %v4312 = vmax.f32 %v4280, 0.0
        %v4313 = vmax.f32 %v4281, 0.0
        %v4314 = vmax.f32 %v4282, 0.0
        %v4315 = vmax.f32 %v4283, 0.0
        %v4316 = vmax.f32 %v4284, 0.0
        %v4317 = vmax.f32 %v4285, 0.0
        %v4318 = vpack.c.bf16 %v4287, %v4286
        %v4319 = vpack.c.bf16 %v4289, %v4288
        %v4320 = vpack.c.bf16 %v4291, %v4290
        %v4321 = vpack.c.bf16 %v4293, %v4292
        %v4322 = vpack.c.bf16 %v4295, %v4294
        %v4323 = vpack.c.bf16 %v4297, %v4296
        %v4324 = vpack.c.bf16 %v4299, %v4298
        %v4325 = vpack.c.bf16 %v4301, %v4300
        %v4326 = vpack.c.bf16 %v4303, %v4302
        %v4327 = vpack.c.bf16 %v4305, %v4304
        %v4328 = vpack.c.bf16 %v4307, %v4306
        %v4329 = vpack.c.bf16 %v4309, %v4308
        %v4330 = vpack.c.bf16 %v4311, %v4310
        %v4331 = vpack.c.bf16 %v4313, %v4312
        %v4332 = vpack.c.bf16 %v4315, %v4314
        %v4333 = vpack.c.bf16 %v4317, %v4316
        %v4350 = vrot.slane %v4318, 4
        %v4351 = vrot.slane %v4319, 4
        %v4352 = vrot.slane %v4320, 4
        %v4353 = vrot.slane %v4321, 4
        %v4354 = vrot.slane %v4322, 4
        %v4355 = vrot.slane %v4323, 4
        %v4356 = vrot.slane %v4324, 4
        %v4357 = vrot.slane %v4325, 4
        %v4358 = vrot.slane %v4326, 4
        %v4359 = vrot.slane %v4327, 4
        %v4360 = vrot.slane %v4328, 4
        %v4361 = vrot.slane %v4329, 4
        %v4362 = vrot.slane %v4330, 4
        %v4363 = vrot.slane %v4331, 4
        %v4364 = vrot.slane %v4332, 4
        %v4365 = vrot.slane %v4333, 4
        %s4382 = smul.addr %s2509, 8
        %s4383 = scalar_lea.vmem [#allocation2], %s4382
        %4384 = vst.msk [vmem:[%s4383] sm:$0xf0] %vm411, %v4350
        %4385 = vst.msk [vmem:[%s4383 + $0x8] sm:$0xf] %vm392, %v4350
        %4386 = vst.msk [vmem:[%s4383 + $0x10] sm:$0xf0] %vm411, %v4351
        %4387 = vst.msk [vmem:[%s4383 + $0x18] sm:$0xf] %vm392, %v4351
        %4388 = vst.msk [vmem:[%s4383 + $0x20] sm:$0xf0] %vm411, %v4352
        %4389 = vst.msk [vmem:[%s4383 + $0x28] sm:$0xf] %vm392, %v4352
        %4390 = vst.msk [vmem:[%s4383 + $0x30] sm:$0xf0] %vm411, %v4353
        %4391 = vst.msk [vmem:[%s4383 + $0x38] sm:$0xf] %vm392, %v4353
        %4392 = vst.msk [vmem:[%s4383 + $0x40] sm:$0xf0] %vm411, %v4354
        %4393 = vst.msk [vmem:[%s4383 + $0x48] sm:$0xf] %vm392, %v4354
        %4394 = vst.msk [vmem:[%s4383 + $0x50] sm:$0xf0] %vm411, %v4355
        %4395 = vst.msk [vmem:[%s4383 + $0x58] sm:$0xf] %vm392, %v4355
        %4396 = vst.msk [vmem:[%s4383 + $0x60] sm:$0xf0] %vm411, %v4356
        %4397 = vst.msk [vmem:[%s4383 + $0x68] sm:$0xf] %vm392, %v4356
        %4398 = vst.msk [vmem:[%s4383 + $0x70] sm:$0xf0] %vm411, %v4357
        %4399 = vst.msk [vmem:[%s4383 + $0x78] sm:$0xf] %vm392, %v4357
        %4400 = vst.msk [vmem:[%s4383 + $0x80] sm:$0xf0] %vm411, %v4358
        %4401 = vst.msk [vmem:[%s4383 + $0x88] sm:$0xf] %vm392, %v4358
        %4402 = vst.msk [vmem:[%s4383 + $0x90] sm:$0xf0] %vm411, %v4359
        %4403 = vst.msk [vmem:[%s4383 + $0x98] sm:$0xf] %vm392, %v4359
        %4404 = vst.msk [vmem:[%s4383 + $0xa0] sm:$0xf0] %vm411, %v4360
        %4405 = vst.msk [vmem:[%s4383 + $0xa8] sm:$0xf] %vm392, %v4360
        %4406 = vst.msk [vmem:[%s4383 + $0xb0] sm:$0xf0] %vm411, %v4361
        %4407 = vst.msk [vmem:[%s4383 + $0xb8] sm:$0xf] %vm392, %v4361
        %4408 = vst.msk [vmem:[%s4383 + $0xc0] sm:$0xf0] %vm411, %v4362
        %4409 = vst.msk [vmem:[%s4383 + $0xc8] sm:$0xf] %vm392, %v4362
        %4410 = vst.msk [vmem:[%s4383 + $0xd0] sm:$0xf0] %vm411, %v4363
        %4411 = vst.msk [vmem:[%s4383 + $0xd8] sm:$0xf] %vm392, %v4363
        %4412 = vst.msk [vmem:[%s4383 + $0xe0] sm:$0xf0] %vm411, %v4364
        %4413 = vst.msk [vmem:[%s4383 + $0xe8] sm:$0xf] %vm392, %v4364
        %4414 = vst.msk [vmem:[%s4383 + $0xf0] sm:$0xf0] %vm411, %v4365
        %4415 = vst.msk [vmem:[%s4383 + $0xf8] sm:$0xf] %vm392, %v4365
        %v4416 = vld [vmem:[%s666] sm:$0xff]
        %v4417 = vld [vmem:[%s666 + $0x8] sm:$0xff]
        %v4418 = vld [vmem:[%s666 + $0x10] sm:$0xff]
        %v4419 = vld [vmem:[%s666 + $0x18] sm:$0xff]
        %v4420 = vld [vmem:[%s666 + $0x20] sm:$0xff]
        %v4421 = vld [vmem:[%s666 + $0x28] sm:$0xff]
        %v4422 = vld [vmem:[%s666 + $0x30] sm:$0xff]
        %v4423 = vld [vmem:[%s666 + $0x38] sm:$0xff]
        %v4424 = vld [vmem:[%s666 + $0x40] sm:$0xff]
        %v4425 = vld [vmem:[%s666 + $0x48] sm:$0xff]
        %v4426 = vld [vmem:[%s666 + $0x50] sm:$0xff]
        %v4427 = vld [vmem:[%s666 + $0x58] sm:$0xff]
        %v4428 = vld [vmem:[%s666 + $0x60] sm:$0xff]
        %v4429 = vld [vmem:[%s666 + $0x68] sm:$0xff]
        %v4430 = vld [vmem:[%s666 + $0x70] sm:$0xff]
        %v4431 = vld [vmem:[%s666 + $0x78] sm:$0xff]
        %v4432 = vld [vmem:[%s666 + $0x80] sm:$0xff]
        %v4433 = vld [vmem:[%s666 + $0x88] sm:$0xff]
        %v4434 = vld [vmem:[%s666 + $0x90] sm:$0xff]
        %v4435 = vld [vmem:[%s666 + $0x98] sm:$0xff]
        %v4436 = vld [vmem:[%s666 + $0xa0] sm:$0xff]
        %v4437 = vld [vmem:[%s666 + $0xa8] sm:$0xff]
        %v4438 = vld [vmem:[%s666 + $0xb0] sm:$0xff]
        %v4439 = vld [vmem:[%s666 + $0xb8] sm:$0xff]
        %v4440 = vld [vmem:[%s666 + $0xc0] sm:$0xff]
        %v4441 = vld [vmem:[%s666 + $0xc8] sm:$0xff]
        %v4442 = vld [vmem:[%s666 + $0xd0] sm:$0xff]
        %v4443 = vld [vmem:[%s666 + $0xd8] sm:$0xff]
        %v4444 = vld [vmem:[%s666 + $0xe0] sm:$0xff]
        %v4445 = vld [vmem:[%s666 + $0xe8] sm:$0xff]
        %v4446 = vld [vmem:[%s666 + $0xf0] sm:$0xff]
        %v4447 = vld [vmem:[%s666 + $0xf8] sm:$0xff]
        %v4448 = vld [vmem:[%s666 + $0x100] sm:$0xff]
        %v4449 = vld [vmem:[%s666 + $0x108] sm:$0xff]
        %v4450 = vld [vmem:[%s666 + $0x110] sm:$0xff]
        %v4451 = vld [vmem:[%s666 + $0x118] sm:$0xff]
        %v4453 = vshrl.u32 %v4416, 16
        %v4455 = vshll.u32 %v4416, 16
        %v4457 = vrot.slane %v4455, 1
        %v4458 = vor.u32 %v4453, %v4457
        %v4460 = vshll.u32 %v4417, 16
        %v4462 = vrot.slane %v4460, 1
        %v4463 = vsel %vm703, %v4458, %v4462
        %v4464 = vshrl.u32 %v4417, 16
        %v4466 = vor.u32 %v4464, %v4462
        %v4468 = vshrl.u32 %v4418, 16
        %v4470 = vshll.u32 %v4418, 16
        %v4472 = vrot.slane %v4470, 1
        %v4473 = vor.u32 %v4468, %v4472
        %v4475 = vshll.u32 %v4419, 16
        %v4477 = vrot.slane %v4475, 1
        %v4478 = vsel %vm703, %v4473, %v4477
        %v4479 = vshrl.u32 %v4419, 16
        %v4481 = vor.u32 %v4479, %v4477
        %v4483 = vshrl.u32 %v4420, 16
        %v4485 = vshll.u32 %v4420, 16
        %v4487 = vrot.slane %v4485, 1
        %v4488 = vor.u32 %v4483, %v4487
        %v4490 = vshll.u32 %v4421, 16
        %v4492 = vrot.slane %v4490, 1
        %v4493 = vsel %vm703, %v4488, %v4492
        %v4494 = vshrl.u32 %v4421, 16
        %v4496 = vor.u32 %v4494, %v4492
        %v4498 = vshrl.u32 %v4422, 16
        %v4500 = vshll.u32 %v4422, 16
        %v4502 = vrot.slane %v4500, 1
        %v4503 = vor.u32 %v4498, %v4502
        %v4505 = vshll.u32 %v4423, 16
        %v4507 = vrot.slane %v4505, 1
        %v4508 = vsel %vm703, %v4503, %v4507
        %v4509 = vshrl.u32 %v4423, 16
        %v4511 = vor.u32 %v4509, %v4507
        %v4513 = vshrl.u32 %v4424, 16
        %v4515 = vshll.u32 %v4424, 16
        %v4517 = vrot.slane %v4515, 1
        %v4518 = vor.u32 %v4513, %v4517
        %v4520 = vshll.u32 %v4425, 16
        %v4522 = vrot.slane %v4520, 1
        %v4523 = vsel %vm703, %v4518, %v4522
        %v4524 = vshrl.u32 %v4425, 16
        %v4526 = vor.u32 %v4524, %v4522
        %v4528 = vshrl.u32 %v4426, 16
        %v4530 = vshll.u32 %v4426, 16
        %v4532 = vrot.slane %v4530, 1
        %v4533 = vor.u32 %v4528, %v4532
        %v4535 = vshll.u32 %v4427, 16
        %v4537 = vrot.slane %v4535, 1
        %v4538 = vsel %vm703, %v4533, %v4537
        %v4539 = vshrl.u32 %v4427, 16
        %v4541 = vor.u32 %v4539, %v4537
        %v4543 = vshrl.u32 %v4428, 16
        %v4545 = vshll.u32 %v4428, 16
        %v4547 = vrot.slane %v4545, 1
        %v4548 = vor.u32 %v4543, %v4547
        %v4550 = vshll.u32 %v4429, 16
        %v4552 = vrot.slane %v4550, 1
        %v4553 = vsel %vm703, %v4548, %v4552
        %v4554 = vshrl.u32 %v4429, 16
        %v4556 = vor.u32 %v4554, %v4552
        %v4558 = vshrl.u32 %v4430, 16
        %v4560 = vshll.u32 %v4430, 16
        %v4562 = vrot.slane %v4560, 1
        %v4563 = vor.u32 %v4558, %v4562
        %v4565 = vshll.u32 %v4431, 16
        %v4567 = vrot.slane %v4565, 1
        %v4568 = vsel %vm703, %v4563, %v4567
        %v4569 = vshrl.u32 %v4431, 16
        %v4571 = vor.u32 %v4569, %v4567
        %v4573 = vshrl.u32 %v4432, 16
        %v4575 = vshll.u32 %v4432, 16
        %v4577 = vrot.slane %v4575, 1
        %v4578 = vor.u32 %v4573, %v4577
        %v4580 = vshll.u32 %v4433, 16
        %v4582 = vrot.slane %v4580, 1
        %v4583 = vsel %vm703, %v4578, %v4582
        %v4584 = vshrl.u32 %v4433, 16
        %v4586 = vor.u32 %v4584, %v4582
        %v4588 = vshrl.u32 %v4434, 16
        %v4590 = vshll.u32 %v4434, 16
        %v4592 = vrot.slane %v4590, 1
        %v4593 = vor.u32 %v4588, %v4592
        %v4595 = vshll.u32 %v4435, 16
        %v4597 = vrot.slane %v4595, 1
        %v4598 = vsel %vm703, %v4593, %v4597
        %v4599 = vshrl.u32 %v4435, 16
        %v4601 = vor.u32 %v4599, %v4597
        %v4603 = vshrl.u32 %v4436, 16
        %v4605 = vshll.u32 %v4436, 16
        %v4607 = vrot.slane %v4605, 1
        %v4608 = vor.u32 %v4603, %v4607
        %v4610 = vshll.u32 %v4437, 16
        %v4612 = vrot.slane %v4610, 1
        %v4613 = vsel %vm703, %v4608, %v4612
        %v4614 = vshrl.u32 %v4437, 16
        %v4616 = vor.u32 %v4614, %v4612
        %v4618 = vshrl.u32 %v4438, 16
        %v4620 = vshll.u32 %v4438, 16
        %v4622 = vrot.slane %v4620, 1
        %v4623 = vor.u32 %v4618, %v4622
        %v4625 = vshll.u32 %v4439, 16
        %v4627 = vrot.slane %v4625, 1
        %v4628 = vsel %vm703, %v4623, %v4627
        %v4629 = vshrl.u32 %v4439, 16
        %v4631 = vor.u32 %v4629, %v4627
        %v4633 = vshrl.u32 %v4440, 16
        %v4635 = vshll.u32 %v4440, 16
        %v4637 = vrot.slane %v4635, 1
        %v4638 = vor.u32 %v4633, %v4637
        %v4640 = vshll.u32 %v4441, 16
        %v4642 = vrot.slane %v4640, 1
        %v4643 = vsel %vm703, %v4638, %v4642
        %v4644 = vshrl.u32 %v4441, 16
        %v4646 = vor.u32 %v4644, %v4642
        %v4648 = vshrl.u32 %v4442, 16
        %v4650 = vshll.u32 %v4442, 16
        %v4652 = vrot.slane %v4650, 1
        %v4653 = vor.u32 %v4648, %v4652
        %v4655 = vshll.u32 %v4443, 16
        %v4657 = vrot.slane %v4655, 1
        %v4658 = vsel %vm703, %v4653, %v4657
        %v4659 = vshrl.u32 %v4443, 16
        %v4661 = vor.u32 %v4659, %v4657
        %v4663 = vshrl.u32 %v4444, 16
        %v4665 = vshll.u32 %v4444, 16
        %v4667 = vrot.slane %v4665, 1
        %v4668 = vor.u32 %v4663, %v4667
        %v4670 = vshll.u32 %v4445, 16
        %v4672 = vrot.slane %v4670, 1
        %v4673 = vsel %vm703, %v4668, %v4672
        %v4674 = vshrl.u32 %v4445, 16
        %v4676 = vor.u32 %v4674, %v4672
        %v4678 = vshrl.u32 %v4446, 16
        %v4680 = vshll.u32 %v4446, 16
        %v4682 = vrot.slane %v4680, 1
        %v4683 = vor.u32 %v4678, %v4682
        %v4685 = vshll.u32 %v4447, 16
        %v4687 = vrot.slane %v4685, 1
        %v4688 = vsel %vm703, %v4683, %v4687
        %v4689 = vshrl.u32 %v4447, 16
        %v4691 = vor.u32 %v4689, %v4687
        %v4693 = vshrl.u32 %v4448, 16
        %v4695 = vshll.u32 %v4448, 16
        %v4697 = vrot.slane %v4695, 1
        %v4698 = vor.u32 %v4693, %v4697
        %v4700 = vshll.u32 %v4449, 16
        %v4702 = vrot.slane %v4700, 1
        %v4703 = vsel %vm703, %v4698, %v4702
        %v4704 = vshrl.u32 %v4449, 16
        %v4706 = vor.u32 %v4704, %v4702
        %v4708 = vshrl.u32 %v4450, 16
        %v4710 = vshll.u32 %v4450, 16
        %v4712 = vrot.slane %v4710, 1
        %v4713 = vor.u32 %v4708, %v4712
        %v4715 = vshll.u32 %v4451, 16
        %v4717 = vrot.slane %v4715, 1
        %v4718 = vsel %vm703, %v4713, %v4717
        %v4719 = vshrl.u32 %v4451, 16
        %v4721 = vor.u32 %v4719, %v4717
        %4722 = vrot.lane.b32.xlu0 %v4463, 32
        %v4723 = vpop.permute.xlu0 %4722
        %4724 = vrot.lane.b32.xlu0 %v4466, 32
        %v4725 = vpop.permute.xlu0 %4724
        %4726 = vrot.lane.b32.xlu0 %v4478, 32
        %v4727 = vpop.permute.xlu0 %4726
        %4728 = vrot.lane.b32.xlu0 %v4481, 32
        %v4729 = vpop.permute.xlu0 %4728
        %4730 = vrot.lane.b32.xlu0 %v4493, 32
        %v4731 = vpop.permute.xlu0 %4730
        %4732 = vrot.lane.b32.xlu0 %v4496, 32
        %v4733 = vpop.permute.xlu0 %4732
        %4734 = vrot.lane.b32.xlu0 %v4508, 32
        %v4735 = vpop.permute.xlu0 %4734
        %4736 = vrot.lane.b32.xlu0 %v4511, 32
        %v4737 = vpop.permute.xlu0 %4736
        %4738 = vrot.lane.b32.xlu0 %v4523, 32
        %v4739 = vpop.permute.xlu0 %4738
        %4740 = vrot.lane.b32.xlu0 %v4526, 32
        %v4741 = vpop.permute.xlu0 %4740
        %4742 = vrot.lane.b32.xlu0 %v4538, 32
        %v4743 = vpop.permute.xlu0 %4742
        %4744 = vrot.lane.b32.xlu0 %v4541, 32
        %v4745 = vpop.permute.xlu0 %4744
        %4746 = vrot.lane.b32.xlu0 %v4553, 32
        %v4747 = vpop.permute.xlu0 %4746
        %4748 = vrot.lane.b32.xlu0 %v4556, 32
        %v4749 = vpop.permute.xlu0 %4748
        %4750 = vrot.lane.b32.xlu0 %v4568, 32
        %v4751 = vpop.permute.xlu0 %4750
        %4752 = vrot.lane.b32.xlu0 %v4571, 32
        %v4753 = vpop.permute.xlu0 %4752
        %4754 = vrot.lane.b32.xlu0 %v4583, 32
        %v4755 = vpop.permute.xlu0 %4754
        %4756 = vrot.lane.b32.xlu0 %v4586, 32
        %v4757 = vpop.permute.xlu0 %4756
        %4758 = vrot.lane.b32.xlu0 %v4598, 32
        %v4759 = vpop.permute.xlu0 %4758
        %4760 = vrot.lane.b32.xlu0 %v4601, 32
        %v4761 = vpop.permute.xlu0 %4760
        %4762 = vrot.lane.b32.xlu0 %v4613, 32
        %v4763 = vpop.permute.xlu0 %4762
        %4764 = vrot.lane.b32.xlu0 %v4616, 32
        %v4765 = vpop.permute.xlu0 %4764
        %4766 = vrot.lane.b32.xlu0 %v4628, 32
        %v4767 = vpop.permute.xlu0 %4766
        %4768 = vrot.lane.b32.xlu0 %v4631, 32
        %v4769 = vpop.permute.xlu0 %4768
        %4770 = vrot.lane.b32.xlu0 %v4643, 32
        %v4771 = vpop.permute.xlu0 %4770
        %4772 = vrot.lane.b32.xlu0 %v4646, 32
        %v4773 = vpop.permute.xlu0 %4772
        %4774 = vrot.lane.b32.xlu0 %v4658, 32
        %v4775 = vpop.permute.xlu0 %4774
        %4776 = vrot.lane.b32.xlu0 %v4661, 32
        %v4777 = vpop.permute.xlu0 %4776
        %4778 = vrot.lane.b32.xlu0 %v4673, 32
        %v4779 = vpop.permute.xlu0 %4778
        %4780 = vrot.lane.b32.xlu0 %v4676, 32
        %v4781 = vpop.permute.xlu0 %4780
        %4782 = vrot.lane.b32.xlu0 %v4688, 32
        %v4783 = vpop.permute.xlu0 %4782
        %4784 = vrot.lane.b32.xlu0 %v4691, 32
        %v4785 = vpop.permute.xlu0 %4784
        %4786 = vrot.lane.b32.xlu0 %v4703, 32
        %v4787 = vpop.permute.xlu0 %4786
        %4788 = vrot.lane.b32.xlu0 %v4706, 32
        %v4789 = vpop.permute.xlu0 %4788
        %4790 = vrot.lane.b32.xlu0 %v4718, 32
        %v4791 = vpop.permute.xlu0 %4790
        %4792 = vrot.lane.b32.xlu0 %v4721, 32
        %v4793 = vpop.permute.xlu0 %4792
        %v4830 = vrot.slane %v4416, 1
        %v4831 = vrot.slane %v4417, 1
        %v4832 = vsel %vm1082, %v4830, %v4831
        %v4833 = vrot.slane %v4418, 1
        %v4834 = vrot.slane %v4419, 1
        %v4835 = vsel %vm1082, %v4833, %v4834
        %v4836 = vrot.slane %v4420, 1
        %v4837 = vrot.slane %v4421, 1
        %v4838 = vsel %vm1082, %v4836, %v4837
        %v4839 = vrot.slane %v4422, 1
        %v4840 = vrot.slane %v4423, 1
        %v4841 = vsel %vm1082, %v4839, %v4840
        %v4842 = vrot.slane %v4424, 1
        %v4843 = vrot.slane %v4425, 1
        %v4844 = vsel %vm1082, %v4842, %v4843
        %v4845 = vrot.slane %v4426, 1
        %v4846 = vrot.slane %v4427, 1
        %v4847 = vsel %vm1082, %v4845, %v4846
        %v4848 = vrot.slane %v4428, 1
        %v4849 = vrot.slane %v4429, 1
        %v4850 = vsel %vm1082, %v4848, %v4849
        %v4851 = vrot.slane %v4430, 1
        %v4852 = vrot.slane %v4431, 1
        %v4853 = vsel %vm1082, %v4851, %v4852
        %v4854 = vrot.slane %v4432, 1
        %v4855 = vrot.slane %v4433, 1
        %v4856 = vsel %vm1082, %v4854, %v4855
        %v4857 = vrot.slane %v4434, 1
        %v4858 = vrot.slane %v4435, 1
        %v4859 = vsel %vm1082, %v4857, %v4858
        %v4860 = vrot.slane %v4436, 1
        %v4861 = vrot.slane %v4437, 1
        %v4862 = vsel %vm1082, %v4860, %v4861
        %v4863 = vrot.slane %v4438, 1
        %v4864 = vrot.slane %v4439, 1
        %v4865 = vsel %vm1082, %v4863, %v4864
        %v4866 = vrot.slane %v4440, 1
        %v4867 = vrot.slane %v4441, 1
        %v4868 = vsel %vm1082, %v4866, %v4867
        %v4869 = vrot.slane %v4442, 1
        %v4870 = vrot.slane %v4443, 1
        %v4871 = vsel %vm1082, %v4869, %v4870
        %v4872 = vrot.slane %v4444, 1
        %v4873 = vrot.slane %v4445, 1
        %v4874 = vsel %vm1082, %v4872, %v4873
        %v4875 = vrot.slane %v4446, 1
        %v4876 = vrot.slane %v4447, 1
        %v4877 = vsel %vm1082, %v4875, %v4876
        %v4878 = vrot.slane %v4448, 1
        %v4879 = vrot.slane %v4449, 1
        %v4880 = vsel %vm1082, %v4878, %v4879
        %v4881 = vrot.slane %v4450, 1
        %v4882 = vrot.slane %v4451, 1
        %v4883 = vsel %vm1082, %v4881, %v4882
        %4884 = vrot.lane.b32.xlu0 %v4832, 64
        %v4885 = vpop.permute.xlu0 %4884
        %4886 = vrot.lane.b32.xlu0 %v4831, 64
        %v4887 = vpop.permute.xlu0 %4886
        %4888 = vrot.lane.b32.xlu0 %v4835, 64
        %v4889 = vpop.permute.xlu0 %4888
        %4890 = vrot.lane.b32.xlu0 %v4834, 64
        %v4891 = vpop.permute.xlu0 %4890
        %4892 = vrot.lane.b32.xlu0 %v4838, 64
        %v4893 = vpop.permute.xlu0 %4892
        %4894 = vrot.lane.b32.xlu0 %v4837, 64
        %v4895 = vpop.permute.xlu0 %4894
        %4896 = vrot.lane.b32.xlu0 %v4841, 64
        %v4897 = vpop.permute.xlu0 %4896
        %4898 = vrot.lane.b32.xlu0 %v4840, 64
        %v4899 = vpop.permute.xlu0 %4898
        %4900 = vrot.lane.b32.xlu0 %v4844, 64
        %v4901 = vpop.permute.xlu0 %4900
        %4902 = vrot.lane.b32.xlu0 %v4843, 64
        %v4903 = vpop.permute.xlu0 %4902
        %4904 = vrot.lane.b32.xlu0 %v4847, 64
        %v4905 = vpop.permute.xlu0 %4904
        %4906 = vrot.lane.b32.xlu0 %v4846, 64
        %v4907 = vpop.permute.xlu0 %4906
        %4908 = vrot.lane.b32.xlu0 %v4850, 64
        %v4909 = vpop.permute.xlu0 %4908
        %4910 = vrot.lane.b32.xlu0 %v4849, 64
        %v4911 = vpop.permute.xlu0 %4910
        %4912 = vrot.lane.b32.xlu0 %v4853, 64
        %v4913 = vpop.permute.xlu0 %4912
        %4914 = vrot.lane.b32.xlu0 %v4852, 64
        %v4915 = vpop.permute.xlu0 %4914
        %4916 = vrot.lane.b32.xlu0 %v4856, 64
        %v4917 = vpop.permute.xlu0 %4916
        %4918 = vrot.lane.b32.xlu0 %v4855, 64
        %v4919 = vpop.permute.xlu0 %4918
        %4920 = vrot.lane.b32.xlu0 %v4859, 64
        %v4921 = vpop.permute.xlu0 %4920
        %4922 = vrot.lane.b32.xlu0 %v4858, 64
        %v4923 = vpop.permute.xlu0 %4922
        %4924 = vrot.lane.b32.xlu0 %v4862, 64
        %v4925 = vpop.permute.xlu0 %4924
        %4926 = vrot.lane.b32.xlu0 %v4861, 64
        %v4927 = vpop.permute.xlu0 %4926
        %4928 = vrot.lane.b32.xlu0 %v4865, 64
        %v4929 = vpop.permute.xlu0 %4928
        %4930 = vrot.lane.b32.xlu0 %v4864, 64
        %v4931 = vpop.permute.xlu0 %4930
        %4932 = vrot.lane.b32.xlu0 %v4868, 64
        %v4933 = vpop.permute.xlu0 %4932
        %4934 = vrot.lane.b32.xlu0 %v4867, 64
        %v4935 = vpop.permute.xlu0 %4934
        %4936 = vrot.lane.b32.xlu0 %v4871, 64
        %v4937 = vpop.permute.xlu0 %4936
        %4938 = vrot.lane.b32.xlu0 %v4870, 64
        %v4939 = vpop.permute.xlu0 %4938
        %4940 = vrot.lane.b32.xlu0 %v4874, 64
        %v4941 = vpop.permute.xlu0 %4940
        %4942 = vrot.lane.b32.xlu0 %v4873, 64
        %v4943 = vpop.permute.xlu0 %4942
        %4944 = vrot.lane.b32.xlu0 %v4877, 64
        %v4945 = vpop.permute.xlu0 %4944
        %4946 = vrot.lane.b32.xlu0 %v4876, 64
        %v4947 = vpop.permute.xlu0 %4946
        %4948 = vrot.lane.b32.xlu0 %v4880, 64
        %v4949 = vpop.permute.xlu0 %4948
        %4950 = vrot.lane.b32.xlu0 %v4879, 64
        %v4951 = vpop.permute.xlu0 %4950
        %4952 = vrot.lane.b32.xlu0 %v4883, 64
        %v4953 = vpop.permute.xlu0 %4952
        %4954 = vrot.lane.b32.xlu0 %v4882, 64
        %v4955 = vpop.permute.xlu0 %4954
        %v4957 = vsel %vm386, %v4416, %v4723
        %v4959 = vsel %vm386, %v4417, %v4725
        %v4961 = vsel %vm386, %v4418, %v4727
        %v4963 = vsel %vm386, %v4419, %v4729
        %v4965 = vsel %vm386, %v4420, %v4731
        %v4967 = vsel %vm386, %v4421, %v4733
        %v4969 = vsel %vm386, %v4422, %v4735
        %v4971 = vsel %vm386, %v4423, %v4737
        %v4973 = vsel %vm386, %v4424, %v4739
        %v4975 = vsel %vm386, %v4425, %v4741
        %v4977 = vsel %vm386, %v4426, %v4743
        %v4979 = vsel %vm386, %v4427, %v4745
        %v4981 = vsel %vm386, %v4428, %v4747
        %v4983 = vsel %vm386, %v4429, %v4749
        %v4985 = vsel %vm386, %v4430, %v4751
        %v4987 = vsel %vm386, %v4431, %v4753
        %v4989 = vsel %vm386, %v4432, %v4755
        %v4991 = vsel %vm386, %v4433, %v4757
        %v4993 = vsel %vm386, %v4434, %v4759
        %v4995 = vsel %vm386, %v4435, %v4761
        %v4997 = vsel %vm386, %v4436, %v4763
        %v4999 = vsel %vm386, %v4437, %v4765
        %v5001 = vsel %vm386, %v4438, %v4767
        %v5003 = vsel %vm386, %v4439, %v4769
        %v5005 = vsel %vm386, %v4440, %v4771
        %v5007 = vsel %vm386, %v4441, %v4773
        %v5009 = vsel %vm386, %v4442, %v4775
        %v5011 = vsel %vm386, %v4443, %v4777
        %v5013 = vsel %vm386, %v4444, %v4779
        %v5015 = vsel %vm386, %v4445, %v4781
        %v5017 = vsel %vm386, %v4446, %v4783
        %v5019 = vsel %vm386, %v4447, %v4785
        %v5021 = vsel %vm386, %v4448, %v4787
        %v5023 = vsel %vm386, %v4449, %v4789
        %v5025 = vsel %vm386, %v4450, %v4791
        %v5027 = vsel %vm386, %v4451, %v4793
        %v5029 = vsel %vm1281, %v4957, %v4885
        %v5031 = vsel %vm1281, %v4959, %v4887
        %v5033 = vsel %vm1281, %v4961, %v4889
        %v5035 = vsel %vm1281, %v4963, %v4891
        %v5037 = vsel %vm1281, %v4965, %v4893
        %v5039 = vsel %vm1281, %v4967, %v4895
        %v5041 = vsel %vm1281, %v4969, %v4897
        %v5043 = vsel %vm1281, %v4971, %v4899
        %v5045 = vsel %vm1281, %v4973, %v4901
        %v5047 = vsel %vm1281, %v4975, %v4903
        %v5049 = vsel %vm1281, %v4977, %v4905
        %v5051 = vsel %vm1281, %v4979, %v4907
        %v5053 = vsel %vm1281, %v4981, %v4909
        %v5055 = vsel %vm1281, %v4983, %v4911
        %v5057 = vsel %vm1281, %v4985, %v4913
        %v5059 = vsel %vm1281, %v4987, %v4915
        %v5061 = vsel %vm1281, %v4989, %v4917
        %v5063 = vsel %vm1281, %v4991, %v4919
        %v5065 = vsel %vm1281, %v4993, %v4921
        %v5067 = vsel %vm1281, %v4995, %v4923
        %v5069 = vsel %vm1281, %v4997, %v4925
        %v5071 = vsel %vm1281, %v4999, %v4927
        %v5073 = vsel %vm1281, %v5001, %v4929
        %v5075 = vsel %vm1281, %v5003, %v4931
        %v5077 = vsel %vm1281, %v5005, %v4933
        %v5079 = vsel %vm1281, %v5007, %v4935
        %v5081 = vsel %vm1281, %v5009, %v4937
        %v5083 = vsel %vm1281, %v5011, %v4939
        %v5085 = vsel %vm1281, %v5013, %v4941
        %v5087 = vsel %vm1281, %v5015, %v4943
        %v5089 = vsel %vm1281, %v5017, %v4945
        %v5091 = vsel %vm1281, %v5019, %v4947
        %v5093 = vsel %vm1281, %v5021, %v4949
        %v5095 = vsel %vm1281, %v5023, %v4951
        %v5097 = vsel %vm1281, %v5025, %v4953
        %v5099 = vsel %vm1281, %v5027, %v4955
        %v5100 = vld [vmem:[%s6] sm:$0x1]
        %v5102 = vlaneseq
        %v5103 = vshrl.u32 %v5102, 7
        %v5104 = vsub.s32 0, %v5103
        %v5105 = vrot.slane %v5100, %v5104
        %v5107 = vshrl.u32 %v5029, 16
        %v5109 = vrot.slane %v5107, 3
        %v5110 = vshll.u32 %v5029, 16
        %v5112 = vrot.slane %v5110, 4
        %v5113 = vor.u32 %v5109, %v5112
        %v5114 = vshrl.u32 %v5031, 16
        %v5116 = vrot.slane %v5114, 3
        %v5117 = vshll.u32 %v5031, 16
        %v5119 = vrot.slane %v5117, 4
        %v5120 = vor.u32 %v5116, %v5119
        %v5121 = vsel %vm1361, %v5113, %v5120
        %v5122 = vshrl.u32 %v5033, 16
        %v5124 = vrot.slane %v5122, 3
        %v5125 = vshll.u32 %v5033, 16
        %v5127 = vrot.slane %v5125, 4
        %v5128 = vor.u32 %v5124, %v5127
        %v5129 = vshrl.u32 %v5035, 16
        %v5131 = vrot.slane %v5129, 3
        %v5132 = vshll.u32 %v5035, 16
        %v5134 = vrot.slane %v5132, 4
        %v5135 = vor.u32 %v5131, %v5134
        %v5136 = vsel %vm1361, %v5128, %v5135
        %v5137 = vshrl.u32 %v5037, 16
        %v5139 = vrot.slane %v5137, 3
        %v5140 = vshll.u32 %v5037, 16
        %v5142 = vrot.slane %v5140, 4
        %v5143 = vor.u32 %v5139, %v5142
        %v5144 = vshrl.u32 %v5039, 16
        %v5146 = vrot.slane %v5144, 3
        %v5147 = vshll.u32 %v5039, 16
        %v5149 = vrot.slane %v5147, 4
        %v5150 = vor.u32 %v5146, %v5149
        %v5151 = vsel %vm1361, %v5143, %v5150
        %v5152 = vshrl.u32 %v5041, 16
        %v5154 = vrot.slane %v5152, 3
        %v5155 = vshll.u32 %v5041, 16
        %v5157 = vrot.slane %v5155, 4
        %v5158 = vor.u32 %v5154, %v5157
        %v5159 = vshrl.u32 %v5043, 16
        %v5161 = vrot.slane %v5159, 3
        %v5162 = vshll.u32 %v5043, 16
        %v5164 = vrot.slane %v5162, 4
        %v5165 = vor.u32 %v5161, %v5164
        %v5166 = vsel %vm1361, %v5158, %v5165
        %v5167 = vshrl.u32 %v5045, 16
        %v5169 = vrot.slane %v5167, 3
        %v5170 = vshll.u32 %v5045, 16
        %v5172 = vrot.slane %v5170, 4
        %v5173 = vor.u32 %v5169, %v5172
        %v5174 = vshrl.u32 %v5047, 16
        %v5176 = vrot.slane %v5174, 3
        %v5177 = vshll.u32 %v5047, 16
        %v5179 = vrot.slane %v5177, 4
        %v5180 = vor.u32 %v5176, %v5179
        %v5181 = vsel %vm1361, %v5173, %v5180
        %v5182 = vshrl.u32 %v5049, 16
        %v5184 = vrot.slane %v5182, 3
        %v5185 = vshll.u32 %v5049, 16
        %v5187 = vrot.slane %v5185, 4
        %v5188 = vor.u32 %v5184, %v5187
        %v5189 = vshrl.u32 %v5051, 16
        %v5191 = vrot.slane %v5189, 3
        %v5192 = vshll.u32 %v5051, 16
        %v5194 = vrot.slane %v5192, 4
        %v5195 = vor.u32 %v5191, %v5194
        %v5196 = vsel %vm1361, %v5188, %v5195
        %v5197 = vshrl.u32 %v5053, 16
        %v5199 = vrot.slane %v5197, 3
        %v5200 = vshll.u32 %v5053, 16
        %v5202 = vrot.slane %v5200, 4
        %v5203 = vor.u32 %v5199, %v5202
        %v5204 = vshrl.u32 %v5055, 16
        %v5206 = vrot.slane %v5204, 3
        %v5207 = vshll.u32 %v5055, 16
        %v5209 = vrot.slane %v5207, 4
        %v5210 = vor.u32 %v5206, %v5209
        %v5211 = vsel %vm1361, %v5203, %v5210
        %v5212 = vshrl.u32 %v5057, 16
        %v5214 = vrot.slane %v5212, 3
        %v5215 = vshll.u32 %v5057, 16
        %v5217 = vrot.slane %v5215, 4
        %v5218 = vor.u32 %v5214, %v5217
        %v5219 = vshrl.u32 %v5059, 16
        %v5221 = vrot.slane %v5219, 3
        %v5222 = vshll.u32 %v5059, 16
        %v5224 = vrot.slane %v5222, 4
        %v5225 = vor.u32 %v5221, %v5224
        %v5226 = vsel %vm1361, %v5218, %v5225
        %v5227 = vshrl.u32 %v5061, 16
        %v5229 = vrot.slane %v5227, 3
        %v5230 = vshll.u32 %v5061, 16
        %v5232 = vrot.slane %v5230, 4
        %v5233 = vor.u32 %v5229, %v5232
        %v5234 = vshrl.u32 %v5063, 16
        %v5236 = vrot.slane %v5234, 3
        %v5237 = vshll.u32 %v5063, 16
        %v5239 = vrot.slane %v5237, 4
        %v5240 = vor.u32 %v5236, %v5239
        %v5241 = vsel %vm1361, %v5233, %v5240
        %v5242 = vshrl.u32 %v5065, 16
        %v5244 = vrot.slane %v5242, 3
        %v5245 = vshll.u32 %v5065, 16
        %v5247 = vrot.slane %v5245, 4
        %v5248 = vor.u32 %v5244, %v5247
        %v5249 = vshrl.u32 %v5067, 16
        %v5251 = vrot.slane %v5249, 3
        %v5252 = vshll.u32 %v5067, 16
        %v5254 = vrot.slane %v5252, 4
        %v5255 = vor.u32 %v5251, %v5254
        %v5256 = vsel %vm1361, %v5248, %v5255
        %v5257 = vshrl.u32 %v5069, 16
        %v5259 = vrot.slane %v5257, 3
        %v5260 = vshll.u32 %v5069, 16
        %v5262 = vrot.slane %v5260, 4
        %v5263 = vor.u32 %v5259, %v5262
        %v5264 = vshrl.u32 %v5071, 16
        %v5266 = vrot.slane %v5264, 3
        %v5267 = vshll.u32 %v5071, 16
        %v5269 = vrot.slane %v5267, 4
        %v5270 = vor.u32 %v5266, %v5269
        %v5271 = vsel %vm1361, %v5263, %v5270
        %v5272 = vshrl.u32 %v5073, 16
        %v5274 = vrot.slane %v5272, 3
        %v5275 = vshll.u32 %v5073, 16
        %v5277 = vrot.slane %v5275, 4
        %v5278 = vor.u32 %v5274, %v5277
        %v5279 = vshrl.u32 %v5075, 16
        %v5281 = vrot.slane %v5279, 3
        %v5282 = vshll.u32 %v5075, 16
        %v5284 = vrot.slane %v5282, 4
        %v5285 = vor.u32 %v5281, %v5284
        %v5286 = vsel %vm1361, %v5278, %v5285
        %v5287 = vshrl.u32 %v5077, 16
        %v5289 = vrot.slane %v5287, 3
        %v5290 = vshll.u32 %v5077, 16
        %v5292 = vrot.slane %v5290, 4
        %v5293 = vor.u32 %v5289, %v5292
        %v5294 = vshrl.u32 %v5079, 16
        %v5296 = vrot.slane %v5294, 3
        %v5297 = vshll.u32 %v5079, 16
        %v5299 = vrot.slane %v5297, 4
        %v5300 = vor.u32 %v5296, %v5299
        %v5301 = vsel %vm1361, %v5293, %v5300
        %v5302 = vshrl.u32 %v5081, 16
        %v5304 = vrot.slane %v5302, 3
        %v5305 = vshll.u32 %v5081, 16
        %v5307 = vrot.slane %v5305, 4
        %v5308 = vor.u32 %v5304, %v5307
        %v5309 = vshrl.u32 %v5083, 16
        %v5311 = vrot.slane %v5309, 3
        %v5312 = vshll.u32 %v5083, 16
        %v5314 = vrot.slane %v5312, 4
        %v5315 = vor.u32 %v5311, %v5314
        %v5316 = vsel %vm1361, %v5308, %v5315
        %v5317 = vshrl.u32 %v5085, 16
        %v5319 = vrot.slane %v5317, 3
        %v5320 = vshll.u32 %v5085, 16
        %v5322 = vrot.slane %v5320, 4
        %v5323 = vor.u32 %v5319, %v5322
        %v5324 = vshrl.u32 %v5087, 16
        %v5326 = vrot.slane %v5324, 3
        %v5327 = vshll.u32 %v5087, 16
        %v5329 = vrot.slane %v5327, 4
        %v5330 = vor.u32 %v5326, %v5329
        %v5331 = vsel %vm1361, %v5323, %v5330
        %v5332 = vshrl.u32 %v5089, 16
        %v5334 = vrot.slane %v5332, 3
        %v5335 = vshll.u32 %v5089, 16
        %v5337 = vrot.slane %v5335, 4
        %v5338 = vor.u32 %v5334, %v5337
        %v5339 = vshrl.u32 %v5091, 16
        %v5341 = vrot.slane %v5339, 3
        %v5342 = vshll.u32 %v5091, 16
        %v5344 = vrot.slane %v5342, 4
        %v5345 = vor.u32 %v5341, %v5344
        %v5346 = vsel %vm1361, %v5338, %v5345
        %v5347 = vld [vmem:[%s5] sm:$0xf]
        %v5348 = vld [vmem:[%s5 + $0x4] sm:$0xf]
        %v5349 = vld [vmem:[%s5 + $0x8] sm:$0xf]
        %v5350 = vld [vmem:[%s5 + $0xc] sm:$0xf]
        %v5351 = vld [vmem:[%s5 + $0x10] sm:$0xf]
        %v5352 = vld [vmem:[%s5 + $0x14] sm:$0xf]
        %v5353 = vld [vmem:[%s5 + $0x18] sm:$0xf]
        %v5354 = vld [vmem:[%s5 + $0x1c] sm:$0xf]
        %v5355 = vld [vmem:[%s5 + $0x20] sm:$0xf]
        %v5356 = vld [vmem:[%s5 + $0x24] sm:$0xf]
        %v5357 = vld [vmem:[%s5 + $0x28] sm:$0xf]
        %v5358 = vld [vmem:[%s5 + $0x2c] sm:$0xf]
        %v5371 = vunpack.c.l.b16 %v5347
        %v5372 = vunpack.c.l.b16 %v5348
        %v5373 = vunpack.c.l.b16 %v5349
        %v5374 = vunpack.c.l.b16 %v5350
        %v5375 = vunpack.c.l.b16 %v5351
        %v5376 = vunpack.c.l.b16 %v5352
        %v5377 = vunpack.c.l.b16 %v5353
        %v5378 = vunpack.c.l.b16 %v5354
        %v5379 = vunpack.c.l.b16 %v5355
        %v5380 = vunpack.c.l.b16 %v5356
        %v5381 = vunpack.c.l.b16 %v5357
        %v5382 = vunpack.c.l.b16 %v5358
        %v5383 = vpack.c.b16 %v5372, %v5371
        %v5384 = vpack.c.b16 %v5374, %v5373
        %v5385 = vpack.c.b16 %v5376, %v5375
        %v5386 = vpack.c.b16 %v5378, %v5377
        %v5387 = vpack.c.b16 %v5380, %v5379
        %v5388 = vpack.c.b16 %v5382, %v5381
        %v5396 = vsel %vm1650, %v5121, 0
        %v5399 = vsel %vm1650, %v5136, 0
        %v5402 = vsel %vm1650, %v5151, 0
        %v5405 = vsel %vm1650, %v5166, 0
        %v5408 = vsel %vm1650, %v5181, 0
        %v5411 = vsel %vm1650, %v5196, 0
        %v5414 = vsel %vm1650, %v5211, 0
        %v5417 = vsel %vm1650, %v5226, 0
        %v5420 = vsel %vm1650, %v5241, 0
        %v5423 = vsel %vm1650, %v5256, 0
        %v5426 = vsel %vm1650, %v5271, 0
        %v5429 = vsel %vm1650, %v5286, 0
        %v5432 = vsel %vm1650, %v5301, 0
        %v5435 = vsel %vm1650, %v5316, 0
        %v5438 = vsel %vm1650, %v5331, 0
        %v5441 = vsel %vm1650, %v5346, 0
        %5443 = vmatprep.subr.bf16.mxu0 0
        %5444 = vmatpush1.bf16.msra.mxu0 %v5383
        %5445 = vmatprep.subr.bf16.mxu0 0
        %5446 = vmatpush1.bf16.msra.mxu0 %v5384
        %5447 = vmatprep.subr.bf16.mxu0 0
        %5448 = vmatpush1.bf16.msra.mxu0 %v5385
        %5449 = vmatprep.subr.bf16.mxu0 0
        %5450 = vmatpush1.bf16.msra.mxu0 %v5386
        %5451 = vmatprep.subr.bf16.mxu0 0
        %5452 = vmatpush1.bf16.msra.mxu0 %v5387
        %5453 = vmatprep.subr.bf16.mxu0 0
        %5454 = vmatpush1.bf16.msra.mxu0 %v5388
        %5455 = vmatprep.subr.bf16.mxu0 0
        %5456 = vmatpush1.bf16.msra.mxu0 0
        %5457 = vmatprep.subr.bf16.mxu0 0
        %5458 = vmatpush1.bf16.msra.mxu0 0
        %5459 = vmatprep.subr.bf16.mxu0 0
        %5460 = vmatpush1.bf16.msra.mxu0 0
        %5461 = vmatprep.subr.bf16.mxu0 0
        %5462 = vmatpush1.bf16.msra.mxu0 0
        %5463 = vmatprep.subr.bf16.mxu0 0
        %5464 = vmatpush1.bf16.msra.mxu0 0
        %5465 = vmatprep.subr.bf16.mxu0 0
        %5466 = vmatpush1.bf16.msra.mxu0 0
        %5467 = vmatprep.subr.bf16.mxu0 0
        %5468 = vmatpush1.bf16.msra.mxu0 0
        %5469 = vmatprep.subr.bf16.mxu0 0
        %5470 = vmatpush1.bf16.msra.mxu0 0
        %5471 = vmatprep.subr.bf16.mxu0 0
        %5472 = vmatpush1.bf16.msra.mxu0 0
        %5473 = vmatprep.subr.bf16.mxu0 0
        %5474 = vmatpush1.bf16.msra.mxu0 0
        %5475 = vmatprep.mubr.bf16.mxu0 0
        %5476 = vmatmul.mubr.bf16.gmra.mrb[0].mxu0 %v5396
        %v5477 = vpop.f32.mrb[0].mxu0
        %v5478 = vadd.f32 0.0, %v5477
        %v5479 = vpop.f32.mrb[0].mxu0
        %v5480 = vpop.f32.mrb[0].mxu0
        %v5481 = vadd.f32 0.0, %v5480
        %v5482 = vpop.f32.mrb[0].mxu0
        %5483 = vmatprep.mubr.bf16.mxu0 0
        %5484 = vmatmul.mubr.bf16.gmra.mrb[0].mxu0 %v5399
        %v5485 = vpop.f32.mrb[0].mxu0
        %v5486 = vadd.f32 0.0, %v5485
        %v5487 = vpop.f32.mrb[0].mxu0
        %v5488 = vpop.f32.mrb[0].mxu0
        %v5489 = vadd.f32 0.0, %v5488
        %v5490 = vpop.f32.mrb[0].mxu0
        %5491 = vmatprep.mubr.bf16.mxu0 0
        %5492 = vmatmul.mubr.bf16.gmra.mrb[0].mxu0 %v5402
        %v5493 = vpop.f32.mrb[0].mxu0
        %v5494 = vadd.f32 0.0, %v5493
        %v5495 = vpop.f32.mrb[0].mxu0
        %v5496 = vpop.f32.mrb[0].mxu0
        %v5497 = vadd.f32 0.0, %v5496
        %v5498 = vpop.f32.mrb[0].mxu0
        %5499 = vmatprep.mubr.bf16.mxu0 0
        %5500 = vmatmul.mubr.bf16.gmra.mrb[0].mxu0 %v5405
        %v5501 = vpop.f32.mrb[0].mxu0
        %v5502 = vadd.f32 0.0, %v5501
        %v5503 = vpop.f32.mrb[0].mxu0
        %v5504 = vpop.f32.mrb[0].mxu0
        %v5505 = vadd.f32 0.0, %v5504
        %v5506 = vpop.f32.mrb[0].mxu0
        %5507 = vmatprep.mubr.bf16.mxu0 0
        %5508 = vmatmul.mubr.bf16.gmra.mrb[0].mxu0 %v5408
        %v5509 = vpop.f32.mrb[0].mxu0
        %v5510 = vadd.f32 0.0, %v5509
        %v5511 = vpop.f32.mrb[0].mxu0
        %v5512 = vpop.f32.mrb[0].mxu0
        %v5513 = vadd.f32 0.0, %v5512
        %v5514 = vpop.f32.mrb[0].mxu0
        %5515 = vmatprep.mubr.bf16.mxu0 0
        %5516 = vmatmul.mubr.bf16.gmra.mrb[0].mxu0 %v5411
        %v5517 = vpop.f32.mrb[0].mxu0
        %v5518 = vadd.f32 0.0, %v5517
        %v5519 = vpop.f32.mrb[0].mxu0
        %v5520 = vpop.f32.mrb[0].mxu0
        %v5521 = vadd.f32 0.0, %v5520
        %v5522 = vpop.f32.mrb[0].mxu0
        %5523 = vmatprep.mubr.bf16.mxu0 0
        %5524 = vmatmul.mubr.bf16.gmra.mrb[0].mxu0 %v5414
        %v5525 = vpop.f32.mrb[0].mxu0
        %v5526 = vadd.f32 0.0, %v5525
        %v5527 = vpop.f32.mrb[0].mxu0
        %v5528 = vpop.f32.mrb[0].mxu0
        %v5529 = vadd.f32 0.0, %v5528
        %v5530 = vpop.f32.mrb[0].mxu0
        %5531 = vmatprep.mubr.bf16.mxu0 0
        %5532 = vmatmul.mubr.bf16.gmra.mrb[0].mxu0 %v5417
        %v5533 = vpop.f32.mrb[0].mxu0
        %v5534 = vadd.f32 0.0, %v5533
        %v5535 = vpop.f32.mrb[0].mxu0
        %v5536 = vpop.f32.mrb[0].mxu0
        %v5537 = vadd.f32 0.0, %v5536
        %v5538 = vpop.f32.mrb[0].mxu0
        %5539 = vmatprep.mubr.bf16.mxu0 0
        %5540 = vmatmul.mubr.bf16.gmra.mrb[0].mxu0 %v5420
        %v5541 = vpop.f32.mrb[0].mxu0
        %v5542 = vadd.f32 0.0, %v5541
        %v5543 = vpop.f32.mrb[0].mxu0
        %v5544 = vpop.f32.mrb[0].mxu0
        %v5545 = vadd.f32 0.0, %v5544
        %v5546 = vpop.f32.mrb[0].mxu0
        %5547 = vmatprep.mubr.bf16.mxu0 0
        %5548 = vmatmul.mubr.bf16.gmra.mrb[0].mxu0 %v5423
        %v5549 = vpop.f32.mrb[0].mxu0
        %v5550 = vadd.f32 0.0, %v5549
        %v5551 = vpop.f32.mrb[0].mxu0
        %v5552 = vpop.f32.mrb[0].mxu0
        %v5553 = vadd.f32 0.0, %v5552
        %v5554 = vpop.f32.mrb[0].mxu0
        %5555 = vmatprep.mubr.bf16.mxu0 0
        %5556 = vmatmul.mubr.bf16.gmra.mrb[0].mxu0 %v5426
        %v5557 = vpop.f32.mrb[0].mxu0
        %v5558 = vadd.f32 0.0, %v5557
        %v5559 = vpop.f32.mrb[0].mxu0
        %v5560 = vpop.f32.mrb[0].mxu0
        %v5561 = vadd.f32 0.0, %v5560
        %v5562 = vpop.f32.mrb[0].mxu0
        %5563 = vmatprep.mubr.bf16.mxu0 0
        %5564 = vmatmul.mubr.bf16.gmra.mrb[0].mxu0 %v5429
        %v5565 = vpop.f32.mrb[0].mxu0
        %v5566 = vadd.f32 0.0, %v5565
        %v5567 = vpop.f32.mrb[0].mxu0
        %v5568 = vpop.f32.mrb[0].mxu0
        %v5569 = vadd.f32 0.0, %v5568
        %v5570 = vpop.f32.mrb[0].mxu0
        %5571 = vmatprep.mubr.bf16.mxu0 0
        %5572 = vmatmul.mubr.bf16.gmra.mrb[0].mxu0 %v5432
        %v5573 = vpop.f32.mrb[0].mxu0
        %v5574 = vadd.f32 0.0, %v5573
        %v5575 = vpop.f32.mrb[0].mxu0
        %v5576 = vpop.f32.mrb[0].mxu0
        %v5577 = vadd.f32 0.0, %v5576
        %v5578 = vpop.f32.mrb[0].mxu0
        %5579 = vmatprep.mubr.bf16.mxu0 0
        %5580 = vmatmul.mubr.bf16.gmra.mrb[0].mxu0 %v5435
        %v5581 = vpop.f32.mrb[0].mxu0
        %v5582 = vadd.f32 0.0, %v5581
        %v5583 = vpop.f32.mrb[0].mxu0
        %v5584 = vpop.f32.mrb[0].mxu0
        %v5585 = vadd.f32 0.0, %v5584
        %v5586 = vpop.f32.mrb[0].mxu0
        %5587 = vmatprep.mubr.bf16.mxu0 0
        %5588 = vmatmul.mubr.bf16.gmra.mrb[0].mxu0 %v5438
        %v5589 = vpop.f32.mrb[0].mxu0
        %v5590 = vadd.f32 0.0, %v5589
        %v5591 = vpop.f32.mrb[0].mxu0
        %v5592 = vpop.f32.mrb[0].mxu0
        %v5593 = vadd.f32 0.0, %v5592
        %v5594 = vpop.f32.mrb[0].mxu0
        %5595 = vmatprep.mubr.bf16.mxu0 0
        %5596 = vmatmul.mubr.bf16.gmra.mrb[0].mxu0 %v5441
        %v5597 = vpop.f32.mrb[0].mxu0
        %v5598 = vadd.f32 0.0, %v5597
        %v5599 = vpop.f32.mrb[0].mxu0
        %v5600 = vpop.f32.mrb[0].mxu0
        %v5601 = vadd.f32 0.0, %v5600
        %v5602 = vpop.f32.mrb[0].mxu0
        %5603 = vdwg.mxu0
        %v5604 = vadd.f32 %v5105, %v5478
        %v5605 = vadd.f32 %v5105, %v5481
        %v5606 = vadd.f32 %v5105, %v5486
        %v5607 = vadd.f32 %v5105, %v5489
        %v5608 = vadd.f32 %v5105, %v5494
        %v5609 = vadd.f32 %v5105, %v5497
        %v5610 = vadd.f32 %v5105, %v5502
        %v5611 = vadd.f32 %v5105, %v5505
        %v5612 = vadd.f32 %v5105, %v5510
        %v5613 = vadd.f32 %v5105, %v5513
        %v5614 = vadd.f32 %v5105, %v5518
        %v5615 = vadd.f32 %v5105, %v5521
        %v5616 = vadd.f32 %v5105, %v5526
        %v5617 = vadd.f32 %v5105, %v5529
        %v5618 = vadd.f32 %v5105, %v5534
        %v5619 = vadd.f32 %v5105, %v5537
        %v5620 = vadd.f32 %v5105, %v5542
        %v5621 = vadd.f32 %v5105, %v5545
        %v5622 = vadd.f32 %v5105, %v5550
        %v5623 = vadd.f32 %v5105, %v5553
        %v5624 = vadd.f32 %v5105, %v5558
        %v5625 = vadd.f32 %v5105, %v5561
        %v5626 = vadd.f32 %v5105, %v5566
        %v5627 = vadd.f32 %v5105, %v5569
        %v5628 = vadd.f32 %v5105, %v5574
        %v5629 = vadd.f32 %v5105, %v5577
        %v5630 = vadd.f32 %v5105, %v5582
        %v5631 = vadd.f32 %v5105, %v5585
        %v5632 = vadd.f32 %v5105, %v5590
        %v5633 = vadd.f32 %v5105, %v5593
        %v5634 = vadd.f32 %v5105, %v5598
        %v5635 = vadd.f32 %v5105, %v5601
        %v5636 = vshrl.u32 %v5093, 16
        %v5638 = vrot.slane %v5636, 3
        %v5639 = vshll.u32 %v5093, 16
        %v5641 = vrot.slane %v5639, 4
        %v5642 = vor.u32 %v5638, %v5641
        %v5643 = vshrl.u32 %v5095, 16
        %v5645 = vrot.slane %v5643, 3
        %v5646 = vshll.u32 %v5095, 16
        %v5648 = vrot.slane %v5646, 4
        %v5649 = vor.u32 %v5645, %v5648
        %v5650 = vsel %vm1361, %v5642, %v5649
        %s5651 = scalar_lea.vmem %s5, 48
        %v5652 = vld [vmem:[%s5651] sm:$0xf]
        %v5653 = vld [vmem:[%s5651 + $0x4] sm:$0xf]
        %v5654 = vld [vmem:[%s5651 + $0x8] sm:$0xf]
        %v5655 = vld [vmem:[%s5651 + $0xc] sm:$0xf]
        %v5656 = vld [vmem:[%s5651 + $0x10] sm:$0xf]
        %v5657 = vld [vmem:[%s5651 + $0x14] sm:$0xf]
        %v5658 = vld [vmem:[%s5651 + $0x18] sm:$0xf]
        %v5659 = vld [vmem:[%s5651 + $0x1c] sm:$0xf]
        %v5660 = vld [vmem:[%s5651 + $0x20] sm:$0xf]
        %v5661 = vld [vmem:[%s5651 + $0x24] sm:$0xf]
        %v5662 = vld [vmem:[%s5651 + $0x28] sm:$0xf]
        %v5663 = vld [vmem:[%s5651 + $0x2c] sm:$0xf]
        %v5676 = vunpack.c.l.b16 %v5652
        %v5677 = vunpack.c.l.b16 %v5653
        %v5678 = vunpack.c.l.b16 %v5654
        %v5679 = vunpack.c.l.b16 %v5655
        %v5680 = vunpack.c.l.b16 %v5656
        %v5681 = vunpack.c.l.b16 %v5657
        %v5682 = vunpack.c.l.b16 %v5658
        %v5683 = vunpack.c.l.b16 %v5659
        %v5684 = vunpack.c.l.b16 %v5660
        %v5685 = vunpack.c.l.b16 %v5661
        %v5686 = vunpack.c.l.b16 %v5662
        %v5687 = vunpack.c.l.b16 %v5663
        %v5688 = vpack.c.b16 %v5677, %v5676
        %v5689 = vpack.c.b16 %v5679, %v5678
        %v5690 = vpack.c.b16 %v5681, %v5680
        %v5691 = vpack.c.b16 %v5683, %v5682
        %v5692 = vpack.c.b16 %v5685, %v5684
        %v5693 = vpack.c.b16 %v5687, %v5686
        %v5701 = vsel %vm1650, %v5650, 0
        %5703 = vmatprep.subr.bf16.mxu0 0
        %5704 = vmatpush1.bf16.msra.mxu0 %v5688
        %5705 = vmatprep.subr.bf16.mxu0 0
        %5706 = vmatpush1.bf16.msra.mxu0 %v5689
        %5707 = vmatprep.subr.bf16.mxu0 0
        %5708 = vmatpush1.bf16.msra.mxu0 %v5690
        %5709 = vmatprep.subr.bf16.mxu0 0
        %5710 = vmatpush1.bf16.msra.mxu0 %v5691
        %5711 = vmatprep.subr.bf16.mxu0 0
        %5712 = vmatpush1.bf16.msra.mxu0 %v5692
        %5713 = vmatprep.subr.bf16.mxu0 0
        %5714 = vmatpush1.bf16.msra.mxu0 %v5693
        %5715 = vmatprep.subr.bf16.mxu0 0
        %5716 = vmatpush1.bf16.msra.mxu0 0
        %5717 = vmatprep.subr.bf16.mxu0 0
        %5718 = vmatpush1.bf16.msra.mxu0 0
        %5719 = vmatprep.subr.bf16.mxu0 0
        %5720 = vmatpush1.bf16.msra.mxu0 0
        %5721 = vmatprep.subr.bf16.mxu0 0
        %5722 = vmatpush1.bf16.msra.mxu0 0
        %5723 = vmatprep.subr.bf16.mxu0 0
        %5724 = vmatpush1.bf16.msra.mxu0 0
        %5725 = vmatprep.subr.bf16.mxu0 0
        %5726 = vmatpush1.bf16.msra.mxu0 0
        %5727 = vmatprep.subr.bf16.mxu0 0
        %5728 = vmatpush1.bf16.msra.mxu0 0
        %5729 = vmatprep.subr.bf16.mxu0 0
        %5730 = vmatpush1.bf16.msra.mxu0 0
        %5731 = vmatprep.subr.bf16.mxu0 0
        %5732 = vmatpush1.bf16.msra.mxu0 0
        %5733 = vmatprep.subr.bf16.mxu0 0
        %5734 = vmatpush1.bf16.msra.mxu0 0
        %5735 = vmatprep.mubr.bf16.mxu0 0
        %5736 = vmatmul.mubr.bf16.gmra.mrb[0].mxu0 %v5399
        %v5737 = vpop.f32.mrb[0].mxu0
        %v5738 = vadd.f32 0.0, %v5737
        %v5739 = vpop.f32.mrb[0].mxu0
        %v5740 = vpop.f32.mrb[0].mxu0
        %v5741 = vadd.f32 0.0, %v5740
        %v5742 = vpop.f32.mrb[0].mxu0
        %5743 = vmatprep.mubr.bf16.mxu0 0
        %5744 = vmatmul.mubr.bf16.gmra.mrb[0].mxu0 %v5402
        %v5745 = vpop.f32.mrb[0].mxu0
        %v5746 = vadd.f32 0.0, %v5745
        %v5747 = vpop.f32.mrb[0].mxu0
        %v5748 = vpop.f32.mrb[0].mxu0
        %v5749 = vadd.f32 0.0, %v5748
        %v5750 = vpop.f32.mrb[0].mxu0
        %5751 = vmatprep.mubr.bf16.mxu0 0
        %5752 = vmatmul.mubr.bf16.gmra.mrb[0].mxu0 %v5405
        %v5753 = vpop.f32.mrb[0].mxu0
        %v5754 = vadd.f32 0.0, %v5753
        %v5755 = vpop.f32.mrb[0].mxu0
        %v5756 = vpop.f32.mrb[0].mxu0
        %v5757 = vadd.f32 0.0, %v5756
        %v5758 = vpop.f32.mrb[0].mxu0
        %5759 = vmatprep.mubr.bf16.mxu0 0
        %5760 = vmatmul.mubr.bf16.gmra.mrb[0].mxu0 %v5408
        %v5761 = vpop.f32.mrb[0].mxu0
        %v5762 = vadd.f32 0.0, %v5761
        %v5763 = vpop.f32.mrb[0].mxu0
        %v5764 = vpop.f32.mrb[0].mxu0
        %v5765 = vadd.f32 0.0, %v5764
        %v5766 = vpop.f32.mrb[0].mxu0
        %5767 = vmatprep.mubr.bf16.mxu0 0
        %5768 = vmatmul.mubr.bf16.gmra.mrb[0].mxu0 %v5411
        %v5769 = vpop.f32.mrb[0].mxu0
        %v5770 = vadd.f32 0.0, %v5769
        %v5771 = vpop.f32.mrb[0].mxu0
        %v5772 = vpop.f32.mrb[0].mxu0
        %v5773 = vadd.f32 0.0, %v5772
        %v5774 = vpop.f32.mrb[0].mxu0
        %5775 = vmatprep.mubr.bf16.mxu0 0
        %5776 = vmatmul.mubr.bf16.gmra.mrb[0].mxu0 %v5414
        %v5777 = vpop.f32.mrb[0].mxu0
        %v5778 = vadd.f32 0.0, %v5777
        %v5779 = vpop.f32.mrb[0].mxu0
        %v5780 = vpop.f32.mrb[0].mxu0
        %v5781 = vadd.f32 0.0, %v5780
        %v5782 = vpop.f32.mrb[0].mxu0
        %5783 = vmatprep.mubr.bf16.mxu0 0
        %5784 = vmatmul.mubr.bf16.gmra.mrb[0].mxu0 %v5417
        %v5785 = vpop.f32.mrb[0].mxu0
        %v5786 = vadd.f32 0.0, %v5785
        %v5787 = vpop.f32.mrb[0].mxu0
        %v5788 = vpop.f32.mrb[0].mxu0
        %v5789 = vadd.f32 0.0, %v5788
        %v5790 = vpop.f32.mrb[0].mxu0
        %5791 = vmatprep.mubr.bf16.mxu0 0
        %5792 = vmatmul.mubr.bf16.gmra.mrb[0].mxu0 %v5420
        %v5793 = vpop.f32.mrb[0].mxu0
        %v5794 = vadd.f32 0.0, %v5793
        %v5795 = vpop.f32.mrb[0].mxu0
        %v5796 = vpop.f32.mrb[0].mxu0
        %v5797 = vadd.f32 0.0, %v5796
        %v5798 = vpop.f32.mrb[0].mxu0
        %5799 = vmatprep.mubr.bf16.mxu0 0
        %5800 = vmatmul.mubr.bf16.gmra.mrb[0].mxu0 %v5423
        %v5801 = vpop.f32.mrb[0].mxu0
        %v5802 = vadd.f32 0.0, %v5801
        %v5803 = vpop.f32.mrb[0].mxu0
        %v5804 = vpop.f32.mrb[0].mxu0
        %v5805 = vadd.f32 0.0, %v5804
        %v5806 = vpop.f32.mrb[0].mxu0
        %5807 = vmatprep.mubr.bf16.mxu0 0
        %5808 = vmatmul.mubr.bf16.gmra.mrb[0].mxu0 %v5426
        %v5809 = vpop.f32.mrb[0].mxu0
        %v5810 = vadd.f32 0.0, %v5809
        %v5811 = vpop.f32.mrb[0].mxu0
        %v5812 = vpop.f32.mrb[0].mxu0
        %v5813 = vadd.f32 0.0, %v5812
        %v5814 = vpop.f32.mrb[0].mxu0
        %5815 = vmatprep.mubr.bf16.mxu0 0
        %5816 = vmatmul.mubr.bf16.gmra.mrb[0].mxu0 %v5429
        %v5817 = vpop.f32.mrb[0].mxu0
        %v5818 = vadd.f32 0.0, %v5817
        %v5819 = vpop.f32.mrb[0].mxu0
        %v5820 = vpop.f32.mrb[0].mxu0
        %v5821 = vadd.f32 0.0, %v5820
        %v5822 = vpop.f32.mrb[0].mxu0
        %5823 = vmatprep.mubr.bf16.mxu0 0
        %5824 = vmatmul.mubr.bf16.gmra.mrb[0].mxu0 %v5432
        %v5825 = vpop.f32.mrb[0].mxu0
        %v5826 = vadd.f32 0.0, %v5825
        %v5827 = vpop.f32.mrb[0].mxu0
        %v5828 = vpop.f32.mrb[0].mxu0
        %v5829 = vadd.f32 0.0, %v5828
        %v5830 = vpop.f32.mrb[0].mxu0
        %5831 = vmatprep.mubr.bf16.mxu0 0
        %5832 = vmatmul.mubr.bf16.gmra.mrb[0].mxu0 %v5435
        %v5833 = vpop.f32.mrb[0].mxu0
        %v5834 = vadd.f32 0.0, %v5833
        %v5835 = vpop.f32.mrb[0].mxu0
        %v5836 = vpop.f32.mrb[0].mxu0
        %v5837 = vadd.f32 0.0, %v5836
        %v5838 = vpop.f32.mrb[0].mxu0
        %5839 = vmatprep.mubr.bf16.mxu0 0
        %5840 = vmatmul.mubr.bf16.gmra.mrb[0].mxu0 %v5438
        %v5841 = vpop.f32.mrb[0].mxu0
        %v5842 = vadd.f32 0.0, %v5841
        %v5843 = vpop.f32.mrb[0].mxu0
        %v5844 = vpop.f32.mrb[0].mxu0
        %v5845 = vadd.f32 0.0, %v5844
        %v5846 = vpop.f32.mrb[0].mxu0
        %5847 = vmatprep.mubr.bf16.mxu0 0
        %5848 = vmatmul.mubr.bf16.gmra.mrb[0].mxu0 %v5441
        %v5849 = vpop.f32.mrb[0].mxu0
        %v5850 = vadd.f32 0.0, %v5849
        %v5851 = vpop.f32.mrb[0].mxu0
        %v5852 = vpop.f32.mrb[0].mxu0
        %v5853 = vadd.f32 0.0, %v5852
        %v5854 = vpop.f32.mrb[0].mxu0
        %5855 = vmatprep.mubr.bf16.mxu0 0
        %5856 = vmatmul.mubr.bf16.gmra.mrb[0].mxu0 %v5701
        %v5857 = vpop.f32.mrb[0].mxu0
        %v5858 = vadd.f32 0.0, %v5857
        %v5859 = vpop.f32.mrb[0].mxu0
        %v5860 = vpop.f32.mrb[0].mxu0
        %v5861 = vadd.f32 0.0, %v5860
        %v5862 = vpop.f32.mrb[0].mxu0
        %5863 = vdwg.mxu0
        %v5864 = vadd.f32 %v5604, %v5738
        %v5865 = vadd.f32 %v5605, %v5741
        %v5866 = vadd.f32 %v5606, %v5746
        %v5867 = vadd.f32 %v5607, %v5749
        %v5868 = vadd.f32 %v5608, %v5754
        %v5869 = vadd.f32 %v5609, %v5757
        %v5870 = vadd.f32 %v5610, %v5762
        %v5871 = vadd.f32 %v5611, %v5765
        %v5872 = vadd.f32 %v5612, %v5770
        %v5873 = vadd.f32 %v5613, %v5773
        %v5874 = vadd.f32 %v5614, %v5778
        %v5875 = vadd.f32 %v5615, %v5781
        %v5876 = vadd.f32 %v5616, %v5786
        %v5877 = vadd.f32 %v5617, %v5789
        %v5878 = vadd.f32 %v5618, %v5794
        %v5879 = vadd.f32 %v5619, %v5797
        %v5880 = vadd.f32 %v5620, %v5802
        %v5881 = vadd.f32 %v5621, %v5805
        %v5882 = vadd.f32 %v5622, %v5810
        %v5883 = vadd.f32 %v5623, %v5813
        %v5884 = vadd.f32 %v5624, %v5818
        %v5885 = vadd.f32 %v5625, %v5821
        %v5886 = vadd.f32 %v5626, %v5826
        %v5887 = vadd.f32 %v5627, %v5829
        %v5888 = vadd.f32 %v5628, %v5834
        %v5889 = vadd.f32 %v5629, %v5837
        %v5890 = vadd.f32 %v5630, %v5842
        %v5891 = vadd.f32 %v5631, %v5845
        %v5892 = vadd.f32 %v5632, %v5850
        %v5893 = vadd.f32 %v5633, %v5853
        %v5894 = vadd.f32 %v5634, %v5858
        %v5895 = vadd.f32 %v5635, %v5861
        %v5896 = vshrl.u32 %v5097, 16
        %v5898 = vrot.slane %v5896, 3
        %v5899 = vshll.u32 %v5097, 16
        %v5901 = vrot.slane %v5899, 4
        %v5902 = vor.u32 %v5898, %v5901
        %v5903 = vshrl.u32 %v5099, 16
        %v5905 = vrot.slane %v5903, 3
        %v5906 = vshll.u32 %v5099, 16
        %v5908 = vrot.slane %v5906, 4
        %v5909 = vor.u32 %v5905, %v5908
        %v5910 = vsel %vm1361, %v5902, %v5909
        %s5911 = scalar_lea.vmem %s5, 96
        %v5912 = vld [vmem:[%s5911] sm:$0xf]
        %v5913 = vld [vmem:[%s5911 + $0x4] sm:$0xf]
        %v5914 = vld [vmem:[%s5911 + $0x8] sm:$0xf]
        %v5915 = vld [vmem:[%s5911 + $0xc] sm:$0xf]
        %v5916 = vld [vmem:[%s5911 + $0x10] sm:$0xf]
        %v5917 = vld [vmem:[%s5911 + $0x14] sm:$0xf]
        %v5918 = vld [vmem:[%s5911 + $0x18] sm:$0xf]
        %v5919 = vld [vmem:[%s5911 + $0x1c] sm:$0xf]
        %v5920 = vld [vmem:[%s5911 + $0x20] sm:$0xf]
        %v5921 = vld [vmem:[%s5911 + $0x24] sm:$0xf]
        %v5922 = vld [vmem:[%s5911 + $0x28] sm:$0xf]
        %v5923 = vld [vmem:[%s5911 + $0x2c] sm:$0xf]
        %v5936 = vunpack.c.l.b16 %v5912
        %v5937 = vunpack.c.l.b16 %v5913
        %v5938 = vunpack.c.l.b16 %v5914
        %v5939 = vunpack.c.l.b16 %v5915
        %v5940 = vunpack.c.l.b16 %v5916
        %v5941 = vunpack.c.l.b16 %v5917
        %v5942 = vunpack.c.l.b16 %v5918
        %v5943 = vunpack.c.l.b16 %v5919
        %v5944 = vunpack.c.l.b16 %v5920
        %v5945 = vunpack.c.l.b16 %v5921
        %v5946 = vunpack.c.l.b16 %v5922
        %v5947 = vunpack.c.l.b16 %v5923
        %v5948 = vpack.c.b16 %v5937, %v5936
        %v5949 = vpack.c.b16 %v5939, %v5938
        %v5950 = vpack.c.b16 %v5941, %v5940
        %v5951 = vpack.c.b16 %v5943, %v5942
        %v5952 = vpack.c.b16 %v5945, %v5944
        %v5953 = vpack.c.b16 %v5947, %v5946
        %v5961 = vsel %vm1650, %v5910, 0
        %5963 = vmatprep.subr.bf16.mxu0 0
        %5964 = vmatpush1.bf16.msra.mxu0 %v5948
        %5965 = vmatprep.subr.bf16.mxu0 0
        %5966 = vmatpush1.bf16.msra.mxu0 %v5949
        %5967 = vmatprep.subr.bf16.mxu0 0
        %5968 = vmatpush1.bf16.msra.mxu0 %v5950
        %5969 = vmatprep.subr.bf16.mxu0 0
        %5970 = vmatpush1.bf16.msra.mxu0 %v5951
        %5971 = vmatprep.subr.bf16.mxu0 0
        %5972 = vmatpush1.bf16.msra.mxu0 %v5952
        %5973 = vmatprep.subr.bf16.mxu0 0
        %5974 = vmatpush1.bf16.msra.mxu0 %v5953
        %5975 = vmatprep.subr.bf16.mxu0 0
        %5976 = vmatpush1.bf16.msra.mxu0 0
        %5977 = vmatprep.subr.bf16.mxu0 0
        %5978 = vmatpush1.bf16.msra.mxu0 0
        %5979 = vmatprep.subr.bf16.mxu0 0
        %5980 = vmatpush1.bf16.msra.mxu0 0
        %5981 = vmatprep.subr.bf16.mxu0 0
        %5982 = vmatpush1.bf16.msra.mxu0 0
        %5983 = vmatprep.subr.bf16.mxu0 0
        %5984 = vmatpush1.bf16.msra.mxu0 0
        %5985 = vmatprep.subr.bf16.mxu0 0
        %5986 = vmatpush1.bf16.msra.mxu0 0
        %5987 = vmatprep.subr.bf16.mxu0 0
        %5988 = vmatpush1.bf16.msra.mxu0 0
        %5989 = vmatprep.subr.bf16.mxu0 0
        %5990 = vmatpush1.bf16.msra.mxu0 0
        %5991 = vmatprep.subr.bf16.mxu0 0
        %5992 = vmatpush1.bf16.msra.mxu0 0
        %5993 = vmatprep.subr.bf16.mxu0 0
        %5994 = vmatpush1.bf16.msra.mxu0 0
        %5995 = vmatprep.mubr.bf16.mxu0 0
        %5996 = vmatmul.mubr.bf16.gmra.mrb[0].mxu0 %v5402
        %v5997 = vpop.f32.mrb[0].mxu0
        %v5998 = vadd.f32 0.0, %v5997
        %v5999 = vpop.f32.mrb[0].mxu0
        %v6000 = vpop.f32.mrb[0].mxu0
        %v6001 = vadd.f32 0.0, %v6000
        %v6002 = vpop.f32.mrb[0].mxu0
        %6003 = vmatprep.mubr.bf16.mxu0 0
        %6004 = vmatmul.mubr.bf16.gmra.mrb[0].mxu0 %v5405
        %v6005 = vpop.f32.mrb[0].mxu0
        %v6006 = vadd.f32 0.0, %v6005
        %v6007 = vpop.f32.mrb[0].mxu0
        %v6008 = vpop.f32.mrb[0].mxu0
        %v6009 = vadd.f32 0.0, %v6008
        %v6010 = vpop.f32.mrb[0].mxu0
        %6011 = vmatprep.mubr.bf16.mxu0 0
        %6012 = vmatmul.mubr.bf16.gmra.mrb[0].mxu0 %v5408
        %v6013 = vpop.f32.mrb[0].mxu0
        %v6014 = vadd.f32 0.0, %v6013
        %v6015 = vpop.f32.mrb[0].mxu0
        %v6016 = vpop.f32.mrb[0].mxu0
        %v6017 = vadd.f32 0.0, %v6016
        %v6018 = vpop.f32.mrb[0].mxu0
        %6019 = vmatprep.mubr.bf16.mxu0 0
        %6020 = vmatmul.mubr.bf16.gmra.mrb[0].mxu0 %v5411
        %v6021 = vpop.f32.mrb[0].mxu0
        %v6022 = vadd.f32 0.0, %v6021
        %v6023 = vpop.f32.mrb[0].mxu0
        %v6024 = vpop.f32.mrb[0].mxu0
        %v6025 = vadd.f32 0.0, %v6024
        %v6026 = vpop.f32.mrb[0].mxu0
        %6027 = vmatprep.mubr.bf16.mxu0 0
        %6028 = vmatmul.mubr.bf16.gmra.mrb[0].mxu0 %v5414
        %v6029 = vpop.f32.mrb[0].mxu0
        %v6030 = vadd.f32 0.0, %v6029
        %v6031 = vpop.f32.mrb[0].mxu0
        %v6032 = vpop.f32.mrb[0].mxu0
        %v6033 = vadd.f32 0.0, %v6032
        %v6034 = vpop.f32.mrb[0].mxu0
        %6035 = vmatprep.mubr.bf16.mxu0 0
        %6036 = vmatmul.mubr.bf16.gmra.mrb[0].mxu0 %v5417
        %v6037 = vpop.f32.mrb[0].mxu0
        %v6038 = vadd.f32 0.0, %v6037
        %v6039 = vpop.f32.mrb[0].mxu0
        %v6040 = vpop.f32.mrb[0].mxu0
        %v6041 = vadd.f32 0.0, %v6040
        %v6042 = vpop.f32.mrb[0].mxu0
        %6043 = vmatprep.mubr.bf16.mxu0 0
        %6044 = vmatmul.mubr.bf16.gmra.mrb[0].mxu0 %v5420
        %v6045 = vpop.f32.mrb[0].mxu0
        %v6046 = vadd.f32 0.0, %v6045
        %v6047 = vpop.f32.mrb[0].mxu0
        %v6048 = vpop.f32.mrb[0].mxu0
        %v6049 = vadd.f32 0.0, %v6048
        %v6050 = vpop.f32.mrb[0].mxu0
        %6051 = vmatprep.mubr.bf16.mxu0 0
        %6052 = vmatmul.mubr.bf16.gmra.mrb[0].mxu0 %v5423
        %v6053 = vpop.f32.mrb[0].mxu0
        %v6054 = vadd.f32 0.0, %v6053
        %v6055 = vpop.f32.mrb[0].mxu0
        %v6056 = vpop.f32.mrb[0].mxu0
        %v6057 = vadd.f32 0.0, %v6056
        %v6058 = vpop.f32.mrb[0].mxu0
        %6059 = vmatprep.mubr.bf16.mxu0 0
        %6060 = vmatmul.mubr.bf16.gmra.mrb[0].mxu0 %v5426
        %v6061 = vpop.f32.mrb[0].mxu0
        %v6062 = vadd.f32 0.0, %v6061
        %v6063 = vpop.f32.mrb[0].mxu0
        %v6064 = vpop.f32.mrb[0].mxu0
        %v6065 = vadd.f32 0.0, %v6064
        %v6066 = vpop.f32.mrb[0].mxu0
        %6067 = vmatprep.mubr.bf16.mxu0 0
        %6068 = vmatmul.mubr.bf16.gmra.mrb[0].mxu0 %v5429
        %v6069 = vpop.f32.mrb[0].mxu0
        %v6070 = vadd.f32 0.0, %v6069
        %v6071 = vpop.f32.mrb[0].mxu0
        %v6072 = vpop.f32.mrb[0].mxu0
        %v6073 = vadd.f32 0.0, %v6072
        %v6074 = vpop.f32.mrb[0].mxu0
        %6075 = vmatprep.mubr.bf16.mxu0 0
        %6076 = vmatmul.mubr.bf16.gmra.mrb[0].mxu0 %v5432
        %v6077 = vpop.f32.mrb[0].mxu0
        %v6078 = vadd.f32 0.0, %v6077
        %v6079 = vpop.f32.mrb[0].mxu0
        %v6080 = vpop.f32.mrb[0].mxu0
        %v6081 = vadd.f32 0.0, %v6080
        %v6082 = vpop.f32.mrb[0].mxu0
        %6083 = vmatprep.mubr.bf16.mxu0 0
        %6084 = vmatmul.mubr.bf16.gmra.mrb[0].mxu0 %v5435
        %v6085 = vpop.f32.mrb[0].mxu0
        %v6086 = vadd.f32 0.0, %v6085
        %v6087 = vpop.f32.mrb[0].mxu0
        %v6088 = vpop.f32.mrb[0].mxu0
        %v6089 = vadd.f32 0.0, %v6088
        %v6090 = vpop.f32.mrb[0].mxu0
        %6091 = vmatprep.mubr.bf16.mxu0 0
        %6092 = vmatmul.mubr.bf16.gmra.mrb[0].mxu0 %v5438
        %v6093 = vpop.f32.mrb[0].mxu0
        %v6094 = vadd.f32 0.0, %v6093
        %v6095 = vpop.f32.mrb[0].mxu0
        %v6096 = vpop.f32.mrb[0].mxu0
        %v6097 = vadd.f32 0.0, %v6096
        %v6098 = vpop.f32.mrb[0].mxu0
        %6099 = vmatprep.mubr.bf16.mxu0 0
        %6100 = vmatmul.mubr.bf16.gmra.mrb[0].mxu0 %v5441
        %v6101 = vpop.f32.mrb[0].mxu0
        %v6102 = vadd.f32 0.0, %v6101
        %v6103 = vpop.f32.mrb[0].mxu0
        %v6104 = vpop.f32.mrb[0].mxu0
        %v6105 = vadd.f32 0.0, %v6104
        %v6106 = vpop.f32.mrb[0].mxu0
        %6107 = vmatprep.mubr.bf16.mxu0 0
        %6108 = vmatmul.mubr.bf16.gmra.mrb[0].mxu0 %v5701
        %v6109 = vpop.f32.mrb[0].mxu0
        %v6110 = vadd.f32 0.0, %v6109
        %v6111 = vpop.f32.mrb[0].mxu0
        %v6112 = vpop.f32.mrb[0].mxu0
        %v6113 = vadd.f32 0.0, %v6112
        %v6114 = vpop.f32.mrb[0].mxu0
        %6115 = vmatprep.mubr.bf16.mxu0 0
        %6116 = vmatmul.mubr.bf16.gmra.mrb[0].mxu0 %v5961
        %v6117 = vpop.f32.mrb[0].mxu0
        %v6118 = vadd.f32 0.0, %v6117
        %v6119 = vpop.f32.mrb[0].mxu0
        %v6120 = vpop.f32.mrb[0].mxu0
        %v6121 = vadd.f32 0.0, %v6120
        %v6122 = vpop.f32.mrb[0].mxu0
        %6123 = vdwg.mxu0
        %v6124 = vadd.f32 %v5864, %v5998
        %v6125 = vadd.f32 %v5865, %v6001
        %v6126 = vadd.f32 %v5866, %v6006
        %v6127 = vadd.f32 %v5867, %v6009
        %v6128 = vadd.f32 %v5868, %v6014
        %v6129 = vadd.f32 %v5869, %v6017
        %v6130 = vadd.f32 %v5870, %v6022
        %v6131 = vadd.f32 %v5871, %v6025
        %v6132 = vadd.f32 %v5872, %v6030
        %v6133 = vadd.f32 %v5873, %v6033
        %v6134 = vadd.f32 %v5874, %v6038
        %v6135 = vadd.f32 %v5875, %v6041
        %v6136 = vadd.f32 %v5876, %v6046
        %v6137 = vadd.f32 %v5877, %v6049
        %v6138 = vadd.f32 %v5878, %v6054
        %v6139 = vadd.f32 %v5879, %v6057
        %v6140 = vadd.f32 %v5880, %v6062
        %v6141 = vadd.f32 %v5881, %v6065
        %v6142 = vadd.f32 %v5882, %v6070
        %v6143 = vadd.f32 %v5883, %v6073
        %v6144 = vadd.f32 %v5884, %v6078
        %v6145 = vadd.f32 %v5885, %v6081
        %v6146 = vadd.f32 %v5886, %v6086
        %v6147 = vadd.f32 %v5887, %v6089
        %v6148 = vadd.f32 %v5888, %v6094
        %v6149 = vadd.f32 %v5889, %v6097
        %v6150 = vadd.f32 %v5890, %v6102
        %v6151 = vadd.f32 %v5891, %v6105
        %v6152 = vadd.f32 %v5892, %v6110
        %v6153 = vadd.f32 %v5893, %v6113
        %v6154 = vadd.f32 %v5894, %v6118
        %v6155 = vadd.f32 %v5895, %v6121
        %v6156 = vmax.f32 %v6124, 0.0
        %v6157 = vmax.f32 %v6125, 0.0
        %v6158 = vmax.f32 %v6126, 0.0
        %v6159 = vmax.f32 %v6127, 0.0
        %v6160 = vmax.f32 %v6128, 0.0
        %v6161 = vmax.f32 %v6129, 0.0
        %v6162 = vmax.f32 %v6130, 0.0
        %v6163 = vmax.f32 %v6131, 0.0
        %v6164 = vmax.f32 %v6132, 0.0
        %v6165 = vmax.f32 %v6133, 0.0
        %v6166 = vmax.f32 %v6134, 0.0
        %v6167 = vmax.f32 %v6135, 0.0
        %v6168 = vmax.f32 %v6136, 0.0
        %v6169 = vmax.f32 %v6137, 0.0
        %v6170 = vmax.f32 %v6138, 0.0
        %v6171 = vmax.f32 %v6139, 0.0
        %v6172 = vmax.f32 %v6140, 0.0
        %v6173 = vmax.f32 %v6141, 0.0
        %v6174 = vmax.f32 %v6142, 0.0
        %v6175 = vmax.f32 %v6143, 0.0
        %v6176 = vmax.f32 %v6144, 0.0
        %v6177 = vmax.f32 %v6145, 0.0
        %v6178 = vmax.f32 %v6146, 0.0
        %v6179 = vmax.f32 %v6147, 0.0
        %v6180 = vmax.f32 %v6148, 0.0
        %v6181 = vmax.f32 %v6149, 0.0
        %v6182 = vmax.f32 %v6150, 0.0
        %v6183 = vmax.f32 %v6151, 0.0
        %v6184 = vmax.f32 %v6152, 0.0
        %v6185 = vmax.f32 %v6153, 0.0
        %v6186 = vmax.f32 %v6154, 0.0
        %v6187 = vmax.f32 %v6155, 0.0
        %v6188 = vpack.c.bf16 %v6157, %v6156
        %v6189 = vpack.c.bf16 %v6159, %v6158
        %v6190 = vpack.c.bf16 %v6161, %v6160
        %v6191 = vpack.c.bf16 %v6163, %v6162
        %v6192 = vpack.c.bf16 %v6165, %v6164
        %v6193 = vpack.c.bf16 %v6167, %v6166
        %v6194 = vpack.c.bf16 %v6169, %v6168
        %v6195 = vpack.c.bf16 %v6171, %v6170
        %v6196 = vpack.c.bf16 %v6173, %v6172
        %v6197 = vpack.c.bf16 %v6175, %v6174
        %v6198 = vpack.c.bf16 %v6177, %v6176
        %v6199 = vpack.c.bf16 %v6179, %v6178
        %v6200 = vpack.c.bf16 %v6181, %v6180
        %v6201 = vpack.c.bf16 %v6183, %v6182
        %v6202 = vpack.c.bf16 %v6185, %v6184
        %v6203 = vpack.c.bf16 %v6187, %v6186
        %v6220 = vrot.slane %v6188, 4
        %v6221 = vrot.slane %v6189, 4
        %v6222 = vrot.slane %v6190, 4
        %v6223 = vrot.slane %v6191, 4
        %v6224 = vrot.slane %v6192, 4
        %v6225 = vrot.slane %v6193, 4
        %v6226 = vrot.slane %v6194, 4
        %v6227 = vrot.slane %v6195, 4
        %v6228 = vrot.slane %v6196, 4
        %v6229 = vrot.slane %v6197, 4
        %v6230 = vrot.slane %v6198, 4
        %v6231 = vrot.slane %v6199, 4
        %v6232 = vrot.slane %v6200, 4
        %v6233 = vrot.slane %v6201, 4
        %v6234 = vrot.slane %v6202, 4
        %v6235 = vrot.slane %v6203, 4
        %6252 = vst.msk [vmem:[%s2511] sm:$0xf0] %vm411, %v6220
        %6253 = vst.msk [vmem:[%s2511 + $0x8] sm:$0xf] %vm392, %v6220
        %6254 = vst.msk [vmem:[%s2511 + $0x10] sm:$0xf0] %vm411, %v6221
        %6255 = vst.msk [vmem:[%s2511 + $0x18] sm:$0xf] %vm392, %v6221
        %6256 = vst.msk [vmem:[%s2511 + $0x20] sm:$0xf0] %vm411, %v6222
        %6257 = vst.msk [vmem:[%s2511 + $0x28] sm:$0xf] %vm392, %v6222
        %6258 = vst.msk [vmem:[%s2511 + $0x30] sm:$0xf0] %vm411, %v6223
        %6259 = vst.msk [vmem:[%s2511 + $0x38] sm:$0xf] %vm392, %v6223
        %6260 = vst.msk [vmem:[%s2511 + $0x40] sm:$0xf0] %vm411, %v6224
        %6261 = vst.msk [vmem:[%s2511 + $0x48] sm:$0xf] %vm392, %v6224
        %6262 = vst.msk [vmem:[%s2511 + $0x50] sm:$0xf0] %vm411, %v6225
        %6263 = vst.msk [vmem:[%s2511 + $0x58] sm:$0xf] %vm392, %v6225
        %6264 = vst.msk [vmem:[%s2511 + $0x60] sm:$0xf0] %vm411, %v6226
        %6265 = vst.msk [vmem:[%s2511 + $0x68] sm:$0xf] %vm392, %v6226
        %6266 = vst.msk [vmem:[%s2511 + $0x70] sm:$0xf0] %vm411, %v6227
        %6267 = vst.msk [vmem:[%s2511 + $0x78] sm:$0xf] %vm392, %v6227
        %6268 = vst.msk [vmem:[%s2511 + $0x80] sm:$0xf0] %vm411, %v6228
        %6269 = vst.msk [vmem:[%s2511 + $0x88] sm:$0xf] %vm392, %v6228
        %6270 = vst.msk [vmem:[%s2511 + $0x90] sm:$0xf0] %vm411, %v6229
        %6271 = vst.msk [vmem:[%s2511 + $0x98] sm:$0xf] %vm392, %v6229
        %6272 = vst.msk [vmem:[%s2511 + $0xa0] sm:$0xf0] %vm411, %v6230
        %6273 = vst.msk [vmem:[%s2511 + $0xa8] sm:$0xf] %vm392, %v6230
        %6274 = vst.msk [vmem:[%s2511 + $0xb0] sm:$0xf0] %vm411, %v6231
        %6275 = vst.msk [vmem:[%s2511 + $0xb8] sm:$0xf] %vm392, %v6231
        %6276 = vst.msk [vmem:[%s2511 + $0xc0] sm:$0xf0] %vm411, %v6232
        %6277 = vst.msk [vmem:[%s2511 + $0xc8] sm:$0xf] %vm392, %v6232
        %6278 = vst.msk [vmem:[%s2511 + $0xd0] sm:$0xf0] %vm411, %v6233
        %6279 = vst.msk [vmem:[%s2511 + $0xd8] sm:$0xf] %vm392, %v6233
        %6280 = vst.msk [vmem:[%s2511 + $0xe0] sm:$0xf0] %vm411, %v6234
        %6281 = vst.msk [vmem:[%s2511 + $0xe8] sm:$0xf] %vm392, %v6234
        %6282 = vst.msk [vmem:[%s2511 + $0xf0] sm:$0xf0] %vm411, %v6235
        %6283 = vst.msk [vmem:[%s2511 + $0xf8] sm:$0xf] %vm392, %v6235
        %v6284 = vld [vmem:[%s2545] sm:$0xff]
        %v6285 = vld [vmem:[%s2545 + $0x8] sm:$0xff]
        %v6286 = vld [vmem:[%s2545 + $0x10] sm:$0xff]
        %v6287 = vld [vmem:[%s2545 + $0x18] sm:$0xff]
        %v6288 = vld [vmem:[%s2545 + $0x20] sm:$0xff]
        %v6289 = vld [vmem:[%s2545 + $0x28] sm:$0xff]
        %v6290 = vld [vmem:[%s2545 + $0x30] sm:$0xff]
        %v6291 = vld [vmem:[%s2545 + $0x38] sm:$0xff]
        %v6292 = vld [vmem:[%s2545 + $0x40] sm:$0xff]
        %v6293 = vld [vmem:[%s2545 + $0x48] sm:$0xff]
        %v6294 = vld [vmem:[%s2545 + $0x50] sm:$0xff]
        %v6295 = vld [vmem:[%s2545 + $0x58] sm:$0xff]
        %v6296 = vld [vmem:[%s2545 + $0x60] sm:$0xff]
        %v6297 = vld [vmem:[%s2545 + $0x68] sm:$0xff]
        %v6298 = vld [vmem:[%s2545 + $0x70] sm:$0xff]
        %v6299 = vld [vmem:[%s2545 + $0x78] sm:$0xff]
        %v6300 = vld [vmem:[%s2545 + $0x80] sm:$0xff]
        %v6301 = vld [vmem:[%s2545 + $0x88] sm:$0xff]
        %v6302 = vld [vmem:[%s2545 + $0x90] sm:$0xff]
        %v6303 = vld [vmem:[%s2545 + $0x98] sm:$0xff]
        %v6304 = vld [vmem:[%s2545 + $0xa0] sm:$0xff]
        %v6305 = vld [vmem:[%s2545 + $0xa8] sm:$0xff]
        %v6306 = vld [vmem:[%s2545 + $0xb0] sm:$0xff]
        %v6307 = vld [vmem:[%s2545 + $0xb8] sm:$0xff]
        %v6308 = vld [vmem:[%s2545 + $0xc0] sm:$0xff]
        %v6309 = vld [vmem:[%s2545 + $0xc8] sm:$0xff]
        %v6310 = vld [vmem:[%s2545 + $0xd0] sm:$0xff]
        %v6311 = vld [vmem:[%s2545 + $0xd8] sm:$0xff]
        %v6312 = vld [vmem:[%s2545 + $0xe0] sm:$0xff]
        %v6313 = vld [vmem:[%s2545 + $0xe8] sm:$0xff]
        %v6314 = vld [vmem:[%s2545 + $0xf0] sm:$0xff]
        %v6315 = vld [vmem:[%s2545 + $0xf8] sm:$0xff]
        %v6316 = vld [vmem:[%s2545 + $0x100] sm:$0xff]
        %v6317 = vld [vmem:[%s2545 + $0x108] sm:$0xff]
        %v6318 = vld [vmem:[%s2545 + $0x110] sm:$0xff]
        %v6319 = vld [vmem:[%s2545 + $0x118] sm:$0xff]
        %v6321 = vshrl.u32 %v6284, 16
        %v6323 = vshll.u32 %v6284, 16
        %v6325 = vrot.slane %v6323, 1
        %v6326 = vor.u32 %v6321, %v6325
        %v6328 = vshll.u32 %v6285, 16
        %v6330 = vrot.slane %v6328, 1
        %v6331 = vsel %vm703, %v6326, %v6330
        %v6332 = vshrl.u32 %v6285, 16
        %v6334 = vor.u32 %v6332, %v6330
        %v6336 = vshrl.u32 %v6286, 16
        %v6338 = vshll.u32 %v6286, 16
        %v6340 = vrot.slane %v6338, 1
        %v6341 = vor.u32 %v6336, %v6340
        %v6343 = vshll.u32 %v6287, 16
        %v6345 = vrot.slane %v6343, 1
        %v6346 = vsel %vm703, %v6341, %v6345
        %v6347 = vshrl.u32 %v6287, 16
        %v6349 = vor.u32 %v6347, %v6345
        %v6351 = vshrl.u32 %v6288, 16
        %v6353 = vshll.u32 %v6288, 16
        %v6355 = vrot.slane %v6353, 1
        %v6356 = vor.u32 %v6351, %v6355
        %v6358 = vshll.u32 %v6289, 16
        %v6360 = vrot.slane %v6358, 1
        %v6361 = vsel %vm703, %v6356, %v6360
        %v6362 = vshrl.u32 %v6289, 16
        %v6364 = vor.u32 %v6362, %v6360
        %v6366 = vshrl.u32 %v6290, 16
        %v6368 = vshll.u32 %v6290, 16
        %v6370 = vrot.slane %v6368, 1
        %v6371 = vor.u32 %v6366, %v6370
        %v6373 = vshll.u32 %v6291, 16
        %v6375 = vrot.slane %v6373, 1
        %v6376 = vsel %vm703, %v6371, %v6375
        %v6377 = vshrl.u32 %v6291, 16
        %v6379 = vor.u32 %v6377, %v6375
        %v6381 = vshrl.u32 %v6292, 16
        %v6383 = vshll.u32 %v6292, 16
        %v6385 = vrot.slane %v6383, 1
        %v6386 = vor.u32 %v6381, %v6385
        %v6388 = vshll.u32 %v6293, 16
        %v6390 = vrot.slane %v6388, 1
        %v6391 = vsel %vm703, %v6386, %v6390
        %v6392 = vshrl.u32 %v6293, 16
        %v6394 = vor.u32 %v6392, %v6390
        %v6396 = vshrl.u32 %v6294, 16
        %v6398 = vshll.u32 %v6294, 16
        %v6400 = vrot.slane %v6398, 1
        %v6401 = vor.u32 %v6396, %v6400
        %v6403 = vshll.u32 %v6295, 16
        %v6405 = vrot.slane %v6403, 1
        %v6406 = vsel %vm703, %v6401, %v6405
        %v6407 = vshrl.u32 %v6295, 16
        %v6409 = vor.u32 %v6407, %v6405
        %v6411 = vshrl.u32 %v6296, 16
        %v6413 = vshll.u32 %v6296, 16
        %v6415 = vrot.slane %v6413, 1
        %v6416 = vor.u32 %v6411, %v6415
        %v6418 = vshll.u32 %v6297, 16
        %v6420 = vrot.slane %v6418, 1
        %v6421 = vsel %vm703, %v6416, %v6420
        %v6422 = vshrl.u32 %v6297, 16
        %v6424 = vor.u32 %v6422, %v6420
        %v6426 = vshrl.u32 %v6298, 16
        %v6428 = vshll.u32 %v6298, 16
        %v6430 = vrot.slane %v6428, 1
        %v6431 = vor.u32 %v6426, %v6430
        %v6433 = vshll.u32 %v6299, 16
        %v6435 = vrot.slane %v6433, 1
        %v6436 = vsel %vm703, %v6431, %v6435
        %v6437 = vshrl.u32 %v6299, 16
        %v6439 = vor.u32 %v6437, %v6435
        %v6441 = vshrl.u32 %v6300, 16
        %v6443 = vshll.u32 %v6300, 16
        %v6445 = vrot.slane %v6443, 1
        %v6446 = vor.u32 %v6441, %v6445
        %v6448 = vshll.u32 %v6301, 16
        %v6450 = vrot.slane %v6448, 1
        %v6451 = vsel %vm703, %v6446, %v6450
        %v6452 = vshrl.u32 %v6301, 16
        %v6454 = vor.u32 %v6452, %v6450
        %v6456 = vshrl.u32 %v6302, 16
        %v6458 = vshll.u32 %v6302, 16
        %v6460 = vrot.slane %v6458, 1
        %v6461 = vor.u32 %v6456, %v6460
        %v6463 = vshll.u32 %v6303, 16
        %v6465 = vrot.slane %v6463, 1
        %v6466 = vsel %vm703, %v6461, %v6465
        %v6467 = vshrl.u32 %v6303, 16
        %v6469 = vor.u32 %v6467, %v6465
        %v6471 = vshrl.u32 %v6304, 16
        %v6473 = vshll.u32 %v6304, 16
        %v6475 = vrot.slane %v6473, 1
        %v6476 = vor.u32 %v6471, %v6475
        %v6478 = vshll.u32 %v6305, 16
        %v6480 = vrot.slane %v6478, 1
        %v6481 = vsel %vm703, %v6476, %v6480
        %v6482 = vshrl.u32 %v6305, 16
        %v6484 = vor.u32 %v6482, %v6480
        %v6486 = vshrl.u32 %v6306, 16
        %v6488 = vshll.u32 %v6306, 16
        %v6490 = vrot.slane %v6488, 1
        %v6491 = vor.u32 %v6486, %v6490
        %v6493 = vshll.u32 %v6307, 16
        %v6495 = vrot.slane %v6493, 1
        %v6496 = vsel %vm703, %v6491, %v6495
        %v6497 = vshrl.u32 %v6307, 16
        %v6499 = vor.u32 %v6497, %v6495
        %v6501 = vshrl.u32 %v6308, 16
        %v6503 = vshll.u32 %v6308, 16
        %v6505 = vrot.slane %v6503, 1
        %v6506 = vor.u32 %v6501, %v6505
        %v6508 = vshll.u32 %v6309, 16
        %v6510 = vrot.slane %v6508, 1
        %v6511 = vsel %vm703, %v6506, %v6510
        %v6512 = vshrl.u32 %v6309, 16
        %v6514 = vor.u32 %v6512, %v6510
        %v6516 = vshrl.u32 %v6310, 16
        %v6518 = vshll.u32 %v6310, 16
        %v6520 = vrot.slane %v6518, 1
        %v6521 = vor.u32 %v6516, %v6520
        %v6523 = vshll.u32 %v6311, 16
        %v6525 = vrot.slane %v6523, 1
        %v6526 = vsel %vm703, %v6521, %v6525
        %v6527 = vshrl.u32 %v6311, 16
        %v6529 = vor.u32 %v6527, %v6525
        %v6531 = vshrl.u32 %v6312, 16
        %v6533 = vshll.u32 %v6312, 16
        %v6535 = vrot.slane %v6533, 1
        %v6536 = vor.u32 %v6531, %v6535
        %v6538 = vshll.u32 %v6313, 16
        %v6540 = vrot.slane %v6538, 1
        %v6541 = vsel %vm703, %v6536, %v6540
        %v6542 = vshrl.u32 %v6313, 16
        %v6544 = vor.u32 %v6542, %v6540
        %v6546 = vshrl.u32 %v6314, 16
        %v6548 = vshll.u32 %v6314, 16
        %v6550 = vrot.slane %v6548, 1
        %v6551 = vor.u32 %v6546, %v6550
        %v6553 = vshll.u32 %v6315, 16
        %v6555 = vrot.slane %v6553, 1
        %v6556 = vsel %vm703, %v6551, %v6555
        %v6557 = vshrl.u32 %v6315, 16
        %v6559 = vor.u32 %v6557, %v6555
        %v6561 = vshrl.u32 %v6316, 16
        %v6563 = vshll.u32 %v6316, 16
        %v6565 = vrot.slane %v6563, 1
        %v6566 = vor.u32 %v6561, %v6565
        %v6568 = vshll.u32 %v6317, 16
        %v6570 = vrot.slane %v6568, 1
        %v6571 = vsel %vm703, %v6566, %v6570
        %v6572 = vshrl.u32 %v6317, 16
        %v6574 = vor.u32 %v6572, %v6570
        %v6576 = vshrl.u32 %v6318, 16
        %v6578 = vshll.u32 %v6318, 16
        %v6580 = vrot.slane %v6578, 1
        %v6581 = vor.u32 %v6576, %v6580
        %v6583 = vshll.u32 %v6319, 16
        %v6585 = vrot.slane %v6583, 1
        %v6586 = vsel %vm703, %v6581, %v6585
        %v6587 = vshrl.u32 %v6319, 16
        %v6589 = vor.u32 %v6587, %v6585
        %6590 = vrot.lane.b32.xlu0 %v6331, 32
        %v6591 = vpop.permute.xlu0 %6590
        %6592 = vrot.lane.b32.xlu0 %v6334, 32
        %v6593 = vpop.permute.xlu0 %6592
        %6594 = vrot.lane.b32.xlu0 %v6346, 32
        %v6595 = vpop.permute.xlu0 %6594
        %6596 = vrot.lane.b32.xlu0 %v6349, 32
        %v6597 = vpop.permute.xlu0 %6596
        %6598 = vrot.lane.b32.xlu0 %v6361, 32
        %v6599 = vpop.permute.xlu0 %6598
        %6600 = vrot.lane.b32.xlu0 %v6364, 32
        %v6601 = vpop.permute.xlu0 %6600
        %6602 = vrot.lane.b32.xlu0 %v6376, 32
        %v6603 = vpop.permute.xlu0 %6602
        %6604 = vrot.lane.b32.xlu0 %v6379, 32
        %v6605 = vpop.permute.xlu0 %6604
        %6606 = vrot.lane.b32.xlu0 %v6391, 32
        %v6607 = vpop.permute.xlu0 %6606
        %6608 = vrot.lane.b32.xlu0 %v6394, 32
        %v6609 = vpop.permute.xlu0 %6608
        %6610 = vrot.lane.b32.xlu0 %v6406, 32
        %v6611 = vpop.permute.xlu0 %6610
        %6612 = vrot.lane.b32.xlu0 %v6409, 32
        %v6613 = vpop.permute.xlu0 %6612
        %6614 = vrot.lane.b32.xlu0 %v6421, 32
        %v6615 = vpop.permute.xlu0 %6614
        %6616 = vrot.lane.b32.xlu0 %v6424, 32
        %v6617 = vpop.permute.xlu0 %6616
        %6618 = vrot.lane.b32.xlu0 %v6436, 32
        %v6619 = vpop.permute.xlu0 %6618
        %6620 = vrot.lane.b32.xlu0 %v6439, 32
        %v6621 = vpop.permute.xlu0 %6620
        %6622 = vrot.lane.b32.xlu0 %v6451, 32
        %v6623 = vpop.permute.xlu0 %6622
        %6624 = vrot.lane.b32.xlu0 %v6454, 32
        %v6625 = vpop.permute.xlu0 %6624
        %6626 = vrot.lane.b32.xlu0 %v6466, 32
        %v6627 = vpop.permute.xlu0 %6626
        %6628 = vrot.lane.b32.xlu0 %v6469, 32
        %v6629 = vpop.permute.xlu0 %6628
        %6630 = vrot.lane.b32.xlu0 %v6481, 32
        %v6631 = vpop.permute.xlu0 %6630
        %6632 = vrot.lane.b32.xlu0 %v6484, 32
        %v6633 = vpop.permute.xlu0 %6632
        %6634 = vrot.lane.b32.xlu0 %v6496, 32
        %v6635 = vpop.permute.xlu0 %6634
        %6636 = vrot.lane.b32.xlu0 %v6499, 32
        %v6637 = vpop.permute.xlu0 %6636
        %6638 = vrot.lane.b32.xlu0 %v6511, 32
        %v6639 = vpop.permute.xlu0 %6638
        %6640 = vrot.lane.b32.xlu0 %v6514, 32
        %v6641 = vpop.permute.xlu0 %6640
        %6642 = vrot.lane.b32.xlu0 %v6526, 32
        %v6643 = vpop.permute.xlu0 %6642
        %6644 = vrot.lane.b32.xlu0 %v6529, 32
        %v6645 = vpop.permute.xlu0 %6644
        %6646 = vrot.lane.b32.xlu0 %v6541, 32
        %v6647 = vpop.permute.xlu0 %6646
        %6648 = vrot.lane.b32.xlu0 %v6544, 32
        %v6649 = vpop.permute.xlu0 %6648
        %6650 = vrot.lane.b32.xlu0 %v6556, 32
        %v6651 = vpop.permute.xlu0 %6650
        %6652 = vrot.lane.b32.xlu0 %v6559, 32
        %v6653 = vpop.permute.xlu0 %6652
        %6654 = vrot.lane.b32.xlu0 %v6571, 32
        %v6655 = vpop.permute.xlu0 %6654
        %6656 = vrot.lane.b32.xlu0 %v6574, 32
        %v6657 = vpop.permute.xlu0 %6656
        %6658 = vrot.lane.b32.xlu0 %v6586, 32
        %v6659 = vpop.permute.xlu0 %6658
        %6660 = vrot.lane.b32.xlu0 %v6589, 32
        %v6661 = vpop.permute.xlu0 %6660
        %v6698 = vrot.slane %v6284, 1
        %v6699 = vrot.slane %v6285, 1
        %v6700 = vsel %vm1082, %v6698, %v6699
        %v6701 = vrot.slane %v6286, 1
        %v6702 = vrot.slane %v6287, 1
        %v6703 = vsel %vm1082, %v6701, %v6702
        %v6704 = vrot.slane %v6288, 1
        %v6705 = vrot.slane %v6289, 1
        %v6706 = vsel %vm1082, %v6704, %v6705
        %v6707 = vrot.slane %v6290, 1
        %v6708 = vrot.slane %v6291, 1
        %v6709 = vsel %vm1082, %v6707, %v6708
        %v6710 = vrot.slane %v6292, 1
        %v6711 = vrot.slane %v6293, 1
        %v6712 = vsel %vm1082, %v6710, %v6711
        %v6713 = vrot.slane %v6294, 1
        %v6714 = vrot.slane %v6295, 1
        %v6715 = vsel %vm1082, %v6713, %v6714
        %v6716 = vrot.slane %v6296, 1
        %v6717 = vrot.slane %v6297, 1
        %v6718 = vsel %vm1082, %v6716, %v6717
        %v6719 = vrot.slane %v6298, 1
        %v6720 = vrot.slane %v6299, 1
        %v6721 = vsel %vm1082, %v6719, %v6720
        %v6722 = vrot.slane %v6300, 1
        %v6723 = vrot.slane %v6301, 1
        %v6724 = vsel %vm1082, %v6722, %v6723
        %v6725 = vrot.slane %v6302, 1
        %v6726 = vrot.slane %v6303, 1
        %v6727 = vsel %vm1082, %v6725, %v6726
        %v6728 = vrot.slane %v6304, 1
        %v6729 = vrot.slane %v6305, 1
        %v6730 = vsel %vm1082, %v6728, %v6729
        %v6731 = vrot.slane %v6306, 1
        %v6732 = vrot.slane %v6307, 1
        %v6733 = vsel %vm1082, %v6731, %v6732
        %v6734 = vrot.slane %v6308, 1
        %v6735 = vrot.slane %v6309, 1
        %v6736 = vsel %vm1082, %v6734, %v6735
        %v6737 = vrot.slane %v6310, 1
        %v6738 = vrot.slane %v6311, 1
        %v6739 = vsel %vm1082, %v6737, %v6738
        %v6740 = vrot.slane %v6312, 1
        %v6741 = vrot.slane %v6313, 1
        %v6742 = vsel %vm1082, %v6740, %v6741
        %v6743 = vrot.slane %v6314, 1
        %v6744 = vrot.slane %v6315, 1
        %v6745 = vsel %vm1082, %v6743, %v6744
        %v6746 = vrot.slane %v6316, 1
        %v6747 = vrot.slane %v6317, 1
        %v6748 = vsel %vm1082, %v6746, %v6747
        %v6749 = vrot.slane %v6318, 1
        %v6750 = vrot.slane %v6319, 1
        %v6751 = vsel %vm1082, %v6749, %v6750
        %6752 = vrot.lane.b32.xlu0 %v6700, 64
        %v6753 = vpop.permute.xlu0 %6752
        %6754 = vrot.lane.b32.xlu0 %v6699, 64
        %v6755 = vpop.permute.xlu0 %6754
        %6756 = vrot.lane.b32.xlu0 %v6703, 64
        %v6757 = vpop.permute.xlu0 %6756
        %6758 = vrot.lane.b32.xlu0 %v6702, 64
        %v6759 = vpop.permute.xlu0 %6758
        %6760 = vrot.lane.b32.xlu0 %v6706, 64
        %v6761 = vpop.permute.xlu0 %6760
        %6762 = vrot.lane.b32.xlu0 %v6705, 64
        %v6763 = vpop.permute.xlu0 %6762
        %6764 = vrot.lane.b32.xlu0 %v6709, 64
        %v6765 = vpop.permute.xlu0 %6764
        %6766 = vrot.lane.b32.xlu0 %v6708, 64
        %v6767 = vpop.permute.xlu0 %6766
        %6768 = vrot.lane.b32.xlu0 %v6712, 64
        %v6769 = vpop.permute.xlu0 %6768
        %6770 = vrot.lane.b32.xlu0 %v6711, 64
        %v6771 = vpop.permute.xlu0 %6770
        %6772 = vrot.lane.b32.xlu0 %v6715, 64
        %v6773 = vpop.permute.xlu0 %6772
        %6774 = vrot.lane.b32.xlu0 %v6714, 64
        %v6775 = vpop.permute.xlu0 %6774
        %6776 = vrot.lane.b32.xlu0 %v6718, 64
        %v6777 = vpop.permute.xlu0 %6776
        %6778 = vrot.lane.b32.xlu0 %v6717, 64
        %v6779 = vpop.permute.xlu0 %6778
        %6780 = vrot.lane.b32.xlu0 %v6721, 64
        %v6781 = vpop.permute.xlu0 %6780
        %6782 = vrot.lane.b32.xlu0 %v6720, 64
        %v6783 = vpop.permute.xlu0 %6782
        %6784 = vrot.lane.b32.xlu0 %v6724, 64
        %v6785 = vpop.permute.xlu0 %6784
        %6786 = vrot.lane.b32.xlu0 %v6723, 64
        %v6787 = vpop.permute.xlu0 %6786
        %6788 = vrot.lane.b32.xlu0 %v6727, 64
        %v6789 = vpop.permute.xlu0 %6788
        %6790 = vrot.lane.b32.xlu0 %v6726, 64
        %v6791 = vpop.permute.xlu0 %6790
        %6792 = vrot.lane.b32.xlu0 %v6730, 64
        %v6793 = vpop.permute.xlu0 %6792
        %6794 = vrot.lane.b32.xlu0 %v6729, 64
        %v6795 = vpop.permute.xlu0 %6794
        %6796 = vrot.lane.b32.xlu0 %v6733, 64
        %v6797 = vpop.permute.xlu0 %6796
        %6798 = vrot.lane.b32.xlu0 %v6732, 64
        %v6799 = vpop.permute.xlu0 %6798
        %6800 = vrot.lane.b32.xlu0 %v6736, 64
        %v6801 = vpop.permute.xlu0 %6800
        %6802 = vrot.lane.b32.xlu0 %v6735, 64
        %v6803 = vpop.permute.xlu0 %6802
        %6804 = vrot.lane.b32.xlu0 %v6739, 64
        %v6805 = vpop.permute.xlu0 %6804
        %6806 = vrot.lane.b32.xlu0 %v6738, 64
        %v6807 = vpop.permute.xlu0 %6806
        %6808 = vrot.lane.b32.xlu0 %v6742, 64
        %v6809 = vpop.permute.xlu0 %6808
        %6810 = vrot.lane.b32.xlu0 %v6741, 64
        %v6811 = vpop.permute.xlu0 %6810
        %6812 = vrot.lane.b32.xlu0 %v6745, 64
        %v6813 = vpop.permute.xlu0 %6812
        %6814 = vrot.lane.b32.xlu0 %v6744, 64
        %v6815 = vpop.permute.xlu0 %6814
        %6816 = vrot.lane.b32.xlu0 %v6748, 64
        %v6817 = vpop.permute.xlu0 %6816
        %6818 = vrot.lane.b32.xlu0 %v6747, 64
        %v6819 = vpop.permute.xlu0 %6818
        %6820 = vrot.lane.b32.xlu0 %v6751, 64
        %v6821 = vpop.permute.xlu0 %6820
        %6822 = vrot.lane.b32.xlu0 %v6750, 64
        %v6823 = vpop.permute.xlu0 %6822
        %v6825 = vsel %vm386, %v6284, %v6591
        %v6827 = vsel %vm386, %v6285, %v6593
        %v6829 = vsel %vm386, %v6286, %v6595
        %v6831 = vsel %vm386, %v6287, %v6597
        %v6833 = vsel %vm386, %v6288, %v6599
        %v6835 = vsel %vm386, %v6289, %v6601
        %v6837 = vsel %vm386, %v6290, %v6603
        %v6839 = vsel %vm386, %v6291, %v6605
        %v6841 = vsel %vm386, %v6292, %v6607
        %v6843 = vsel %vm386, %v6293, %v6609
        %v6845 = vsel %vm386, %v6294, %v6611
        %v6847 = vsel %vm386, %v6295, %v6613
        %v6849 = vsel %vm386, %v6296, %v6615
        %v6851 = vsel %vm386, %v6297, %v6617
        %v6853 = vsel %vm386, %v6298, %v6619
        %v6855 = vsel %vm386, %v6299, %v6621
        %v6857 = vsel %vm386, %v6300, %v6623
        %v6859 = vsel %vm386, %v6301, %v6625
        %v6861 = vsel %vm386, %v6302, %v6627
        %v6863 = vsel %vm386, %v6303, %v6629
        %v6865 = vsel %vm386, %v6304, %v6631
        %v6867 = vsel %vm386, %v6305, %v6633
        %v6869 = vsel %vm386, %v6306, %v6635
        %v6871 = vsel %vm386, %v6307, %v6637
        %v6873 = vsel %vm386, %v6308, %v6639
        %v6875 = vsel %vm386, %v6309, %v6641
        %v6877 = vsel %vm386, %v6310, %v6643
        %v6879 = vsel %vm386, %v6311, %v6645
        %v6881 = vsel %vm386, %v6312, %v6647
        %v6883 = vsel %vm386, %v6313, %v6649
        %v6885 = vsel %vm386, %v6314, %v6651
        %v6887 = vsel %vm386, %v6315, %v6653
        %v6889 = vsel %vm386, %v6316, %v6655
        %v6891 = vsel %vm386, %v6317, %v6657
        %v6893 = vsel %vm386, %v6318, %v6659
        %v6895 = vsel %vm386, %v6319, %v6661
        %v6897 = vsel %vm1281, %v6825, %v6753
        %v6899 = vsel %vm1281, %v6827, %v6755
        %v6901 = vsel %vm1281, %v6829, %v6757
        %v6903 = vsel %vm1281, %v6831, %v6759
        %v6905 = vsel %vm1281, %v6833, %v6761
        %v6907 = vsel %vm1281, %v6835, %v6763
        %v6909 = vsel %vm1281, %v6837, %v6765
        %v6911 = vsel %vm1281, %v6839, %v6767
        %v6913 = vsel %vm1281, %v6841, %v6769
        %v6915 = vsel %vm1281, %v6843, %v6771
        %v6917 = vsel %vm1281, %v6845, %v6773
        %v6919 = vsel %vm1281, %v6847, %v6775
        %v6921 = vsel %vm1281, %v6849, %v6777
        %v6923 = vsel %vm1281, %v6851, %v6779
        %v6925 = vsel %vm1281, %v6853, %v6781
        %v6927 = vsel %vm1281, %v6855, %v6783
        %v6929 = vsel %vm1281, %v6857, %v6785
        %v6931 = vsel %vm1281, %v6859, %v6787
        %v6933 = vsel %vm1281, %v6861, %v6789
        %v6935 = vsel %vm1281, %v6863, %v6791
        %v6937 = vsel %vm1281, %v6865, %v6793
        %v6939 = vsel %vm1281, %v6867, %v6795
        %v6941 = vsel %vm1281, %v6869, %v6797
        %v6943 = vsel %vm1281, %v6871, %v6799
        %v6945 = vsel %vm1281, %v6873, %v6801
        %v6947 = vsel %vm1281, %v6875, %v6803
        %v6949 = vsel %vm1281, %v6877, %v6805
        %v6951 = vsel %vm1281, %v6879, %v6807
        %v6953 = vsel %vm1281, %v6881, %v6809
        %v6955 = vsel %vm1281, %v6883, %v6811
        %v6957 = vsel %vm1281, %v6885, %v6813
        %v6959 = vsel %vm1281, %v6887, %v6815
        %v6961 = vsel %vm1281, %v6889, %v6817
        %v6963 = vsel %vm1281, %v6891, %v6819
        %v6965 = vsel %vm1281, %v6893, %v6821
        %v6967 = vsel %vm1281, %v6895, %v6823
        %v6968 = vld [vmem:[%s8] sm:$0x1]
        %v6970 = vlaneseq
        %v6971 = vshrl.u32 %v6970, 7
        %v6972 = vsub.s32 0, %v6971
        %v6973 = vrot.slane %v6968, %v6972
        %v6975 = vshrl.u32 %v6897, 16
        %v6977 = vrot.slane %v6975, 3
        %v6978 = vshll.u32 %v6897, 16
        %v6980 = vrot.slane %v6978, 4
        %v6981 = vor.u32 %v6977, %v6980
        %v6982 = vshrl.u32 %v6899, 16
        %v6984 = vrot.slane %v6982, 3
        %v6985 = vshll.u32 %v6899, 16
        %v6987 = vrot.slane %v6985, 4
        %v6988 = vor.u32 %v6984, %v6987
        %v6989 = vsel %vm1361, %v6981, %v6988
        %v6990 = vshrl.u32 %v6901, 16
        %v6992 = vrot.slane %v6990, 3
        %v6993 = vshll.u32 %v6901, 16
        %v6995 = vrot.slane %v6993, 4
        %v6996 = vor.u32 %v6992, %v6995
        %v6997 = vshrl.u32 %v6903, 16
        %v6999 = vrot.slane %v6997, 3
        %v7000 = vshll.u32 %v6903, 16
        %v7002 = vrot.slane %v7000, 4
        %v7003 = vor.u32 %v6999, %v7002
        %v7004 = vsel %vm1361, %v6996, %v7003
        %v7005 = vshrl.u32 %v6905, 16
        %v7007 = vrot.slane %v7005, 3
        %v7008 = vshll.u32 %v6905, 16
        %v7010 = vrot.slane %v7008, 4
        %v7011 = vor.u32 %v7007, %v7010
        %v7012 = vshrl.u32 %v6907, 16
        %v7014 = vrot.slane %v7012, 3
        %v7015 = vshll.u32 %v6907, 16
        %v7017 = vrot.slane %v7015, 4
        %v7018 = vor.u32 %v7014, %v7017
        %v7019 = vsel %vm1361, %v7011, %v7018
        %v7020 = vshrl.u32 %v6909, 16
        %v7022 = vrot.slane %v7020, 3
        %v7023 = vshll.u32 %v6909, 16
        %v7025 = vrot.slane %v7023, 4
        %v7026 = vor.u32 %v7022, %v7025
        %v7027 = vshrl.u32 %v6911, 16
        %v7029 = vrot.slane %v7027, 3
        %v7030 = vshll.u32 %v6911, 16
        %v7032 = vrot.slane %v7030, 4
        %v7033 = vor.u32 %v7029, %v7032
        %v7034 = vsel %vm1361, %v7026, %v7033
        %v7035 = vshrl.u32 %v6913, 16
        %v7037 = vrot.slane %v7035, 3
        %v7038 = vshll.u32 %v6913, 16
        %v7040 = vrot.slane %v7038, 4
        %v7041 = vor.u32 %v7037, %v7040
        %v7042 = vshrl.u32 %v6915, 16
        %v7044 = vrot.slane %v7042, 3
        %v7045 = vshll.u32 %v6915, 16
        %v7047 = vrot.slane %v7045, 4
        %v7048 = vor.u32 %v7044, %v7047
        %v7049 = vsel %vm1361, %v7041, %v7048
        %v7050 = vshrl.u32 %v6917, 16
        %v7052 = vrot.slane %v7050, 3
        %v7053 = vshll.u32 %v6917, 16
        %v7055 = vrot.slane %v7053, 4
        %v7056 = vor.u32 %v7052, %v7055
        %v7057 = vshrl.u32 %v6919, 16
        %v7059 = vrot.slane %v7057, 3
        %v7060 = vshll.u32 %v6919, 16
        %v7062 = vrot.slane %v7060, 4
        %v7063 = vor.u32 %v7059, %v7062
        %v7064 = vsel %vm1361, %v7056, %v7063
        %v7065 = vshrl.u32 %v6921, 16
        %v7067 = vrot.slane %v7065, 3
        %v7068 = vshll.u32 %v6921, 16
        %v7070 = vrot.slane %v7068, 4
        %v7071 = vor.u32 %v7067, %v7070
        %v7072 = vshrl.u32 %v6923, 16
        %v7074 = vrot.slane %v7072, 3
        %v7075 = vshll.u32 %v6923, 16
        %v7077 = vrot.slane %v7075, 4
        %v7078 = vor.u32 %v7074, %v7077
        %v7079 = vsel %vm1361, %v7071, %v7078
        %v7080 = vshrl.u32 %v6925, 16
        %v7082 = vrot.slane %v7080, 3
        %v7083 = vshll.u32 %v6925, 16
        %v7085 = vrot.slane %v7083, 4
        %v7086 = vor.u32 %v7082, %v7085
        %v7087 = vshrl.u32 %v6927, 16
        %v7089 = vrot.slane %v7087, 3
        %v7090 = vshll.u32 %v6927, 16
        %v7092 = vrot.slane %v7090, 4
        %v7093 = vor.u32 %v7089, %v7092
        %v7094 = vsel %vm1361, %v7086, %v7093
        %v7095 = vshrl.u32 %v6929, 16
        %v7097 = vrot.slane %v7095, 3
        %v7098 = vshll.u32 %v6929, 16
        %v7100 = vrot.slane %v7098, 4
        %v7101 = vor.u32 %v7097, %v7100
        %v7102 = vshrl.u32 %v6931, 16
        %v7104 = vrot.slane %v7102, 3
        %v7105 = vshll.u32 %v6931, 16
        %v7107 = vrot.slane %v7105, 4
        %v7108 = vor.u32 %v7104, %v7107
        %v7109 = vsel %vm1361, %v7101, %v7108
        %v7110 = vshrl.u32 %v6933, 16
        %v7112 = vrot.slane %v7110, 3
        %v7113 = vshll.u32 %v6933, 16
        %v7115 = vrot.slane %v7113, 4
        %v7116 = vor.u32 %v7112, %v7115
        %v7117 = vshrl.u32 %v6935, 16
        %v7119 = vrot.slane %v7117, 3
        %v7120 = vshll.u32 %v6935, 16
        %v7122 = vrot.slane %v7120, 4
        %v7123 = vor.u32 %v7119, %v7122
        %v7124 = vsel %vm1361, %v7116, %v7123
        %v7125 = vshrl.u32 %v6937, 16
        %v7127 = vrot.slane %v7125, 3
        %v7128 = vshll.u32 %v6937, 16
        %v7130 = vrot.slane %v7128, 4
        %v7131 = vor.u32 %v7127, %v7130
        %v7132 = vshrl.u32 %v6939, 16
        %v7134 = vrot.slane %v7132, 3
        %v7135 = vshll.u32 %v6939, 16
        %v7137 = vrot.slane %v7135, 4
        %v7138 = vor.u32 %v7134, %v7137
        %v7139 = vsel %vm1361, %v7131, %v7138
        %v7140 = vshrl.u32 %v6941, 16
        %v7142 = vrot.slane %v7140, 3
        %v7143 = vshll.u32 %v6941, 16
        %v7145 = vrot.slane %v7143, 4
        %v7146 = vor.u32 %v7142, %v7145
        %v7147 = vshrl.u32 %v6943, 16
        %v7149 = vrot.slane %v7147, 3
        %v7150 = vshll.u32 %v6943, 16
        %v7152 = vrot.slane %v7150, 4
        %v7153 = vor.u32 %v7149, %v7152
        %v7154 = vsel %vm1361, %v7146, %v7153
        %v7155 = vshrl.u32 %v6945, 16
        %v7157 = vrot.slane %v7155, 3
        %v7158 = vshll.u32 %v6945, 16
        %v7160 = vrot.slane %v7158, 4
        %v7161 = vor.u32 %v7157, %v7160
        %v7162 = vshrl.u32 %v6947, 16
        %v7164 = vrot.slane %v7162, 3
        %v7165 = vshll.u32 %v6947, 16
        %v7167 = vrot.slane %v7165, 4
        %v7168 = vor.u32 %v7164, %v7167
        %v7169 = vsel %vm1361, %v7161, %v7168
        %v7170 = vshrl.u32 %v6949, 16
        %v7172 = vrot.slane %v7170, 3
        %v7173 = vshll.u32 %v6949, 16
        %v7175 = vrot.slane %v7173, 4
        %v7176 = vor.u32 %v7172, %v7175
        %v7177 = vshrl.u32 %v6951, 16
        %v7179 = vrot.slane %v7177, 3
        %v7180 = vshll.u32 %v6951, 16
        %v7182 = vrot.slane %v7180, 4
        %v7183 = vor.u32 %v7179, %v7182
        %v7184 = vsel %vm1361, %v7176, %v7183
        %v7185 = vshrl.u32 %v6953, 16
        %v7187 = vrot.slane %v7185, 3
        %v7188 = vshll.u32 %v6953, 16
        %v7190 = vrot.slane %v7188, 4
        %v7191 = vor.u32 %v7187, %v7190
        %v7192 = vshrl.u32 %v6955, 16
        %v7194 = vrot.slane %v7192, 3
        %v7195 = vshll.u32 %v6955, 16
        %v7197 = vrot.slane %v7195, 4
        %v7198 = vor.u32 %v7194, %v7197
        %v7199 = vsel %vm1361, %v7191, %v7198
        %v7200 = vshrl.u32 %v6957, 16
        %v7202 = vrot.slane %v7200, 3
        %v7203 = vshll.u32 %v6957, 16
        %v7205 = vrot.slane %v7203, 4
        %v7206 = vor.u32 %v7202, %v7205
        %v7207 = vshrl.u32 %v6959, 16
        %v7209 = vrot.slane %v7207, 3
        %v7210 = vshll.u32 %v6959, 16
        %v7212 = vrot.slane %v7210, 4
        %v7213 = vor.u32 %v7209, %v7212
        %v7214 = vsel %vm1361, %v7206, %v7213
        %v7215 = vld [vmem:[%s7] sm:$0xf]
        %v7216 = vld [vmem:[%s7 + $0x4] sm:$0xf]
        %v7217 = vld [vmem:[%s7 + $0x8] sm:$0xf]
        %v7218 = vld [vmem:[%s7 + $0xc] sm:$0xf]
        %v7219 = vld [vmem:[%s7 + $0x10] sm:$0xf]
        %v7220 = vld [vmem:[%s7 + $0x14] sm:$0xf]
        %v7221 = vld [vmem:[%s7 + $0x18] sm:$0xf]
        %v7222 = vld [vmem:[%s7 + $0x1c] sm:$0xf]
        %v7223 = vld [vmem:[%s7 + $0x20] sm:$0xf]
        %v7224 = vld [vmem:[%s7 + $0x24] sm:$0xf]
        %v7225 = vld [vmem:[%s7 + $0x28] sm:$0xf]
        %v7226 = vld [vmem:[%s7 + $0x2c] sm:$0xf]
        %v7239 = vunpack.c.l.b16 %v7215
        %v7240 = vunpack.c.l.b16 %v7216
        %v7241 = vunpack.c.l.b16 %v7217
        %v7242 = vunpack.c.l.b16 %v7218
        %v7243 = vunpack.c.l.b16 %v7219
        %v7244 = vunpack.c.l.b16 %v7220
        %v7245 = vunpack.c.l.b16 %v7221
        %v7246 = vunpack.c.l.b16 %v7222
        %v7247 = vunpack.c.l.b16 %v7223
        %v7248 = vunpack.c.l.b16 %v7224
        %v7249 = vunpack.c.l.b16 %v7225
        %v7250 = vunpack.c.l.b16 %v7226
        %v7251 = vpack.c.b16 %v7240, %v7239
        %v7252 = vpack.c.b16 %v7242, %v7241
        %v7253 = vpack.c.b16 %v7244, %v7243
        %v7254 = vpack.c.b16 %v7246, %v7245
        %v7255 = vpack.c.b16 %v7248, %v7247
        %v7256 = vpack.c.b16 %v7250, %v7249
        %v7264 = vsel %vm1650, %v6989, 0
        %v7267 = vsel %vm1650, %v7004, 0
        %v7270 = vsel %vm1650, %v7019, 0
        %v7273 = vsel %vm1650, %v7034, 0
        %v7276 = vsel %vm1650, %v7049, 0
        %v7279 = vsel %vm1650, %v7064, 0
        %v7282 = vsel %vm1650, %v7079, 0
        %v7285 = vsel %vm1650, %v7094, 0
        %v7288 = vsel %vm1650, %v7109, 0
        %v7291 = vsel %vm1650, %v7124, 0
        %v7294 = vsel %vm1650, %v7139, 0
        %v7297 = vsel %vm1650, %v7154, 0
        %v7300 = vsel %vm1650, %v7169, 0
        %v7303 = vsel %vm1650, %v7184, 0
        %v7306 = vsel %vm1650, %v7199, 0
        %v7309 = vsel %vm1650, %v7214, 0
        %7311 = vmatprep.subr.bf16.mxu0 0
        %7312 = vmatpush1.bf16.msra.mxu0 %v7251
        %7313 = vmatprep.subr.bf16.mxu0 0
        %7314 = vmatpush1.bf16.msra.mxu0 %v7252
        %7315 = vmatprep.subr.bf16.mxu0 0
        %7316 = vmatpush1.bf16.msra.mxu0 %v7253
        %7317 = vmatprep.subr.bf16.mxu0 0
        %7318 = vmatpush1.bf16.msra.mxu0 %v7254
        %7319 = vmatprep.subr.bf16.mxu0 0
        %7320 = vmatpush1.bf16.msra.mxu0 %v7255
        %7321 = vmatprep.subr.bf16.mxu0 0
        %7322 = vmatpush1.bf16.msra.mxu0 %v7256
        %7323 = vmatprep.subr.bf16.mxu0 0
        %7324 = vmatpush1.bf16.msra.mxu0 0
        %7325 = vmatprep.subr.bf16.mxu0 0
        %7326 = vmatpush1.bf16.msra.mxu0 0
        %7327 = vmatprep.subr.bf16.mxu0 0
        %7328 = vmatpush1.bf16.msra.mxu0 0
        %7329 = vmatprep.subr.bf16.mxu0 0
        %7330 = vmatpush1.bf16.msra.mxu0 0
        %7331 = vmatprep.subr.bf16.mxu0 0
        %7332 = vmatpush1.bf16.msra.mxu0 0
        %7333 = vmatprep.subr.bf16.mxu0 0
        %7334 = vmatpush1.bf16.msra.mxu0 0
        %7335 = vmatprep.subr.bf16.mxu0 0
        %7336 = vmatpush1.bf16.msra.mxu0 0
        %7337 = vmatprep.subr.bf16.mxu0 0
        %7338 = vmatpush1.bf16.msra.mxu0 0
        %7339 = vmatprep.subr.bf16.mxu0 0
        %7340 = vmatpush1.bf16.msra.mxu0 0
        %7341 = vmatprep.subr.bf16.mxu0 0
        %7342 = vmatpush1.bf16.msra.mxu0 0
        %7343 = vmatprep.mubr.bf16.mxu0 0
        %7344 = vmatmul.mubr.bf16.gmra.mrb[0].mxu0 %v7264
        %v7345 = vpop.f32.mrb[0].mxu0
        %v7346 = vadd.f32 0.0, %v7345
        %v7347 = vpop.f32.mrb[0].mxu0
        %v7348 = vpop.f32.mrb[0].mxu0
        %v7349 = vadd.f32 0.0, %v7348
        %v7350 = vpop.f32.mrb[0].mxu0
        %7351 = vmatprep.mubr.bf16.mxu0 0
        %7352 = vmatmul.mubr.bf16.gmra.mrb[0].mxu0 %v7267
        %v7353 = vpop.f32.mrb[0].mxu0
        %v7354 = vadd.f32 0.0, %v7353
        %v7355 = vpop.f32.mrb[0].mxu0
        %v7356 = vpop.f32.mrb[0].mxu0
        %v7357 = vadd.f32 0.0, %v7356
        %v7358 = vpop.f32.mrb[0].mxu0
        %7359 = vmatprep.mubr.bf16.mxu0 0
        %7360 = vmatmul.mubr.bf16.gmra.mrb[0].mxu0 %v7270
        %v7361 = vpop.f32.mrb[0].mxu0
        %v7362 = vadd.f32 0.0, %v7361
        %v7363 = vpop.f32.mrb[0].mxu0
        %v7364 = vpop.f32.mrb[0].mxu0
        %v7365 = vadd.f32 0.0, %v7364
        %v7366 = vpop.f32.mrb[0].mxu0
        %7367 = vmatprep.mubr.bf16.mxu0 0
        %7368 = vmatmul.mubr.bf16.gmra.mrb[0].mxu0 %v7273
        %v7369 = vpop.f32.mrb[0].mxu0
        %v7370 = vadd.f32 0.0, %v7369
        %v7371 = vpop.f32.mrb[0].mxu0
        %v7372 = vpop.f32.mrb[0].mxu0
        %v7373 = vadd.f32 0.0, %v7372
        %v7374 = vpop.f32.mrb[0].mxu0
        %7375 = vmatprep.mubr.bf16.mxu0 0
        %7376 = vmatmul.mubr.bf16.gmra.mrb[0].mxu0 %v7276
        %v7377 = vpop.f32.mrb[0].mxu0
        %v7378 = vadd.f32 0.0, %v7377
        %v7379 = vpop.f32.mrb[0].mxu0
        %v7380 = vpop.f32.mrb[0].mxu0
        %v7381 = vadd.f32 0.0, %v7380
        %v7382 = vpop.f32.mrb[0].mxu0
        %7383 = vmatprep.mubr.bf16.mxu0 0
        %7384 = vmatmul.mubr.bf16.gmra.mrb[0].mxu0 %v7279
        %v7385 = vpop.f32.mrb[0].mxu0
        %v7386 = vadd.f32 0.0, %v7385
        %v7387 = vpop.f32.mrb[0].mxu0
        %v7388 = vpop.f32.mrb[0].mxu0
        %v7389 = vadd.f32 0.0, %v7388
        %v7390 = vpop.f32.mrb[0].mxu0
        %7391 = vmatprep.mubr.bf16.mxu0 0
        %7392 = vmatmul.mubr.bf16.gmra.mrb[0].mxu0 %v7282
        %v7393 = vpop.f32.mrb[0].mxu0
        %v7394 = vadd.f32 0.0, %v7393
        %v7395 = vpop.f32.mrb[0].mxu0
        %v7396 = vpop.f32.mrb[0].mxu0
        %v7397 = vadd.f32 0.0, %v7396
        %v7398 = vpop.f32.mrb[0].mxu0
        %7399 = vmatprep.mubr.bf16.mxu0 0
        %7400 = vmatmul.mubr.bf16.gmra.mrb[0].mxu0 %v7285
        %v7401 = vpop.f32.mrb[0].mxu0
        %v7402 = vadd.f32 0.0, %v7401
        %v7403 = vpop.f32.mrb[0].mxu0
        %v7404 = vpop.f32.mrb[0].mxu0
        %v7405 = vadd.f32 0.0, %v7404
        %v7406 = vpop.f32.mrb[0].mxu0
        %7407 = vmatprep.mubr.bf16.mxu0 0
        %7408 = vmatmul.mubr.bf16.gmra.mrb[0].mxu0 %v7288
        %v7409 = vpop.f32.mrb[0].mxu0
        %v7410 = vadd.f32 0.0, %v7409
        %v7411 = vpop.f32.mrb[0].mxu0
        %v7412 = vpop.f32.mrb[0].mxu0
        %v7413 = vadd.f32 0.0, %v7412
        %v7414 = vpop.f32.mrb[0].mxu0
        %7415 = vmatprep.mubr.bf16.mxu0 0
        %7416 = vmatmul.mubr.bf16.gmra.mrb[0].mxu0 %v7291
        %v7417 = vpop.f32.mrb[0].mxu0
        %v7418 = vadd.f32 0.0, %v7417
        %v7419 = vpop.f32.mrb[0].mxu0
        %v7420 = vpop.f32.mrb[0].mxu0
        %v7421 = vadd.f32 0.0, %v7420
        %v7422 = vpop.f32.mrb[0].mxu0
        %7423 = vmatprep.mubr.bf16.mxu0 0
        %7424 = vmatmul.mubr.bf16.gmra.mrb[0].mxu0 %v7294
        %v7425 = vpop.f32.mrb[0].mxu0
        %v7426 = vadd.f32 0.0, %v7425
        %v7427 = vpop.f32.mrb[0].mxu0
        %v7428 = vpop.f32.mrb[0].mxu0
        %v7429 = vadd.f32 0.0, %v7428
        %v7430 = vpop.f32.mrb[0].mxu0
        %7431 = vmatprep.mubr.bf16.mxu0 0
        %7432 = vmatmul.mubr.bf16.gmra.mrb[0].mxu0 %v7297
        %v7433 = vpop.f32.mrb[0].mxu0
        %v7434 = vadd.f32 0.0, %v7433
        %v7435 = vpop.f32.mrb[0].mxu0
        %v7436 = vpop.f32.mrb[0].mxu0
        %v7437 = vadd.f32 0.0, %v7436
        %v7438 = vpop.f32.mrb[0].mxu0
        %7439 = vmatprep.mubr.bf16.mxu0 0
        %7440 = vmatmul.mubr.bf16.gmra.mrb[0].mxu0 %v7300
        %v7441 = vpop.f32.mrb[0].mxu0
        %v7442 = vadd.f32 0.0, %v7441
        %v7443 = vpop.f32.mrb[0].mxu0
        %v7444 = vpop.f32.mrb[0].mxu0
        %v7445 = vadd.f32 0.0, %v7444
        %v7446 = vpop.f32.mrb[0].mxu0
        %7447 = vmatprep.mubr.bf16.mxu0 0
        %7448 = vmatmul.mubr.bf16.gmra.mrb[0].mxu0 %v7303
        %v7449 = vpop.f32.mrb[0].mxu0
        %v7450 = vadd.f32 0.0, %v7449
        %v7451 = vpop.f32.mrb[0].mxu0
        %v7452 = vpop.f32.mrb[0].mxu0
        %v7453 = vadd.f32 0.0, %v7452
        %v7454 = vpop.f32.mrb[0].mxu0
        %7455 = vmatprep.mubr.bf16.mxu0 0
        %7456 = vmatmul.mubr.bf16.gmra.mrb[0].mxu0 %v7306
        %v7457 = vpop.f32.mrb[0].mxu0
        %v7458 = vadd.f32 0.0, %v7457
        %v7459 = vpop.f32.mrb[0].mxu0
        %v7460 = vpop.f32.mrb[0].mxu0
        %v7461 = vadd.f32 0.0, %v7460
        %v7462 = vpop.f32.mrb[0].mxu0
        %7463 = vmatprep.mubr.bf16.mxu0 0
        %7464 = vmatmul.mubr.bf16.gmra.mrb[0].mxu0 %v7309
        %v7465 = vpop.f32.mrb[0].mxu0
        %v7466 = vadd.f32 0.0, %v7465
        %v7467 = vpop.f32.mrb[0].mxu0
        %v7468 = vpop.f32.mrb[0].mxu0
        %v7469 = vadd.f32 0.0, %v7468
        %v7470 = vpop.f32.mrb[0].mxu0
        %7471 = vdwg.mxu0
        %v7472 = vadd.f32 %v6973, %v7346
        %v7473 = vadd.f32 %v6973, %v7349
        %v7474 = vadd.f32 %v6973, %v7354
        %v7475 = vadd.f32 %v6973, %v7357
        %v7476 = vadd.f32 %v6973, %v7362
        %v7477 = vadd.f32 %v6973, %v7365
        %v7478 = vadd.f32 %v6973, %v7370
        %v7479 = vadd.f32 %v6973, %v7373
        %v7480 = vadd.f32 %v6973, %v7378
        %v7481 = vadd.f32 %v6973, %v7381
        %v7482 = vadd.f32 %v6973, %v7386
        %v7483 = vadd.f32 %v6973, %v7389
        %v7484 = vadd.f32 %v6973, %v7394
        %v7485 = vadd.f32 %v6973, %v7397
        %v7486 = vadd.f32 %v6973, %v7402
        %v7487 = vadd.f32 %v6973, %v7405
        %v7488 = vadd.f32 %v6973, %v7410
        %v7489 = vadd.f32 %v6973, %v7413
        %v7490 = vadd.f32 %v6973, %v7418
        %v7491 = vadd.f32 %v6973, %v7421
        %v7492 = vadd.f32 %v6973, %v7426
        %v7493 = vadd.f32 %v6973, %v7429
        %v7494 = vadd.f32 %v6973, %v7434
        %v7495 = vadd.f32 %v6973, %v7437
        %v7496 = vadd.f32 %v6973, %v7442
        %v7497 = vadd.f32 %v6973, %v7445
        %v7498 = vadd.f32 %v6973, %v7450
        %v7499 = vadd.f32 %v6973, %v7453
        %v7500 = vadd.f32 %v6973, %v7458
        %v7501 = vadd.f32 %v6973, %v7461
        %v7502 = vadd.f32 %v6973, %v7466
        %v7503 = vadd.f32 %v6973, %v7469
        %v7504 = vshrl.u32 %v6961, 16
        %v7506 = vrot.slane %v7504, 3
        %v7507 = vshll.u32 %v6961, 16
        %v7509 = vrot.slane %v7507, 4
        %v7510 = vor.u32 %v7506, %v7509
        %v7511 = vshrl.u32 %v6963, 16
        %v7513 = vrot.slane %v7511, 3
        %v7514 = vshll.u32 %v6963, 16
        %v7516 = vrot.slane %v7514, 4
        %v7517 = vor.u32 %v7513, %v7516
        %v7518 = vsel %vm1361, %v7510, %v7517
        %s7519 = scalar_lea.vmem %s7, 48
        %v7520 = vld [vmem:[%s7519] sm:$0xf]
        %v7521 = vld [vmem:[%s7519 + $0x4] sm:$0xf]
        %v7522 = vld [vmem:[%s7519 + $0x8] sm:$0xf]
        %v7523 = vld [vmem:[%s7519 + $0xc] sm:$0xf]
        %v7524 = vld [vmem:[%s7519 + $0x10] sm:$0xf]
        %v7525 = vld [vmem:[%s7519 + $0x14] sm:$0xf]
        %v7526 = vld [vmem:[%s7519 + $0x18] sm:$0xf]
        %v7527 = vld [vmem:[%s7519 + $0x1c] sm:$0xf]
        %v7528 = vld [vmem:[%s7519 + $0x20] sm:$0xf]
        %v7529 = vld [vmem:[%s7519 + $0x24] sm:$0xf]
        %v7530 = vld [vmem:[%s7519 + $0x28] sm:$0xf]
        %v7531 = vld [vmem:[%s7519 + $0x2c] sm:$0xf]
        %v7544 = vunpack.c.l.b16 %v7520
        %v7545 = vunpack.c.l.b16 %v7521
        %v7546 = vunpack.c.l.b16 %v7522
        %v7547 = vunpack.c.l.b16 %v7523
        %v7548 = vunpack.c.l.b16 %v7524
        %v7549 = vunpack.c.l.b16 %v7525
        %v7550 = vunpack.c.l.b16 %v7526
        %v7551 = vunpack.c.l.b16 %v7527
        %v7552 = vunpack.c.l.b16 %v7528
        %v7553 = vunpack.c.l.b16 %v7529
        %v7554 = vunpack.c.l.b16 %v7530
        %v7555 = vunpack.c.l.b16 %v7531
        %v7556 = vpack.c.b16 %v7545, %v7544
        %v7557 = vpack.c.b16 %v7547, %v7546
        %v7558 = vpack.c.b16 %v7549, %v7548
        %v7559 = vpack.c.b16 %v7551, %v7550
        %v7560 = vpack.c.b16 %v7553, %v7552
        %v7561 = vpack.c.b16 %v7555, %v7554
        %v7569 = vsel %vm1650, %v7518, 0
        %7571 = vmatprep.subr.bf16.mxu0 0
        %7572 = vmatpush1.bf16.msra.mxu0 %v7556
        %7573 = vmatprep.subr.bf16.mxu0 0
        %7574 = vmatpush1.bf16.msra.mxu0 %v7557
        %7575 = vmatprep.subr.bf16.mxu0 0
        %7576 = vmatpush1.bf16.msra.mxu0 %v7558
        %7577 = vmatprep.subr.bf16.mxu0 0
        %7578 = vmatpush1.bf16.msra.mxu0 %v7559
        %7579 = vmatprep.subr.bf16.mxu0 0
        %7580 = vmatpush1.bf16.msra.mxu0 %v7560
        %7581 = vmatprep.subr.bf16.mxu0 0
        %7582 = vmatpush1.bf16.msra.mxu0 %v7561
        %7583 = vmatprep.subr.bf16.mxu0 0
        %7584 = vmatpush1.bf16.msra.mxu0 0
        %7585 = vmatprep.subr.bf16.mxu0 0
        %7586 = vmatpush1.bf16.msra.mxu0 0
        %7587 = vmatprep.subr.bf16.mxu0 0
        %7588 = vmatpush1.bf16.msra.mxu0 0
        %7589 = vmatprep.subr.bf16.mxu0 0
        %7590 = vmatpush1.bf16.msra.mxu0 0
        %7591 = vmatprep.subr.bf16.mxu0 0
        %7592 = vmatpush1.bf16.msra.mxu0 0
        %7593 = vmatprep.subr.bf16.mxu0 0
        %7594 = vmatpush1.bf16.msra.mxu0 0
        %7595 = vmatprep.subr.bf16.mxu0 0
        %7596 = vmatpush1.bf16.msra.mxu0 0
        %7597 = vmatprep.subr.bf16.mxu0 0
        %7598 = vmatpush1.bf16.msra.mxu0 0
        %7599 = vmatprep.subr.bf16.mxu0 0
        %7600 = vmatpush1.bf16.msra.mxu0 0
        %7601 = vmatprep.subr.bf16.mxu0 0
        %7602 = vmatpush1.bf16.msra.mxu0 0
        %7603 = vmatprep.mubr.bf16.mxu0 0
        %7604 = vmatmul.mubr.bf16.gmra.mrb[0].mxu0 %v7267
        %v7605 = vpop.f32.mrb[0].mxu0
        %v7606 = vadd.f32 0.0, %v7605
        %v7607 = vpop.f32.mrb[0].mxu0
        %v7608 = vpop.f32.mrb[0].mxu0
        %v7609 = vadd.f32 0.0, %v7608
        %v7610 = vpop.f32.mrb[0].mxu0
        %7611 = vmatprep.mubr.bf16.mxu0 0
        %7612 = vmatmul.mubr.bf16.gmra.mrb[0].mxu0 %v7270
        %v7613 = vpop.f32.mrb[0].mxu0
        %v7614 = vadd.f32 0.0, %v7613
        %v7615 = vpop.f32.mrb[0].mxu0
        %v7616 = vpop.f32.mrb[0].mxu0
        %v7617 = vadd.f32 0.0, %v7616
        %v7618 = vpop.f32.mrb[0].mxu0
        %7619 = vmatprep.mubr.bf16.mxu0 0
        %7620 = vmatmul.mubr.bf16.gmra.mrb[0].mxu0 %v7273
        %v7621 = vpop.f32.mrb[0].mxu0
        %v7622 = vadd.f32 0.0, %v7621
        %v7623 = vpop.f32.mrb[0].mxu0
        %v7624 = vpop.f32.mrb[0].mxu0
        %v7625 = vadd.f32 0.0, %v7624
        %v7626 = vpop.f32.mrb[0].mxu0
        %7627 = vmatprep.mubr.bf16.mxu0 0
        %7628 = vmatmul.mubr.bf16.gmra.mrb[0].mxu0 %v7276
        %v7629 = vpop.f32.mrb[0].mxu0
        %v7630 = vadd.f32 0.0, %v7629
        %v7631 = vpop.f32.mrb[0].mxu0
        %v7632 = vpop.f32.mrb[0].mxu0
        %v7633 = vadd.f32 0.0, %v7632
        %v7634 = vpop.f32.mrb[0].mxu0
        %7635 = vmatprep.mubr.bf16.mxu0 0
        %7636 = vmatmul.mubr.bf16.gmra.mrb[0].mxu0 %v7279
        %v7637 = vpop.f32.mrb[0].mxu0
        %v7638 = vadd.f32 0.0, %v7637
        %v7639 = vpop.f32.mrb[0].mxu0
        %v7640 = vpop.f32.mrb[0].mxu0
        %v7641 = vadd.f32 0.0, %v7640
        %v7642 = vpop.f32.mrb[0].mxu0
        %7643 = vmatprep.mubr.bf16.mxu0 0
        %7644 = vmatmul.mubr.bf16.gmra.mrb[0].mxu0 %v7282
        %v7645 = vpop.f32.mrb[0].mxu0
        %v7646 = vadd.f32 0.0, %v7645
        %v7647 = vpop.f32.mrb[0].mxu0
        %v7648 = vpop.f32.mrb[0].mxu0
        %v7649 = vadd.f32 0.0, %v7648
        %v7650 = vpop.f32.mrb[0].mxu0
        %7651 = vmatprep.mubr.bf16.mxu0 0
        %7652 = vmatmul.mubr.bf16.gmra.mrb[0].mxu0 %v7285
        %v7653 = vpop.f32.mrb[0].mxu0
        %v7654 = vadd.f32 0.0, %v7653
        %v7655 = vpop.f32.mrb[0].mxu0
        %v7656 = vpop.f32.mrb[0].mxu0
        %v7657 = vadd.f32 0.0, %v7656
        %v7658 = vpop.f32.mrb[0].mxu0
        %7659 = vmatprep.mubr.bf16.mxu0 0
        %7660 = vmatmul.mubr.bf16.gmra.mrb[0].mxu0 %v7288
        %v7661 = vpop.f32.mrb[0].mxu0
        %v7662 = vadd.f32 0.0, %v7661
        %v7663 = vpop.f32.mrb[0].mxu0
        %v7664 = vpop.f32.mrb[0].mxu0
        %v7665 = vadd.f32 0.0, %v7664
        %v7666 = vpop.f32.mrb[0].mxu0
        %7667 = vmatprep.mubr.bf16.mxu0 0
        %7668 = vmatmul.mubr.bf16.gmra.mrb[0].mxu0 %v7291
        %v7669 = vpop.f32.mrb[0].mxu0
        %v7670 = vadd.f32 0.0, %v7669
        %v7671 = vpop.f32.mrb[0].mxu0
        %v7672 = vpop.f32.mrb[0].mxu0
        %v7673 = vadd.f32 0.0, %v7672
        %v7674 = vpop.f32.mrb[0].mxu0
        %7675 = vmatprep.mubr.bf16.mxu0 0
        %7676 = vmatmul.mubr.bf16.gmra.mrb[0].mxu0 %v7294
        %v7677 = vpop.f32.mrb[0].mxu0
        %v7678 = vadd.f32 0.0, %v7677
        %v7679 = vpop.f32.mrb[0].mxu0
        %v7680 = vpop.f32.mrb[0].mxu0
        %v7681 = vadd.f32 0.0, %v7680
        %v7682 = vpop.f32.mrb[0].mxu0
        %7683 = vmatprep.mubr.bf16.mxu0 0
        %7684 = vmatmul.mubr.bf16.gmra.mrb[0].mxu0 %v7297
        %v7685 = vpop.f32.mrb[0].mxu0
        %v7686 = vadd.f32 0.0, %v7685
        %v7687 = vpop.f32.mrb[0].mxu0
        %v7688 = vpop.f32.mrb[0].mxu0
        %v7689 = vadd.f32 0.0, %v7688
        %v7690 = vpop.f32.mrb[0].mxu0
        %7691 = vmatprep.mubr.bf16.mxu0 0
        %7692 = vmatmul.mubr.bf16.gmra.mrb[0].mxu0 %v7300
        %v7693 = vpop.f32.mrb[0].mxu0
        %v7694 = vadd.f32 0.0, %v7693
        %v7695 = vpop.f32.mrb[0].mxu0
        %v7696 = vpop.f32.mrb[0].mxu0
        %v7697 = vadd.f32 0.0, %v7696
        %v7698 = vpop.f32.mrb[0].mxu0
        %7699 = vmatprep.mubr.bf16.mxu0 0
        %7700 = vmatmul.mubr.bf16.gmra.mrb[0].mxu0 %v7303
        %v7701 = vpop.f32.mrb[0].mxu0
        %v7702 = vadd.f32 0.0, %v7701
        %v7703 = vpop.f32.mrb[0].mxu0
        %v7704 = vpop.f32.mrb[0].mxu0
        %v7705 = vadd.f32 0.0, %v7704
        %v7706 = vpop.f32.mrb[0].mxu0
        %7707 = vmatprep.mubr.bf16.mxu0 0
        %7708 = vmatmul.mubr.bf16.gmra.mrb[0].mxu0 %v7306
        %v7709 = vpop.f32.mrb[0].mxu0
        %v7710 = vadd.f32 0.0, %v7709
        %v7711 = vpop.f32.mrb[0].mxu0
        %v7712 = vpop.f32.mrb[0].mxu0
        %v7713 = vadd.f32 0.0, %v7712
        %v7714 = vpop.f32.mrb[0].mxu0
        %7715 = vmatprep.mubr.bf16.mxu0 0
        %7716 = vmatmul.mubr.bf16.gmra.mrb[0].mxu0 %v7309
        %v7717 = vpop.f32.mrb[0].mxu0
        %v7718 = vadd.f32 0.0, %v7717
        %v7719 = vpop.f32.mrb[0].mxu0
        %v7720 = vpop.f32.mrb[0].mxu0
        %v7721 = vadd.f32 0.0, %v7720
        %v7722 = vpop.f32.mrb[0].mxu0
        %7723 = vmatprep.mubr.bf16.mxu0 0
        %7724 = vmatmul.mubr.bf16.gmra.mrb[0].mxu0 %v7569
        %v7725 = vpop.f32.mrb[0].mxu0
        %v7726 = vadd.f32 0.0, %v7725
        %v7727 = vpop.f32.mrb[0].mxu0
        %v7728 = vpop.f32.mrb[0].mxu0
        %v7729 = vadd.f32 0.0, %v7728
        %v7730 = vpop.f32.mrb[0].mxu0
        %7731 = vdwg.mxu0
        %v7732 = vadd.f32 %v7472, %v7606
        %v7733 = vadd.f32 %v7473, %v7609
        %v7734 = vadd.f32 %v7474, %v7614
        %v7735 = vadd.f32 %v7475, %v7617
        %v7736 = vadd.f32 %v7476, %v7622
        %v7737 = vadd.f32 %v7477, %v7625
        %v7738 = vadd.f32 %v7478, %v7630
        %v7739 = vadd.f32 %v7479, %v7633
        %v7740 = vadd.f32 %v7480, %v7638
        %v7741 = vadd.f32 %v7481, %v7641
        %v7742 = vadd.f32 %v7482, %v7646
        %v7743 = vadd.f32 %v7483, %v7649
        %v7744 = vadd.f32 %v7484, %v7654
        %v7745 = vadd.f32 %v7485, %v7657
        %v7746 = vadd.f32 %v7486, %v7662
        %v7747 = vadd.f32 %v7487, %v7665
        %v7748 = vadd.f32 %v7488, %v7670
        %v7749 = vadd.f32 %v7489, %v7673
        %v7750 = vadd.f32 %v7490, %v7678
        %v7751 = vadd.f32 %v7491, %v7681
        %v7752 = vadd.f32 %v7492, %v7686
        %v7753 = vadd.f32 %v7493, %v7689
        %v7754 = vadd.f32 %v7494, %v7694
        %v7755 = vadd.f32 %v7495, %v7697
        %v7756 = vadd.f32 %v7496, %v7702
        %v7757 = vadd.f32 %v7497, %v7705
        %v7758 = vadd.f32 %v7498, %v7710
        %v7759 = vadd.f32 %v7499, %v7713
        %v7760 = vadd.f32 %v7500, %v7718
        %v7761 = vadd.f32 %v7501, %v7721
        %v7762 = vadd.f32 %v7502, %v7726
        %v7763 = vadd.f32 %v7503, %v7729
        %v7764 = vshrl.u32 %v6965, 16
        %v7766 = vrot.slane %v7764, 3
        %v7767 = vshll.u32 %v6965, 16
        %v7769 = vrot.slane %v7767, 4
        %v7770 = vor.u32 %v7766, %v7769
        %v7771 = vshrl.u32 %v6967, 16
        %v7773 = vrot.slane %v7771, 3
        %v7774 = vshll.u32 %v6967, 16
        %v7776 = vrot.slane %v7774, 4
        %v7777 = vor.u32 %v7773, %v7776
        %v7778 = vsel %vm1361, %v7770, %v7777
        %s7779 = scalar_lea.vmem %s7, 96
        %v7780 = vld [vmem:[%s7779] sm:$0xf]
        %v7781 = vld [vmem:[%s7779 + $0x4] sm:$0xf]
        %v7782 = vld [vmem:[%s7779 + $0x8] sm:$0xf]
        %v7783 = vld [vmem:[%s7779 + $0xc] sm:$0xf]
        %v7784 = vld [vmem:[%s7779 + $0x10] sm:$0xf]
        %v7785 = vld [vmem:[%s7779 + $0x14] sm:$0xf]
        %v7786 = vld [vmem:[%s7779 + $0x18] sm:$0xf]
        %v7787 = vld [vmem:[%s7779 + $0x1c] sm:$0xf]
        %v7788 = vld [vmem:[%s7779 + $0x20] sm:$0xf]
        %v7789 = vld [vmem:[%s7779 + $0x24] sm:$0xf]
        %v7790 = vld [vmem:[%s7779 + $0x28] sm:$0xf]
        %v7791 = vld [vmem:[%s7779 + $0x2c] sm:$0xf]
        %v7804 = vunpack.c.l.b16 %v7780
        %v7805 = vunpack.c.l.b16 %v7781
        %v7806 = vunpack.c.l.b16 %v7782
        %v7807 = vunpack.c.l.b16 %v7783
        %v7808 = vunpack.c.l.b16 %v7784
        %v7809 = vunpack.c.l.b16 %v7785
        %v7810 = vunpack.c.l.b16 %v7786
        %v7811 = vunpack.c.l.b16 %v7787
        %v7812 = vunpack.c.l.b16 %v7788
        %v7813 = vunpack.c.l.b16 %v7789
        %v7814 = vunpack.c.l.b16 %v7790
        %v7815 = vunpack.c.l.b16 %v7791
        %v7816 = vpack.c.b16 %v7805, %v7804
        %v7817 = vpack.c.b16 %v7807, %v7806
        %v7818 = vpack.c.b16 %v7809, %v7808
        %v7819 = vpack.c.b16 %v7811, %v7810
        %v7820 = vpack.c.b16 %v7813, %v7812
        %v7821 = vpack.c.b16 %v7815, %v7814
        %v7829 = vsel %vm1650, %v7778, 0
        %7831 = vmatprep.subr.bf16.mxu0 0
        %7832 = vmatpush1.bf16.msra.mxu0 %v7816
        %7833 = vmatprep.subr.bf16.mxu0 0
        %7834 = vmatpush1.bf16.msra.mxu0 %v7817
        %7835 = vmatprep.subr.bf16.mxu0 0
        %7836 = vmatpush1.bf16.msra.mxu0 %v7818
        %7837 = vmatprep.subr.bf16.mxu0 0
        %7838 = vmatpush1.bf16.msra.mxu0 %v7819
        %7839 = vmatprep.subr.bf16.mxu0 0
        %7840 = vmatpush1.bf16.msra.mxu0 %v7820
        %7841 = vmatprep.subr.bf16.mxu0 0
        %7842 = vmatpush1.bf16.msra.mxu0 %v7821
        %7843 = vmatprep.subr.bf16.mxu0 0
        %7844 = vmatpush1.bf16.msra.mxu0 0
        %7845 = vmatprep.subr.bf16.mxu0 0
        %7846 = vmatpush1.bf16.msra.mxu0 0
        %7847 = vmatprep.subr.bf16.mxu0 0
        %7848 = vmatpush1.bf16.msra.mxu0 0
        %7849 = vmatprep.subr.bf16.mxu0 0
        %7850 = vmatpush1.bf16.msra.mxu0 0
        %7851 = vmatprep.subr.bf16.mxu0 0
        %7852 = vmatpush1.bf16.msra.mxu0 0
        %7853 = vmatprep.subr.bf16.mxu0 0
        %7854 = vmatpush1.bf16.msra.mxu0 0
        %7855 = vmatprep.subr.bf16.mxu0 0
        %7856 = vmatpush1.bf16.msra.mxu0 0
        %7857 = vmatprep.subr.bf16.mxu0 0
        %7858 = vmatpush1.bf16.msra.mxu0 0
        %7859 = vmatprep.subr.bf16.mxu0 0
        %7860 = vmatpush1.bf16.msra.mxu0 0
        %7861 = vmatprep.subr.bf16.mxu0 0
        %7862 = vmatpush1.bf16.msra.mxu0 0
        %7863 = vmatprep.mubr.bf16.mxu0 0
        %7864 = vmatmul.mubr.bf16.gmra.mrb[0].mxu0 %v7270
        %v7865 = vpop.f32.mrb[0].mxu0
        %v7866 = vadd.f32 0.0, %v7865
        %v7867 = vpop.f32.mrb[0].mxu0
        %v7868 = vpop.f32.mrb[0].mxu0
        %v7869 = vadd.f32 0.0, %v7868
        %v7870 = vpop.f32.mrb[0].mxu0
        %7871 = vmatprep.mubr.bf16.mxu0 0
        %7872 = vmatmul.mubr.bf16.gmra.mrb[0].mxu0 %v7273
        %v7873 = vpop.f32.mrb[0].mxu0
        %v7874 = vadd.f32 0.0, %v7873
        %v7875 = vpop.f32.mrb[0].mxu0
        %v7876 = vpop.f32.mrb[0].mxu0
        %v7877 = vadd.f32 0.0, %v7876
        %v7878 = vpop.f32.mrb[0].mxu0
        %7879 = vmatprep.mubr.bf16.mxu0 0
        %7880 = vmatmul.mubr.bf16.gmra.mrb[0].mxu0 %v7276
        %v7881 = vpop.f32.mrb[0].mxu0
        %v7882 = vadd.f32 0.0, %v7881
        %v7883 = vpop.f32.mrb[0].mxu0
        %v7884 = vpop.f32.mrb[0].mxu0
        %v7885 = vadd.f32 0.0, %v7884
        %v7886 = vpop.f32.mrb[0].mxu0
        %7887 = vmatprep.mubr.bf16.mxu0 0
        %7888 = vmatmul.mubr.bf16.gmra.mrb[0].mxu0 %v7279
        %v7889 = vpop.f32.mrb[0].mxu0
        %v7890 = vadd.f32 0.0, %v7889
        %v7891 = vpop.f32.mrb[0].mxu0
        %v7892 = vpop.f32.mrb[0].mxu0
        %v7893 = vadd.f32 0.0, %v7892
        %v7894 = vpop.f32.mrb[0].mxu0
        %7895 = vmatprep.mubr.bf16.mxu0 0
        %7896 = vmatmul.mubr.bf16.gmra.mrb[0].mxu0 %v7282
        %v7897 = vpop.f32.mrb[0].mxu0
        %v7898 = vadd.f32 0.0, %v7897
        %v7899 = vpop.f32.mrb[0].mxu0
        %v7900 = vpop.f32.mrb[0].mxu0
        %v7901 = vadd.f32 0.0, %v7900
        %v7902 = vpop.f32.mrb[0].mxu0
        %7903 = vmatprep.mubr.bf16.mxu0 0
        %7904 = vmatmul.mubr.bf16.gmra.mrb[0].mxu0 %v7285
        %v7905 = vpop.f32.mrb[0].mxu0
        %v7906 = vadd.f32 0.0, %v7905
        %v7907 = vpop.f32.mrb[0].mxu0
        %v7908 = vpop.f32.mrb[0].mxu0
        %v7909 = vadd.f32 0.0, %v7908
        %v7910 = vpop.f32.mrb[0].mxu0
        %7911 = vmatprep.mubr.bf16.mxu0 0
        %7912 = vmatmul.mubr.bf16.gmra.mrb[0].mxu0 %v7288
        %v7913 = vpop.f32.mrb[0].mxu0
        %v7914 = vadd.f32 0.0, %v7913
        %v7915 = vpop.f32.mrb[0].mxu0
        %v7916 = vpop.f32.mrb[0].mxu0
        %v7917 = vadd.f32 0.0, %v7916
        %v7918 = vpop.f32.mrb[0].mxu0
        %7919 = vmatprep.mubr.bf16.mxu0 0
        %7920 = vmatmul.mubr.bf16.gmra.mrb[0].mxu0 %v7291
        %v7921 = vpop.f32.mrb[0].mxu0
        %v7922 = vadd.f32 0.0, %v7921
        %v7923 = vpop.f32.mrb[0].mxu0
        %v7924 = vpop.f32.mrb[0].mxu0
        %v7925 = vadd.f32 0.0, %v7924
        %v7926 = vpop.f32.mrb[0].mxu0
        %7927 = vmatprep.mubr.bf16.mxu0 0
        %7928 = vmatmul.mubr.bf16.gmra.mrb[0].mxu0 %v7294
        %v7929 = vpop.f32.mrb[0].mxu0
        %v7930 = vadd.f32 0.0, %v7929
        %v7931 = vpop.f32.mrb[0].mxu0
        %v7932 = vpop.f32.mrb[0].mxu0
        %v7933 = vadd.f32 0.0, %v7932
        %v7934 = vpop.f32.mrb[0].mxu0
        %7935 = vmatprep.mubr.bf16.mxu0 0
        %7936 = vmatmul.mubr.bf16.gmra.mrb[0].mxu0 %v7297
        %v7937 = vpop.f32.mrb[0].mxu0
        %v7938 = vadd.f32 0.0, %v7937
        %v7939 = vpop.f32.mrb[0].mxu0
        %v7940 = vpop.f32.mrb[0].mxu0
        %v7941 = vadd.f32 0.0, %v7940
        %v7942 = vpop.f32.mrb[0].mxu0
        %7943 = vmatprep.mubr.bf16.mxu0 0
        %7944 = vmatmul.mubr.bf16.gmra.mrb[0].mxu0 %v7300
        %v7945 = vpop.f32.mrb[0].mxu0
        %v7946 = vadd.f32 0.0, %v7945
        %v7947 = vpop.f32.mrb[0].mxu0
        %v7948 = vpop.f32.mrb[0].mxu0
        %v7949 = vadd.f32 0.0, %v7948
        %v7950 = vpop.f32.mrb[0].mxu0
        %7951 = vmatprep.mubr.bf16.mxu0 0
        %7952 = vmatmul.mubr.bf16.gmra.mrb[0].mxu0 %v7303
        %v7953 = vpop.f32.mrb[0].mxu0
        %v7954 = vadd.f32 0.0, %v7953
        %v7955 = vpop.f32.mrb[0].mxu0
        %v7956 = vpop.f32.mrb[0].mxu0
        %v7957 = vadd.f32 0.0, %v7956
        %v7958 = vpop.f32.mrb[0].mxu0
        %7959 = vmatprep.mubr.bf16.mxu0 0
        %7960 = vmatmul.mubr.bf16.gmra.mrb[0].mxu0 %v7306
        %v7961 = vpop.f32.mrb[0].mxu0
        %v7962 = vadd.f32 0.0, %v7961
        %v7963 = vpop.f32.mrb[0].mxu0
        %v7964 = vpop.f32.mrb[0].mxu0
        %v7965 = vadd.f32 0.0, %v7964
        %v7966 = vpop.f32.mrb[0].mxu0
        %7967 = vmatprep.mubr.bf16.mxu0 0
        %7968 = vmatmul.mubr.bf16.gmra.mrb[0].mxu0 %v7309
        %v7969 = vpop.f32.mrb[0].mxu0
        %v7970 = vadd.f32 0.0, %v7969
        %v7971 = vpop.f32.mrb[0].mxu0
        %v7972 = vpop.f32.mrb[0].mxu0
        %v7973 = vadd.f32 0.0, %v7972
        %v7974 = vpop.f32.mrb[0].mxu0
        %7975 = vmatprep.mubr.bf16.mxu0 0
        %7976 = vmatmul.mubr.bf16.gmra.mrb[0].mxu0 %v7569
        %v7977 = vpop.f32.mrb[0].mxu0
        %v7978 = vadd.f32 0.0, %v7977
        %v7979 = vpop.f32.mrb[0].mxu0
        %v7980 = vpop.f32.mrb[0].mxu0
        %v7981 = vadd.f32 0.0, %v7980
        %v7982 = vpop.f32.mrb[0].mxu0
        %7983 = vmatprep.mubr.bf16.mxu0 0
        %7984 = vmatmul.mubr.bf16.gmra.mrb[0].mxu0 %v7829
        %v7985 = vpop.f32.mrb[0].mxu0
        %v7986 = vadd.f32 0.0, %v7985
        %v7987 = vpop.f32.mrb[0].mxu0
        %v7988 = vpop.f32.mrb[0].mxu0
        %v7989 = vadd.f32 0.0, %v7988
        %v7990 = vpop.f32.mrb[0].mxu0
        %7991 = vdwg.mxu0
        %v7992 = vadd.f32 %v7732, %v7866
        %v7993 = vadd.f32 %v7733, %v7869
        %v7994 = vadd.f32 %v7734, %v7874
        %v7995 = vadd.f32 %v7735, %v7877
        %v7996 = vadd.f32 %v7736, %v7882
        %v7997 = vadd.f32 %v7737, %v7885
        %v7998 = vadd.f32 %v7738, %v7890
        %v7999 = vadd.f32 %v7739, %v7893
        %v8000 = vadd.f32 %v7740, %v7898
        %v8001 = vadd.f32 %v7741, %v7901
        %v8002 = vadd.f32 %v7742, %v7906
        %v8003 = vadd.f32 %v7743, %v7909
        %v8004 = vadd.f32 %v7744, %v7914
        %v8005 = vadd.f32 %v7745, %v7917
        %v8006 = vadd.f32 %v7746, %v7922
        %v8007 = vadd.f32 %v7747, %v7925
        %v8008 = vadd.f32 %v7748, %v7930
        %v8009 = vadd.f32 %v7749, %v7933
        %v8010 = vadd.f32 %v7750, %v7938
        %v8011 = vadd.f32 %v7751, %v7941
        %v8012 = vadd.f32 %v7752, %v7946
        %v8013 = vadd.f32 %v7753, %v7949
        %v8014 = vadd.f32 %v7754, %v7954
        %v8015 = vadd.f32 %v7755, %v7957
        %v8016 = vadd.f32 %v7756, %v7962
        %v8017 = vadd.f32 %v7757, %v7965
        %v8018 = vadd.f32 %v7758, %v7970
        %v8019 = vadd.f32 %v7759, %v7973
        %v8020 = vadd.f32 %v7760, %v7978
        %v8021 = vadd.f32 %v7761, %v7981
        %v8022 = vadd.f32 %v7762, %v7986
        %v8023 = vadd.f32 %v7763, %v7989
        %v8024 = vmax.f32 %v7992, 0.0
        %v8025 = vmax.f32 %v7993, 0.0
        %v8026 = vmax.f32 %v7994, 0.0
        %v8027 = vmax.f32 %v7995, 0.0
        %v8028 = vmax.f32 %v7996, 0.0
        %v8029 = vmax.f32 %v7997, 0.0
        %v8030 = vmax.f32 %v7998, 0.0
        %v8031 = vmax.f32 %v7999, 0.0
        %v8032 = vmax.f32 %v8000, 0.0
        %v8033 = vmax.f32 %v8001, 0.0
        %v8034 = vmax.f32 %v8002, 0.0
        %v8035 = vmax.f32 %v8003, 0.0
        %v8036 = vmax.f32 %v8004, 0.0
        %v8037 = vmax.f32 %v8005, 0.0
        %v8038 = vmax.f32 %v8006, 0.0
        %v8039 = vmax.f32 %v8007, 0.0
        %v8040 = vmax.f32 %v8008, 0.0
        %v8041 = vmax.f32 %v8009, 0.0
        %v8042 = vmax.f32 %v8010, 0.0
        %v8043 = vmax.f32 %v8011, 0.0
        %v8044 = vmax.f32 %v8012, 0.0
        %v8045 = vmax.f32 %v8013, 0.0
        %v8046 = vmax.f32 %v8014, 0.0
        %v8047 = vmax.f32 %v8015, 0.0
        %v8048 = vmax.f32 %v8016, 0.0
        %v8049 = vmax.f32 %v8017, 0.0
        %v8050 = vmax.f32 %v8018, 0.0
        %v8051 = vmax.f32 %v8019, 0.0
        %v8052 = vmax.f32 %v8020, 0.0
        %v8053 = vmax.f32 %v8021, 0.0
        %v8054 = vmax.f32 %v8022, 0.0
        %v8055 = vmax.f32 %v8023, 0.0
        %v8056 = vpack.c.bf16 %v8025, %v8024
        %v8057 = vpack.c.bf16 %v8027, %v8026
        %v8058 = vpack.c.bf16 %v8029, %v8028
        %v8059 = vpack.c.bf16 %v8031, %v8030
        %v8060 = vpack.c.bf16 %v8033, %v8032
        %v8061 = vpack.c.bf16 %v8035, %v8034
        %v8062 = vpack.c.bf16 %v8037, %v8036
        %v8063 = vpack.c.bf16 %v8039, %v8038
        %v8064 = vpack.c.bf16 %v8041, %v8040
        %v8065 = vpack.c.bf16 %v8043, %v8042
        %v8066 = vpack.c.bf16 %v8045, %v8044
        %v8067 = vpack.c.bf16 %v8047, %v8046
        %v8068 = vpack.c.bf16 %v8049, %v8048
        %v8069 = vpack.c.bf16 %v8051, %v8050
        %v8070 = vpack.c.bf16 %v8053, %v8052
        %v8071 = vpack.c.bf16 %v8055, %v8054
        %v8088 = vrot.slane %v8056, 4
        %v8089 = vrot.slane %v8057, 4
        %v8090 = vrot.slane %v8058, 4
        %v8091 = vrot.slane %v8059, 4
        %v8092 = vrot.slane %v8060, 4
        %v8093 = vrot.slane %v8061, 4
        %v8094 = vrot.slane %v8062, 4
        %v8095 = vrot.slane %v8063, 4
        %v8096 = vrot.slane %v8064, 4
        %v8097 = vrot.slane %v8065, 4
        %v8098 = vrot.slane %v8066, 4
        %v8099 = vrot.slane %v8067, 4
        %v8100 = vrot.slane %v8068, 4
        %v8101 = vrot.slane %v8069, 4
        %v8102 = vrot.slane %v8070, 4
        %v8103 = vrot.slane %v8071, 4
        %8120 = vst.msk [vmem:[%s4383] sm:$0xf0] %vm411, %v8088
        %8121 = vst.msk [vmem:[%s4383 + $0x8] sm:$0xf] %vm392, %v8088
        %8122 = vst.msk [vmem:[%s4383 + $0x10] sm:$0xf0] %vm411, %v8089
        %8123 = vst.msk [vmem:[%s4383 + $0x18] sm:$0xf] %vm392, %v8089
        %8124 = vst.msk [vmem:[%s4383 + $0x20] sm:$0xf0] %vm411, %v8090
        %8125 = vst.msk [vmem:[%s4383 + $0x28] sm:$0xf] %vm392, %v8090
        %8126 = vst.msk [vmem:[%s4383 + $0x30] sm:$0xf0] %vm411, %v8091
        %8127 = vst.msk [vmem:[%s4383 + $0x38] sm:$0xf] %vm392, %v8091
        %8128 = vst.msk [vmem:[%s4383 + $0x40] sm:$0xf0] %vm411, %v8092
        %8129 = vst.msk [vmem:[%s4383 + $0x48] sm:$0xf] %vm392, %v8092
        %8130 = vst.msk [vmem:[%s4383 + $0x50] sm:$0xf0] %vm411, %v8093
        %8131 = vst.msk [vmem:[%s4383 + $0x58] sm:$0xf] %vm392, %v8093
        %8132 = vst.msk [vmem:[%s4383 + $0x60] sm:$0xf0] %vm411, %v8094
        %8133 = vst.msk [vmem:[%s4383 + $0x68] sm:$0xf] %vm392, %v8094
        %8134 = vst.msk [vmem:[%s4383 + $0x70] sm:$0xf0] %vm411, %v8095
        %8135 = vst.msk [vmem:[%s4383 + $0x78] sm:$0xf] %vm392, %v8095
        %8136 = vst.msk [vmem:[%s4383 + $0x80] sm:$0xf0] %vm411, %v8096
        %8137 = vst.msk [vmem:[%s4383 + $0x88] sm:$0xf] %vm392, %v8096
        %8138 = vst.msk [vmem:[%s4383 + $0x90] sm:$0xf0] %vm411, %v8097
        %8139 = vst.msk [vmem:[%s4383 + $0x98] sm:$0xf] %vm392, %v8097
        %8140 = vst.msk [vmem:[%s4383 + $0xa0] sm:$0xf0] %vm411, %v8098
        %8141 = vst.msk [vmem:[%s4383 + $0xa8] sm:$0xf] %vm392, %v8098
        %8142 = vst.msk [vmem:[%s4383 + $0xb0] sm:$0xf0] %vm411, %v8099
        %8143 = vst.msk [vmem:[%s4383 + $0xb8] sm:$0xf] %vm392, %v8099
        %8144 = vst.msk [vmem:[%s4383 + $0xc0] sm:$0xf0] %vm411, %v8100
        %8145 = vst.msk [vmem:[%s4383 + $0xc8] sm:$0xf] %vm392, %v8100
        %8146 = vst.msk [vmem:[%s4383 + $0xd0] sm:$0xf0] %vm411, %v8101
        %8147 = vst.msk [vmem:[%s4383 + $0xd8] sm:$0xf] %vm392, %v8101
        %8148 = vst.msk [vmem:[%s4383 + $0xe0] sm:$0xf0] %vm411, %v8102
        %8149 = vst.msk [vmem:[%s4383 + $0xe8] sm:$0xf] %vm392, %v8102
        %8150 = vst.msk [vmem:[%s4383 + $0xf0] sm:$0xf0] %vm411, %v8103
        %8151 = vst.msk [vmem:[%s4383 + $0xf8] sm:$0xf] %vm392, %v8103
        %v8152 = vld [vmem:[%s666] sm:$0xff]
        %v8153 = vld [vmem:[%s666 + $0x8] sm:$0xff]
        %v8154 = vld [vmem:[%s666 + $0x10] sm:$0xff]
        %v8155 = vld [vmem:[%s666 + $0x18] sm:$0xff]
        %v8156 = vld [vmem:[%s666 + $0x20] sm:$0xff]
        %v8157 = vld [vmem:[%s666 + $0x28] sm:$0xff]
        %v8158 = vld [vmem:[%s666 + $0x30] sm:$0xff]
        %v8159 = vld [vmem:[%s666 + $0x38] sm:$0xff]
        %v8160 = vld [vmem:[%s666 + $0x40] sm:$0xff]
        %v8161 = vld [vmem:[%s666 + $0x48] sm:$0xff]
        %v8162 = vld [vmem:[%s666 + $0x50] sm:$0xff]
        %v8163 = vld [vmem:[%s666 + $0x58] sm:$0xff]
        %v8164 = vld [vmem:[%s666 + $0x60] sm:$0xff]
        %v8165 = vld [vmem:[%s666 + $0x68] sm:$0xff]
        %v8166 = vld [vmem:[%s666 + $0x70] sm:$0xff]
        %v8167 = vld [vmem:[%s666 + $0x78] sm:$0xff]
        %v8168 = vld [vmem:[%s666 + $0x80] sm:$0xff]
        %v8169 = vld [vmem:[%s666 + $0x88] sm:$0xff]
        %v8170 = vld [vmem:[%s666 + $0x90] sm:$0xff]
        %v8171 = vld [vmem:[%s666 + $0x98] sm:$0xff]
        %v8172 = vld [vmem:[%s666 + $0xa0] sm:$0xff]
        %v8173 = vld [vmem:[%s666 + $0xa8] sm:$0xff]
        %v8174 = vld [vmem:[%s666 + $0xb0] sm:$0xff]
        %v8175 = vld [vmem:[%s666 + $0xb8] sm:$0xff]
        %v8176 = vld [vmem:[%s666 + $0xc0] sm:$0xff]
        %v8177 = vld [vmem:[%s666 + $0xc8] sm:$0xff]
        %v8178 = vld [vmem:[%s666 + $0xd0] sm:$0xff]
        %v8179 = vld [vmem:[%s666 + $0xd8] sm:$0xff]
        %v8180 = vld [vmem:[%s666 + $0xe0] sm:$0xff]
        %v8181 = vld [vmem:[%s666 + $0xe8] sm:$0xff]
        %v8182 = vld [vmem:[%s666 + $0xf0] sm:$0xff]
        %v8183 = vld [vmem:[%s666 + $0xf8] sm:$0xff]
        %v8184 = vld [vmem:[%s666 + $0x100] sm:$0xff]
        %v8185 = vld [vmem:[%s666 + $0x108] sm:$0xff]
        %v8186 = vld [vmem:[%s666 + $0x110] sm:$0xff]
        %v8187 = vld [vmem:[%s666 + $0x118] sm:$0xff]
        %v8189 = vshrl.u32 %v8152, 16
        %v8191 = vshll.u32 %v8152, 16
        %v8193 = vrot.slane %v8191, 1
        %v8194 = vor.u32 %v8189, %v8193
        %v8196 = vshll.u32 %v8153, 16
        %v8198 = vrot.slane %v8196, 1
        %v8199 = vsel %vm703, %v8194, %v8198
        %v8200 = vshrl.u32 %v8153, 16
        %v8202 = vor.u32 %v8200, %v8198
        %v8204 = vshrl.u32 %v8154, 16
        %v8206 = vshll.u32 %v8154, 16
        %v8208 = vrot.slane %v8206, 1
        %v8209 = vor.u32 %v8204, %v8208
        %v8211 = vshll.u32 %v8155, 16
        %v8213 = vrot.slane %v8211, 1
        %v8214 = vsel %vm703, %v8209, %v8213
        %v8215 = vshrl.u32 %v8155, 16
        %v8217 = vor.u32 %v8215, %v8213
        %v8219 = vshrl.u32 %v8156, 16
        %v8221 = vshll.u32 %v8156, 16
        %v8223 = vrot.slane %v8221, 1
        %v8224 = vor.u32 %v8219, %v8223
        %v8226 = vshll.u32 %v8157, 16
        %v8228 = vrot.slane %v8226, 1
        %v8229 = vsel %vm703, %v8224, %v8228
        %v8230 = vshrl.u32 %v8157, 16
        %v8232 = vor.u32 %v8230, %v8228
        %v8234 = vshrl.u32 %v8158, 16
        %v8236 = vshll.u32 %v8158, 16
        %v8238 = vrot.slane %v8236, 1
        %v8239 = vor.u32 %v8234, %v8238
        %v8241 = vshll.u32 %v8159, 16
        %v8243 = vrot.slane %v8241, 1
        %v8244 = vsel %vm703, %v8239, %v8243
        %v8245 = vshrl.u32 %v8159, 16
        %v8247 = vor.u32 %v8245, %v8243
        %v8249 = vshrl.u32 %v8160, 16
        %v8251 = vshll.u32 %v8160, 16
        %v8253 = vrot.slane %v8251, 1
        %v8254 = vor.u32 %v8249, %v8253
        %v8256 = vshll.u32 %v8161, 16
        %v8258 = vrot.slane %v8256, 1
        %v8259 = vsel %vm703, %v8254, %v8258
        %v8260 = vshrl.u32 %v8161, 16
        %v8262 = vor.u32 %v8260, %v8258
        %v8264 = vshrl.u32 %v8162, 16
        %v8266 = vshll.u32 %v8162, 16
        %v8268 = vrot.slane %v8266, 1
        %v8269 = vor.u32 %v8264, %v8268
        %v8271 = vshll.u32 %v8163, 16
        %v8273 = vrot.slane %v8271, 1
        %v8274 = vsel %vm703, %v8269, %v8273
        %v8275 = vshrl.u32 %v8163, 16
        %v8277 = vor.u32 %v8275, %v8273
        %v8279 = vshrl.u32 %v8164, 16
        %v8281 = vshll.u32 %v8164, 16
        %v8283 = vrot.slane %v8281, 1
        %v8284 = vor.u32 %v8279, %v8283
        %v8286 = vshll.u32 %v8165, 16
        %v8288 = vrot.slane %v8286, 1
        %v8289 = vsel %vm703, %v8284, %v8288
        %v8290 = vshrl.u32 %v8165, 16
        %v8292 = vor.u32 %v8290, %v8288
        %v8294 = vshrl.u32 %v8166, 16
        %v8296 = vshll.u32 %v8166, 16
        %v8298 = vrot.slane %v8296, 1
        %v8299 = vor.u32 %v8294, %v8298
        %v8301 = vshll.u32 %v8167, 16
        %v8303 = vrot.slane %v8301, 1
        %v8304 = vsel %vm703, %v8299, %v8303
        %v8305 = vshrl.u32 %v8167, 16
        %v8307 = vor.u32 %v8305, %v8303
        %v8309 = vshrl.u32 %v8168, 16
        %v8311 = vshll.u32 %v8168, 16
        %v8313 = vrot.slane %v8311, 1
        %v8314 = vor.u32 %v8309, %v8313
        %v8316 = vshll.u32 %v8169, 16
        %v8318 = vrot.slane %v8316, 1
        %v8319 = vsel %vm703, %v8314, %v8318
        %v8320 = vshrl.u32 %v8169, 16
        %v8322 = vor.u32 %v8320, %v8318
        %v8324 = vshrl.u32 %v8170, 16
        %v8326 = vshll.u32 %v8170, 16
        %v8328 = vrot.slane %v8326, 1
        %v8329 = vor.u32 %v8324, %v8328
        %v8331 = vshll.u32 %v8171, 16
        %v8333 = vrot.slane %v8331, 1
        %v8334 = vsel %vm703, %v8329, %v8333
        %v8335 = vshrl.u32 %v8171, 16
        %v8337 = vor.u32 %v8335, %v8333
        %v8339 = vshrl.u32 %v8172, 16
        %v8341 = vshll.u32 %v8172, 16
        %v8343 = vrot.slane %v8341, 1
        %v8344 = vor.u32 %v8339, %v8343
        %v8346 = vshll.u32 %v8173, 16
        %v8348 = vrot.slane %v8346, 1
        %v8349 = vsel %vm703, %v8344, %v8348
        %v8350 = vshrl.u32 %v8173, 16
        %v8352 = vor.u32 %v8350, %v8348
        %v8354 = vshrl.u32 %v8174, 16
        %v8356 = vshll.u32 %v8174, 16
        %v8358 = vrot.slane %v8356, 1
        %v8359 = vor.u32 %v8354, %v8358
        %v8361 = vshll.u32 %v8175, 16
        %v8363 = vrot.slane %v8361, 1
        %v8364 = vsel %vm703, %v8359, %v8363
        %v8365 = vshrl.u32 %v8175, 16
        %v8367 = vor.u32 %v8365, %v8363
        %v8369 = vshrl.u32 %v8176, 16
        %v8371 = vshll.u32 %v8176, 16
        %v8373 = vrot.slane %v8371, 1
        %v8374 = vor.u32 %v8369, %v8373
        %v8376 = vshll.u32 %v8177, 16
        %v8378 = vrot.slane %v8376, 1
        %v8379 = vsel %vm703, %v8374, %v8378
        %v8380 = vshrl.u32 %v8177, 16
        %v8382 = vor.u32 %v8380, %v8378
        %v8384 = vshrl.u32 %v8178, 16
        %v8386 = vshll.u32 %v8178, 16
        %v8388 = vrot.slane %v8386, 1
        %v8389 = vor.u32 %v8384, %v8388
        %v8391 = vshll.u32 %v8179, 16
        %v8393 = vrot.slane %v8391, 1
        %v8394 = vsel %vm703, %v8389, %v8393
        %v8395 = vshrl.u32 %v8179, 16
        %v8397 = vor.u32 %v8395, %v8393
        %v8399 = vshrl.u32 %v8180, 16
        %v8401 = vshll.u32 %v8180, 16
        %v8403 = vrot.slane %v8401, 1
        %v8404 = vor.u32 %v8399, %v8403
        %v8406 = vshll.u32 %v8181, 16
        %v8408 = vrot.slane %v8406, 1
        %v8409 = vsel %vm703, %v8404, %v8408
        %v8410 = vshrl.u32 %v8181, 16
        %v8412 = vor.u32 %v8410, %v8408
        %v8414 = vshrl.u32 %v8182, 16
        %v8416 = vshll.u32 %v8182, 16
        %v8418 = vrot.slane %v8416, 1
        %v8419 = vor.u32 %v8414, %v8418
        %v8421 = vshll.u32 %v8183, 16
        %v8423 = vrot.slane %v8421, 1
        %v8424 = vsel %vm703, %v8419, %v8423
        %v8425 = vshrl.u32 %v8183, 16
        %v8427 = vor.u32 %v8425, %v8423
        %v8429 = vshrl.u32 %v8184, 16
        %v8431 = vshll.u32 %v8184, 16
        %v8433 = vrot.slane %v8431, 1
        %v8434 = vor.u32 %v8429, %v8433
        %v8436 = vshll.u32 %v8185, 16
        %v8438 = vrot.slane %v8436, 1
        %v8439 = vsel %vm703, %v8434, %v8438
        %v8440 = vshrl.u32 %v8185, 16
        %v8442 = vor.u32 %v8440, %v8438
        %v8444 = vshrl.u32 %v8186, 16
        %v8446 = vshll.u32 %v8186, 16
        %v8448 = vrot.slane %v8446, 1
        %v8449 = vor.u32 %v8444, %v8448
        %v8451 = vshll.u32 %v8187, 16
        %v8453 = vrot.slane %v8451, 1
        %v8454 = vsel %vm703, %v8449, %v8453
        %v8455 = vshrl.u32 %v8187, 16
        %v8457 = vor.u32 %v8455, %v8453
        %8458 = vrot.lane.b32.xlu0 %v8199, 32
        %v8459 = vpop.permute.xlu0 %8458
        %8460 = vrot.lane.b32.xlu0 %v8202, 32
        %v8461 = vpop.permute.xlu0 %8460
        %8462 = vrot.lane.b32.xlu0 %v8214, 32
        %v8463 = vpop.permute.xlu0 %8462
        %8464 = vrot.lane.b32.xlu0 %v8217, 32
        %v8465 = vpop.permute.xlu0 %8464
        %8466 = vrot.lane.b32.xlu0 %v8229, 32
        %v8467 = vpop.permute.xlu0 %8466
        %8468 = vrot.lane.b32.xlu0 %v8232, 32
        %v8469 = vpop.permute.xlu0 %8468
        %8470 = vrot.lane.b32.xlu0 %v8244, 32
        %v8471 = vpop.permute.xlu0 %8470
        %8472 = vrot.lane.b32.xlu0 %v8247, 32
        %v8473 = vpop.permute.xlu0 %8472
        %8474 = vrot.lane.b32.xlu0 %v8259, 32
        %v8475 = vpop.permute.xlu0 %8474
        %8476 = vrot.lane.b32.xlu0 %v8262, 32
        %v8477 = vpop.permute.xlu0 %8476
        %8478 = vrot.lane.b32.xlu0 %v8274, 32
        %v8479 = vpop.permute.xlu0 %8478
        %8480 = vrot.lane.b32.xlu0 %v8277, 32
        %v8481 = vpop.permute.xlu0 %8480
        %8482 = vrot.lane.b32.xlu0 %v8289, 32
        %v8483 = vpop.permute.xlu0 %8482
        %8484 = vrot.lane.b32.xlu0 %v8292, 32
        %v8485 = vpop.permute.xlu0 %8484
        %8486 = vrot.lane.b32.xlu0 %v8304, 32
        %v8487 = vpop.permute.xlu0 %8486
        %8488 = vrot.lane.b32.xlu0 %v8307, 32
        %v8489 = vpop.permute.xlu0 %8488
        %8490 = vrot.lane.b32.xlu0 %v8319, 32
        %v8491 = vpop.permute.xlu0 %8490
        %8492 = vrot.lane.b32.xlu0 %v8322, 32
        %v8493 = vpop.permute.xlu0 %8492
        %8494 = vrot.lane.b32.xlu0 %v8334, 32
        %v8495 = vpop.permute.xlu0 %8494
        %8496 = vrot.lane.b32.xlu0 %v8337, 32
        %v8497 = vpop.permute.xlu0 %8496
        %8498 = vrot.lane.b32.xlu0 %v8349, 32
        %v8499 = vpop.permute.xlu0 %8498
        %8500 = vrot.lane.b32.xlu0 %v8352, 32
        %v8501 = vpop.permute.xlu0 %8500
        %8502 = vrot.lane.b32.xlu0 %v8364, 32
        %v8503 = vpop.permute.xlu0 %8502
        %8504 = vrot.lane.b32.xlu0 %v8367, 32
        %v8505 = vpop.permute.xlu0 %8504
        %8506 = vrot.lane.b32.xlu0 %v8379, 32
        %v8507 = vpop.permute.xlu0 %8506
        %8508 = vrot.lane.b32.xlu0 %v8382, 32
        %v8509 = vpop.permute.xlu0 %8508
        %8510 = vrot.lane.b32.xlu0 %v8394, 32
        %v8511 = vpop.permute.xlu0 %8510
        %8512 = vrot.lane.b32.xlu0 %v8397, 32
        %v8513 = vpop.permute.xlu0 %8512
        %8514 = vrot.lane.b32.xlu0 %v8409, 32
        %v8515 = vpop.permute.xlu0 %8514
        %8516 = vrot.lane.b32.xlu0 %v8412, 32
        %v8517 = vpop.permute.xlu0 %8516
        %8518 = vrot.lane.b32.xlu0 %v8424, 32
        %v8519 = vpop.permute.xlu0 %8518
        %8520 = vrot.lane.b32.xlu0 %v8427, 32
        %v8521 = vpop.permute.xlu0 %8520
        %8522 = vrot.lane.b32.xlu0 %v8439, 32
        %v8523 = vpop.permute.xlu0 %8522
        %8524 = vrot.lane.b32.xlu0 %v8442, 32
        %v8525 = vpop.permute.xlu0 %8524
        %8526 = vrot.lane.b32.xlu0 %v8454, 32
        %v8527 = vpop.permute.xlu0 %8526
        %8528 = vrot.lane.b32.xlu0 %v8457, 32
        %v8529 = vpop.permute.xlu0 %8528
        %v8566 = vrot.slane %v8152, 1
        %v8567 = vrot.slane %v8153, 1
        %v8568 = vsel %vm1082, %v8566, %v8567
        %v8569 = vrot.slane %v8154, 1
        %v8570 = vrot.slane %v8155, 1
        %v8571 = vsel %vm1082, %v8569, %v8570
        %v8572 = vrot.slane %v8156, 1
        %v8573 = vrot.slane %v8157, 1
        %v8574 = vsel %vm1082, %v8572, %v8573
        %v8575 = vrot.slane %v8158, 1
        %v8576 = vrot.slane %v8159, 1
        %v8577 = vsel %vm1082, %v8575, %v8576
        %v8578 = vrot.slane %v8160, 1
        %v8579 = vrot.slane %v8161, 1
        %v8580 = vsel %vm1082, %v8578, %v8579
        %v8581 = vrot.slane %v8162, 1
        %v8582 = vrot.slane %v8163, 1
        %v8583 = vsel %vm1082, %v8581, %v8582
        %v8584 = vrot.slane %v8164, 1
        %v8585 = vrot.slane %v8165, 1
        %v8586 = vsel %vm1082, %v8584, %v8585
        %v8587 = vrot.slane %v8166, 1
        %v8588 = vrot.slane %v8167, 1
        %v8589 = vsel %vm1082, %v8587, %v8588
        %v8590 = vrot.slane %v8168, 1
        %v8591 = vrot.slane %v8169, 1
        %v8592 = vsel %vm1082, %v8590, %v8591
        %v8593 = vrot.slane %v8170, 1
        %v8594 = vrot.slane %v8171, 1
        %v8595 = vsel %vm1082, %v8593, %v8594
        %v8596 = vrot.slane %v8172, 1
        %v8597 = vrot.slane %v8173, 1
        %v8598 = vsel %vm1082, %v8596, %v8597
        %v8599 = vrot.slane %v8174, 1
        %v8600 = vrot.slane %v8175, 1
        %v8601 = vsel %vm1082, %v8599, %v8600
        %v8602 = vrot.slane %v8176, 1
        %v8603 = vrot.slane %v8177, 1
        %v8604 = vsel %vm1082, %v8602, %v8603
        %v8605 = vrot.slane %v8178, 1
        %v8606 = vrot.slane %v8179, 1
        %v8607 = vsel %vm1082, %v8605, %v8606
        %v8608 = vrot.slane %v8180, 1
        %v8609 = vrot.slane %v8181, 1
        %v8610 = vsel %vm1082, %v8608, %v8609
        %v8611 = vrot.slane %v8182, 1
        %v8612 = vrot.slane %v8183, 1
        %v8613 = vsel %vm1082, %v8611, %v8612
        %v8614 = vrot.slane %v8184, 1
        %v8615 = vrot.slane %v8185, 1
        %v8616 = vsel %vm1082, %v8614, %v8615
        %v8617 = vrot.slane %v8186, 1
        %v8618 = vrot.slane %v8187, 1
        %v8619 = vsel %vm1082, %v8617, %v8618
        %8620 = vrot.lane.b32.xlu0 %v8568, 64
        %v8621 = vpop.permute.xlu0 %8620
        %8622 = vrot.lane.b32.xlu0 %v8567, 64
        %v8623 = vpop.permute.xlu0 %8622
        %8624 = vrot.lane.b32.xlu0 %v8571, 64
        %v8625 = vpop.permute.xlu0 %8624
        %8626 = vrot.lane.b32.xlu0 %v8570, 64
        %v8627 = vpop.permute.xlu0 %8626
        %8628 = vrot.lane.b32.xlu0 %v8574, 64
        %v8629 = vpop.permute.xlu0 %8628
        %8630 = vrot.lane.b32.xlu0 %v8573, 64
        %v8631 = vpop.permute.xlu0 %8630
        %8632 = vrot.lane.b32.xlu0 %v8577, 64
        %v8633 = vpop.permute.xlu0 %8632
        %8634 = vrot.lane.b32.xlu0 %v8576, 64
        %v8635 = vpop.permute.xlu0 %8634
        %8636 = vrot.lane.b32.xlu0 %v8580, 64
        %v8637 = vpop.permute.xlu0 %8636
        %8638 = vrot.lane.b32.xlu0 %v8579, 64
        %v8639 = vpop.permute.xlu0 %8638
        %8640 = vrot.lane.b32.xlu0 %v8583, 64
        %v8641 = vpop.permute.xlu0 %8640
        %8642 = vrot.lane.b32.xlu0 %v8582, 64
        %v8643 = vpop.permute.xlu0 %8642
        %8644 = vrot.lane.b32.xlu0 %v8586, 64
        %v8645 = vpop.permute.xlu0 %8644
        %8646 = vrot.lane.b32.xlu0 %v8585, 64
        %v8647 = vpop.permute.xlu0 %8646
        %8648 = vrot.lane.b32.xlu0 %v8589, 64
        %v8649 = vpop.permute.xlu0 %8648
        %8650 = vrot.lane.b32.xlu0 %v8588, 64
        %v8651 = vpop.permute.xlu0 %8650
        %8652 = vrot.lane.b32.xlu0 %v8592, 64
        %v8653 = vpop.permute.xlu0 %8652
        %8654 = vrot.lane.b32.xlu0 %v8591, 64
        %v8655 = vpop.permute.xlu0 %8654
        %8656 = vrot.lane.b32.xlu0 %v8595, 64
        %v8657 = vpop.permute.xlu0 %8656
        %8658 = vrot.lane.b32.xlu0 %v8594, 64
        %v8659 = vpop.permute.xlu0 %8658
        %8660 = vrot.lane.b32.xlu0 %v8598, 64
        %v8661 = vpop.permute.xlu0 %8660
        %8662 = vrot.lane.b32.xlu0 %v8597, 64
        %v8663 = vpop.permute.xlu0 %8662
        %8664 = vrot.lane.b32.xlu0 %v8601, 64
        %v8665 = vpop.permute.xlu0 %8664
        %8666 = vrot.lane.b32.xlu0 %v8600, 64
        %v8667 = vpop.permute.xlu0 %8666
        %8668 = vrot.lane.b32.xlu0 %v8604, 64
        %v8669 = vpop.permute.xlu0 %8668
        %8670 = vrot.lane.b32.xlu0 %v8603, 64
        %v8671 = vpop.permute.xlu0 %8670
        %8672 = vrot.lane.b32.xlu0 %v8607, 64
        %v8673 = vpop.permute.xlu0 %8672
        %8674 = vrot.lane.b32.xlu0 %v8606, 64
        %v8675 = vpop.permute.xlu0 %8674
        %8676 = vrot.lane.b32.xlu0 %v8610, 64
        %v8677 = vpop.permute.xlu0 %8676
        %8678 = vrot.lane.b32.xlu0 %v8609, 64
        %v8679 = vpop.permute.xlu0 %8678
        %8680 = vrot.lane.b32.xlu0 %v8613, 64
        %v8681 = vpop.permute.xlu0 %8680
        %8682 = vrot.lane.b32.xlu0 %v8612, 64
        %v8683 = vpop.permute.xlu0 %8682
        %8684 = vrot.lane.b32.xlu0 %v8616, 64
        %v8685 = vpop.permute.xlu0 %8684
        %8686 = vrot.lane.b32.xlu0 %v8615, 64
        %v8687 = vpop.permute.xlu0 %8686
        %8688 = vrot.lane.b32.xlu0 %v8619, 64
        %v8689 = vpop.permute.xlu0 %8688
        %8690 = vrot.lane.b32.xlu0 %v8618, 64
        %v8691 = vpop.permute.xlu0 %8690
        %v8693 = vsel %vm386, %v8152, %v8459
        %v8695 = vsel %vm386, %v8153, %v8461
        %v8697 = vsel %vm386, %v8154, %v8463
        %v8699 = vsel %vm386, %v8155, %v8465
        %v8701 = vsel %vm386, %v8156, %v8467
        %v8703 = vsel %vm386, %v8157, %v8469
        %v8705 = vsel %vm386, %v8158, %v8471
        %v8707 = vsel %vm386, %v8159, %v8473
        %v8709 = vsel %vm386, %v8160, %v8475
        %v8711 = vsel %vm386, %v8161, %v8477
        %v8713 = vsel %vm386, %v8162, %v8479
        %v8715 = vsel %vm386, %v8163, %v8481
        %v8717 = vsel %vm386, %v8164, %v8483
        %v8719 = vsel %vm386, %v8165, %v8485
        %v8721 = vsel %vm386, %v8166, %v8487
        %v8723 = vsel %vm386, %v8167, %v8489
        %v8725 = vsel %vm386, %v8168, %v8491
        %v8727 = vsel %vm386, %v8169, %v8493
        %v8729 = vsel %vm386, %v8170, %v8495
        %v8731 = vsel %vm386, %v8171, %v8497
        %v8733 = vsel %vm386, %v8172, %v8499
        %v8735 = vsel %vm386, %v8173, %v8501
        %v8737 = vsel %vm386, %v8174, %v8503
        %v8739 = vsel %vm386, %v8175, %v8505
        %v8741 = vsel %vm386, %v8176, %v8507
        %v8743 = vsel %vm386, %v8177, %v8509
        %v8745 = vsel %vm386, %v8178, %v8511
        %v8747 = vsel %vm386, %v8179, %v8513
        %v8749 = vsel %vm386, %v8180, %v8515
        %v8751 = vsel %vm386, %v8181, %v8517
        %v8753 = vsel %vm386, %v8182, %v8519
        %v8755 = vsel %vm386, %v8183, %v8521
        %v8757 = vsel %vm386, %v8184, %v8523
        %v8759 = vsel %vm386, %v8185, %v8525
        %v8761 = vsel %vm386, %v8186, %v8527
        %v8763 = vsel %vm386, %v8187, %v8529
        %v8765 = vsel %vm1281, %v8693, %v8621
        %v8767 = vsel %vm1281, %v8695, %v8623
        %v8769 = vsel %vm1281, %v8697, %v8625
        %v8771 = vsel %vm1281, %v8699, %v8627
        %v8773 = vsel %vm1281, %v8701, %v8629
        %v8775 = vsel %vm1281, %v8703, %v8631
        %v8777 = vsel %vm1281, %v8705, %v8633
        %v8779 = vsel %vm1281, %v8707, %v8635
        %v8781 = vsel %vm1281, %v8709, %v8637
        %v8783 = vsel %vm1281, %v8711, %v8639
        %v8785 = vsel %vm1281, %v8713, %v8641
        %v8787 = vsel %vm1281, %v8715, %v8643
        %v8789 = vsel %vm1281, %v8717, %v8645
        %v8791 = vsel %vm1281, %v8719, %v8647
        %v8793 = vsel %vm1281, %v8721, %v8649
        %v8795 = vsel %vm1281, %v8723, %v8651
        %v8797 = vsel %vm1281, %v8725, %v8653
        %v8799 = vsel %vm1281, %v8727, %v8655
        %v8801 = vsel %vm1281, %v8729, %v8657
        %v8803 = vsel %vm1281, %v8731, %v8659
        %v8805 = vsel %vm1281, %v8733, %v8661
        %v8807 = vsel %vm1281, %v8735, %v8663
        %v8809 = vsel %vm1281, %v8737, %v8665
        %v8811 = vsel %vm1281, %v8739, %v8667
        %v8813 = vsel %vm1281, %v8741, %v8669
        %v8815 = vsel %vm1281, %v8743, %v8671
        %v8817 = vsel %vm1281, %v8745, %v8673
        %v8819 = vsel %vm1281, %v8747, %v8675
        %v8821 = vsel %vm1281, %v8749, %v8677
        %v8823 = vsel %vm1281, %v8751, %v8679
        %v8825 = vsel %vm1281, %v8753, %v8681
        %v8827 = vsel %vm1281, %v8755, %v8683
        %v8829 = vsel %vm1281, %v8757, %v8685
        %v8831 = vsel %vm1281, %v8759, %v8687
        %v8833 = vsel %vm1281, %v8761, %v8689
        %v8835 = vsel %vm1281, %v8763, %v8691
        %v8836 = vld [vmem:[%s10] sm:$0x1]
        %v8838 = vlaneseq
        %v8839 = vshrl.u32 %v8838, 7
        %v8840 = vsub.s32 0, %v8839
        %v8841 = vrot.slane %v8836, %v8840
        %v8843 = vshrl.u32 %v8765, 16
        %v8845 = vrot.slane %v8843, 3
        %v8846 = vshll.u32 %v8765, 16
        %v8848 = vrot.slane %v8846, 4
        %v8849 = vor.u32 %v8845, %v8848
        %v8850 = vshrl.u32 %v8767, 16
        %v8852 = vrot.slane %v8850, 3
        %v8853 = vshll.u32 %v8767, 16
        %v8855 = vrot.slane %v8853, 4
        %v8856 = vor.u32 %v8852, %v8855
        %v8857 = vsel %vm1361, %v8849, %v8856
        %v8858 = vshrl.u32 %v8769, 16
        %v8860 = vrot.slane %v8858, 3
        %v8861 = vshll.u32 %v8769, 16
        %v8863 = vrot.slane %v8861, 4
        %v8864 = vor.u32 %v8860, %v8863
        %v8865 = vshrl.u32 %v8771, 16
        %v8867 = vrot.slane %v8865, 3
        %v8868 = vshll.u32 %v8771, 16
        %v8870 = vrot.slane %v8868, 4
        %v8871 = vor.u32 %v8867, %v8870
        %v8872 = vsel %vm1361, %v8864, %v8871
        %v8873 = vshrl.u32 %v8773, 16
        %v8875 = vrot.slane %v8873, 3
        %v8876 = vshll.u32 %v8773, 16
        %v8878 = vrot.slane %v8876, 4
        %v8879 = vor.u32 %v8875, %v8878
        %v8880 = vshrl.u32 %v8775, 16
        %v8882 = vrot.slane %v8880, 3
        %v8883 = vshll.u32 %v8775, 16
        %v8885 = vrot.slane %v8883, 4
        %v8886 = vor.u32 %v8882, %v8885
        %v8887 = vsel %vm1361, %v8879, %v8886
        %v8888 = vshrl.u32 %v8777, 16
        %v8890 = vrot.slane %v8888, 3
        %v8891 = vshll.u32 %v8777, 16
        %v8893 = vrot.slane %v8891, 4
        %v8894 = vor.u32 %v8890, %v8893
        %v8895 = vshrl.u32 %v8779, 16
        %v8897 = vrot.slane %v8895, 3
        %v8898 = vshll.u32 %v8779, 16
        %v8900 = vrot.slane %v8898, 4
        %v8901 = vor.u32 %v8897, %v8900
        %v8902 = vsel %vm1361, %v8894, %v8901
        %v8903 = vshrl.u32 %v8781, 16
        %v8905 = vrot.slane %v8903, 3
        %v8906 = vshll.u32 %v8781, 16
        %v8908 = vrot.slane %v8906, 4
        %v8909 = vor.u32 %v8905, %v8908
        %v8910 = vshrl.u32 %v8783, 16
        %v8912 = vrot.slane %v8910, 3
        %v8913 = vshll.u32 %v8783, 16
        %v8915 = vrot.slane %v8913, 4
        %v8916 = vor.u32 %v8912, %v8915
        %v8917 = vsel %vm1361, %v8909, %v8916
        %v8918 = vshrl.u32 %v8785, 16
        %v8920 = vrot.slane %v8918, 3
        %v8921 = vshll.u32 %v8785, 16
        %v8923 = vrot.slane %v8921, 4
        %v8924 = vor.u32 %v8920, %v8923
        %v8925 = vshrl.u32 %v8787, 16
        %v8927 = vrot.slane %v8925, 3
        %v8928 = vshll.u32 %v8787, 16
        %v8930 = vrot.slane %v8928, 4
        %v8931 = vor.u32 %v8927, %v8930
        %v8932 = vsel %vm1361, %v8924, %v8931
        %v8933 = vshrl.u32 %v8789, 16
        %v8935 = vrot.slane %v8933, 3
        %v8936 = vshll.u32 %v8789, 16
        %v8938 = vrot.slane %v8936, 4
        %v8939 = vor.u32 %v8935, %v8938
        %v8940 = vshrl.u32 %v8791, 16
        %v8942 = vrot.slane %v8940, 3
        %v8943 = vshll.u32 %v8791, 16
        %v8945 = vrot.slane %v8943, 4
        %v8946 = vor.u32 %v8942, %v8945
        %v8947 = vsel %vm1361, %v8939, %v8946
        %v8948 = vshrl.u32 %v8793, 16
        %v8950 = vrot.slane %v8948, 3
        %v8951 = vshll.u32 %v8793, 16
        %v8953 = vrot.slane %v8951, 4
        %v8954 = vor.u32 %v8950, %v8953
        %v8955 = vshrl.u32 %v8795, 16
        %v8957 = vrot.slane %v8955, 3
        %v8958 = vshll.u32 %v8795, 16
        %v8960 = vrot.slane %v8958, 4
        %v8961 = vor.u32 %v8957, %v8960
        %v8962 = vsel %vm1361, %v8954, %v8961
        %v8963 = vshrl.u32 %v8797, 16
        %v8965 = vrot.slane %v8963, 3
        %v8966 = vshll.u32 %v8797, 16
        %v8968 = vrot.slane %v8966, 4
        %v8969 = vor.u32 %v8965, %v8968
        %v8970 = vshrl.u32 %v8799, 16
        %v8972 = vrot.slane %v8970, 3
        %v8973 = vshll.u32 %v8799, 16
        %v8975 = vrot.slane %v8973, 4
        %v8976 = vor.u32 %v8972, %v8975
        %v8977 = vsel %vm1361, %v8969, %v8976
        %v8978 = vshrl.u32 %v8801, 16
        %v8980 = vrot.slane %v8978, 3
        %v8981 = vshll.u32 %v8801, 16
        %v8983 = vrot.slane %v8981, 4
        %v8984 = vor.u32 %v8980, %v8983
        %v8985 = vshrl.u32 %v8803, 16
        %v8987 = vrot.slane %v8985, 3
        %v8988 = vshll.u32 %v8803, 16
        %v8990 = vrot.slane %v8988, 4
        %v8991 = vor.u32 %v8987, %v8990
        %v8992 = vsel %vm1361, %v8984, %v8991
        %v8993 = vshrl.u32 %v8805, 16
        %v8995 = vrot.slane %v8993, 3
        %v8996 = vshll.u32 %v8805, 16
        %v8998 = vrot.slane %v8996, 4
        %v8999 = vor.u32 %v8995, %v8998
        %v9000 = vshrl.u32 %v8807, 16
        %v9002 = vrot.slane %v9000, 3
        %v9003 = vshll.u32 %v8807, 16
        %v9005 = vrot.slane %v9003, 4
        %v9006 = vor.u32 %v9002, %v9005
        %v9007 = vsel %vm1361, %v8999, %v9006
        %v9008 = vshrl.u32 %v8809, 16
        %v9010 = vrot.slane %v9008, 3
        %v9011 = vshll.u32 %v8809, 16
        %v9013 = vrot.slane %v9011, 4
        %v9014 = vor.u32 %v9010, %v9013
        %v9015 = vshrl.u32 %v8811, 16
        %v9017 = vrot.slane %v9015, 3
        %v9018 = vshll.u32 %v8811, 16
        %v9020 = vrot.slane %v9018, 4
        %v9021 = vor.u32 %v9017, %v9020
        %v9022 = vsel %vm1361, %v9014, %v9021
        %v9023 = vshrl.u32 %v8813, 16
        %v9025 = vrot.slane %v9023, 3
        %v9026 = vshll.u32 %v8813, 16
        %v9028 = vrot.slane %v9026, 4
        %v9029 = vor.u32 %v9025, %v9028
        %v9030 = vshrl.u32 %v8815, 16
        %v9032 = vrot.slane %v9030, 3
        %v9033 = vshll.u32 %v8815, 16
        %v9035 = vrot.slane %v9033, 4
        %v9036 = vor.u32 %v9032, %v9035
        %v9037 = vsel %vm1361, %v9029, %v9036
        %v9038 = vshrl.u32 %v8817, 16
        %v9040 = vrot.slane %v9038, 3
        %v9041 = vshll.u32 %v8817, 16
        %v9043 = vrot.slane %v9041, 4
        %v9044 = vor.u32 %v9040, %v9043
        %v9045 = vshrl.u32 %v8819, 16
        %v9047 = vrot.slane %v9045, 3
        %v9048 = vshll.u32 %v8819, 16
        %v9050 = vrot.slane %v9048, 4
        %v9051 = vor.u32 %v9047, %v9050
        %v9052 = vsel %vm1361, %v9044, %v9051
        %v9053 = vshrl.u32 %v8821, 16
        %v9055 = vrot.slane %v9053, 3
        %v9056 = vshll.u32 %v8821, 16
        %v9058 = vrot.slane %v9056, 4
        %v9059 = vor.u32 %v9055, %v9058
        %v9060 = vshrl.u32 %v8823, 16
        %v9062 = vrot.slane %v9060, 3
        %v9063 = vshll.u32 %v8823, 16
        %v9065 = vrot.slane %v9063, 4
        %v9066 = vor.u32 %v9062, %v9065
        %v9067 = vsel %vm1361, %v9059, %v9066
        %v9068 = vshrl.u32 %v8825, 16
        %v9070 = vrot.slane %v9068, 3
        %v9071 = vshll.u32 %v8825, 16
        %v9073 = vrot.slane %v9071, 4
        %v9074 = vor.u32 %v9070, %v9073
        %v9075 = vshrl.u32 %v8827, 16
        %v9077 = vrot.slane %v9075, 3
        %v9078 = vshll.u32 %v8827, 16
        %v9080 = vrot.slane %v9078, 4
        %v9081 = vor.u32 %v9077, %v9080
        %v9082 = vsel %vm1361, %v9074, %v9081
        %v9083 = vld [vmem:[%s9] sm:$0xf]
        %v9084 = vld [vmem:[%s9 + $0x4] sm:$0xf]
        %v9085 = vld [vmem:[%s9 + $0x8] sm:$0xf]
        %v9086 = vld [vmem:[%s9 + $0xc] sm:$0xf]
        %v9087 = vld [vmem:[%s9 + $0x10] sm:$0xf]
        %v9088 = vld [vmem:[%s9 + $0x14] sm:$0xf]
        %v9089 = vld [vmem:[%s9 + $0x18] sm:$0xf]
        %v9090 = vld [vmem:[%s9 + $0x1c] sm:$0xf]
        %v9091 = vld [vmem:[%s9 + $0x20] sm:$0xf]
        %v9092 = vld [vmem:[%s9 + $0x24] sm:$0xf]
        %v9093 = vld [vmem:[%s9 + $0x28] sm:$0xf]
        %v9094 = vld [vmem:[%s9 + $0x2c] sm:$0xf]
        %v9107 = vunpack.c.l.b16 %v9083
        %v9108 = vunpack.c.l.b16 %v9084
        %v9109 = vunpack.c.l.b16 %v9085
        %v9110 = vunpack.c.l.b16 %v9086
        %v9111 = vunpack.c.l.b16 %v9087
        %v9112 = vunpack.c.l.b16 %v9088
        %v9113 = vunpack.c.l.b16 %v9089
        %v9114 = vunpack.c.l.b16 %v9090
        %v9115 = vunpack.c.l.b16 %v9091
        %v9116 = vunpack.c.l.b16 %v9092
        %v9117 = vunpack.c.l.b16 %v9093
        %v9118 = vunpack.c.l.b16 %v9094
        %v9119 = vpack.c.b16 %v9108, %v9107
        %v9120 = vpack.c.b16 %v9110, %v9109
        %v9121 = vpack.c.b16 %v9112, %v9111
        %v9122 = vpack.c.b16 %v9114, %v9113
        %v9123 = vpack.c.b16 %v9116, %v9115
        %v9124 = vpack.c.b16 %v9118, %v9117
        %v9132 = vsel %vm1650, %v8857, 0
        %v9135 = vsel %vm1650, %v8872, 0
        %v9138 = vsel %vm1650, %v8887, 0
        %v9141 = vsel %vm1650, %v8902, 0
        %v9144 = vsel %vm1650, %v8917, 0
        %v9147 = vsel %vm1650, %v8932, 0
        %v9150 = vsel %vm1650, %v8947, 0
        %v9153 = vsel %vm1650, %v8962, 0
        %v9156 = vsel %vm1650, %v8977, 0
        %v9159 = vsel %vm1650, %v8992, 0
        %v9162 = vsel %vm1650, %v9007, 0
        %v9165 = vsel %vm1650, %v9022, 0
        %v9168 = vsel %vm1650, %v9037, 0
        %v9171 = vsel %vm1650, %v9052, 0
        %v9174 = vsel %vm1650, %v9067, 0
        %v9177 = vsel %vm1650, %v9082, 0
        %9179 = vmatprep.subr.bf16.mxu0 0
        %9180 = vmatpush1.bf16.msra.mxu0 %v9119
        %9181 = vmatprep.subr.bf16.mxu0 0
        %9182 = vmatpush1.bf16.msra.mxu0 %v9120
        %9183 = vmatprep.subr.bf16.mxu0 0
        %9184 = vmatpush1.bf16.msra.mxu0 %v9121
        %9185 = vmatprep.subr.bf16.mxu0 0
        %9186 = vmatpush1.bf16.msra.mxu0 %v9122
        %9187 = vmatprep.subr.bf16.mxu0 0
        %9188 = vmatpush1.bf16.msra.mxu0 %v9123
        %9189 = vmatprep.subr.bf16.mxu0 0
        %9190 = vmatpush1.bf16.msra.mxu0 %v9124
        %9191 = vmatprep.subr.bf16.mxu0 0
        %9192 = vmatpush1.bf16.msra.mxu0 0
        %9193 = vmatprep.subr.bf16.mxu0 0
        %9194 = vmatpush1.bf16.msra.mxu0 0
        %9195 = vmatprep.subr.bf16.mxu0 0
        %9196 = vmatpush1.bf16.msra.mxu0 0
        %9197 = vmatprep.subr.bf16.mxu0 0
        %9198 = vmatpush1.bf16.msra.mxu0 0
        %9199 = vmatprep.subr.bf16.mxu0 0
        %9200 = vmatpush1.bf16.msra.mxu0 0
        %9201 = vmatprep.subr.bf16.mxu0 0
        %9202 = vmatpush1.bf16.msra.mxu0 0
        %9203 = vmatprep.subr.bf16.mxu0 0
        %9204 = vmatpush1.bf16.msra.mxu0 0
        %9205 = vmatprep.subr.bf16.mxu0 0
        %9206 = vmatpush1.bf16.msra.mxu0 0
        %9207 = vmatprep.subr.bf16.mxu0 0
        %9208 = vmatpush1.bf16.msra.mxu0 0
        %9209 = vmatprep.subr.bf16.mxu0 0
        %9210 = vmatpush1.bf16.msra.mxu0 0
        %9211 = vmatprep.mubr.bf16.mxu0 0
        %9212 = vmatmul.mubr.bf16.gmra.mrb[0].mxu0 %v9132
        %v9213 = vpop.f32.mrb[0].mxu0
        %v9214 = vadd.f32 0.0, %v9213
        %v9215 = vpop.f32.mrb[0].mxu0
        %v9216 = vpop.f32.mrb[0].mxu0
        %v9217 = vadd.f32 0.0, %v9216
        %v9218 = vpop.f32.mrb[0].mxu0
        %9219 = vmatprep.mubr.bf16.mxu0 0
        %9220 = vmatmul.mubr.bf16.gmra.mrb[0].mxu0 %v9135
        %v9221 = vpop.f32.mrb[0].mxu0
        %v9222 = vadd.f32 0.0, %v9221
        %v9223 = vpop.f32.mrb[0].mxu0
        %v9224 = vpop.f32.mrb[0].mxu0
        %v9225 = vadd.f32 0.0, %v9224
        %v9226 = vpop.f32.mrb[0].mxu0
        %9227 = vmatprep.mubr.bf16.mxu0 0
        %9228 = vmatmul.mubr.bf16.gmra.mrb[0].mxu0 %v9138
        %v9229 = vpop.f32.mrb[0].mxu0
        %v9230 = vadd.f32 0.0, %v9229
        %v9231 = vpop.f32.mrb[0].mxu0
        %v9232 = vpop.f32.mrb[0].mxu0
        %v9233 = vadd.f32 0.0, %v9232
        %v9234 = vpop.f32.mrb[0].mxu0
        %9235 = vmatprep.mubr.bf16.mxu0 0
        %9236 = vmatmul.mubr.bf16.gmra.mrb[0].mxu0 %v9141
        %v9237 = vpop.f32.mrb[0].mxu0
        %v9238 = vadd.f32 0.0, %v9237
        %v9239 = vpop.f32.mrb[0].mxu0
        %v9240 = vpop.f32.mrb[0].mxu0
        %v9241 = vadd.f32 0.0, %v9240
        %v9242 = vpop.f32.mrb[0].mxu0
        %9243 = vmatprep.mubr.bf16.mxu0 0
        %9244 = vmatmul.mubr.bf16.gmra.mrb[0].mxu0 %v9144
        %v9245 = vpop.f32.mrb[0].mxu0
        %v9246 = vadd.f32 0.0, %v9245
        %v9247 = vpop.f32.mrb[0].mxu0
        %v9248 = vpop.f32.mrb[0].mxu0
        %v9249 = vadd.f32 0.0, %v9248
        %v9250 = vpop.f32.mrb[0].mxu0
        %9251 = vmatprep.mubr.bf16.mxu0 0
        %9252 = vmatmul.mubr.bf16.gmra.mrb[0].mxu0 %v9147
        %v9253 = vpop.f32.mrb[0].mxu0
        %v9254 = vadd.f32 0.0, %v9253
        %v9255 = vpop.f32.mrb[0].mxu0
        %v9256 = vpop.f32.mrb[0].mxu0
        %v9257 = vadd.f32 0.0, %v9256
        %v9258 = vpop.f32.mrb[0].mxu0
        %9259 = vmatprep.mubr.bf16.mxu0 0
        %9260 = vmatmul.mubr.bf16.gmra.mrb[0].mxu0 %v9150
        %v9261 = vpop.f32.mrb[0].mxu0
        %v9262 = vadd.f32 0.0, %v9261
        %v9263 = vpop.f32.mrb[0].mxu0
        %v9264 = vpop.f32.mrb[0].mxu0
        %v9265 = vadd.f32 0.0, %v9264
        %v9266 = vpop.f32.mrb[0].mxu0
        %9267 = vmatprep.mubr.bf16.mxu0 0
        %9268 = vmatmul.mubr.bf16.gmra.mrb[0].mxu0 %v9153
        %v9269 = vpop.f32.mrb[0].mxu0
        %v9270 = vadd.f32 0.0, %v9269
        %v9271 = vpop.f32.mrb[0].mxu0
        %v9272 = vpop.f32.mrb[0].mxu0
        %v9273 = vadd.f32 0.0, %v9272
        %v9274 = vpop.f32.mrb[0].mxu0
        %9275 = vmatprep.mubr.bf16.mxu0 0
        %9276 = vmatmul.mubr.bf16.gmra.mrb[0].mxu0 %v9156
        %v9277 = vpop.f32.mrb[0].mxu0
        %v9278 = vadd.f32 0.0, %v9277
        %v9279 = vpop.f32.mrb[0].mxu0
        %v9280 = vpop.f32.mrb[0].mxu0
        %v9281 = vadd.f32 0.0, %v9280
        %v9282 = vpop.f32.mrb[0].mxu0
        %9283 = vmatprep.mubr.bf16.mxu0 0
        %9284 = vmatmul.mubr.bf16.gmra.mrb[0].mxu0 %v9159
        %v9285 = vpop.f32.mrb[0].mxu0
        %v9286 = vadd.f32 0.0, %v9285
        %v9287 = vpop.f32.mrb[0].mxu0
        %v9288 = vpop.f32.mrb[0].mxu0
        %v9289 = vadd.f32 0.0, %v9288
        %v9290 = vpop.f32.mrb[0].mxu0
        %9291 = vmatprep.mubr.bf16.mxu0 0
        %9292 = vmatmul.mubr.bf16.gmra.mrb[0].mxu0 %v9162
        %v9293 = vpop.f32.mrb[0].mxu0
        %v9294 = vadd.f32 0.0, %v9293
        %v9295 = vpop.f32.mrb[0].mxu0
        %v9296 = vpop.f32.mrb[0].mxu0
        %v9297 = vadd.f32 0.0, %v9296
        %v9298 = vpop.f32.mrb[0].mxu0
        %9299 = vmatprep.mubr.bf16.mxu0 0
        %9300 = vmatmul.mubr.bf16.gmra.mrb[0].mxu0 %v9165
        %v9301 = vpop.f32.mrb[0].mxu0
        %v9302 = vadd.f32 0.0, %v9301
        %v9303 = vpop.f32.mrb[0].mxu0
        %v9304 = vpop.f32.mrb[0].mxu0
        %v9305 = vadd.f32 0.0, %v9304
        %v9306 = vpop.f32.mrb[0].mxu0
        %9307 = vmatprep.mubr.bf16.mxu0 0
        %9308 = vmatmul.mubr.bf16.gmra.mrb[0].mxu0 %v9168
        %v9309 = vpop.f32.mrb[0].mxu0
        %v9310 = vadd.f32 0.0, %v9309
        %v9311 = vpop.f32.mrb[0].mxu0
        %v9312 = vpop.f32.mrb[0].mxu0
        %v9313 = vadd.f32 0.0, %v9312
        %v9314 = vpop.f32.mrb[0].mxu0
        %9315 = vmatprep.mubr.bf16.mxu0 0
        %9316 = vmatmul.mubr.bf16.gmra.mrb[0].mxu0 %v9171
        %v9317 = vpop.f32.mrb[0].mxu0
        %v9318 = vadd.f32 0.0, %v9317
        %v9319 = vpop.f32.mrb[0].mxu0
        %v9320 = vpop.f32.mrb[0].mxu0
        %v9321 = vadd.f32 0.0, %v9320
        %v9322 = vpop.f32.mrb[0].mxu0
        %9323 = vmatprep.mubr.bf16.mxu0 0
        %9324 = vmatmul.mubr.bf16.gmra.mrb[0].mxu0 %v9174
        %v9325 = vpop.f32.mrb[0].mxu0
        %v9326 = vadd.f32 0.0, %v9325
        %v9327 = vpop.f32.mrb[0].mxu0
        %v9328 = vpop.f32.mrb[0].mxu0
        %v9329 = vadd.f32 0.0, %v9328
        %v9330 = vpop.f32.mrb[0].mxu0
        %9331 = vmatprep.mubr.bf16.mxu0 0
        %9332 = vmatmul.mubr.bf16.gmra.mrb[0].mxu0 %v9177
        %v9333 = vpop.f32.mrb[0].mxu0
        %v9334 = vadd.f32 0.0, %v9333
        %v9335 = vpop.f32.mrb[0].mxu0
        %v9336 = vpop.f32.mrb[0].mxu0
        %v9337 = vadd.f32 0.0, %v9336
        %v9338 = vpop.f32.mrb[0].mxu0
        %9339 = vdwg.mxu0
        %v9340 = vadd.f32 %v8841, %v9214
        %v9341 = vadd.f32 %v8841, %v9217
        %v9342 = vadd.f32 %v8841, %v9222
        %v9343 = vadd.f32 %v8841, %v9225
        %v9344 = vadd.f32 %v8841, %v9230
        %v9345 = vadd.f32 %v8841, %v9233
        %v9346 = vadd.f32 %v8841, %v9238
        %v9347 = vadd.f32 %v8841, %v9241
        %v9348 = vadd.f32 %v8841, %v9246
        %v9349 = vadd.f32 %v8841, %v9249
        %v9350 = vadd.f32 %v8841, %v9254
        %v9351 = vadd.f32 %v8841, %v9257
        %v9352 = vadd.f32 %v8841, %v9262
        %v9353 = vadd.f32 %v8841, %v9265
        %v9354 = vadd.f32 %v8841, %v9270
        %v9355 = vadd.f32 %v8841, %v9273
        %v9356 = vadd.f32 %v8841, %v9278
        %v9357 = vadd.f32 %v8841, %v9281
        %v9358 = vadd.f32 %v8841, %v9286
        %v9359 = vadd.f32 %v8841, %v9289
        %v9360 = vadd.f32 %v8841, %v9294
        %v9361 = vadd.f32 %v8841, %v9297
        %v9362 = vadd.f32 %v8841, %v9302
        %v9363 = vadd.f32 %v8841, %v9305
        %v9364 = vadd.f32 %v8841, %v9310
        %v9365 = vadd.f32 %v8841, %v9313
        %v9366 = vadd.f32 %v8841, %v9318
        %v9367 = vadd.f32 %v8841, %v9321
        %v9368 = vadd.f32 %v8841, %v9326
        %v9369 = vadd.f32 %v8841, %v9329
        %v9370 = vadd.f32 %v8841, %v9334
        %v9371 = vadd.f32 %v8841, %v9337
        %v9372 = vshrl.u32 %v8829, 16
        %v9374 = vrot.slane %v9372, 3
        %v9375 = vshll.u32 %v8829, 16
        %v9377 = vrot.slane %v9375, 4
        %v9378 = vor.u32 %v9374, %v9377
        %v9379 = vshrl.u32 %v8831, 16
        %v9381 = vrot.slane %v9379, 3
        %v9382 = vshll.u32 %v8831, 16
        %v9384 = vrot.slane %v9382, 4
        %v9385 = vor.u32 %v9381, %v9384
        %v9386 = vsel %vm1361, %v9378, %v9385
        %s9387 = scalar_lea.vmem %s9, 48
        %v9388 = vld [vmem:[%s9387] sm:$0xf]
        %v9389 = vld [vmem:[%s9387 + $0x4] sm:$0xf]
        %v9390 = vld [vmem:[%s9387 + $0x8] sm:$0xf]
        %v9391 = vld [vmem:[%s9387 + $0xc] sm:$0xf]
        %v9392 = vld [vmem:[%s9387 + $0x10] sm:$0xf]
        %v9393 = vld [vmem:[%s9387 + $0x14] sm:$0xf]
        %v9394 = vld [vmem:[%s9387 + $0x18] sm:$0xf]
        %v9395 = vld [vmem:[%s9387 + $0x1c] sm:$0xf]
        %v9396 = vld [vmem:[%s9387 + $0x20] sm:$0xf]
        %v9397 = vld [vmem:[%s9387 + $0x24] sm:$0xf]
        %v9398 = vld [vmem:[%s9387 + $0x28] sm:$0xf]
        %v9399 = vld [vmem:[%s9387 + $0x2c] sm:$0xf]
        %v9412 = vunpack.c.l.b16 %v9388
        %v9413 = vunpack.c.l.b16 %v9389
        %v9414 = vunpack.c.l.b16 %v9390
        %v9415 = vunpack.c.l.b16 %v9391
        %v9416 = vunpack.c.l.b16 %v9392
        %v9417 = vunpack.c.l.b16 %v9393
        %v9418 = vunpack.c.l.b16 %v9394
        %v9419 = vunpack.c.l.b16 %v9395
        %v9420 = vunpack.c.l.b16 %v9396
        %v9421 = vunpack.c.l.b16 %v9397
        %v9422 = vunpack.c.l.b16 %v9398
        %v9423 = vunpack.c.l.b16 %v9399
        %v9424 = vpack.c.b16 %v9413, %v9412
        %v9425 = vpack.c.b16 %v9415, %v9414
        %v9426 = vpack.c.b16 %v9417, %v9416
        %v9427 = vpack.c.b16 %v9419, %v9418
        %v9428 = vpack.c.b16 %v9421, %v9420
        %v9429 = vpack.c.b16 %v9423, %v9422
        %v9437 = vsel %vm1650, %v9386, 0
        %9439 = vmatprep.subr.bf16.mxu0 0
        %9440 = vmatpush1.bf16.msra.mxu0 %v9424
        %9441 = vmatprep.subr.bf16.mxu0 0
        %9442 = vmatpush1.bf16.msra.mxu0 %v9425
        %9443 = vmatprep.subr.bf16.mxu0 0
        %9444 = vmatpush1.bf16.msra.mxu0 %v9426
        %9445 = vmatprep.subr.bf16.mxu0 0
        %9446 = vmatpush1.bf16.msra.mxu0 %v9427
        %9447 = vmatprep.subr.bf16.mxu0 0
        %9448 = vmatpush1.bf16.msra.mxu0 %v9428
        %9449 = vmatprep.subr.bf16.mxu0 0
        %9450 = vmatpush1.bf16.msra.mxu0 %v9429
        %9451 = vmatprep.subr.bf16.mxu0 0
        %9452 = vmatpush1.bf16.msra.mxu0 0
        %9453 = vmatprep.subr.bf16.mxu0 0
        %9454 = vmatpush1.bf16.msra.mxu0 0
        %9455 = vmatprep.subr.bf16.mxu0 0
        %9456 = vmatpush1.bf16.msra.mxu0 0
        %9457 = vmatprep.subr.bf16.mxu0 0
        %9458 = vmatpush1.bf16.msra.mxu0 0
        %9459 = vmatprep.subr.bf16.mxu0 0
        %9460 = vmatpush1.bf16.msra.mxu0 0
        %9461 = vmatprep.subr.bf16.mxu0 0
        %9462 = vmatpush1.bf16.msra.mxu0 0
        %9463 = vmatprep.subr.bf16.mxu0 0
        %9464 = vmatpush1.bf16.msra.mxu0 0
        %9465 = vmatprep.subr.bf16.mxu0 0
        %9466 = vmatpush1.bf16.msra.mxu0 0
        %9467 = vmatprep.subr.bf16.mxu0 0
        %9468 = vmatpush1.bf16.msra.mxu0 0
        %9469 = vmatprep.subr.bf16.mxu0 0
        %9470 = vmatpush1.bf16.msra.mxu0 0
        %9471 = vmatprep.mubr.bf16.mxu0 0
        %9472 = vmatmul.mubr.bf16.gmra.mrb[0].mxu0 %v9135
        %v9473 = vpop.f32.mrb[0].mxu0
        %v9474 = vadd.f32 0.0, %v9473
        %v9475 = vpop.f32.mrb[0].mxu0
        %v9476 = vpop.f32.mrb[0].mxu0
        %v9477 = vadd.f32 0.0, %v9476
        %v9478 = vpop.f32.mrb[0].mxu0
        %9479 = vmatprep.mubr.bf16.mxu0 0
        %9480 = vmatmul.mubr.bf16.gmra.mrb[0].mxu0 %v9138
        %v9481 = vpop.f32.mrb[0].mxu0
        %v9482 = vadd.f32 0.0, %v9481
        %v9483 = vpop.f32.mrb[0].mxu0
        %v9484 = vpop.f32.mrb[0].mxu0
        %v9485 = vadd.f32 0.0, %v9484
        %v9486 = vpop.f32.mrb[0].mxu0
        %9487 = vmatprep.mubr.bf16.mxu0 0
        %9488 = vmatmul.mubr.bf16.gmra.mrb[0].mxu0 %v9141
        %v9489 = vpop.f32.mrb[0].mxu0
        %v9490 = vadd.f32 0.0, %v9489
        %v9491 = vpop.f32.mrb[0].mxu0
        %v9492 = vpop.f32.mrb[0].mxu0
        %v9493 = vadd.f32 0.0, %v9492
        %v9494 = vpop.f32.mrb[0].mxu0
        %9495 = vmatprep.mubr.bf16.mxu0 0
        %9496 = vmatmul.mubr.bf16.gmra.mrb[0].mxu0 %v9144
        %v9497 = vpop.f32.mrb[0].mxu0
        %v9498 = vadd.f32 0.0, %v9497
        %v9499 = vpop.f32.mrb[0].mxu0
        %v9500 = vpop.f32.mrb[0].mxu0
        %v9501 = vadd.f32 0.0, %v9500
        %v9502 = vpop.f32.mrb[0].mxu0
        %9503 = vmatprep.mubr.bf16.mxu0 0
        %9504 = vmatmul.mubr.bf16.gmra.mrb[0].mxu0 %v9147
        %v9505 = vpop.f32.mrb[0].mxu0
        %v9506 = vadd.f32 0.0, %v9505
        %v9507 = vpop.f32.mrb[0].mxu0
        %v9508 = vpop.f32.mrb[0].mxu0
        %v9509 = vadd.f32 0.0, %v9508
        %v9510 = vpop.f32.mrb[0].mxu0
        %9511 = vmatprep.mubr.bf16.mxu0 0
        %9512 = vmatmul.mubr.bf16.gmra.mrb[0].mxu0 %v9150
        %v9513 = vpop.f32.mrb[0].mxu0
        %v9514 = vadd.f32 0.0, %v9513
        %v9515 = vpop.f32.mrb[0].mxu0
        %v9516 = vpop.f32.mrb[0].mxu0
        %v9517 = vadd.f32 0.0, %v9516
        %v9518 = vpop.f32.mrb[0].mxu0
        %9519 = vmatprep.mubr.bf16.mxu0 0
        %9520 = vmatmul.mubr.bf16.gmra.mrb[0].mxu0 %v9153
        %v9521 = vpop.f32.mrb[0].mxu0
        %v9522 = vadd.f32 0.0, %v9521
        %v9523 = vpop.f32.mrb[0].mxu0
        %v9524 = vpop.f32.mrb[0].mxu0
        %v9525 = vadd.f32 0.0, %v9524
        %v9526 = vpop.f32.mrb[0].mxu0
        %9527 = vmatprep.mubr.bf16.mxu0 0
        %9528 = vmatmul.mubr.bf16.gmra.mrb[0].mxu0 %v9156
        %v9529 = vpop.f32.mrb[0].mxu0
        %v9530 = vadd.f32 0.0, %v9529
        %v9531 = vpop.f32.mrb[0].mxu0
        %v9532 = vpop.f32.mrb[0].mxu0
        %v9533 = vadd.f32 0.0, %v9532
        %v9534 = vpop.f32.mrb[0].mxu0
        %9535 = vmatprep.mubr.bf16.mxu0 0
        %9536 = vmatmul.mubr.bf16.gmra.mrb[0].mxu0 %v9159
        %v9537 = vpop.f32.mrb[0].mxu0
        %v9538 = vadd.f32 0.0, %v9537
        %v9539 = vpop.f32.mrb[0].mxu0
        %v9540 = vpop.f32.mrb[0].mxu0
        %v9541 = vadd.f32 0.0, %v9540
        %v9542 = vpop.f32.mrb[0].mxu0
        %9543 = vmatprep.mubr.bf16.mxu0 0
        %9544 = vmatmul.mubr.bf16.gmra.mrb[0].mxu0 %v9162
        %v9545 = vpop.f32.mrb[0].mxu0
        %v9546 = vadd.f32 0.0, %v9545
        %v9547 = vpop.f32.mrb[0].mxu0
        %v9548 = vpop.f32.mrb[0].mxu0
        %v9549 = vadd.f32 0.0, %v9548
        %v9550 = vpop.f32.mrb[0].mxu0
        %9551 = vmatprep.mubr.bf16.mxu0 0
        %9552 = vmatmul.mubr.bf16.gmra.mrb[0].mxu0 %v9165
        %v9553 = vpop.f32.mrb[0].mxu0
        %v9554 = vadd.f32 0.0, %v9553
        %v9555 = vpop.f32.mrb[0].mxu0
        %v9556 = vpop.f32.mrb[0].mxu0
        %v9557 = vadd.f32 0.0, %v9556
        %v9558 = vpop.f32.mrb[0].mxu0
        %9559 = vmatprep.mubr.bf16.mxu0 0
        %9560 = vmatmul.mubr.bf16.gmra.mrb[0].mxu0 %v9168
        %v9561 = vpop.f32.mrb[0].mxu0
        %v9562 = vadd.f32 0.0, %v9561
        %v9563 = vpop.f32.mrb[0].mxu0
        %v9564 = vpop.f32.mrb[0].mxu0
        %v9565 = vadd.f32 0.0, %v9564
        %v9566 = vpop.f32.mrb[0].mxu0
        %9567 = vmatprep.mubr.bf16.mxu0 0
        %9568 = vmatmul.mubr.bf16.gmra.mrb[0].mxu0 %v9171
        %v9569 = vpop.f32.mrb[0].mxu0
        %v9570 = vadd.f32 0.0, %v9569
        %v9571 = vpop.f32.mrb[0].mxu0
        %v9572 = vpop.f32.mrb[0].mxu0
        %v9573 = vadd.f32 0.0, %v9572
        %v9574 = vpop.f32.mrb[0].mxu0
        %9575 = vmatprep.mubr.bf16.mxu0 0
        %9576 = vmatmul.mubr.bf16.gmra.mrb[0].mxu0 %v9174
        %v9577 = vpop.f32.mrb[0].mxu0
        %v9578 = vadd.f32 0.0, %v9577
        %v9579 = vpop.f32.mrb[0].mxu0
        %v9580 = vpop.f32.mrb[0].mxu0
        %v9581 = vadd.f32 0.0, %v9580
        %v9582 = vpop.f32.mrb[0].mxu0
        %9583 = vmatprep.mubr.bf16.mxu0 0
        %9584 = vmatmul.mubr.bf16.gmra.mrb[0].mxu0 %v9177
        %v9585 = vpop.f32.mrb[0].mxu0
        %v9586 = vadd.f32 0.0, %v9585
        %v9587 = vpop.f32.mrb[0].mxu0
        %v9588 = vpop.f32.mrb[0].mxu0
        %v9589 = vadd.f32 0.0, %v9588
        %v9590 = vpop.f32.mrb[0].mxu0
        %9591 = vmatprep.mubr.bf16.mxu0 0
        %9592 = vmatmul.mubr.bf16.gmra.mrb[0].mxu0 %v9437
        %v9593 = vpop.f32.mrb[0].mxu0
        %v9594 = vadd.f32 0.0, %v9593
        %v9595 = vpop.f32.mrb[0].mxu0
        %v9596 = vpop.f32.mrb[0].mxu0
        %v9597 = vadd.f32 0.0, %v9596
        %v9598 = vpop.f32.mrb[0].mxu0
        %9599 = vdwg.mxu0
        %v9600 = vadd.f32 %v9340, %v9474
        %v9601 = vadd.f32 %v9341, %v9477
        %v9602 = vadd.f32 %v9342, %v9482
        %v9603 = vadd.f32 %v9343, %v9485
        %v9604 = vadd.f32 %v9344, %v9490
        %v9605 = vadd.f32 %v9345, %v9493
        %v9606 = vadd.f32 %v9346, %v9498
        %v9607 = vadd.f32 %v9347, %v9501
        %v9608 = vadd.f32 %v9348, %v9506
        %v9609 = vadd.f32 %v9349, %v9509
        %v9610 = vadd.f32 %v9350, %v9514
        %v9611 = vadd.f32 %v9351, %v9517
        %v9612 = vadd.f32 %v9352, %v9522
        %v9613 = vadd.f32 %v9353, %v9525
        %v9614 = vadd.f32 %v9354, %v9530
        %v9615 = vadd.f32 %v9355, %v9533
        %v9616 = vadd.f32 %v9356, %v9538
        %v9617 = vadd.f32 %v9357, %v9541
        %v9618 = vadd.f32 %v9358, %v9546
        %v9619 = vadd.f32 %v9359, %v9549
        %v9620 = vadd.f32 %v9360, %v9554
        %v9621 = vadd.f32 %v9361, %v9557
        %v9622 = vadd.f32 %v9362, %v9562
        %v9623 = vadd.f32 %v9363, %v9565
        %v9624 = vadd.f32 %v9364, %v9570
        %v9625 = vadd.f32 %v9365, %v9573
        %v9626 = vadd.f32 %v9366, %v9578
        %v9627 = vadd.f32 %v9367, %v9581
        %v9628 = vadd.f32 %v9368, %v9586
        %v9629 = vadd.f32 %v9369, %v9589
        %v9630 = vadd.f32 %v9370, %v9594
        %v9631 = vadd.f32 %v9371, %v9597
        %v9632 = vshrl.u32 %v8833, 16
        %v9634 = vrot.slane %v9632, 3
        %v9635 = vshll.u32 %v8833, 16
        %v9637 = vrot.slane %v9635, 4
        %v9638 = vor.u32 %v9634, %v9637
        %v9639 = vshrl.u32 %v8835, 16
        %v9641 = vrot.slane %v9639, 3
        %v9642 = vshll.u32 %v8835, 16
        %v9644 = vrot.slane %v9642, 4
        %v9645 = vor.u32 %v9641, %v9644
        %v9646 = vsel %vm1361, %v9638, %v9645
        %s9647 = scalar_lea.vmem %s9, 96
        %v9648 = vld [vmem:[%s9647] sm:$0xf]
        %v9649 = vld [vmem:[%s9647 + $0x4] sm:$0xf]
        %v9650 = vld [vmem:[%s9647 + $0x8] sm:$0xf]
        %v9651 = vld [vmem:[%s9647 + $0xc] sm:$0xf]
        %v9652 = vld [vmem:[%s9647 + $0x10] sm:$0xf]
        %v9653 = vld [vmem:[%s9647 + $0x14] sm:$0xf]
        %v9654 = vld [vmem:[%s9647 + $0x18] sm:$0xf]
        %v9655 = vld [vmem:[%s9647 + $0x1c] sm:$0xf]
        %v9656 = vld [vmem:[%s9647 + $0x20] sm:$0xf]
        %v9657 = vld [vmem:[%s9647 + $0x24] sm:$0xf]
        %v9658 = vld [vmem:[%s9647 + $0x28] sm:$0xf]
        %v9659 = vld [vmem:[%s9647 + $0x2c] sm:$0xf]
        %v9672 = vunpack.c.l.b16 %v9648
        %v9673 = vunpack.c.l.b16 %v9649
        %v9674 = vunpack.c.l.b16 %v9650
        %v9675 = vunpack.c.l.b16 %v9651
        %v9676 = vunpack.c.l.b16 %v9652
        %v9677 = vunpack.c.l.b16 %v9653
        %v9678 = vunpack.c.l.b16 %v9654
        %v9679 = vunpack.c.l.b16 %v9655
        %v9680 = vunpack.c.l.b16 %v9656
        %v9681 = vunpack.c.l.b16 %v9657
        %v9682 = vunpack.c.l.b16 %v9658
        %v9683 = vunpack.c.l.b16 %v9659
        %v9684 = vpack.c.b16 %v9673, %v9672
        %v9685 = vpack.c.b16 %v9675, %v9674
        %v9686 = vpack.c.b16 %v9677, %v9676
        %v9687 = vpack.c.b16 %v9679, %v9678
        %v9688 = vpack.c.b16 %v9681, %v9680
        %v9689 = vpack.c.b16 %v9683, %v9682
        %v9697 = vsel %vm1650, %v9646, 0
        %9699 = vmatprep.subr.bf16.mxu0 0
        %9700 = vmatpush1.bf16.msra.mxu0 %v9684
        %9701 = vmatprep.subr.bf16.mxu0 0
        %9702 = vmatpush1.bf16.msra.mxu0 %v9685
        %9703 = vmatprep.subr.bf16.mxu0 0
        %9704 = vmatpush1.bf16.msra.mxu0 %v9686
        %9705 = vmatprep.subr.bf16.mxu0 0
        %9706 = vmatpush1.bf16.msra.mxu0 %v9687
        %9707 = vmatprep.subr.bf16.mxu0 0
        %9708 = vmatpush1.bf16.msra.mxu0 %v9688
        %9709 = vmatprep.subr.bf16.mxu0 0
        %9710 = vmatpush1.bf16.msra.mxu0 %v9689
        %9711 = vmatprep.subr.bf16.mxu0 0
        %9712 = vmatpush1.bf16.msra.mxu0 0
        %9713 = vmatprep.subr.bf16.mxu0 0
        %9714 = vmatpush1.bf16.msra.mxu0 0
        %9715 = vmatprep.subr.bf16.mxu0 0
        %9716 = vmatpush1.bf16.msra.mxu0 0
        %9717 = vmatprep.subr.bf16.mxu0 0
        %9718 = vmatpush1.bf16.msra.mxu0 0
        %9719 = vmatprep.subr.bf16.mxu0 0
        %9720 = vmatpush1.bf16.msra.mxu0 0
        %9721 = vmatprep.subr.bf16.mxu0 0
        %9722 = vmatpush1.bf16.msra.mxu0 0
        %9723 = vmatprep.subr.bf16.mxu0 0
        %9724 = vmatpush1.bf16.msra.mxu0 0
        %9725 = vmatprep.subr.bf16.mxu0 0
        %9726 = vmatpush1.bf16.msra.mxu0 0
        %9727 = vmatprep.subr.bf16.mxu0 0
        %9728 = vmatpush1.bf16.msra.mxu0 0
        %9729 = vmatprep.subr.bf16.mxu0 0
        %9730 = vmatpush1.bf16.msra.mxu0 0
        %9731 = vmatprep.mubr.bf16.mxu0 0
        %9732 = vmatmul.mubr.bf16.gmra.mrb[0].mxu0 %v9138
        %v9733 = vpop.f32.mrb[0].mxu0
        %v9734 = vadd.f32 0.0, %v9733
        %v9735 = vpop.f32.mrb[0].mxu0
        %v9736 = vpop.f32.mrb[0].mxu0
        %v9737 = vadd.f32 0.0, %v9736
        %v9738 = vpop.f32.mrb[0].mxu0
        %9739 = vmatprep.mubr.bf16.mxu0 0
        %9740 = vmatmul.mubr.bf16.gmra.mrb[0].mxu0 %v9141
        %v9741 = vpop.f32.mrb[0].mxu0
        %v9742 = vadd.f32 0.0, %v9741
        %v9743 = vpop.f32.mrb[0].mxu0
        %v9744 = vpop.f32.mrb[0].mxu0
        %v9745 = vadd.f32 0.0, %v9744
        %v9746 = vpop.f32.mrb[0].mxu0
        %9747 = vmatprep.mubr.bf16.mxu0 0
        %9748 = vmatmul.mubr.bf16.gmra.mrb[0].mxu0 %v9144
        %v9749 = vpop.f32.mrb[0].mxu0
        %v9750 = vadd.f32 0.0, %v9749
        %v9751 = vpop.f32.mrb[0].mxu0
        %v9752 = vpop.f32.mrb[0].mxu0
        %v9753 = vadd.f32 0.0, %v9752
        %v9754 = vpop.f32.mrb[0].mxu0
        %9755 = vmatprep.mubr.bf16.mxu0 0
        %9756 = vmatmul.mubr.bf16.gmra.mrb[0].mxu0 %v9147
        %v9757 = vpop.f32.mrb[0].mxu0
        %v9758 = vadd.f32 0.0, %v9757
        %v9759 = vpop.f32.mrb[0].mxu0
        %v9760 = vpop.f32.mrb[0].mxu0
        %v9761 = vadd.f32 0.0, %v9760
        %v9762 = vpop.f32.mrb[0].mxu0
        %9763 = vmatprep.mubr.bf16.mxu0 0
        %9764 = vmatmul.mubr.bf16.gmra.mrb[0].mxu0 %v9150
        %v9765 = vpop.f32.mrb[0].mxu0
        %v9766 = vadd.f32 0.0, %v9765
        %v9767 = vpop.f32.mrb[0].mxu0
        %v9768 = vpop.f32.mrb[0].mxu0
        %v9769 = vadd.f32 0.0, %v9768
        %v9770 = vpop.f32.mrb[0].mxu0
        %9771 = vmatprep.mubr.bf16.mxu0 0
        %9772 = vmatmul.mubr.bf16.gmra.mrb[0].mxu0 %v9153
        %v9773 = vpop.f32.mrb[0].mxu0
        %v9774 = vadd.f32 0.0, %v9773
        %v9775 = vpop.f32.mrb[0].mxu0
        %v9776 = vpop.f32.mrb[0].mxu0
        %v9777 = vadd.f32 0.0, %v9776
        %v9778 = vpop.f32.mrb[0].mxu0
        %9779 = vmatprep.mubr.bf16.mxu0 0
        %9780 = vmatmul.mubr.bf16.gmra.mrb[0].mxu0 %v9156
        %v9781 = vpop.f32.mrb[0].mxu0
        %v9782 = vadd.f32 0.0, %v9781
        %v9783 = vpop.f32.mrb[0].mxu0
        %v9784 = vpop.f32.mrb[0].mxu0
        %v9785 = vadd.f32 0.0, %v9784
        %v9786 = vpop.f32.mrb[0].mxu0
        %9787 = vmatprep.mubr.bf16.mxu0 0
        %9788 = vmatmul.mubr.bf16.gmra.mrb[0].mxu0 %v9159
        %v9789 = vpop.f32.mrb[0].mxu0
        %v9790 = vadd.f32 0.0, %v9789
        %v9791 = vpop.f32.mrb[0].mxu0
        %v9792 = vpop.f32.mrb[0].mxu0
        %v9793 = vadd.f32 0.0, %v9792
        %v9794 = vpop.f32.mrb[0].mxu0
        %9795 = vmatprep.mubr.bf16.mxu0 0
        %9796 = vmatmul.mubr.bf16.gmra.mrb[0].mxu0 %v9162
        %v9797 = vpop.f32.mrb[0].mxu0
        %v9798 = vadd.f32 0.0, %v9797
        %v9799 = vpop.f32.mrb[0].mxu0
        %v9800 = vpop.f32.mrb[0].mxu0
        %v9801 = vadd.f32 0.0, %v9800
        %v9802 = vpop.f32.mrb[0].mxu0
        %9803 = vmatprep.mubr.bf16.mxu0 0
        %9804 = vmatmul.mubr.bf16.gmra.mrb[0].mxu0 %v9165
        %v9805 = vpop.f32.mrb[0].mxu0
        %v9806 = vadd.f32 0.0, %v9805
        %v9807 = vpop.f32.mrb[0].mxu0
        %v9808 = vpop.f32.mrb[0].mxu0
        %v9809 = vadd.f32 0.0, %v9808
        %v9810 = vpop.f32.mrb[0].mxu0
        %9811 = vmatprep.mubr.bf16.mxu0 0
        %9812 = vmatmul.mubr.bf16.gmra.mrb[0].mxu0 %v9168
        %v9813 = vpop.f32.mrb[0].mxu0
        %v9814 = vadd.f32 0.0, %v9813
        %v9815 = vpop.f32.mrb[0].mxu0
        %v9816 = vpop.f32.mrb[0].mxu0
        %v9817 = vadd.f32 0.0, %v9816
        %v9818 = vpop.f32.mrb[0].mxu0
        %9819 = vmatprep.mubr.bf16.mxu0 0
        %9820 = vmatmul.mubr.bf16.gmra.mrb[0].mxu0 %v9171
        %v9821 = vpop.f32.mrb[0].mxu0
        %v9822 = vadd.f32 0.0, %v9821
        %v9823 = vpop.f32.mrb[0].mxu0
        %v9824 = vpop.f32.mrb[0].mxu0
        %v9825 = vadd.f32 0.0, %v9824
        %v9826 = vpop.f32.mrb[0].mxu0
        %9827 = vmatprep.mubr.bf16.mxu0 0
        %9828 = vmatmul.mubr.bf16.gmra.mrb[0].mxu0 %v9174
        %v9829 = vpop.f32.mrb[0].mxu0
        %v9830 = vadd.f32 0.0, %v9829
        %v9831 = vpop.f32.mrb[0].mxu0
        %v9832 = vpop.f32.mrb[0].mxu0
        %v9833 = vadd.f32 0.0, %v9832
        %v9834 = vpop.f32.mrb[0].mxu0
        %9835 = vmatprep.mubr.bf16.mxu0 0
        %9836 = vmatmul.mubr.bf16.gmra.mrb[0].mxu0 %v9177
        %v9837 = vpop.f32.mrb[0].mxu0
        %v9838 = vadd.f32 0.0, %v9837
        %v9839 = vpop.f32.mrb[0].mxu0
        %v9840 = vpop.f32.mrb[0].mxu0
        %v9841 = vadd.f32 0.0, %v9840
        %v9842 = vpop.f32.mrb[0].mxu0
        %9843 = vmatprep.mubr.bf16.mxu0 0
        %9844 = vmatmul.mubr.bf16.gmra.mrb[0].mxu0 %v9437
        %v9845 = vpop.f32.mrb[0].mxu0
        %v9846 = vadd.f32 0.0, %v9845
        %v9847 = vpop.f32.mrb[0].mxu0
        %v9848 = vpop.f32.mrb[0].mxu0
        %v9849 = vadd.f32 0.0, %v9848
        %v9850 = vpop.f32.mrb[0].mxu0
        %9851 = vmatprep.mubr.bf16.mxu0 0
        %9852 = vmatmul.mubr.bf16.gmra.mrb[0].mxu0 %v9697
        %v9853 = vpop.f32.mrb[0].mxu0
        %v9854 = vadd.f32 0.0, %v9853
        %v9855 = vpop.f32.mrb[0].mxu0
        %v9856 = vpop.f32.mrb[0].mxu0
        %v9857 = vadd.f32 0.0, %v9856
        %v9858 = vpop.f32.mrb[0].mxu0
        %9859 = vdwg.mxu0
        %v9860 = vadd.f32 %v9600, %v9734
        %v9861 = vadd.f32 %v9601, %v9737
        %v9862 = vadd.f32 %v9602, %v9742
        %v9863 = vadd.f32 %v9603, %v9745
        %v9864 = vadd.f32 %v9604, %v9750
        %v9865 = vadd.f32 %v9605, %v9753
        %v9866 = vadd.f32 %v9606, %v9758
        %v9867 = vadd.f32 %v9607, %v9761
        %v9868 = vadd.f32 %v9608, %v9766
        %v9869 = vadd.f32 %v9609, %v9769
        %v9870 = vadd.f32 %v9610, %v9774
        %v9871 = vadd.f32 %v9611, %v9777
        %v9872 = vadd.f32 %v9612, %v9782
        %v9873 = vadd.f32 %v9613, %v9785
        %v9874 = vadd.f32 %v9614, %v9790
        %v9875 = vadd.f32 %v9615, %v9793
        %v9876 = vadd.f32 %v9616, %v9798
        %v9877 = vadd.f32 %v9617, %v9801
        %v9878 = vadd.f32 %v9618, %v9806
        %v9879 = vadd.f32 %v9619, %v9809
        %v9880 = vadd.f32 %v9620, %v9814
        %v9881 = vadd.f32 %v9621, %v9817
        %v9882 = vadd.f32 %v9622, %v9822
        %v9883 = vadd.f32 %v9623, %v9825
        %v9884 = vadd.f32 %v9624, %v9830
        %v9885 = vadd.f32 %v9625, %v9833
        %v9886 = vadd.f32 %v9626, %v9838
        %v9887 = vadd.f32 %v9627, %v9841
        %v9888 = vadd.f32 %v9628, %v9846
        %v9889 = vadd.f32 %v9629, %v9849
        %v9890 = vadd.f32 %v9630, %v9854
        %v9891 = vadd.f32 %v9631, %v9857
        %s9892 = smul.u32 0, 16
        %s9893 = scalar_lea.vmem %s379, %s9892 [#allocation4]
        %9894 = vst [vmem:[%s9893] sm:$0xff] %v9860
        %9895 = vst [vmem:[%s9893 + $0x8] sm:$0xff] %v9861
        %9896 = vst [vmem:[%s9893 + $0x10] sm:$0xff] %v9862
        %9897 = vst [vmem:[%s9893 + $0x18] sm:$0xff] %v9863
        %9898 = vst [vmem:[%s9893 + $0x20] sm:$0xff] %v9864
        %9899 = vst [vmem:[%s9893 + $0x28] sm:$0xff] %v9865
        %9900 = vst [vmem:[%s9893 + $0x30] sm:$0xff] %v9866
        %9901 = vst [vmem:[%s9893 + $0x38] sm:$0xff] %v9867
        %9902 = vst [vmem:[%s9893 + $0x40] sm:$0xff] %v9868
        %9903 = vst [vmem:[%s9893 + $0x48] sm:$0xff] %v9869
        %9904 = vst [vmem:[%s9893 + $0x50] sm:$0xff] %v9870
        %9905 = vst [vmem:[%s9893 + $0x58] sm:$0xff] %v9871
        %9906 = vst [vmem:[%s9893 + $0x60] sm:$0xff] %v9872
        %9907 = vst [vmem:[%s9893 + $0x68] sm:$0xff] %v9873
        %9908 = vst [vmem:[%s9893 + $0x70] sm:$0xff] %v9874
        %9909 = vst [vmem:[%s9893 + $0x78] sm:$0xff] %v9875
        %9910 = vst [vmem:[%s9893 + $0x80] sm:$0xff] %v9876
        %9911 = vst [vmem:[%s9893 + $0x88] sm:$0xff] %v9877
        %9912 = vst [vmem:[%s9893 + $0x90] sm:$0xff] %v9878
        %9913 = vst [vmem:[%s9893 + $0x98] sm:$0xff] %v9879
        %9914 = vst [vmem:[%s9893 + $0xa0] sm:$0xff] %v9880
        %9915 = vst [vmem:[%s9893 + $0xa8] sm:$0xff] %v9881
        %9916 = vst [vmem:[%s9893 + $0xb0] sm:$0xff] %v9882
        %9917 = vst [vmem:[%s9893 + $0xb8] sm:$0xff] %v9883
        %9918 = vst [vmem:[%s9893 + $0xc0] sm:$0xff] %v9884
        %9919 = vst [vmem:[%s9893 + $0xc8] sm:$0xff] %v9885
        %9920 = vst [vmem:[%s9893 + $0xd0] sm:$0xff] %v9886
        %9921 = vst [vmem:[%s9893 + $0xd8] sm:$0xff] %v9887
        %9922 = vst [vmem:[%s9893 + $0xe0] sm:$0xff] %v9888
        %9923 = vst [vmem:[%s9893 + $0xe8] sm:$0xff] %v9889
        %9924 = vst [vmem:[%s9893 + $0xf0] sm:$0xff] %v9890
        %9925 = vst [vmem:[%s9893 + $0xf8] sm:$0xff] %v9891
        %s9926 = sand.u32 %s269, 1
        %s9927 = scalar_lea.sflag [#allocation5], %s9926
        %s9928 = sand.u32 %s269, 1
        %s9929 = smul.addr %s9928, 256
        %s9930 = scalar_lea.vmem [#allocation4], %s9929
        // Predicated region
        $region65: #{tpu_custom_call.1} parent=63 // pred_check
          %p9931 = pneg %p279
        $region66: #{tpu_custom_call.1} parent=63 // pred_check_branch
          %9933 = sbr.rel (%p9931) target = $region68
        $region67: #{tpu_custom_call.1} parent=63 // pred_region
          %s9935 = ssub.s32 4096, 4096
          %9936 = vsyncadd %s9927, %s9935
          %s9937 = smul.addr %s25, 32
          %s9938 = smul.addr %s9937, 128
          %s9939 = scalar_lea.hbm %s11, %s9938
          %s9940 = sshll.u32 %s9930, 4
          %s9941 = int_to_ptr.vmem [resolvable:$true] %s9940
          %9946 = dma.vmem_to_hbm [thread:$0]  %s9941, 4096, %s9939, %s9927, 128, 128, 8
        $region68: #{tpu_custom_call.1} parent=63 // pred_fallthru
          _
      $region64: #{tpu_custom_call.1} parent=5 // pred_fallthru
        _
      %p9947 = scmp.le.s32.totalorder 2, %s20
      // Predicated region
      $region69: #{tpu_custom_call.1} parent=5 // pred_check
        %p9948 = pneg %p9947
      $region70: #{tpu_custom_call.1} parent=5 // pred_check_branch
        %9950 = sbr.rel (%p9948) target = $region72
      $region71: #{tpu_custom_call.1} parent=5 // pred_region
        %s9951 = ssub.s32 %s20, 2
        // Predicated region
        $region73: #{tpu_custom_call.1} parent=71 // pred_check
          %p9952 = pneg %p285
        $region74: #{tpu_custom_call.1} parent=71 // pred_check_branch
          %9954 = sbr.rel (%p9952) target = $region76
        $region75: #{tpu_custom_call.1} parent=71 // pred_region
          %s9955 = sand.u32 %s270, 1
          %s9956 = scalar_lea.sflag [#allocation5], %s9955
          %s9957 = sand.u32 %s270, 1
          %s9958 = smul.addr %s9957, 256
          %s9959 = scalar_lea.vmem [#allocation4], %s9958
          %9960 = dma.done %s9956, 4096
        $region76: #{tpu_custom_call.1} parent=71 // pred_fallthru
          _
      $region72: #{tpu_custom_call.1} parent=5 // pred_fallthru
        _
    $region6: #{tpu_custom_call.1} parent=1 // loop_footer
      %s24 = sadd.s32 1, %s20
    $region7: #{tpu_custom_call.1} parent=1 // loop_footer_branch
      %19 = sbr.rel target = $region3
    $region8: #{tpu_custom_call.1} parent=1 // loop_exit
      _
    %9961 = vsyncpa [#allocation5], 1
    %s9962 = scalar_lea.sflag [#allocation5], 1
    %9963 = vsyncpa %s9962, 1

</llo_original>
